<compile_context>
chip_gen: v5e
topology: v5e:2x2
jax: 0.10.0
libtpu: 0.0.40
codegen_flags: <defaults>
</compile_context>

<pallas_src>
from functools import partial

import numpy as np
import jax
import jax.numpy as jnp
from jax.experimental import pallas as pl
from jax.experimental.pallas import tpu as pltpu

MAX_ROW_TILE = 512        # largest row tile on the edge / triplet axes
ROW_PAD = 256             # host pads edge/triplet rows to a multiple of this
F_PAD = 128               # padded lane width for rbf / sbf feature slabs
OUT_PAD = 128             # padded lane width for the output-channel dim
VMEM_LIMIT = 32 * 1024 * 1024


# ----------------------------------------------------------------------------
# Pallas kernels (dense compute; gather/scatter is index-based outside)
# ----------------------------------------------------------------------------
def _swish(v):
    return v * (1.0 / (1.0 + jnp.exp(-v)))


def emb_kernel(xi_ref, xj_ref, rbf_ref, wrbf_ref, brbf_ref, wcat_ref, blin_ref,
               wrbf_out_ref, wrbf_int_ref, wkj_ref, bkj_ref,
               x_ref, g_ref, xkj_ref):
    bf16, f32 = jnp.bfloat16, jnp.float32
    rbf = rbf_ref[...].astype(bf16)
    rbf_h = _swish(jnp.dot(rbf, wrbf_ref[...], preferred_element_type=f32)
                   + brbf_ref[...])
    # cat([x_i, x_j, rbf_h]) @ W_lin as ONE K=384 matmul (fills the 256-deep MXU)
    cat = jnp.concatenate(
        [xi_ref[...].astype(bf16), xj_ref[...].astype(bf16), rbf_h.astype(bf16)],
        axis=1)
    x = _swish(jnp.dot(cat, wcat_ref[...], preferred_element_type=f32)
               + blin_ref[...])
    x_ref[...] = x.astype(x_ref.dtype)
    # fused edge term of output_block[0]:  lin_rbf(rbf) * x
    g_ref[...] = (jnp.dot(rbf, wrbf_out_ref[...], preferred_element_type=f32)
                  * x).astype(g_ref.dtype)
    # fused interaction-block-0 edge message:  swish(lin_kj(x)) * lin_rbf_int(rbf)
    rbf_hi = jnp.dot(rbf, wrbf_int_ref[...], preferred_element_type=f32)
    x_kj = _swish(jnp.dot(x.astype(bf16), wkj_ref[...],
                          preferred_element_type=f32) + bkj_ref[...]) * rbf_hi
    xkj_ref[...] = x_kj.astype(xkj_ref.dtype)


def trip_kernel(xk_ref, sbf_ref, wsbf_ref, wbil_ref, o_ref):
    bf16, f32 = jnp.bfloat16, jnp.float32
    xk = xk_ref[...].astype(bf16)                               # (tile, H)
    sbf_h = jnp.dot(sbf_ref[...].astype(bf16), wsbf_ref[...],
                    preferred_element_type=f32)                  # (tile, B)
    # einsum('wj,wl,ijl->wi'): per-l (tile,H)@(H,H) matmul, scale, accumulate.
    # Each 128-lane slice is consumed before the next is produced (no (tile,B*H)
    # f32 live value -> no vst-slot pressure on v5e).
    nb = wbil_ref.shape[0]
    acc = sbf_h[:, 0:1] * jnp.dot(xk, wbil_ref[0], preferred_element_type=f32)
    for b in range(1, nb):
        acc = acc + sbf_h[:, b:b + 1] * jnp.dot(xk, wbil_ref[b],
                                                preferred_element_type=f32)
    o_ref[...] = acc.astype(o_ref.dtype)


def _combine_core(x_ref, xs_ref, rbf_ref, wji_ref, bji_ref, wlin_ref, blin_ref,
                  wrbf_out_ref):
    bf16, f32 = jnp.bfloat16, jnp.float32
    x_ji = _swish(jnp.dot(x_ref[...].astype(bf16), wji_ref[...],
                          preferred_element_type=f32) + bji_ref[...])
    h = x_ji + xs_ref[...].astype(f32)
    x_new = _swish(jnp.dot(h.astype(bf16), wlin_ref[...],
                           preferred_element_type=f32) + blin_ref[...])
    # fused edge term of the matching output block: lin_rbf(rbf) * x_new
    g = jnp.dot(rbf_ref[...].astype(bf16), wrbf_out_ref[...],
                preferred_element_type=f32) * x_new
    return x_new, g


def combine_last_kernel(x_ref, xs_ref, rbf_ref, wji_ref, bji_ref, wlin_ref,
                        blin_ref, wrbf_out_ref, xnew_ref, g_ref):
    x_new, g = _combine_core(x_ref, xs_ref, rbf_ref, wji_ref, bji_ref,
                             wlin_ref, blin_ref, wrbf_out_ref)
    xnew_ref[...] = x_new.astype(xnew_ref.dtype)
    g_ref[...] = g.astype(g_ref.dtype)


def combine_next_kernel(x_ref, xs_ref, rbf_ref, wji_ref, bji_ref, wlin_ref,
                        blin_ref, wrbf_out_ref, wrbf_int_ref, wkj_ref, bkj_ref,
                        xnew_ref, g_ref, xkj_ref):
    bf16, f32 = jnp.bfloat16, jnp.float32
    x_new, g = _combine_core(x_ref, xs_ref, rbf_ref, wji_ref, bji_ref,
                             wlin_ref, blin_ref, wrbf_out_ref)
    xnew_ref[...] = x_new.astype(xnew_ref.dtype)
    g_ref[...] = g.astype(g_ref.dtype)
    # fused edge message for the NEXT interaction block (x_new is resident)
    rbf_hi = jnp.dot(rbf_ref[...].astype(bf16), wrbf_int_ref[...],
                     preferred_element_type=f32)
    x_kj = _swish(jnp.dot(x_new.astype(bf16), wkj_ref[...],
                          preferred_element_type=f32) + bkj_ref[...]) * rbf_hi
    xkj_ref[...] = x_kj.astype(xkj_ref.dtype)


def node_mlp_kernel(xn_ref, lw_ref, lb_ref, wout_ref, p_ref):
    bf16, f32 = jnp.bfloat16, jnp.float32
    nb1, nl = lw_ref.shape[0], lw_ref.shape[1]
    acc = jnp.zeros(p_ref.shape, f32)
    for blk in range(nb1):                        # all output blocks, one launch
        x = xn_ref[blk].astype(f32)
        for l in range(nl):
            x = _swish(jnp.dot(x.astype(bf16), lw_ref[blk, l],
                               preferred_element_type=f32) + lb_ref[blk, l])
        acc = acc + jnp.dot(x.astype(bf16), wout_ref[blk],
                            preferred_element_type=f32)
    p_ref[...] = acc


# ----------------------------------------------------------------------------
# pallas_call plumbing
# ----------------------------------------------------------------------------
def _pick_tile(rows):
    # rows is a multiple of 128; keep >= 2 grid steps where possible (v7x 2 TCs)
    for t in (MAX_ROW_TILE, 256, 128):
        if rows % t == 0 and rows // t >= 2:
            return t
    return min(rows, 128)


def _full_spec(shape):
    nd = len(shape)
    return pl.BlockSpec(shape, lambda i, _nd=nd: (0,) * _nd)


def _row_spec(tile, feat):
    return pl.BlockSpec((tile, feat), lambda i: (i, 0))


def _cparams(parallel=True):
    sem = ("parallel",) if parallel else ("arbitrary",)
    return pltpu.CompilerParams(dimension_semantics=sem,
                                vmem_limit_bytes=VMEM_LIMIT)


def _tiled_call(kernel, row_args, full_args, out_feats, out_dtypes):
    rows = row_args[0].shape[0]
    tile = _pick_tile(rows)
    out_shape = tuple(jax.ShapeDtypeStruct((rows, f), dt)
                      for f, dt in zip(out_feats, out_dtypes))
    out_specs = tuple(_row_spec(tile, f) for f in out_feats)
    if len(out_feats) == 1:
        out_shape, out_specs = out_shape[0], out_specs[0]
    return pl.pallas_call(
        kernel,
        out_shape=out_shape,
        grid=(rows // tile,),
        in_specs=[_row_spec(tile, a.shape[1]) for a in row_args]
                 + [_full_spec(a.shape) for a in full_args],
        out_specs=out_specs,
        compiler_params=_cparams(True),
    )(*row_args, *full_args)


def emb_call(xi, xj, rbf, pe, ip0, wrbf_out0):
    h = xi.shape[1]
    bf = jnp.bfloat16
    return _tiled_call(
        emb_kernel, (xi, xj, rbf),
        (pe["wrbf"], pe["brbf"], pe["wcat"], pe["blin"],
         wrbf_out0, ip0["wrbf"], ip0["wkj"], ip0["bkj"]),
        (h, h, h), (bf, bf, bf))


def trip_call(xk, sbf, ip):
    h = xk.shape[1]
    return _tiled_call(trip_kernel, (xk, sbf), (ip["wsbf"], ip["wbil"]),
                       (h,), (jnp.bfloat16,))


def combine_last_call(x, x_scat, rbf, ip, wrbf_out):
    h = x.shape[1]
    bf = jnp.bfloat16
    return _tiled_call(combine_last_kernel, (x, x_scat, rbf),
                       (ip["wji"], ip["bji"], ip["wlin"], ip["blin"], wrbf_out),
                       (h, h), (bf, bf))


def combine_next_call(x, x_scat, rbf, ip, wrbf_out, ip_next):
    h = x.shape[1]
    bf = jnp.bfloat16
    return _tiled_call(combine_next_kernel, (x, x_scat, rbf),
                       (ip["wji"], ip["bji"], ip["wlin"], ip["blin"], wrbf_out,
                        ip_next["wrbf"], ip_next["wkj"], ip_next["bkj"]),
                       (h, h, h), (bf, bf, bf))


def node_call(xn_all, om):
    n = xn_all.shape[1]
    args = (xn_all, om["lins_w"], om["lins_b"], om["wout"])
    return pl.pallas_call(
        node_mlp_kernel,
        out_shape=jax.ShapeDtypeStruct((n, OUT_PAD), jnp.float32),
        grid=(1,),
        in_specs=[_full_spec(a.shape) for a in args],
        out_specs=_full_spec((n, OUT_PAD)),
        compiler_params=_cparams(False),
    )(*args)


# ----------------------------------------------------------------------------
# Host-side glue: graph construction, triplets, Bessel / spherical basis
# ----------------------------------------------------------------------------
def build_graph(pos, cutoff):
    n = pos.shape[0]
    diff = pos[:, None, :] - pos[None, :, :]
    d = np.sqrt((diff ** 2).sum(-1))
    adj = (d < cutoff) & (~np.eye(n, dtype=bool))
    row, col = np.nonzero(adj)  # edge e: j = row[e] -> i = col[e]
    return row.astype(np.int64), col.astype(np.int64)


def build_triplets(row, col):
    # mirrors MPN.triplets (SparseTensor bookkeeping) in plain numpy
    e_num = row.shape[0]
    li, lj, lk, lkj, lji = [], [], [], [], []
    for e in range(e_num):
        r, c = row[e], col[e]
        incoming = np.nonzero(col == r)[0]       # edges k -> j(=r)
        ks = row[incoming]
        order = np.argsort(ks, kind="stable")    # SparseTensor sorts cols in-row
        for o in order:
            e2 = incoming[o]
            k = row[e2]
            if k != c:                           # mask idx_i != idx_k
                li.append(c); lj.append(r); lk.append(k)
                lkj.append(e2); lji.append(e)
    return (np.asarray(li), np.asarray(lj), np.asarray(lk),
            np.asarray(lkj), np.asarray(lji))


def _envelope(x, exponent):
    p = exponent + 1
    a = -(p + 1) * (p + 2) / 2.0
    b = p * (p + 2.0)
    c = -p * (p + 1) / 2.0
    return 1.0 / x + a * x ** (p - 1) + b * x ** p + c * x ** (p + 1)


def _spherical_jn(l, x):
    x = np.asarray(x, dtype=np.float64)
    sx, cx = np.sin(x), np.cos(x)
    if l == 0:
        return sx / x
    if l == 1:
        return sx / x ** 2 - cx / x
    if l == 2:
        return (3.0 / x ** 3 - 1.0 / x) * sx - 3.0 / x ** 2 * cx
    if l == 3:
        return (15.0 / x ** 4 - 6.0 / x ** 2) * sx - (15.0 / x ** 3 - 1.0 / x) * cx
    raise NotImplementedError("num_spherical > 3 not supported in this script")


def _jn_zeros(n, k):
    zeros = np.zeros((n, k))
    zeros[0] = np.arange(1, k + 1) * np.pi
    points = np.arange(1, k + n) * np.pi
    for l in range(1, n):
        new_pts = np.zeros(len(points) - 1)
        for j in range(len(points) - 1):
            a, b = points[j], points[j + 1]
            fa = _spherical_jn(l, a)
            for _ in range(100):               # bisection (roots interlace)
                m = 0.5 * (a + b)
                fm = _spherical_jn(l, m)
                if fa * fm <= 0:
                    b = m
                else:
                    a, fa = m, fm
            new_pts[j] = 0.5 * (a + b)
        points = new_pts
        zeros[l] = points[:k]
    return zeros


def bessel_rbf(dist, num_radial, cutoff, env_exp):
    x = dist[:, None] / cutoff
    freq = np.arange(1, num_radial + 1) * np.pi
    return _envelope(x, env_exp) * np.sin(freq * x)


def spherical_sbf(dist, angle, idx_kj, num_spherical, num_radial, cutoff, env_exp):
    n, k = num_spherical, num_radial
    assert n <= 3
    zeros = _jn_zeros(n, k)
    norm = np.zeros((n, k))
    for l in range(n):
        for i in range(k):
            norm[l, i] = 1.0 / np.sqrt(0.5 * _spherical_jn(l + 1, zeros[l, i]) ** 2)
    x = dist / cutoff
    rbf = np.zeros((dist.shape[0], n * k))
    for l in range(n):
        for i in range(k):
            rbf[:, l * k + i] = norm[l, i] * _spherical_jn(l, zeros[l, i] * x)
    rbf = _envelope(x, env_exp)[:, None] * rbf
    ct = np.cos(angle)
    cbf_all = [np.full_like(angle, 0.28209479177387814),
               0.4886025119029199 * ct,
               0.31539156525252005 * (3.0 * ct ** 2 - 1.0)]
    cbf = np.stack(cbf_all[:n], axis=1)
    out = (rbf[idx_kj].reshape(-1, n, k) * cbf[:, :, None]).reshape(-1, n * k)
    return out


def _round_up(x, m):
    return ((x + m - 1) // m) * m


def _pad2d(a, rows, cols):
    out = np.zeros((rows, cols), np.float32)
    out[:a.shape[0], :a.shape[1]] = a
    return out


# ----------------------------------------------------------------------------
# Parameters (deterministic synthetic init; bf16 weights, f32 biases)
# ----------------------------------------------------------------------------
def init_params(key, *, hidden, rbf_pad, sbf_pad, num_bilinear, out_pad,
                num_layers, num_blocks):
    keys = iter(jax.random.split(key, 256))

    def w(shape, scale=None, dtype=jnp.bfloat16):
        fan_in = shape[-2] if len(shape) >= 2 else shape[0]
        s = (1.0 / np.sqrt(fan_in)) if scale is None else scale
        return (jax.random.normal(next(keys), shape) * s).astype(dtype)

    h, b, nb1 = hidden, num_bilinear, num_blocks + 1
    fb = lambda: jnp.zeros((1, h), jnp.float32)
    params = {
        "emb_table": w((95, h), 1.0),
        "emb": dict(wrbf=w((rbf_pad, h)), brbf=fb(),
                    wcat=w((3 * h, h)), blin=fb()),        # stacked [W1;W2;W3]
        "int": [],
        "out_rbf": [w((rbf_pad, h)) for _ in range(nb1)],
        "out_mlp": dict(
            lins_w=w((nb1, num_layers, h, h)),
            lins_b=jnp.zeros((nb1, num_layers, 1, h), jnp.float32),
            # torch fills this with 0; random here so the demo output is nonzero.
            wout=w((nb1, h, out_pad))),
    }
    for _ in range(num_blocks):
        params["int"].append(dict(
            wrbf=w((rbf_pad, h)), wsbf=w((sbf_pad, b)),
            wkj=w((h, h)), bkj=fb(), wji=w((h, h)), bji=fb(),
            # per-l bilinear slices: wbil[l] == torch W[:, l, :].T  (H_j, H_i)
            wbil=w((b, h, h), 2.0 / h),
            wlin=w((h, h)), blin=fb()))
    return params


# ----------------------------------------------------------------------------
# Device-side forward (jitted): Pallas kernels + index-based gather/scatter
# ----------------------------------------------------------------------------
@partial(jax.jit, static_argnames=("n_nodes", "n_edges", "n_trip", "out_channels"))
def _forward_device(params, zi, zj, i_idx, rbf_p, sbf_p, idx_kj, idx_ji, *,
                    n_nodes, n_edges, n_trip, out_channels):
    f32, bf16 = jnp.float32, jnp.bfloat16
    e_pad = rbf_p.shape[0]
    num_blocks = len(params["int"])
    emb_tab = params["emb_table"]
    xi, xj = emb_tab[zi], emb_tab[zj]                       # (E_pad, H) bf16

    # Embedding block + output-block-0 edge term + interaction-0 edge message
    x, g, x_kj = emb_call(xi, xj, rbf_p, params["emb"],
                          params["int"][0], params["out_rbf"][0])
    xn_list = [jax.ops.segment_sum(g[:n_edges].astype(f32), i_idx,
                                   num_segments=n_nodes)]

    for blk in range(num_blocks):
        ip = params["int"][blk]
        wrbf_out = params["out_rbf"][blk + 1]
        xk_t = x_kj[idx_kj]                                 # gather -> (T_pad, H) bf16
        y = trip_call(xk_t, sbf_p, ip)                      # (T_pad, H) bf16
        # scatter over idx_ji straight into the padded edge slab (tail rows = 0)
        x_scat = jax.ops.segment_sum(y[:n_trip].astype(f32), idx_ji,
                                     num_segments=e_pad).astype(bf16)
        if blk + 1 < num_blocks:
            x, g, x_kj = combine_next_call(x, x_scat, rbf_p, ip, wrbf_out,
                                           params["int"][blk + 1])
        else:
            x, g = combine_last_call(x, x_scat, rbf_p, ip, wrbf_out)
        xn_list.append(jax.ops.segment_sum(g[:n_edges].astype(f32), i_idx,
                                           num_segments=n_nodes))

    # all (num_blocks+1) tiny node MLPs in one pallas_call
    xn_all = jnp.stack(xn_list)                             # (NB+1, N, H) f32
    p = node_call(xn_all, params["out_mlp"])                # (N, OUT_PAD) f32
    return p[:, :out_channels].sum(axis=0)                  # batch None -> P.sum(0)


# ----------------------------------------------------------------------------
# Full MPN forward (host glue + device call)
# ----------------------------------------------------------------------------
def mpn_forward(params, z_np, pos_np, *, cutoff=5.0, env_exp=5,
                num_spherical=3, num_radial=4, out_channels=16):
    assert len(params["int"]) >= 1
    row, col = build_graph(pos_np, cutoff)                  # j = row, i = col
    idx_i, idx_j, idx_k, idx_kj, idx_ji = build_triplets(row, col)
    n_nodes, n_edges, n_trip = pos_np.shape[0], row.shape[0], idx_kj.shape[0]
    assert n_edges > 0 and n_trip > 0
    e_pad = _round_up(n_edges, ROW_PAD)
    t_pad = _round_up(n_trip, ROW_PAD)

    dist = np.sqrt(((pos_np[col] - pos_np[row]) ** 2).sum(-1))
    pos_ci = pos_np[idx_i]
    v_ji = pos_np[idx_j] - pos_ci
    v_ki = pos_np[idx_k] - pos_ci
    a = (v_ji * v_ki).sum(-1)
    b = np.linalg.norm(np.cross(v_ji, v_ki), axis=-1)
    angle = np.arctan2(b, a)

    rbf = bessel_rbf(dist, num_radial, cutoff, env_exp)                    # (E, R)
    sbf = spherical_sbf(dist, angle, idx_kj, num_spherical, num_radial,
                        cutoff, env_exp)                                   # (T, S*R)
    # lane-dense, bf16 basis slabs (halves HBM traffic on the mem-bound kernels)
    rbf_p = jnp.asarray(_pad2d(rbf, e_pad, F_PAD), dtype=jnp.bfloat16)
    sbf_p = jnp.asarray(_pad2d(sbf, t_pad, F_PAD), dtype=jnp.bfloat16)

    z = np.asarray(z_np)
    col_pad = np.zeros(e_pad, np.int64); col_pad[:n_edges] = col
    row_pad = np.zeros(e_pad, np.int64); row_pad[:n_edges] = row
    kj_pad = np.zeros(t_pad, np.int64); kj_pad[:n_trip] = idx_kj

    zi = jnp.asarray(z[col_pad].astype(np.int32))
    zj = jnp.asarray(z[row_pad].astype(np.int32))
    i_idx = jnp.asarray(col.astype(np.int32))
    idx_kj_d = jnp.asarray(kj_pad.astype(np.int32))
    idx_ji_d = jnp.asarray(idx_ji.astype(np.int32))

    return _forward_device(params, zi, zj, i_idx, rbf_p, sbf_p,
                           idx_kj_d, idx_ji_d,
                           n_nodes=n_nodes, n_edges=n_edges, n_trip=n_trip,
                           out_channels=out_channels)


if __name__ == "__main__":
    N_NODES, HIDDEN, NUM_RADIAL, NUM_SPHERICAL = 8, 128, 4, 3
    NUM_BILINEAR, OUT_CHANNELS, NUM_LAYERS, NUM_BLOCKS = 8, 16, 2, 1
    CUTOFF, ENV_EXP = 5.0, 5

    key = jax.random.PRNGKey(0)
    k_z, k_pos, k_par = jax.random.split(key, 3)
    z = np.asarray(jax.random.randint(k_z, (N_NODES,), 1, 10))
    pos = np.asarray(jax.random.normal(k_pos, (N_NODES, 3), dtype=jnp.float32),
                     dtype=np.float64)

    params = init_params(k_par, hidden=HIDDEN, rbf_pad=F_PAD, sbf_pad=F_PAD,
                         num_bilinear=NUM_BILINEAR, out_pad=OUT_PAD,
                         num_layers=NUM_LAYERS, num_blocks=NUM_BLOCKS)

    out = mpn_forward(params, z, pos, cutoff=CUTOFF, env_exp=ENV_EXP,
                      num_spherical=NUM_SPHERICAL, num_radial=NUM_RADIAL,
                      out_channels=OUT_CHANNELS)
    out = jax.block_until_ready(out)
    assert out.shape == (OUT_CHANNELS,) and bool(jnp.all(jnp.isfinite(out)))
    print("KERNEL_OK")
</pallas_src>

<mosaic_0001>
module attributes {stable_mosaic.version = 11 : i64} {
  func.func @emb_kernel(%arg0: i32, %arg1: memref<128x128xbf16, #tpu.memory_space<vmem>>, %arg2: memref<128x128xbf16, #tpu.memory_space<vmem>>, %arg3: memref<128x128xbf16, #tpu.memory_space<vmem>>, %arg4: memref<128x128xbf16, #tpu.memory_space<vmem>>, %arg5: memref<1x128xf32, #tpu.memory_space<vmem>>, %arg6: memref<384x128xbf16, #tpu.memory_space<vmem>>, %arg7: memref<1x128xf32, #tpu.memory_space<vmem>>, %arg8: memref<128x128xbf16, #tpu.memory_space<vmem>>, %arg9: memref<128x128xbf16, #tpu.memory_space<vmem>>, %arg10: memref<128x128xbf16, #tpu.memory_space<vmem>>, %arg11: memref<1x128xf32, #tpu.memory_space<vmem>>, %arg12: memref<128x128xbf16, #tpu.memory_space<vmem>>, %arg13: memref<128x128xbf16, #tpu.memory_space<vmem>>, %arg14: memref<128x128xbf16, #tpu.memory_space<vmem>>) attributes {dimension_semantics = [#tpu.dimension_semantics<parallel>], iteration_bounds = array<i64: 2>, scalar_prefetch = 0 : i64, scratch_operands = 0 : i64, tpu.core_type = #tpu.core_type<tc>, window_params = [{transform_indices = @transform_0, window_bounds = array<i64: 128, 128>}, {transform_indices = @transform_1, window_bounds = array<i64: 128, 128>}, {transform_indices = @transform_2, window_bounds = array<i64: 128, 128>}, {pipeline_mode = #tpu.pipeline_mode<synchronous>, transform_indices = @transform_3, window_bounds = array<i64: 128, 128>}, {pipeline_mode = #tpu.pipeline_mode<synchronous>, transform_indices = @transform_4, window_bounds = array<i64: 1, 128>}, {pipeline_mode = #tpu.pipeline_mode<synchronous>, transform_indices = @transform_5, window_bounds = array<i64: 384, 128>}, {pipeline_mode = #tpu.pipeline_mode<synchronous>, transform_indices = @transform_6, window_bounds = array<i64: 1, 128>}, {pipeline_mode = #tpu.pipeline_mode<synchronous>, transform_indices = @transform_7, window_bounds = array<i64: 128, 128>}, {pipeline_mode = #tpu.pipeline_mode<synchronous>, transform_indices = @transform_8, window_bounds = array<i64: 128, 128>}, {pipeline_mode = #tpu.pipeline_mode<synchronous>, transform_indices = @transform_9, window_bounds = array<i64: 128, 128>}, {pipeline_mode = #tpu.pipeline_mode<synchronous>, transform_indices = @transform_10, window_bounds = array<i64: 1, 128>}, {transform_indices = @transform_11, window_bounds = array<i64: 128, 128>}, {transform_indices = @transform_12, window_bounds = array<i64: 128, 128>}, {transform_indices = @transform_13, window_bounds = array<i64: 128, 128>}]} {
    %c0 = arith.constant 0 : index
    %c0_0 = arith.constant 0 : index
    %0 = vector.load %arg3[%c0, %c0_0] : memref<128x128xbf16, #tpu.memory_space<vmem>>, vector<128x128xbf16>
    %c0_1 = arith.constant 0 : index
    %c0_2 = arith.constant 0 : index
    %1 = vector.load %arg4[%c0_1, %c0_2] : memref<128x128xbf16, #tpu.memory_space<vmem>>, vector<128x128xbf16>
    %cst = arith.constant dense<0.000000e+00> : vector<128x128xf32>
    %2 = tpu.matmul %0, %1, %cst {dimension_numbers = #tpu.dot_dimension_numbers<[1], [0], [0], [1], [0, 0, 1, 1], [], []>} : vector<128x128xbf16>, vector<128x128xbf16>, vector<128x128xf32> -> vector<128x128xf32>
    %c0_3 = arith.constant 0 : index
    %c0_4 = arith.constant 0 : index
    %3 = vector.load %arg5[%c0_3, %c0_4] : memref<1x128xf32, #tpu.memory_space<vmem>>, vector<1x128xf32>
    %4 = vector.broadcast %3 : vector<1x128xf32> to vector<128x128xf32>
    %5 = arith.addf %2, %4 : vector<128x128xf32>
    %cst_5 = arith.constant 0.000000e+00 : f32
    %6 = vector.broadcast %cst_5 : f32 to vector<128x128xf32>
    %7 = arith.subf %6, %5 : vector<128x128xf32>
    %8 = math.exp %7 : vector<128x128xf32>
    %cst_6 = arith.constant 1.000000e+00 : f32
    %9 = vector.broadcast %cst_6 : f32 to vector<128x128xf32>
    %10 = arith.addf %9, %8 : vector<128x128xf32>
    %cst_7 = arith.constant 1.000000e+00 : f32
    %11 = vector.broadcast %cst_7 : f32 to vector<128x128xf32>
    %12 = arith.divf %11, %10 : vector<128x128xf32>
    %13 = arith.mulf %5, %12 : vector<128x128xf32>
    %c0_8 = arith.constant 0 : index
    %c0_9 = arith.constant 0 : index
    %14 = vector.load %arg1[%c0_8, %c0_9] : memref<128x128xbf16, #tpu.memory_space<vmem>>, vector<128x128xbf16>
    %c0_10 = arith.constant 0 : index
    %c0_11 = arith.constant 0 : index
    %15 = vector.load %arg2[%c0_10, %c0_11] : memref<128x128xbf16, #tpu.memory_space<vmem>>, vector<128x128xbf16>
    %16 = arith.truncf %13 : vector<128x128xf32> to vector<128x128xbf16>
    %17 = tpu.concatenate %14, %15, %16 in 1 : vector<128x128xbf16>, vector<128x128xbf16>, vector<128x128xbf16> -> vector<128x384xbf16>
    %c0_12 = arith.constant 0 : index
    %c0_13 = arith.constant 0 : index
    %18 = vector.load %arg6[%c0_12, %c0_13] : memref<384x128xbf16, #tpu.memory_space<vmem>>, vector<384x128xbf16>
    %cst_14 = arith.constant dense<0.000000e+00> : vector<128x128xf32>
    %19 = tpu.matmul %17, %18, %cst_14 {dimension_numbers = #tpu.dot_dimension_numbers<[1], [0], [0], [1], [0, 0, 1, 1], [], []>} : vector<128x384xbf16>, vector<384x128xbf16>, vector<128x128xf32> -> vector<128x128xf32>
    %c0_15 = arith.constant 0 : index
    %c0_16 = arith.constant 0 : index
    %20 = vector.load %arg7[%c0_15, %c0_16] : memref<1x128xf32, #tpu.memory_space<vmem>>, vector<1x128xf32>
    %21 = vector.broadcast %20 : vector<1x128xf32> to vector<128x128xf32>
    %22 = arith.addf %19, %21 : vector<128x128xf32>
    %cst_17 = arith.constant 0.000000e+00 : f32
    %23 = vector.broadcast %cst_17 : f32 to vector<128x128xf32>
    %24 = arith.subf %23, %22 : vector<128x128xf32>
    %25 = math.exp %24 : vector<128x128xf32>
    %cst_18 = arith.constant 1.000000e+00 : f32
    %26 = vector.broadcast %cst_18 : f32 to vector<128x128xf32>
    %27 = arith.addf %26, %25 : vector<128x128xf32>
    %cst_19 = arith.constant 1.000000e+00 : f32
    %28 = vector.broadcast %cst_19 : f32 to vector<128x128xf32>
    %29 = arith.divf %28, %27 : vector<128x128xf32>
    %30 = arith.mulf %22, %29 : vector<128x128xf32>
    %31 = arith.truncf %30 : vector<128x128xf32> to vector<128x128xbf16>
    %c0_20 = arith.constant 0 : index
    %c0_21 = arith.constant 0 : index
    %32 = vector.load %arg12[%c0_20, %c0_21] : memref<128x128xbf16, #tpu.memory_space<vmem>>, vector<128x128xbf16>
    tpu.vector_store %arg12[%c0_20, %c0_21], %31 {strides = array<i32>} : memref<128x128xbf16, #tpu.memory_space<vmem>>, vector<128x128xbf16>,
    %c0_22 = arith.constant 0 : index
    %c0_23 = arith.constant 0 : index
    %33 = vector.load %arg8[%c0_22, %c0_23] : memref<128x128xbf16, #tpu.memory_space<vmem>>, vector<128x128xbf16>
    %cst_24 = arith.constant dense<0.000000e+00> : vector<128x128xf32>
    %34 = tpu.matmul %0, %33, %cst_24 {dimension_numbers = #tpu.dot_dimension_numbers<[1], [0], [0], [1], [0, 0, 1, 1], [], []>} : vector<128x128xbf16>, vector<128x128xbf16>, vector<128x128xf32> -> vector<128x128xf32>
    %35 = arith.mulf %34, %30 : vector<128x128xf32>
    %36 = arith.truncf %35 : vector<128x128xf32> to vector<128x128xbf16>
    %c0_25 = arith.constant 0 : index
    %c0_26 = arith.constant 0 : index
    %37 = vector.load %arg13[%c0_25, %c0_26] : memref<128x128xbf16, #tpu.memory_space<vmem>>, vector<128x128xbf16>
    tpu.vector_store %arg13[%c0_25, %c0_26], %36 {strides = array<i32>} : memref<128x128xbf16, #tpu.memory_space<vmem>>, vector<128x128xbf16>,
    %c0_27 = arith.constant 0 : index
    %c0_28 = arith.constant 0 : index
    %38 = vector.load %arg9[%c0_27, %c0_28] : memref<128x128xbf16, #tpu.memory_space<vmem>>, vector<128x128xbf16>
    %cst_29 = arith.constant dense<0.000000e+00> : vector<128x128xf32>
    %39 = tpu.matmul %0, %38, %cst_29 {dimension_numbers = #tpu.dot_dimension_numbers<[1], [0], [0], [1], [0, 0, 1, 1], [], []>} : vector<128x128xbf16>, vector<128x128xbf16>, vector<128x128xf32> -> vector<128x128xf32>
    %40 = arith.truncf %30 : vector<128x128xf32> to vector<128x128xbf16>
    %c0_30 = arith.constant 0 : index
    %c0_31 = arith.constant 0 : index
    %41 = vector.load %arg10[%c0_30, %c0_31] : memref<128x128xbf16, #tpu.memory_space<vmem>>, vector<128x128xbf16>
    %cst_32 = arith.constant dense<0.000000e+00> : vector<128x128xf32>
    %42 = tpu.matmul %40, %41, %cst_32 {dimension_numbers = #tpu.dot_dimension_numbers<[1], [0], [0], [1], [0, 0, 1, 1], [], []>} : vector<128x128xbf16>, vector<128x128xbf16>, vector<128x128xf32> -> vector<128x128xf32>
    %c0_33 = arith.constant 0 : index
    %c0_34 = arith.constant 0 : index
    %43 = vector.load %arg11[%c0_33, %c0_34] : memref<1x128xf32, #tpu.memory_space<vmem>>, vector<1x128xf32>
    %44 = vector.broadcast %43 : vector<1x128xf32> to vector<128x128xf32>
    %45 = arith.addf %42, %44 : vector<128x128xf32>
    %cst_35 = arith.constant 0.000000e+00 : f32
    %46 = vector.broadcast %cst_35 : f32 to vector<128x128xf32>
    %47 = arith.subf %46, %45 : vector<128x128xf32>
    %48 = math.exp %47 : vector<128x128xf32>
    %cst_36 = arith.constant 1.000000e+00 : f32
    %49 = vector.broadcast %cst_36 : f32 to vector<128x128xf32>
    %50 = arith.addf %49, %48 : vector<128x128xf32>
    %cst_37 = arith.constant 1.000000e+00 : f32
    %51 = vector.broadcast %cst_37 : f32 to vector<128x128xf32>
    %52 = arith.divf %51, %50 : vector<128x128xf32>
    %53 = arith.mulf %45, %52 : vector<128x128xf32>
    %54 = arith.mulf %53, %39 : vector<128x128xf32>
    %55 = arith.truncf %54 : vector<128x128xf32> to vector<128x128xbf16>
    %c0_38 = arith.constant 0 : index
    %c0_39 = arith.constant 0 : index
    %56 = vector.load %arg14[%c0_38, %c0_39] : memref<128x128xbf16, #tpu.memory_space<vmem>>, vector<128x128xbf16>
    tpu.vector_store %arg14[%c0_38, %c0_39], %55 {strides = array<i32>} : memref<128x128xbf16, #tpu.memory_space<vmem>>, vector<128x128xbf16>,
    return
  }
  func.func @transform_0(%arg0: i32) -> (i32, i32) {
    %c0_i32 = arith.constant 0 : i32
    %c0_i32_0 = arith.constant 0 : i32
    return %arg0, %c0_i32 : i32, i32
  }
  func.func @transform_1(%arg0: i32) -> (i32, i32) {
    %c0_i32 = arith.constant 0 : i32
    %c0_i32_0 = arith.constant 0 : i32
    return %arg0, %c0_i32 : i32, i32
  }
  func.func @transform_2(%arg0: i32) -> (i32, i32) {
    %c0_i32 = arith.constant 0 : i32
    %c0_i32_0 = arith.constant 0 : i32
    return %arg0, %c0_i32 : i32, i32
  }
  func.func @transform_3(%arg0: i32) -> (i32, i32) {
    %c0_i32 = arith.constant 0 : i32
    %c0_i32_0 = arith.constant 0 : i32
    %c0_i32_1 = arith.constant 0 : i32
    return %c0_i32, %c0_i32_0 : i32, i32
  }
  func.func @transform_4(%arg0: i32) -> (i32, i32) {
    %c0_i32 = arith.constant 0 : i32
    %c0_i32_0 = arith.constant 0 : i32
    %c0_i32_1 = arith.constant 0 : i32
    return %c0_i32, %c0_i32_0 : i32, i32
  }
  func.func @transform_5(%arg0: i32) -> (i32, i32) {
    %c0_i32 = arith.constant 0 : i32
    %c0_i32_0 = arith.constant 0 : i32
    %c0_i32_1 = arith.constant 0 : i32
    return %c0_i32, %c0_i32_0 : i32, i32
  }
  func.func @transform_6(%arg0: i32) -> (i32, i32) {
    %c0_i32 = arith.constant 0 : i32
    %c0_i32_0 = arith.constant 0 : i32
    %c0_i32_1 = arith.constant 0 : i32
    return %c0_i32, %c0_i32_0 : i32, i32
  }
  func.func @transform_7(%arg0: i32) -> (i32, i32) {
    %c0_i32 = arith.constant 0 : i32
    %c0_i32_0 = arith.constant 0 : i32
    %c0_i32_1 = arith.constant 0 : i32
    return %c0_i32, %c0_i32_0 : i32, i32
  }
  func.func @transform_8(%arg0: i32) -> (i32, i32) {
    %c0_i32 = arith.constant 0 : i32
    %c0_i32_0 = arith.constant 0 : i32
    %c0_i32_1 = arith.constant 0 : i32
    return %c0_i32, %c0_i32_0 : i32, i32
  }
  func.func @transform_9(%arg0: i32) -> (i32, i32) {
    %c0_i32 = arith.constant 0 : i32
    %c0_i32_0 = arith.constant 0 : i32
    %c0_i32_1 = arith.constant 0 : i32
    return %c0_i32, %c0_i32_0 : i32, i32
  }
  func.func @transform_10(%arg0: i32) -> (i32, i32) {
    %c0_i32 = arith.constant 0 : i32
    %c0_i32_0 = arith.constant 0 : i32
    %c0_i32_1 = arith.constant 0 : i32
    return %c0_i32, %c0_i32_0 : i32, i32
  }
  func.func @transform_11(%arg0: i32) -> (i32, i32) {
    %c0_i32 = arith.constant 0 : i32
    %c0_i32_0 = arith.constant 0 : i32
    return %arg0, %c0_i32 : i32, i32
  }
  func.func @transform_12(%arg0: i32) -> (i32, i32) {
    %c0_i32 = arith.constant 0 : i32
    %c0_i32_0 = arith.constant 0 : i32
    return %arg0, %c0_i32 : i32, i32
  }
  func.func @transform_13(%arg0: i32) -> (i32, i32) {
    %c0_i32 = arith.constant 0 : i32
    %c0_i32_0 = arith.constant 0 : i32
    return %arg0, %c0_i32 : i32, i32
  }
}

module attributes {stable_mosaic.version = 11 : i64} {
  func.func @trip_kernel(%arg0: i32, %arg1: memref<256x128xbf16, #tpu.memory_space<vmem>>, %arg2: memref<256x128xbf16, #tpu.memory_space<vmem>>, %arg3: memref<128x8xbf16, #tpu.memory_space<vmem>>, %arg4: memref<8x128x128xbf16, #tpu.memory_space<vmem>>, %arg5: memref<256x128xbf16, #tpu.memory_space<vmem>>) attributes {dimension_semantics = [#tpu.dimension_semantics<parallel>], iteration_bounds = array<i64: 2>, scalar_prefetch = 0 : i64, scratch_operands = 0 : i64, tpu.core_type = #tpu.core_type<tc>, window_params = [{transform_indices = @transform_0, window_bounds = array<i64: 256, 128>}, {transform_indices = @transform_1, window_bounds = array<i64: 256, 128>}, {pipeline_mode = #tpu.pipeline_mode<synchronous>, transform_indices = @transform_2, window_bounds = array<i64: 128, 8>}, {pipeline_mode = #tpu.pipeline_mode<synchronous>, transform_indices = @transform_3, window_bounds = array<i64: 8, 128, 128>}, {transform_indices = @transform_4, window_bounds = array<i64: 256, 128>}]} {
    %c0 = arith.constant 0 : index
    %c0_0 = arith.constant 0 : index
    %0 = vector.load %arg1[%c0, %c0_0] : memref<256x128xbf16, #tpu.memory_space<vmem>>, vector<256x128xbf16>
    %c0_1 = arith.constant 0 : index
    %c0_2 = arith.constant 0 : index
    %1 = vector.load %arg2[%c0_1, %c0_2] : memref<256x128xbf16, #tpu.memory_space<vmem>>, vector<256x128xbf16>
    %c0_3 = arith.constant 0 : index
    %c0_4 = arith.constant 0 : index
    %2 = vector.load %arg3[%c0_3, %c0_4] : memref<128x8xbf16, #tpu.memory_space<vmem>>, vector<128x8xbf16>
    %cst = arith.constant dense<0.000000e+00> : vector<256x8xf32>
    %3 = tpu.matmul %1, %2, %cst {dimension_numbers = #tpu.dot_dimension_numbers<[1], [0], [0], [1], [0, 0, 1, 1], [], []>} : vector<256x128xbf16>, vector<128x8xbf16>, vector<256x8xf32> -> vector<256x8xf32>
    %4 = vector.extract_strided_slice %3 {offsets = [0, 0], sizes = [256, 1], strides = [1, 1]} : vector<256x8xf32> to vector<256x1xf32>
    %c0_5 = arith.constant 0 : index
    %c0_6 = arith.constant 0 : index
    %c0_7 = arith.constant 0 : index
    %5 = vector.load %arg4[%c0_5, %c0_6, %c0_7] : memref<8x128x128xbf16, #tpu.memory_space<vmem>>, vector<1x128x128xbf16>
    %6 = vector.shape_cast %5 : vector<1x128x128xbf16> to vector<128x128xbf16>
    %cst_8 = arith.constant dense<0.000000e+00> : vector<256x128xf32>
    %7 = tpu.matmul %0, %6, %cst_8 {dimension_numbers = #tpu.dot_dimension_numbers<[1], [0], [0], [1], [0, 0, 1, 1], [], []>} : vector<256x128xbf16>, vector<128x128xbf16>, vector<256x128xf32> -> vector<256x128xf32>
    %8 = vector.broadcast %4 : vector<256x1xf32> to vector<256x128xf32>
    %9 = arith.mulf %8, %7 : vector<256x128xf32>
    %10 = vector.extract_strided_slice %3 {offsets = [0, 1], sizes = [256, 1], strides = [1, 1]} : vector<256x8xf32> to vector<256x1xf32>
    %c1 = arith.constant 1 : index
    %c0_9 = arith.constant 0 : index
    %c0_10 = arith.constant 0 : index
    %11 = vector.load %arg4[%c1, %c0_9, %c0_10] : memref<8x128x128xbf16, #tpu.memory_space<vmem>>, vector<1x128x128xbf16>
    %12 = vector.shape_cast %11 : vector<1x128x128xbf16> to vector<128x128xbf16>
    %cst_11 = arith.constant dense<0.000000e+00> : vector<256x128xf32>
    %13 = tpu.matmul %0, %12, %cst_11 {dimension_numbers = #tpu.dot_dimension_numbers<[1], [0], [0], [1], [0, 0, 1, 1], [], []>} : vector<256x128xbf16>, vector<128x128xbf16>, vector<256x128xf32> -> vector<256x128xf32>
    %14 = vector.broadcast %10 : vector<256x1xf32> to vector<256x128xf32>
    %15 = arith.mulf %14, %13 : vector<256x128xf32>
    %16 = arith.addf %9, %15 : vector<256x128xf32>
    %17 = vector.extract_strided_slice %3 {offsets = [0, 2], sizes = [256, 1], strides = [1, 1]} : vector<256x8xf32> to vector<256x1xf32>
    %c2 = arith.constant 2 : index
    %c0_12 = arith.constant 0 : index
    %c0_13 = arith.constant 0 : index
    %18 = vector.load %arg4[%c2, %c0_12, %c0_13] : memref<8x128x128xbf16, #tpu.memory_space<vmem>>, vector<1x128x128xbf16>
    %19 = vector.shape_cast %18 : vector<1x128x128xbf16> to vector<128x128xbf16>
    %cst_14 = arith.constant dense<0.000000e+00> : vector<256x128xf32>
    %20 = tpu.matmul %0, %19, %cst_14 {dimension_numbers = #tpu.dot_dimension_numbers<[1], [0], [0], [1], [0, 0, 1, 1], [], []>} : vector<256x128xbf16>, vector<128x128xbf16>, vector<256x128xf32> -> vector<256x128xf32>
    %21 = vector.broadcast %17 : vector<256x1xf32> to vector<256x128xf32>
    %22 = arith.mulf %21, %20 : vector<256x128xf32>
    %23 = arith.addf %16, %22 : vector<256x128xf32>
    %24 = vector.extract_strided_slice %3 {offsets = [0, 3], sizes = [256, 1], strides = [1, 1]} : vector<256x8xf32> to vector<256x1xf32>
    %c3 = arith.constant 3 : index
    %c0_15 = arith.constant 0 : index
    %c0_16 = arith.constant 0 : index
    %25 = vector.load %arg4[%c3, %c0_15, %c0_16] : memref<8x128x128xbf16, #tpu.memory_space<vmem>>, vector<1x128x128xbf16>
    %26 = vector.shape_cast %25 : vector<1x128x128xbf16> to vector<128x128xbf16>
    %cst_17 = arith.constant dense<0.000000e+00> : vector<256x128xf32>
    %27 = tpu.matmul %0, %26, %cst_17 {dimension_numbers = #tpu.dot_dimension_numbers<[1], [0], [0], [1], [0, 0, 1, 1], [], []>} : vector<256x128xbf16>, vector<128x128xbf16>, vector<256x128xf32> -> vector<256x128xf32>
    %28 = vector.broadcast %24 : vector<256x1xf32> to vector<256x128xf32>
    %29 = arith.mulf %28, %27 : vector<256x128xf32>
    %30 = arith.addf %23, %29 : vector<256x128xf32>
    %31 = vector.extract_strided_slice %3 {offsets = [0, 4], sizes = [256, 1], strides = [1, 1]} : vector<256x8xf32> to vector<256x1xf32>
    %c4 = arith.constant 4 : index
    %c0_18 = arith.constant 0 : index
    %c0_19 = arith.constant 0 : index
    %32 = vector.load %arg4[%c4, %c0_18, %c0_19] : memref<8x128x128xbf16, #tpu.memory_space<vmem>>, vector<1x128x128xbf16>
    %33 = vector.shape_cast %32 : vector<1x128x128xbf16> to vector<128x128xbf16>
    %cst_20 = arith.constant dense<0.000000e+00> : vector<256x128xf32>
    %34 = tpu.matmul %0, %33, %cst_20 {dimension_numbers = #tpu.dot_dimension_numbers<[1], [0], [0], [1], [0, 0, 1, 1], [], []>} : vector<256x128xbf16>, vector<128x128xbf16>, vector<256x128xf32> -> vector<256x128xf32>
    %35 = vector.broadcast %31 : vector<256x1xf32> to vector<256x128xf32>
    %36 = arith.mulf %35, %34 : vector<256x128xf32>
    %37 = arith.addf %30, %36 : vector<256x128xf32>
    %38 = vector.extract_strided_slice %3 {offsets = [0, 5], sizes = [256, 1], strides = [1, 1]} : vector<256x8xf32> to vector<256x1xf32>
    %c5 = arith.constant 5 : index
    %c0_21 = arith.constant 0 : index
    %c0_22 = arith.constant 0 : index
    %39 = vector.load %arg4[%c5, %c0_21, %c0_22] : memref<8x128x128xbf16, #tpu.memory_space<vmem>>, vector<1x128x128xbf16>
    %40 = vector.shape_cast %39 : vector<1x128x128xbf16> to vector<128x128xbf16>
    %cst_23 = arith.constant dense<0.000000e+00> : vector<256x128xf32>
    %41 = tpu.matmul %0, %40, %cst_23 {dimension_numbers = #tpu.dot_dimension_numbers<[1], [0], [0], [1], [0, 0, 1, 1], [], []>} : vector<256x128xbf16>, vector<128x128xbf16>, vector<256x128xf32> -> vector<256x128xf32>
    %42 = vector.broadcast %38 : vector<256x1xf32> to vector<256x128xf32>
    %43 = arith.mulf %42, %41 : vector<256x128xf32>
    %44 = arith.addf %37, %43 : vector<256x128xf32>
    %45 = vector.extract_strided_slice %3 {offsets = [0, 6], sizes = [256, 1], strides = [1, 1]} : vector<256x8xf32> to vector<256x1xf32>
    %c6 = arith.constant 6 : index
    %c0_24 = arith.constant 0 : index
    %c0_25 = arith.constant 0 : index
    %46 = vector.load %arg4[%c6, %c0_24, %c0_25] : memref<8x128x128xbf16, #tpu.memory_space<vmem>>, vector<1x128x128xbf16>
    %47 = vector.shape_cast %46 : vector<1x128x128xbf16> to vector<128x128xbf16>
    %cst_26 = arith.constant dense<0.000000e+00> : vector<256x128xf32>
    %48 = tpu.matmul %0, %47, %cst_26 {dimension_numbers = #tpu.dot_dimension_numbers<[1], [0], [0], [1], [0, 0, 1, 1], [], []>} : vector<256x128xbf16>, vector<128x128xbf16>, vector<256x128xf32> -> vector<256x128xf32>
    %49 = vector.broadcast %45 : vector<256x1xf32> to vector<256x128xf32>
    %50 = arith.mulf %49, %48 : vector<256x128xf32>
    %51 = arith.addf %44, %50 : vector<256x128xf32>
    %52 = vector.extract_strided_slice %3 {offsets = [0, 7], sizes = [256, 1], strides = [1, 1]} : vector<256x8xf32> to vector<256x1xf32>
    %c7 = arith.constant 7 : index
    %c0_27 = arith.constant 0 : index
    %c0_28 = arith.constant 0 : index
    %53 = vector.load %arg4[%c7, %c0_27, %c0_28] : memref<8x128x128xbf16, #tpu.memory_space<vmem>>, vector<1x128x128xbf16>
    %54 = vector.shape_cast %53 : vector<1x128x128xbf16> to vector<128x128xbf16>
    %cst_29 = arith.constant dense<0.000000e+00> : vector<256x128xf32>
    %55 = tpu.matmul %0, %54, %cst_29 {dimension_numbers = #tpu.dot_dimension_numbers<[1], [0], [0], [1], [0, 0, 1, 1], [], []>} : vector<256x128xbf16>, vector<128x128xbf16>, vector<256x128xf32> -> vector<256x128xf32>
    %56 = vector.broadcast %52 : vector<256x1xf32> to vector<256x128xf32>
    %57 = arith.mulf %56, %55 : vector<256x128xf32>
    %58 = arith.addf %51, %57 : vector<256x128xf32>
    %59 = arith.truncf %58 : vector<256x128xf32> to vector<256x128xbf16>
    %c0_30 = arith.constant 0 : index
    %c0_31 = arith.constant 0 : index
    %60 = vector.load %arg5[%c0_30, %c0_31] : memref<256x128xbf16, #tpu.memory_space<vmem>>, vector<256x128xbf16>
    tpu.vector_store %arg5[%c0_30, %c0_31], %59 {strides = array<i32>} : memref<256x128xbf16, #tpu.memory_space<vmem>>, vector<256x128xbf16>,
    return
  }
  func.func @transform_0(%arg0: i32) -> (i32, i32) {
    %c0_i32 = arith.constant 0 : i32
    %c0_i32_0 = arith.constant 0 : i32
    return %arg0, %c0_i32 : i32, i32
  }
  func.func @transform_1(%arg0: i32) -> (i32, i32) {
    %c0_i32 = arith.constant 0 : i32
    %c0_i32_0 = arith.constant 0 : i32
    return %arg0, %c0_i32 : i32, i32
  }
  func.func @transform_2(%arg0: i32) -> (i32, i32) {
    %c0_i32 = arith.constant 0 : i32
    %c0_i32_0 = arith.constant 0 : i32
    %c0_i32_1 = arith.constant 0 : i32
    return %c0_i32, %c0_i32_0 : i32, i32
  }
  func.func @transform_3(%arg0: i32) -> (i32, i32, i32) {
    %c0_i32 = arith.constant 0 : i32
    %c0_i32_0 = arith.constant 0 : i32
    %c0_i32_1 = arith.constant 0 : i32
    %c0_i32_2 = arith.constant 0 : i32
    return %c0_i32, %c0_i32_0, %c0_i32_1 : i32, i32, i32
  }
  func.func @transform_4(%arg0: i32) -> (i32, i32) {
    %c0_i32 = arith.constant 0 : i32
    %c0_i32_0 = arith.constant 0 : i32
    return %arg0, %c0_i32 : i32, i32
  }
}

module attributes {stable_mosaic.version = 11 : i64} {
  func.func @combine_last_kernel(%arg0: i32, %arg1: memref<128x128xbf16, #tpu.memory_space<vmem>>, %arg2: memref<128x128xbf16, #tpu.memory_space<vmem>>, %arg3: memref<128x128xbf16, #tpu.memory_space<vmem>>, %arg4: memref<128x128xbf16, #tpu.memory_space<vmem>>, %arg5: memref<1x128xf32, #tpu.memory_space<vmem>>, %arg6: memref<128x128xbf16, #tpu.memory_space<vmem>>, %arg7: memref<1x128xf32, #tpu.memory_space<vmem>>, %arg8: memref<128x128xbf16, #tpu.memory_space<vmem>>, %arg9: memref<128x128xbf16, #tpu.memory_space<vmem>>, %arg10: memref<128x128xbf16, #tpu.memory_space<vmem>>) attributes {dimension_semantics = [#tpu.dimension_semantics<parallel>], iteration_bounds = array<i64: 2>, scalar_prefetch = 0 : i64, scratch_operands = 0 : i64, tpu.core_type = #tpu.core_type<tc>, window_params = [{transform_indices = @transform_0, window_bounds = array<i64: 128, 128>}, {transform_indices = @transform_1, window_bounds = array<i64: 128, 128>}, {transform_indices = @transform_2, window_bounds = array<i64: 128, 128>}, {pipeline_mode = #tpu.pipeline_mode<synchronous>, transform_indices = @transform_3, window_bounds = array<i64: 128, 128>}, {pipeline_mode = #tpu.pipeline_mode<synchronous>, transform_indices = @transform_4, window_bounds = array<i64: 1, 128>}, {pipeline_mode = #tpu.pipeline_mode<synchronous>, transform_indices = @transform_5, window_bounds = array<i64: 128, 128>}, {pipeline_mode = #tpu.pipeline_mode<synchronous>, transform_indices = @transform_6, window_bounds = array<i64: 1, 128>}, {pipeline_mode = #tpu.pipeline_mode<synchronous>, transform_indices = @transform_7, window_bounds = array<i64: 128, 128>}, {transform_indices = @transform_8, window_bounds = array<i64: 128, 128>}, {transform_indices = @transform_9, window_bounds = array<i64: 128, 128>}]} {
    %c0 = arith.constant 0 : index
    %c0_0 = arith.constant 0 : index
    %0 = vector.load %arg1[%c0, %c0_0] : memref<128x128xbf16, #tpu.memory_space<vmem>>, vector<128x128xbf16>
    %c0_1 = arith.constant 0 : index
    %c0_2 = arith.constant 0 : index
    %1 = vector.load %arg4[%c0_1, %c0_2] : memref<128x128xbf16, #tpu.memory_space<vmem>>, vector<128x128xbf16>
    %cst = arith.constant dense<0.000000e+00> : vector<128x128xf32>
    %2 = tpu.matmul %0, %1, %cst {dimension_numbers = #tpu.dot_dimension_numbers<[1], [0], [0], [1], [0, 0, 1, 1], [], []>} : vector<128x128xbf16>, vector<128x128xbf16>, vector<128x128xf32> -> vector<128x128xf32>
    %c0_3 = arith.constant 0 : index
    %c0_4 = arith.constant 0 : index
    %3 = vector.load %arg5[%c0_3, %c0_4] : memref<1x128xf32, #tpu.memory_space<vmem>>, vector<1x128xf32>
    %4 = vector.broadcast %3 : vector<1x128xf32> to vector<128x128xf32>
    %5 = arith.addf %2, %4 : vector<128x128xf32>
    %cst_5 = arith.constant 0.000000e+00 : f32
    %6 = vector.broadcast %cst_5 : f32 to vector<128x128xf32>
    %7 = arith.subf %6, %5 : vector<128x128xf32>
    %8 = math.exp %7 : vector<128x128xf32>
    %cst_6 = arith.constant 1.000000e+00 : f32
    %9 = vector.broadcast %cst_6 : f32 to vector<128x128xf32>
    %10 = arith.addf %9, %8 : vector<128x128xf32>
    %cst_7 = arith.constant 1.000000e+00 : f32
    %11 = vector.broadcast %cst_7 : f32 to vector<128x128xf32>
    %12 = arith.divf %11, %10 : vector<128x128xf32>
    %13 = arith.mulf %5, %12 : vector<128x128xf32>
    %c0_8 = arith.constant 0 : index
    %c0_9 = arith.constant 0 : index
    %14 = vector.load %arg2[%c0_8, %c0_9] : memref<128x128xbf16, #tpu.memory_space<vmem>>, vector<128x128xbf16>
    %15 = arith.extf %14 : vector<128x128xbf16> to vector<128x128xf32>
    %16 = arith.addf %13, %15 : vector<128x128xf32>
    %17 = arith.truncf %16 : vector<128x128xf32> to vector<128x128xbf16>
    %c0_10 = arith.constant 0 : index
    %c0_11 = arith.constant 0 : index
    %18 = vector.load %arg6[%c0_10, %c0_11] : memref<128x128xbf16, #tpu.memory_space<vmem>>, vector<128x128xbf16>
    %cst_12 = arith.constant dense<0.000000e+00> : vector<128x128xf32>
    %19 = tpu.matmul %17, %18, %cst_12 {dimension_numbers = #tpu.dot_dimension_numbers<[1], [0], [0], [1], [0, 0, 1, 1], [], []>} : vector<128x128xbf16>, vector<128x128xbf16>, vector<128x128xf32> -> vector<128x128xf32>
    %c0_13 = arith.constant 0 : index
    %c0_14 = arith.constant 0 : index
    %20 = vector.load %arg7[%c0_13, %c0_14] : memref<1x128xf32, #tpu.memory_space<vmem>>, vector<1x128xf32>
    %21 = vector.broadcast %20 : vector<1x128xf32> to vector<128x128xf32>
    %22 = arith.addf %19, %21 : vector<128x128xf32>
    %cst_15 = arith.constant 0.000000e+00 : f32
    %23 = vector.broadcast %cst_15 : f32 to vector<128x128xf32>
    %24 = arith.subf %23, %22 : vector<128x128xf32>
    %25 = math.exp %24 : vector<128x128xf32>
    %cst_16 = arith.constant 1.000000e+00 : f32
    %26 = vector.broadcast %cst_16 : f32 to vector<128x128xf32>
    %27 = arith.addf %26, %25 : vector<128x128xf32>
    %cst_17 = arith.constant 1.000000e+00 : f32
    %28 = vector.broadcast %cst_17 : f32 to vector<128x128xf32>
    %29 = arith.divf %28, %27 : vector<128x128xf32>
    %30 = arith.mulf %22, %29 : vector<128x128xf32>
    %c0_18 = arith.constant 0 : index
    %c0_19 = arith.constant 0 : index
    %31 = vector.load %arg3[%c0_18, %c0_19] : memref<128x128xbf16, #tpu.memory_space<vmem>>, vector<128x128xbf16>
    %c0_20 = arith.constant 0 : index
    %c0_21 = arith.constant 0 : index
    %32 = vector.load %arg8[%c0_20, %c0_21] : memref<128x128xbf16, #tpu.memory_space<vmem>>, vector<128x128xbf16>
    %cst_22 = arith.constant dense<0.000000e+00> : vector<128x128xf32>
    %33 = tpu.matmul %31, %32, %cst_22 {dimension_numbers = #tpu.dot_dimension_numbers<[1], [0], [0], [1], [0, 0, 1, 1], [], []>} : vector<128x128xbf16>, vector<128x128xbf16>, vector<128x128xf32> -> vector<128x128xf32>
    %34 = arith.mulf %33, %30 : vector<128x128xf32>
    %35 = arith.truncf %30 : vector<128x128xf32> to vector<128x128xbf16>
    %c0_23 = arith.constant 0 : index
    %c0_24 = arith.constant 0 : index
    %36 = vector.load %arg9[%c0_23, %c0_24] : memref<128x128xbf16, #tpu.memory_space<vmem>>, vector<128x128xbf16>
    tpu.vector_store %arg9[%c0_23, %c0_24], %35 {strides = array<i32>} : memref<128x128xbf16, #tpu.memory_space<vmem>>, vector<128x128xbf16>,
    %37 = arith.truncf %34 : vector<128x128xf32> to vector<128x128xbf16>
    %c0_25 = arith.constant 0 : index
    %c0_26 = arith.constant 0 : index
    %38 = vector.load %arg10[%c0_25, %c0_26] : memref<128x128xbf16, #tpu.memory_space<vmem>>, vector<128x128xbf16>
    tpu.vector_store %arg10[%c0_25, %c0_26], %37 {strides = array<i32>} : memref<128x128xbf16, #tpu.memory_space<vmem>>, vector<128x128xbf16>,
    return
  }
  func.func @transform_0(%arg0: i32) -> (i32, i32) {
    %c0_i32 = arith.constant 0 : i32
    %c0_i32_0 = arith.constant 0 : i32
    return %arg0, %c0_i32 : i32, i32
  }
  func.func @transform_1(%arg0: i32) -> (i32, i32) {
    %c0_i32 = arith.constant 0 : i32
    %c0_i32_0 = arith.constant 0 : i32
    return %arg0, %c0_i32 : i32, i32
  }
  func.func @transform_2(%arg0: i32) -> (i32, i32) {
    %c0_i32 = arith.constant 0 : i32
    %c0_i32_0 = arith.constant 0 : i32
    return %arg0, %c0_i32 : i32, i32
  }
  func.func @transform_3(%arg0: i32) -> (i32, i32) {
    %c0_i32 = arith.constant 0 : i32
    %c0_i32_0 = arith.constant 0 : i32
    %c0_i32_1 = arith.constant 0 : i32
    return %c0_i32, %c0_i32_0 : i32, i32
  }
  func.func @transform_4(%arg0: i32) -> (i32, i32) {
    %c0_i32 = arith.constant 0 : i32
    %c0_i32_0 = arith.constant 0 : i32
    %c0_i32_1 = arith.constant 0 : i32
    return %c0_i32, %c0_i32_0 : i32, i32
  }
  func.func @transform_5(%arg0: i32) -> (i32, i32) {
    %c0_i32 = arith.constant 0 : i32
    %c0_i32_0 = arith.constant 0 : i32
    %c0_i32_1 = arith.constant 0 : i32
    return %c0_i32, %c0_i32_0 : i32, i32
  }
  func.func @transform_6(%arg0: i32) -> (i32, i32) {
    %c0_i32 = arith.constant 0 : i32
    %c0_i32_0 = arith.constant 0 : i32
    %c0_i32_1 = arith.constant 0 : i32
    return %c0_i32, %c0_i32_0 : i32, i32
  }
  func.func @transform_7(%arg0: i32) -> (i32, i32) {
    %c0_i32 = arith.constant 0 : i32
    %c0_i32_0 = arith.constant 0 : i32
    %c0_i32_1 = arith.constant 0 : i32
    return %c0_i32, %c0_i32_0 : i32, i32
  }
  func.func @transform_8(%arg0: i32) -> (i32, i32) {
    %c0_i32 = arith.constant 0 : i32
    %c0_i32_0 = arith.constant 0 : i32
    return %arg0, %c0_i32 : i32, i32
  }
  func.func @transform_9(%arg0: i32) -> (i32, i32) {
    %c0_i32 = arith.constant 0 : i32
    %c0_i32_0 = arith.constant 0 : i32
    return %arg0, %c0_i32 : i32, i32
  }
}

module attributes {stable_mosaic.version = 11 : i64} {
  func.func @node_mlp_kernel(%arg0: i32, %arg1: memref<2x8x128xf32, #tpu.memory_space<vmem>>, %arg2: memref<2x2x128x128xbf16, #tpu.memory_space<vmem>>, %arg3: memref<2x2x1x128xf32, #tpu.memory_space<vmem>>, %arg4: memref<2x128x128xbf16, #tpu.memory_space<vmem>>, %arg5: memref<8x128xf32, #tpu.memory_space<vmem>>) attributes {dimension_semantics = [#tpu.dimension_semantics<arbitrary>], iteration_bounds = array<i64: 1>, scalar_prefetch = 0 : i64, scratch_operands = 0 : i64, tpu.core_type = #tpu.core_type<tc>, window_params = [{pipeline_mode = #tpu.pipeline_mode<synchronous>, transform_indices = @transform_0, window_bounds = array<i64: 2, 8, 128>}, {pipeline_mode = #tpu.pipeline_mode<synchronous>, transform_indices = @transform_1, window_bounds = array<i64: 2, 2, 128, 128>}, {pipeline_mode = #tpu.pipeline_mode<synchronous>, transform_indices = @transform_2, window_bounds = array<i64: 2, 2, 1, 128>}, {pipeline_mode = #tpu.pipeline_mode<synchronous>, transform_indices = @transform_3, window_bounds = array<i64: 2, 128, 128>}, {pipeline_mode = #tpu.pipeline_mode<synchronous>, transform_indices = @transform_4, window_bounds = array<i64: 8, 128>}]} {
    %cst = arith.constant 0.000000e+00 : f32
    %0 = vector.broadcast %cst : f32 to vector<8x128xf32>
    %c0 = arith.constant 0 : index
    %c0_0 = arith.constant 0 : index
    %c0_1 = arith.constant 0 : index
    %1 = vector.load %arg1[%c0, %c0_0, %c0_1] : memref<2x8x128xf32, #tpu.memory_space<vmem>>, vector<1x8x128xf32>
    %2 = vector.shape_cast %1 : vector<1x8x128xf32> to vector<8x128xf32>
    %3 = arith.truncf %2 : vector<8x128xf32> to vector<8x128xbf16>
    %c0_2 = arith.constant 0 : index
    %c0_3 = arith.constant 0 : index
    %c0_4 = arith.constant 0 : index
    %c0_5 = arith.constant 0 : index
    %4 = vector.load %arg2[%c0_2, %c0_3, %c0_4, %c0_5] : memref<2x2x128x128xbf16, #tpu.memory_space<vmem>>, vector<1x1x128x128xbf16>
    %5 = vector.shape_cast %4 : vector<1x1x128x128xbf16> to vector<128x128xbf16>
    %cst_6 = arith.constant dense<0.000000e+00> : vector<8x128xf32>
    %6 = tpu.matmul %3, %5, %cst_6 {dimension_numbers = #tpu.dot_dimension_numbers<[1], [0], [0], [1], [0, 0, 1, 1], [], []>} : vector<8x128xbf16>, vector<128x128xbf16>, vector<8x128xf32> -> vector<8x128xf32>
    %c0_7 = arith.constant 0 : index
    %c0_8 = arith.constant 0 : index
    %c0_9 = arith.constant 0 : index
    %c0_10 = arith.constant 0 : index
    %7 = vector.load %arg3[%c0_7, %c0_8, %c0_9, %c0_10] : memref<2x2x1x128xf32, #tpu.memory_space<vmem>>, vector<1x1x1x128xf32>
    %8 = vector.shape_cast %7 : vector<1x1x1x128xf32> to vector<1x128xf32>
    %9 = vector.broadcast %8 : vector<1x128xf32> to vector<8x128xf32>
    %10 = arith.addf %6, %9 : vector<8x128xf32>
    %cst_11 = arith.constant 0.000000e+00 : f32
    %11 = vector.broadcast %cst_11 : f32 to vector<8x128xf32>
    %12 = arith.subf %11, %10 : vector<8x128xf32>
    %13 = math.exp %12 : vector<8x128xf32>
    %cst_12 = arith.constant 1.000000e+00 : f32
    %14 = vector.broadcast %cst_12 : f32 to vector<8x128xf32>
    %15 = arith.addf %14, %13 : vector<8x128xf32>
    %cst_13 = arith.constant 1.000000e+00 : f32
    %16 = vector.broadcast %cst_13 : f32 to vector<8x128xf32>
    %17 = arith.divf %16, %15 : vector<8x128xf32>
    %18 = arith.mulf %10, %17 : vector<8x128xf32>
    %19 = arith.truncf %18 : vector<8x128xf32> to vector<8x128xbf16>
    %c0_14 = arith.constant 0 : index
    %c1 = arith.constant 1 : index
    %c0_15 = arith.constant 0 : index
    %c0_16 = arith.constant 0 : index
    %20 = vector.load %arg2[%c0_14, %c1, %c0_15, %c0_16] : memref<2x2x128x128xbf16, #tpu.memory_space<vmem>>, vector<1x1x128x128xbf16>
    %21 = vector.shape_cast %20 : vector<1x1x128x128xbf16> to vector<128x128xbf16>
    %cst_17 = arith.constant dense<0.000000e+00> : vector<8x128xf32>
    %22 = tpu.matmul %19, %21, %cst_17 {dimension_numbers = #tpu.dot_dimension_numbers<[1], [0], [0], [1], [0, 0, 1, 1], [], []>} : vector<8x128xbf16>, vector<128x128xbf16>, vector<8x128xf32> -> vector<8x128xf32>
    %c0_18 = arith.constant 0 : index
    %c1_19 = arith.constant 1 : index
    %c0_20 = arith.constant 0 : index
    %c0_21 = arith.constant 0 : index
    %23 = vector.load %arg3[%c0_18, %c1_19, %c0_20, %c0_21] : memref<2x2x1x128xf32, #tpu.memory_space<vmem>>, vector<1x1x1x128xf32>
    %24 = vector.shape_cast %23 : vector<1x1x1x128xf32> to vector<1x128xf32>
    %25 = vector.broadcast %24 : vector<1x128xf32> to vector<8x128xf32>
    %26 = arith.addf %22, %25 : vector<8x128xf32>
    %cst_22 = arith.constant 0.000000e+00 : f32
    %27 = vector.broadcast %cst_22 : f32 to vector<8x128xf32>
    %28 = arith.subf %27, %26 : vector<8x128xf32>
    %29 = math.exp %28 : vector<8x128xf32>
    %cst_23 = arith.constant 1.000000e+00 : f32
    %30 = vector.broadcast %cst_23 : f32 to vector<8x128xf32>
    %31 = arith.addf %30, %29 : vector<8x128xf32>
    %cst_24 = arith.constant 1.000000e+00 : f32
    %32 = vector.broadcast %cst_24 : f32 to vector<8x128xf32>
    %33 = arith.divf %32, %31 : vector<8x128xf32>
    %34 = arith.mulf %26, %33 : vector<8x128xf32>
    %35 = arith.truncf %34 : vector<8x128xf32> to vector<8x128xbf16>
    %c0_25 = arith.constant 0 : index
    %c0_26 = arith.constant 0 : index
    %c0_27 = arith.constant 0 : index
    %36 = vector.load %arg4[%c0_25, %c0_26, %c0_27] : memref<2x128x128xbf16, #tpu.memory_space<vmem>>, vector<1x128x128xbf16>
    %37 = vector.shape_cast %36 : vector<1x128x128xbf16> to vector<128x128xbf16>
    %cst_28 = arith.constant dense<0.000000e+00> : vector<8x128xf32>
    %38 = tpu.matmul %35, %37, %cst_28 {dimension_numbers = #tpu.dot_dimension_numbers<[1], [0], [0], [1], [0, 0, 1, 1], [], []>} : vector<8x128xbf16>, vector<128x128xbf16>, vector<8x128xf32> -> vector<8x128xf32>
    %39 = arith.addf %0, %38 : vector<8x128xf32>
    %c1_29 = arith.constant 1 : index
    %c0_30 = arith.constant 0 : index
    %c0_31 = arith.constant 0 : index
    %40 = vector.load %arg1[%c1_29, %c0_30, %c0_31] : memref<2x8x128xf32, #tpu.memory_space<vmem>>, vector<1x8x128xf32>
    %41 = vector.shape_cast %40 : vector<1x8x128xf32> to vector<8x128xf32>
    %42 = arith.truncf %41 : vector<8x128xf32> to vector<8x128xbf16>
    %c1_32 = arith.constant 1 : index
    %c0_33 = arith.constant 0 : index
    %c0_34 = arith.constant 0 : index
    %c0_35 = arith.constant 0 : index
    %43 = vector.load %arg2[%c1_32, %c0_33, %c0_34, %c0_35] : memref<2x2x128x128xbf16, #tpu.memory_space<vmem>>, vector<1x1x128x128xbf16>
    %44 = vector.shape_cast %43 : vector<1x1x128x128xbf16> to vector<128x128xbf16>
    %cst_36 = arith.constant dense<0.000000e+00> : vector<8x128xf32>
    %45 = tpu.matmul %42, %44, %cst_36 {dimension_numbers = #tpu.dot_dimension_numbers<[1], [0], [0], [1], [0, 0, 1, 1], [], []>} : vector<8x128xbf16>, vector<128x128xbf16>, vector<8x128xf32> -> vector<8x128xf32>
    %c1_37 = arith.constant 1 : index
    %c0_38 = arith.constant 0 : index
    %c0_39 = arith.constant 0 : index
    %c0_40 = arith.constant 0 : index
    %46 = vector.load %arg3[%c1_37, %c0_38, %c0_39, %c0_40] : memref<2x2x1x128xf32, #tpu.memory_space<vmem>>, vector<1x1x1x128xf32>
    %47 = vector.shape_cast %46 : vector<1x1x1x128xf32> to vector<1x128xf32>
    %48 = vector.broadcast %47 : vector<1x128xf32> to vector<8x128xf32>
    %49 = arith.addf %45, %48 : vector<8x128xf32>
    %cst_41 = arith.constant 0.000000e+00 : f32
    %50 = vector.broadcast %cst_41 : f32 to vector<8x128xf32>
    %51 = arith.subf %50, %49 : vector<8x128xf32>
    %52 = math.exp %51 : vector<8x128xf32>
    %cst_42 = arith.constant 1.000000e+00 : f32
    %53 = vector.broadcast %cst_42 : f32 to vector<8x128xf32>
    %54 = arith.addf %53, %52 : vector<8x128xf32>
    %cst_43 = arith.constant 1.000000e+00 : f32
    %55 = vector.broadcast %cst_43 : f32 to vector<8x128xf32>
    %56 = arith.divf %55, %54 : vector<8x128xf32>
    %57 = arith.mulf %49, %56 : vector<8x128xf32>
    %58 = arith.truncf %57 : vector<8x128xf32> to vector<8x128xbf16>
    %c1_44 = arith.constant 1 : index
    %c1_45 = arith.constant 1 : index
    %c0_46 = arith.constant 0 : index
    %c0_47 = arith.constant 0 : index
    %59 = vector.load %arg2[%c1_44, %c1_45, %c0_46, %c0_47] : memref<2x2x128x128xbf16, #tpu.memory_space<vmem>>, vector<1x1x128x128xbf16>
    %60 = vector.shape_cast %59 : vector<1x1x128x128xbf16> to vector<128x128xbf16>
    %cst_48 = arith.constant dense<0.000000e+00> : vector<8x128xf32>
    %61 = tpu.matmul %58, %60, %cst_48 {dimension_numbers = #tpu.dot_dimension_numbers<[1], [0], [0], [1], [0, 0, 1, 1], [], []>} : vector<8x128xbf16>, vector<128x128xbf16>, vector<8x128xf32> -> vector<8x128xf32>
    %c1_49 = arith.constant 1 : index
    %c1_50 = arith.constant 1 : index
    %c0_51 = arith.constant 0 : index
    %c0_52 = arith.constant 0 : index
    %62 = vector.load %arg3[%c1_49, %c1_50, %c0_51, %c0_52] : memref<2x2x1x128xf32, #tpu.memory_space<vmem>>, vector<1x1x1x128xf32>
    %63 = vector.shape_cast %62 : vector<1x1x1x128xf32> to vector<1x128xf32>
    %64 = vector.broadcast %63 : vector<1x128xf32> to vector<8x128xf32>
    %65 = arith.addf %61, %64 : vector<8x128xf32>
    %cst_53 = arith.constant 0.000000e+00 : f32
    %66 = vector.broadcast %cst_53 : f32 to vector<8x128xf32>
    %67 = arith.subf %66, %65 : vector<8x128xf32>
    %68 = math.exp %67 : vector<8x128xf32>
    %cst_54 = arith.constant 1.000000e+00 : f32
    %69 = vector.broadcast %cst_54 : f32 to vector<8x128xf32>
    %70 = arith.addf %69, %68 : vector<8x128xf32>
    %cst_55 = arith.constant 1.000000e+00 : f32
    %71 = vector.broadcast %cst_55 : f32 to vector<8x128xf32>
    %72 = arith.divf %71, %70 : vector<8x128xf32>
    %73 = arith.mulf %65, %72 : vector<8x128xf32>
    %74 = arith.truncf %73 : vector<8x128xf32> to vector<8x128xbf16>
    %c1_56 = arith.constant 1 : index
    %c0_57 = arith.constant 0 : index
    %c0_58 = arith.constant 0 : index
    %75 = vector.load %arg4[%c1_56, %c0_57, %c0_58] : memref<2x128x128xbf16, #tpu.memory_space<vmem>>, vector<1x128x128xbf16>
    %76 = vector.shape_cast %75 : vector<1x128x128xbf16> to vector<128x128xbf16>
    %cst_59 = arith.constant dense<0.000000e+00> : vector<8x128xf32>
    %77 = tpu.matmul %74, %76, %cst_59 {dimension_numbers = #tpu.dot_dimension_numbers<[1], [0], [0], [1], [0, 0, 1, 1], [], []>} : vector<8x128xbf16>, vector<128x128xbf16>, vector<8x128xf32> -> vector<8x128xf32>
    %78 = arith.addf %39, %77 : vector<8x128xf32>
    %c0_60 = arith.constant 0 : index
    %c0_61 = arith.constant 0 : index
    %79 = vector.load %arg5[%c0_60, %c0_61] : memref<8x128xf32, #tpu.memory_space<vmem>>, vector<8x128xf32>
    tpu.vector_store %arg5[%c0_60, %c0_61], %78 {strides = array<i32>} : memref<8x128xf32, #tpu.memory_space<vmem>>, vector<8x128xf32>,
    return
  }
  func.func @transform_0(%arg0: i32) -> (i32, i32, i32) {
    %c0_i32 = arith.constant 0 : i32
    %c0_i32_0 = arith.constant 0 : i32
    %c0_i32_1 = arith.constant 0 : i32
    %c0_i32_2 = arith.constant 0 : i32
    return %c0_i32, %c0_i32_0, %c0_i32_1 : i32, i32, i32
  }
  func.func @transform_1(%arg0: i32) -> (i32, i32, i32, i32) {
    %c0_i32 = arith.constant 0 : i32
    %c0_i32_0 = arith.constant 0 : i32
    %c0_i32_1 = arith.constant 0 : i32
    %c0_i32_2 = arith.constant 0 : i32
    %c0_i32_3 = arith.constant 0 : i32
    return %c0_i32, %c0_i32_0, %c0_i32_1, %c0_i32_2 : i32, i32, i32, i32
  }
  func.func @transform_2(%arg0: i32) -> (i32, i32, i32, i32) {
    %c0_i32 = arith.constant 0 : i32
    %c0_i32_0 = arith.constant 0 : i32
    %c0_i32_1 = arith.constant 0 : i32
    %c0_i32_2 = arith.constant 0 : i32
    %c0_i32_3 = arith.constant 0 : i32
    return %c0_i32, %c0_i32_0, %c0_i32_1, %c0_i32_2 : i32, i32, i32, i32
  }
  func.func @transform_3(%arg0: i32) -> (i32, i32, i32) {
    %c0_i32 = arith.constant 0 : i32
    %c0_i32_0 = arith.constant 0 : i32
    %c0_i32_1 = arith.constant 0 : i32
    %c0_i32_2 = arith.constant 0 : i32
    return %c0_i32, %c0_i32_0, %c0_i32_1 : i32, i32, i32
  }
  func.func @transform_4(%arg0: i32) -> (i32, i32) {
    %c0_i32 = arith.constant 0 : i32
    %c0_i32_0 = arith.constant 0 : i32
    %c0_i32_1 = arith.constant 0 : i32
    return %c0_i32, %c0_i32_0 : i32, i32
  }
}

</mosaic_0001>

<llo_original>
// kernel: _forward_device.4
$region0: #{_forward_device.4}
  #allocation0 [shape = 'u32[]', space=smem, size = 0x4, offset = 0x4, fixed_abs, tag = 'smem constant byte address 0x4 - core index']
  #allocation1 [shape = 'u32[72,128]{1,0:T(1,128)}', space=vmem, size = 0x9000, scoped, tag = 'internal scratch']
  %s0 = inlined_call_operand.vmem [shape: bf16[256,128], index: 0, kind: input, shape index: {}]
  %s1 = inlined_call_operand.vmem [shape: bf16[256,128], index: 1, kind: input, shape index: {}]
  %s2 = inlined_call_operand.vmem [shape: bf16[256,128], index: 2, kind: input, shape index: {}]
  %s3 = inlined_call_operand.vmem [shape: bf16[128,128], index: 3, kind: input, shape index: {}]
  %s4 = inlined_call_operand.vmem [shape: f32[1,128], index: 4, kind: input, shape index: {}]
  %s5 = inlined_call_operand.vmem [shape: bf16[384,128], index: 5, kind: input, shape index: {}]
  %s6 = inlined_call_operand.vmem [shape: f32[1,128], index: 6, kind: input, shape index: {}]
  %s7 = inlined_call_operand.vmem [shape: bf16[128,128], index: 7, kind: input, shape index: {}]
  %s8 = inlined_call_operand.vmem [shape: bf16[128,128], index: 8, kind: input, shape index: {}]
  %s9 = inlined_call_operand.vmem [shape: bf16[128,128], index: 9, kind: input, shape index: {}]
  %s10 = inlined_call_operand.vmem [shape: f32[1,128], index: 10, kind: input, shape index: {}]
  %s11 = inlined_call_operand.vmem [shape: bf16[256,128], index: 11, kind: output, shape index: {0}]
  %s12 = inlined_call_operand.vmem [shape: bf16[256,128], index: 12, kind: output, shape index: {1}]
  %s13 = inlined_call_operand.vmem [shape: bf16[256,128], index: 13, kind: output, shape index: {2}]
  %14 = xla_tuple %s11, %s12, %s13
  %s15 = sld [smem:[#allocation0]]
  $region93: #{_forward_device.4} parent=0
    _
  %s17 = ssub.s32 1, %s15
  %s18 = scalar_select 0, %s17, %s15
  loop: start=0, step=1, limit=4
  $region2: #{_forward_device.4} parent=0 // loop_pre_header
    _
  $region3: #{_forward_device.4} parent=0 // loop_header
    %s20 = sphi 0, %s24
    %p21 = scmp.ge.s32.totalorder %s20, 4
    %s30 = sphi 0, %s32
    %s33 = sphi 0, %s30
    %s34 = sphi 0, %s33
    %s50 = sphi 0, %s34
    %s56 = sphi 0, %s58
    %s59 = sphi 0, %s56
    %s60 = sphi 0, %s59
    %s76 = sphi 0, %s60
    %s82 = sphi 0, %s84
    %s85 = sphi 0, %s82
    %s86 = sphi 0, %s85
    %s102 = sphi 0, %s86
    %s106 = sphi 0, %s106
    %s108 = sphi 0, %s106
    %s109 = sphi 0, %s108
    %s123 = sphi 0, %s109
    %s127 = sphi 0, %s127
    %s129 = sphi 0, %s127
    %s130 = sphi 0, %s129
    %s144 = sphi 0, %s130
    %s148 = sphi 0, %s148
    %s150 = sphi 0, %s148
    %s151 = sphi 0, %s150
    %s165 = sphi 0, %s151
    %s169 = sphi 0, %s169
    %s171 = sphi 0, %s169
    %s172 = sphi 0, %s171
    %s186 = sphi 0, %s172
    %s190 = sphi 0, %s190
    %s192 = sphi 0, %s190
    %s193 = sphi 0, %s192
    %s207 = sphi 0, %s193
    %s211 = sphi 0, %s211
    %s213 = sphi 0, %s211
    %s214 = sphi 0, %s213
    %s228 = sphi 0, %s214
    %s232 = sphi 0, %s232
    %s234 = sphi 0, %s232
    %s235 = sphi 0, %s234
    %s249 = sphi 0, %s235
    %s253 = sphi 0, %s253
    %s255 = sphi 0, %s253
    %s256 = sphi 0, %s255
    %s270 = sphi 0, %s256
    %s276 = sphi 0, %s278
    %s279 = sphi 0, %s276
    %s280 = sphi 0, %s279
    %s296 = sphi 0, %s280
    %s302 = sphi 0, %s304
    %s305 = sphi 0, %s302
    %s306 = sphi 0, %s305
    %s322 = sphi 0, %s306
    %s328 = sphi 0, %s330
    %s331 = sphi 0, %s328
    %s332 = sphi 0, %s331
    %s348 = sphi 0, %s332
  $region4: #{_forward_device.4} parent=0 // loop_header_branch
    %23 = sbr.rel (%p21) target = $region8
  $region5: #{_forward_device.4} parent=0 // loop_body
    %s25 = ssub.s32 %s20, 1
    %s26 = ssub.s32 %s20, 2
    %s27 = sadd.s32 %s20, 1
    %s28 = ssub.s32 %s20, %s27
    %p29 = scmp.eq.s32.totalorder %s28, 0
    %s31 = sadd.s32 %s30, 1
    %s32 = scalar_select %p29, %s30, %s31
    %p35 = pneg %p29
    %p36 = scmp.eq.s32.totalorder %s20, 1
    %p37 = por %p35, %p36
    %p38 = scmp.ne.s32.totalorder %s30, %s33
    %p39 = scmp.eq.s32.totalorder %s20, 0
    %p40 = por %p38, %p39
    %p41 = scmp.ne.s32.totalorder %s30, %s33
    %p42 = scmp.eq.s32.totalorder %s25, 1
    %p43 = por %p41, %p42
    %p44 = scmp.ne.s32.totalorder %s33, %s34
    %p45 = scmp.eq.s32.totalorder %s25, 0
    %p46 = por %p44, %p45
    %p47 = scmp.ne.s32.totalorder %s33, %s34
    %p48 = scmp.eq.s32.totalorder %s26, 1
    %p49 = por %p47, %p48
    %p51 = scmp.ne.s32.totalorder %s34, %s50
    %p52 = scmp.eq.s32.totalorder %s26, 0
    %p53 = por %p51, %p52
    %s54 = ssub.s32 %s20, %s27
    %p55 = scmp.eq.s32.totalorder %s54, 0
    %s57 = sadd.s32 %s56, 1
    %s58 = scalar_select %p55, %s56, %s57
    %p61 = pneg %p55
    %p62 = scmp.eq.s32.totalorder %s20, 1
    %p63 = por %p61, %p62
    %p64 = scmp.ne.s32.totalorder %s56, %s59
    %p65 = scmp.eq.s32.totalorder %s20, 0
    %p66 = por %p64, %p65
    %p67 = scmp.ne.s32.totalorder %s56, %s59
    %p68 = scmp.eq.s32.totalorder %s25, 1
    %p69 = por %p67, %p68
    %p70 = scmp.ne.s32.totalorder %s59, %s60
    %p71 = scmp.eq.s32.totalorder %s25, 0
    %p72 = por %p70, %p71
    %p73 = scmp.ne.s32.totalorder %s59, %s60
    %p74 = scmp.eq.s32.totalorder %s26, 1
    %p75 = por %p73, %p74
    %p77 = scmp.ne.s32.totalorder %s60, %s76
    %p78 = scmp.eq.s32.totalorder %s26, 0
    %p79 = por %p77, %p78
    %s80 = ssub.s32 %s20, %s27
    %p81 = scmp.eq.s32.totalorder %s80, 0
    %s83 = sadd.s32 %s82, 1
    %s84 = scalar_select %p81, %s82, %s83
    %p87 = pneg %p81
    %p88 = scmp.eq.s32.totalorder %s20, 1
    %p89 = por %p87, %p88
    %p90 = scmp.ne.s32.totalorder %s82, %s85
    %p91 = scmp.eq.s32.totalorder %s20, 0
    %p92 = por %p90, %p91
    %p93 = scmp.ne.s32.totalorder %s82, %s85
    %p94 = scmp.eq.s32.totalorder %s25, 1
    %p95 = por %p93, %p94
    %p96 = scmp.ne.s32.totalorder %s85, %s86
    %p97 = scmp.eq.s32.totalorder %s25, 0
    %p98 = por %p96, %p97
    %p99 = scmp.ne.s32.totalorder %s85, %s86
    %p100 = scmp.eq.s32.totalorder %s26, 1
    %p101 = por %p99, %p100
    %p103 = scmp.ne.s32.totalorder %s86, %s102
    %p104 = scmp.eq.s32.totalorder %s26, 0
    %p105 = por %p103, %p104
    %s107 = sadd.s32 %s106, 1
    %p110 = scmp.eq.s32.totalorder %s20, 1
    %p111 = scmp.ne.s32.totalorder %s106, %s108
    %p112 = scmp.eq.s32.totalorder %s20, 0
    %p113 = por %p111, %p112
    %p114 = scmp.ne.s32.totalorder %s106, %s108
    %p115 = scmp.eq.s32.totalorder %s25, 1
    %p116 = por %p114, %p115
    %p117 = scmp.ne.s32.totalorder %s108, %s109
    %p118 = scmp.eq.s32.totalorder %s25, 0
    %p119 = por %p117, %p118
    %p120 = scmp.ne.s32.totalorder %s108, %s109
    %p121 = scmp.eq.s32.totalorder %s26, 1
    %p122 = por %p120, %p121
    %p124 = scmp.ne.s32.totalorder %s109, %s123
    %p125 = scmp.eq.s32.totalorder %s26, 0
    %p126 = por %p124, %p125
    %s128 = sadd.s32 %s127, 1
    %p131 = scmp.eq.s32.totalorder %s20, 1
    %p132 = scmp.ne.s32.totalorder %s127, %s129
    %p133 = scmp.eq.s32.totalorder %s20, 0
    %p134 = por %p132, %p133
    %p135 = scmp.ne.s32.totalorder %s127, %s129
    %p136 = scmp.eq.s32.totalorder %s25, 1
    %p137 = por %p135, %p136
    %p138 = scmp.ne.s32.totalorder %s129, %s130
    %p139 = scmp.eq.s32.totalorder %s25, 0
    %p140 = por %p138, %p139
    %p141 = scmp.ne.s32.totalorder %s129, %s130
    %p142 = scmp.eq.s32.totalorder %s26, 1
    %p143 = por %p141, %p142
    %p145 = scmp.ne.s32.totalorder %s130, %s144
    %p146 = scmp.eq.s32.totalorder %s26, 0
    %p147 = por %p145, %p146
    %s149 = sadd.s32 %s148, 1
    %p152 = scmp.eq.s32.totalorder %s20, 1
    %p153 = scmp.ne.s32.totalorder %s148, %s150
    %p154 = scmp.eq.s32.totalorder %s20, 0
    %p155 = por %p153, %p154
    %p156 = scmp.ne.s32.totalorder %s148, %s150
    %p157 = scmp.eq.s32.totalorder %s25, 1
    %p158 = por %p156, %p157
    %p159 = scmp.ne.s32.totalorder %s150, %s151
    %p160 = scmp.eq.s32.totalorder %s25, 0
    %p161 = por %p159, %p160
    %p162 = scmp.ne.s32.totalorder %s150, %s151
    %p163 = scmp.eq.s32.totalorder %s26, 1
    %p164 = por %p162, %p163
    %p166 = scmp.ne.s32.totalorder %s151, %s165
    %p167 = scmp.eq.s32.totalorder %s26, 0
    %p168 = por %p166, %p167
    %s170 = sadd.s32 %s169, 1
    %p173 = scmp.eq.s32.totalorder %s20, 1
    %p174 = scmp.ne.s32.totalorder %s169, %s171
    %p175 = scmp.eq.s32.totalorder %s20, 0
    %p176 = por %p174, %p175
    %p177 = scmp.ne.s32.totalorder %s169, %s171
    %p178 = scmp.eq.s32.totalorder %s25, 1
    %p179 = por %p177, %p178
    %p180 = scmp.ne.s32.totalorder %s171, %s172
    %p181 = scmp.eq.s32.totalorder %s25, 0
    %p182 = por %p180, %p181
    %p183 = scmp.ne.s32.totalorder %s171, %s172
    %p184 = scmp.eq.s32.totalorder %s26, 1
    %p185 = por %p183, %p184
    %p187 = scmp.ne.s32.totalorder %s172, %s186
    %p188 = scmp.eq.s32.totalorder %s26, 0
    %p189 = por %p187, %p188
    %s191 = sadd.s32 %s190, 1
    %p194 = scmp.eq.s32.totalorder %s20, 1
    %p195 = scmp.ne.s32.totalorder %s190, %s192
    %p196 = scmp.eq.s32.totalorder %s20, 0
    %p197 = por %p195, %p196
    %p198 = scmp.ne.s32.totalorder %s190, %s192
    %p199 = scmp.eq.s32.totalorder %s25, 1
    %p200 = por %p198, %p199
    %p201 = scmp.ne.s32.totalorder %s192, %s193
    %p202 = scmp.eq.s32.totalorder %s25, 0
    %p203 = por %p201, %p202
    %p204 = scmp.ne.s32.totalorder %s192, %s193
    %p205 = scmp.eq.s32.totalorder %s26, 1
    %p206 = por %p204, %p205
    %p208 = scmp.ne.s32.totalorder %s193, %s207
    %p209 = scmp.eq.s32.totalorder %s26, 0
    %p210 = por %p208, %p209
    %s212 = sadd.s32 %s211, 1
    %p215 = scmp.eq.s32.totalorder %s20, 1
    %p216 = scmp.ne.s32.totalorder %s211, %s213
    %p217 = scmp.eq.s32.totalorder %s20, 0
    %p218 = por %p216, %p217
    %p219 = scmp.ne.s32.totalorder %s211, %s213
    %p220 = scmp.eq.s32.totalorder %s25, 1
    %p221 = por %p219, %p220
    %p222 = scmp.ne.s32.totalorder %s213, %s214
    %p223 = scmp.eq.s32.totalorder %s25, 0
    %p224 = por %p222, %p223
    %p225 = scmp.ne.s32.totalorder %s213, %s214
    %p226 = scmp.eq.s32.totalorder %s26, 1
    %p227 = por %p225, %p226
    %p229 = scmp.ne.s32.totalorder %s214, %s228
    %p230 = scmp.eq.s32.totalorder %s26, 0
    %p231 = por %p229, %p230
    %s233 = sadd.s32 %s232, 1
    %p236 = scmp.eq.s32.totalorder %s20, 1
    %p237 = scmp.ne.s32.totalorder %s232, %s234
    %p238 = scmp.eq.s32.totalorder %s20, 0
    %p239 = por %p237, %p238
    %p240 = scmp.ne.s32.totalorder %s232, %s234
    %p241 = scmp.eq.s32.totalorder %s25, 1
    %p242 = por %p240, %p241
    %p243 = scmp.ne.s32.totalorder %s234, %s235
    %p244 = scmp.eq.s32.totalorder %s25, 0
    %p245 = por %p243, %p244
    %p246 = scmp.ne.s32.totalorder %s234, %s235
    %p247 = scmp.eq.s32.totalorder %s26, 1
    %p248 = por %p246, %p247
    %p250 = scmp.ne.s32.totalorder %s235, %s249
    %p251 = scmp.eq.s32.totalorder %s26, 0
    %p252 = por %p250, %p251
    %s254 = sadd.s32 %s253, 1
    %p257 = scmp.eq.s32.totalorder %s20, 1
    %p258 = scmp.ne.s32.totalorder %s253, %s255
    %p259 = scmp.eq.s32.totalorder %s20, 0
    %p260 = por %p258, %p259
    %p261 = scmp.ne.s32.totalorder %s253, %s255
    %p262 = scmp.eq.s32.totalorder %s25, 1
    %p263 = por %p261, %p262
    %p264 = scmp.ne.s32.totalorder %s255, %s256
    %p265 = scmp.eq.s32.totalorder %s25, 0
    %p266 = por %p264, %p265
    %p267 = scmp.ne.s32.totalorder %s255, %s256
    %p268 = scmp.eq.s32.totalorder %s26, 1
    %p269 = por %p267, %p268
    %p271 = scmp.ne.s32.totalorder %s256, %s270
    %p272 = scmp.eq.s32.totalorder %s26, 0
    %p273 = por %p271, %p272
    %s274 = ssub.s32 %s20, %s27
    %p275 = scmp.eq.s32.totalorder %s274, 0
    %s277 = sadd.s32 %s276, 1
    %s278 = scalar_select %p275, %s276, %s277
    %p281 = pneg %p275
    %p282 = scmp.eq.s32.totalorder %s20, 1
    %p283 = por %p281, %p282
    %p284 = scmp.ne.s32.totalorder %s276, %s279
    %p285 = scmp.eq.s32.totalorder %s20, 0
    %p286 = por %p284, %p285
    %p287 = scmp.ne.s32.totalorder %s276, %s279
    %p288 = scmp.eq.s32.totalorder %s25, 1
    %p289 = por %p287, %p288
    %p290 = scmp.ne.s32.totalorder %s279, %s280
    %p291 = scmp.eq.s32.totalorder %s25, 0
    %p292 = por %p290, %p291
    %p293 = scmp.ne.s32.totalorder %s279, %s280
    %p294 = scmp.eq.s32.totalorder %s26, 1
    %p295 = por %p293, %p294
    %p297 = scmp.ne.s32.totalorder %s280, %s296
    %p298 = scmp.eq.s32.totalorder %s26, 0
    %p299 = por %p297, %p298
    %s300 = ssub.s32 %s20, %s27
    %p301 = scmp.eq.s32.totalorder %s300, 0
    %s303 = sadd.s32 %s302, 1
    %s304 = scalar_select %p301, %s302, %s303
    %p307 = pneg %p301
    %p308 = scmp.eq.s32.totalorder %s20, 1
    %p309 = por %p307, %p308
    %p310 = scmp.ne.s32.totalorder %s302, %s305
    %p311 = scmp.eq.s32.totalorder %s20, 0
    %p312 = por %p310, %p311
    %p313 = scmp.ne.s32.totalorder %s302, %s305
    %p314 = scmp.eq.s32.totalorder %s25, 1
    %p315 = por %p313, %p314
    %p316 = scmp.ne.s32.totalorder %s305, %s306
    %p317 = scmp.eq.s32.totalorder %s25, 0
    %p318 = por %p316, %p317
    %p319 = scmp.ne.s32.totalorder %s305, %s306
    %p320 = scmp.eq.s32.totalorder %s26, 1
    %p321 = por %p319, %p320
    %p323 = scmp.ne.s32.totalorder %s306, %s322
    %p324 = scmp.eq.s32.totalorder %s26, 0
    %p325 = por %p323, %p324
    %s326 = ssub.s32 %s20, %s27
    %p327 = scmp.eq.s32.totalorder %s326, 0
    %s329 = sadd.s32 %s328, 1
    %s330 = scalar_select %p327, %s328, %s329
    %p333 = pneg %p327
    %p334 = scmp.eq.s32.totalorder %s20, 1
    %p335 = por %p333, %p334
    %p336 = scmp.ne.s32.totalorder %s328, %s331
    %p337 = scmp.eq.s32.totalorder %s20, 0
    %p338 = por %p336, %p337
    %p339 = scmp.ne.s32.totalorder %s328, %s331
    %p340 = scmp.eq.s32.totalorder %s25, 1
    %p341 = por %p339, %p340
    %p342 = scmp.ne.s32.totalorder %s331, %s332
    %p343 = scmp.eq.s32.totalorder %s25, 0
    %p344 = por %p342, %p343
    %p345 = scmp.ne.s32.totalorder %s331, %s332
    %p346 = scmp.eq.s32.totalorder %s26, 1
    %p347 = por %p345, %p346
    %p349 = scmp.ne.s32.totalorder %s332, %s348
    %p350 = scmp.eq.s32.totalorder %s26, 0
    %p351 = por %p349, %p350
    %p352 = scmp.le.s32.totalorder 1, %s20
    %p353 = scmp.lt.s32.totalorder %s20, 3
    %p354 = pnand %p352, %p353
    %p355 = pneg %p354
    // Predicated region
    $region9: #{_forward_device.4} parent=5 // pred_check
      _
    $region10: #{_forward_device.4} parent=5 // pred_check_branch
      %357 = sbr.rel (%p354) target = $region12
    $region11: #{_forward_device.4} parent=5 // pred_region
      %s358 = ssub.s32 %s20, 1
      // Predicated region
      $region13: #{_forward_device.4} parent=11 // pred_check
        %p359 = pneg %p119
      $region14: #{_forward_device.4} parent=11 // pred_check_branch
        %361 = sbr.rel (%p359) target = $region16
      $region15: #{_forward_device.4} parent=11 // pred_region
        _
      $region16: #{_forward_device.4} parent=11 // pred_fallthru
        _
      // Predicated region
      $region17: #{_forward_device.4} parent=11 // pred_check
        %p362 = pneg %p140
      $region18: #{_forward_device.4} parent=11 // pred_check_branch
        %364 = sbr.rel (%p362) target = $region20
      $region19: #{_forward_device.4} parent=11 // pred_region
        _
      $region20: #{_forward_device.4} parent=11 // pred_fallthru
        _
      // Predicated region
      $region21: #{_forward_device.4} parent=11 // pred_check
        %p365 = pneg %p161
      $region22: #{_forward_device.4} parent=11 // pred_check_branch
        %367 = sbr.rel (%p365) target = $region24
      $region23: #{_forward_device.4} parent=11 // pred_region
        _
      $region24: #{_forward_device.4} parent=11 // pred_fallthru
        _
      // Predicated region
      $region25: #{_forward_device.4} parent=11 // pred_check
        %p368 = pneg %p182
      $region26: #{_forward_device.4} parent=11 // pred_check_branch
        %370 = sbr.rel (%p368) target = $region28
      $region27: #{_forward_device.4} parent=11 // pred_region
        _
      $region28: #{_forward_device.4} parent=11 // pred_fallthru
        _
      // Predicated region
      $region29: #{_forward_device.4} parent=11 // pred_check
        %p371 = pneg %p203
      $region30: #{_forward_device.4} parent=11 // pred_check_branch
        %373 = sbr.rel (%p371) target = $region32
      $region31: #{_forward_device.4} parent=11 // pred_region
        _
      $region32: #{_forward_device.4} parent=11 // pred_fallthru
        _
      // Predicated region
      $region33: #{_forward_device.4} parent=11 // pred_check
        %p374 = pneg %p224
      $region34: #{_forward_device.4} parent=11 // pred_check_branch
        %376 = sbr.rel (%p374) target = $region36
      $region35: #{_forward_device.4} parent=11 // pred_region
        _
      $region36: #{_forward_device.4} parent=11 // pred_fallthru
        _
      // Predicated region
      $region37: #{_forward_device.4} parent=11 // pred_check
        %p377 = pneg %p245
      $region38: #{_forward_device.4} parent=11 // pred_check_branch
        %379 = sbr.rel (%p377) target = $region40
      $region39: #{_forward_device.4} parent=11 // pred_region
        _
      $region40: #{_forward_device.4} parent=11 // pred_fallthru
        _
      // Predicated region
      $region41: #{_forward_device.4} parent=11 // pred_check
        %p380 = pneg %p266
      $region42: #{_forward_device.4} parent=11 // pred_check_branch
        %382 = sbr.rel (%p380) target = $region44
      $region43: #{_forward_device.4} parent=11 // pred_region
        _
      $region44: #{_forward_device.4} parent=11 // pred_fallthru
        _
    $region12: #{_forward_device.4} parent=5 // pred_fallthru
      _
    %p383 = scmp.lt.s32.totalorder %s20, 2
    // Predicated region
    $region45: #{_forward_device.4} parent=5 // pred_check
      %p384 = pneg %p383
    $region46: #{_forward_device.4} parent=5 // pred_check_branch
      %386 = sbr.rel (%p384) target = $region48
    $region47: #{_forward_device.4} parent=5 // pred_region
      // Predicated region
      $region49: #{_forward_device.4} parent=47 // pred_check
        %p387 = pneg %p40
      $region50: #{_forward_device.4} parent=47 // pred_check_branch
        %389 = sbr.rel (%p387) target = $region52
      $region51: #{_forward_device.4} parent=47 // pred_region
        %s390 = smul.u32 16, %s20
        %p391 = scmp.lt.s32.totalorder %s390, 31
        %s392 = scalar_select %p391, %s390, 31
        %s393 = smul.addr %s392, 4
        %s394 = scalar_lea.vmem %s0, %s393
        %s395 = smul.u32 16, %s20
      $region52: #{_forward_device.4} parent=47 // pred_fallthru
        _
      // Predicated region
      $region53: #{_forward_device.4} parent=47 // pred_check
        %p396 = pneg %p66
      $region54: #{_forward_device.4} parent=47 // pred_check_branch
        %398 = sbr.rel (%p396) target = $region56
      $region55: #{_forward_device.4} parent=47 // pred_region
        %s399 = smul.u32 16, %s20
        %p400 = scmp.lt.s32.totalorder %s399, 31
        %s401 = scalar_select %p400, %s399, 31
        %s402 = smul.addr %s401, 4
        %s403 = scalar_lea.vmem %s1, %s402
        %s404 = smul.u32 16, %s20
      $region56: #{_forward_device.4} parent=47 // pred_fallthru
        _
      // Predicated region
      $region57: #{_forward_device.4} parent=47 // pred_check
        %p405 = pneg %p92
      $region58: #{_forward_device.4} parent=47 // pred_check_branch
        %407 = sbr.rel (%p405) target = $region60
      $region59: #{_forward_device.4} parent=47 // pred_region
        %s408 = smul.u32 16, %s20
        %p409 = scmp.lt.s32.totalorder %s408, 31
        %s410 = scalar_select %p409, %s408, 31
        %s411 = smul.addr %s410, 4
        %s412 = scalar_lea.vmem %s2, %s411
        %s413 = smul.u32 16, %s20
      $region60: #{_forward_device.4} parent=47 // pred_fallthru
        _
    $region48: #{_forward_device.4} parent=5 // pred_fallthru
      _
    %p414 = scmp.le.s32.totalorder 1, %s20
    %p415 = scmp.lt.s32.totalorder %s20, 3
    %p416 = pnand %p414, %p415
    %p417 = pneg %p416
    // Predicated region
    $region61: #{_forward_device.4} parent=5 // pred_check
      _
    $region62: #{_forward_device.4} parent=5 // pred_check_branch
      %419 = sbr.rel (%p416) target = $region64
    $region63: #{_forward_device.4} parent=5 // pred_region
      %s420 = ssub.s32 %s20, 1
      %s421 = smul.u32 16, %s25
      %p422 = scmp.lt.s32.totalorder %s421, 31
      %s423 = scalar_select %p422, %s421, 31
      %s424 = smul.addr %s423, 4
      %s425 = scalar_lea.vmem %s0, %s424
      %p426 = pneg %p46
      %p427 = pneg %p43
      %s428 = smul.u32 16, %s25
      %p429 = scmp.lt.s32.totalorder %s428, 31
      %s430 = scalar_select %p429, %s428, 31
      %s431 = smul.addr %s430, 4
      %s432 = scalar_lea.vmem %s1, %s431
      %p433 = pneg %p72
      %p434 = pneg %p69
      %s435 = smul.u32 16, %s25
      %p436 = scmp.lt.s32.totalorder %s435, 31
      %s437 = scalar_select %p436, %s435, 31
      %s438 = smul.addr %s437, 4
      %s439 = scalar_lea.vmem %s2, %s438
      %p440 = pneg %p98
      %p441 = pneg %p95
      %p442 = pneg %p119
      %p443 = pneg %p116
      %p444 = pneg %p140
      %p445 = pneg %p137
      %p446 = pneg %p161
      %p447 = pneg %p158
      %p448 = pneg %p182
      %p449 = pneg %p179
      %p450 = pneg %p203
      %p451 = pneg %p200
      %p452 = pneg %p224
      %p453 = pneg %p221
      %p454 = pneg %p245
      %p455 = pneg %p242
      %p456 = pneg %p266
      %p457 = pneg %p263
      %p458 = pneg %p292
      %p459 = pneg %p289
      %s460 = smul.u32 16, %s25
      %p461 = scmp.lt.s32.totalorder %s460, 31
      %s462 = scalar_select %p461, %s460, 31
      %s463 = smul.addr %s462, 4
      %s464 = scalar_lea.vmem %s11, %s463
      %p465 = pneg %p318
      %p466 = pneg %p315
      %s467 = smul.u32 16, %s25
      %p468 = scmp.lt.s32.totalorder %s467, 31
      %s469 = scalar_select %p468, %s467, 31
      %s470 = smul.addr %s469, 4
      %s471 = scalar_lea.vmem %s12, %s470
      %p472 = pneg %p344
      %p473 = pneg %p341
      %s474 = smul.u32 16, %s25
      %p475 = scmp.lt.s32.totalorder %s474, 31
      %s476 = scalar_select %p475, %s474, 31
      %s477 = smul.addr %s476, 4
      %s478 = scalar_lea.vmem %s13, %s477
      %s479 = smul.u32 16, %s25
      %p480 = scmp.lt.s32.totalorder %s479, 31
      %s481 = scalar_select %p480, %s479, 31
      %s482 = smul.addr %s481, 4
      %s483 = scalar_lea.vmem %s0, %s482
      %s484 = smul.u32 16, %s25
      %s485 = smul.u32 16, %s25
      %p486 = scmp.lt.s32.totalorder %s485, 31
      %s487 = scalar_select %p486, %s485, 31
      %s488 = smul.addr %s487, 4
      %s489 = scalar_lea.vmem %s1, %s488
      %s490 = smul.u32 16, %s25
      %s491 = smul.u32 16, %s25
      %p492 = scmp.lt.s32.totalorder %s491, 31
      %s493 = scalar_select %p492, %s491, 31
      %s494 = smul.addr %s493, 4
      %s495 = scalar_lea.vmem %s2, %s494
      %s496 = smul.u32 16, %s25
      %s497 = smul.u32 16, %s25
      %p498 = scmp.lt.s32.totalorder %s497, 31
      %s499 = scalar_select %p498, %s497, 31
      %s500 = smul.addr %s499, 4
      %s501 = scalar_lea.vmem %s11, %s500
      %s502 = smul.u32 16, %s25
      %s503 = smul.u32 16, %s25
      %p504 = scmp.lt.s32.totalorder %s503, 31
      %s505 = scalar_select %p504, %s503, 31
      %s506 = smul.addr %s505, 4
      %s507 = scalar_lea.vmem %s12, %s506
      %s508 = smul.u32 16, %s25
      %s509 = smul.u32 16, %s25
      %p510 = scmp.lt.s32.totalorder %s509, 31
      %s511 = scalar_select %p510, %s509, 31
      %s512 = smul.addr %s511, 4
      %s513 = scalar_lea.vmem %s13, %s512
      %s514 = smul.u32 16, %s25
      %v515 = vld [vmem:[%s495] sm:$0xf]
      %v516 = vld [vmem:[%s495 + $0x4] sm:$0xf]
      %v517 = vld [vmem:[%s495 + $0x8] sm:$0xf]
      %v518 = vld [vmem:[%s495 + $0xc] sm:$0xf]
      %v519 = vld [vmem:[%s495 + $0x10] sm:$0xf]
      %v520 = vld [vmem:[%s495 + $0x14] sm:$0xf]
      %v521 = vld [vmem:[%s495 + $0x18] sm:$0xf]
      %v522 = vld [vmem:[%s495 + $0x1c] sm:$0xf]
      %v523 = vld [vmem:[%s495 + $0x20] sm:$0xf]
      %v524 = vld [vmem:[%s495 + $0x24] sm:$0xf]
      %v525 = vld [vmem:[%s495 + $0x28] sm:$0xf]
      %v526 = vld [vmem:[%s495 + $0x2c] sm:$0xf]
      %v527 = vld [vmem:[%s495 + $0x30] sm:$0xf]
      %v528 = vld [vmem:[%s495 + $0x34] sm:$0xf]
      %v529 = vld [vmem:[%s495 + $0x38] sm:$0xf]
      %v530 = vld [vmem:[%s495 + $0x3c] sm:$0xf]
      %v531 = vld [vmem:[%s3] sm:$0xf]
      %v532 = vld [vmem:[%s3 + $0x4] sm:$0xf]
      %v533 = vld [vmem:[%s3 + $0x8] sm:$0xf]
      %v534 = vld [vmem:[%s3 + $0xc] sm:$0xf]
      %v535 = vld [vmem:[%s3 + $0x10] sm:$0xf]
      %v536 = vld [vmem:[%s3 + $0x14] sm:$0xf]
      %v537 = vld [vmem:[%s3 + $0x18] sm:$0xf]
      %v538 = vld [vmem:[%s3 + $0x1c] sm:$0xf]
      %v539 = vld [vmem:[%s3 + $0x20] sm:$0xf]
      %v540 = vld [vmem:[%s3 + $0x24] sm:$0xf]
      %v541 = vld [vmem:[%s3 + $0x28] sm:$0xf]
      %v542 = vld [vmem:[%s3 + $0x2c] sm:$0xf]
      %v543 = vld [vmem:[%s3 + $0x30] sm:$0xf]
      %v544 = vld [vmem:[%s3 + $0x34] sm:$0xf]
      %v545 = vld [vmem:[%s3 + $0x38] sm:$0xf]
      %v546 = vld [vmem:[%s3 + $0x3c] sm:$0xf]
      %v547 = vld [vmem:[%s4] sm:$0x1]
      %v549 = vperm.slane %v547, 0
      %v567 = vunpack.c.l.b16 %v515
      %v568 = vunpack.c.l.b16 %v516
      %v569 = vunpack.c.l.b16 %v517
      %v570 = vunpack.c.l.b16 %v518
      %v571 = vunpack.c.l.b16 %v519
      %v572 = vunpack.c.l.b16 %v520
      %v573 = vunpack.c.l.b16 %v521
      %v574 = vunpack.c.l.b16 %v522
      %v575 = vunpack.c.l.b16 %v523
      %v576 = vunpack.c.l.b16 %v524
      %v577 = vunpack.c.l.b16 %v525
      %v578 = vunpack.c.l.b16 %v526
      %v579 = vunpack.c.l.b16 %v527
      %v580 = vunpack.c.l.b16 %v528
      %v581 = vunpack.c.l.b16 %v529
      %v582 = vunpack.c.l.b16 %v530
      %v583 = vpack.c.b16 %v568, %v567
      %v584 = vpack.c.b16 %v570, %v569
      %v585 = vpack.c.b16 %v572, %v571
      %v586 = vpack.c.b16 %v574, %v573
      %v587 = vpack.c.b16 %v576, %v575
      %v588 = vpack.c.b16 %v578, %v577
      %v589 = vpack.c.b16 %v580, %v579
      %v590 = vpack.c.b16 %v582, %v581
      %v615 = vunpack.c.l.b16 %v531
      %v616 = vunpack.c.l.b16 %v532
      %v617 = vunpack.c.l.b16 %v533
      %v618 = vunpack.c.l.b16 %v534
      %v619 = vunpack.c.l.b16 %v535
      %v620 = vunpack.c.l.b16 %v536
      %v621 = vunpack.c.l.b16 %v537
      %v622 = vunpack.c.l.b16 %v538
      %v623 = vunpack.c.l.b16 %v539
      %v624 = vunpack.c.l.b16 %v540
      %v625 = vunpack.c.l.b16 %v541
      %v626 = vunpack.c.l.b16 %v542
      %v627 = vunpack.c.l.b16 %v543
      %v628 = vunpack.c.l.b16 %v544
      %v629 = vunpack.c.l.b16 %v545
      %v630 = vunpack.c.l.b16 %v546
      %v631 = vpack.c.b16 %v616, %v615
      %v632 = vpack.c.b16 %v618, %v617
      %v633 = vpack.c.b16 %v620, %v619
      %v634 = vpack.c.b16 %v622, %v621
      %v635 = vpack.c.b16 %v624, %v623
      %v636 = vpack.c.b16 %v626, %v625
      %v637 = vpack.c.b16 %v628, %v627
      %v638 = vpack.c.b16 %v630, %v629
      %647 = vmatpush.bf16.msra.mxu0 %v638
      %648 = vmatpush.bf16.msra.mxu0 %v637
      %649 = vmatpush.bf16.msra.mxu0 %v636
      %650 = vmatpush.bf16.msra.mxu0 %v635
      %651 = vmatpush.bf16.msra.mxu0 %v634
      %652 = vmatpush.bf16.msra.mxu0 %v633
      %653 = vmatpush.bf16.msra.mxu0 %v632
      %654 = vmatpush.bf16.msra.mxu0 %v631
      %655 = vmatmul.bf16.gmra.mxu0 %v583
      %v656 = vpop.f32.mrf.mxu0
      %v657 = vadd.f32 %v549, %v656
      %v658 = vpop.f32.mrf.mxu0
      %v659 = vadd.f32 %v549, %v658
      %660 = vmatmul.bf16.gmra.mxu0 %v584
      %v661 = vpop.f32.mrf.mxu0
      %v662 = vadd.f32 %v549, %v661
      %v663 = vpop.f32.mrf.mxu0
      %v664 = vadd.f32 %v549, %v663
      %665 = vmatmul.bf16.gmra.mxu0 %v585
      %v666 = vpop.f32.mrf.mxu0
      %v667 = vadd.f32 %v549, %v666
      %v668 = vpop.f32.mrf.mxu0
      %v669 = vadd.f32 %v549, %v668
      %670 = vmatmul.bf16.gmra.mxu0 %v586
      %v671 = vpop.f32.mrf.mxu0
      %v672 = vadd.f32 %v549, %v671
      %v673 = vpop.f32.mrf.mxu0
      %v674 = vadd.f32 %v549, %v673
      %675 = vmatmul.bf16.gmra.mxu0 %v587
      %v676 = vpop.f32.mrf.mxu0
      %v677 = vadd.f32 %v549, %v676
      %v678 = vpop.f32.mrf.mxu0
      %v679 = vadd.f32 %v549, %v678
      %680 = vmatmul.bf16.gmra.mxu0 %v588
      %v681 = vpop.f32.mrf.mxu0
      %v682 = vadd.f32 %v549, %v681
      %v683 = vpop.f32.mrf.mxu0
      %v684 = vadd.f32 %v549, %v683
      %685 = vmatmul.bf16.gmra.mxu0 %v589
      %v686 = vpop.f32.mrf.mxu0
      %v687 = vadd.f32 %v549, %v686
      %v688 = vpop.f32.mrf.mxu0
      %v689 = vadd.f32 %v549, %v688
      %690 = vmatmul.bf16.gmra.mxu0 %v590
      %v691 = vpop.f32.mrf.mxu0
      %v692 = vadd.f32 %v549, %v691
      %v693 = vpop.f32.mrf.mxu0
      %v694 = vadd.f32 %v549, %v693
      %695 = vdwg.mxu0
      %v696 = vsub.f32 0.0, %v657
      %v697 = vsub.f32 0.0, %v659
      %v698 = vsub.f32 0.0, %v662
      %v699 = vsub.f32 0.0, %v664
      %v700 = vsub.f32 0.0, %v667
      %v701 = vsub.f32 0.0, %v669
      %v702 = vsub.f32 0.0, %v672
      %v703 = vsub.f32 0.0, %v674
      %v704 = vsub.f32 0.0, %v677
      %v705 = vsub.f32 0.0, %v679
      %v706 = vsub.f32 0.0, %v682
      %v707 = vsub.f32 0.0, %v684
      %v708 = vsub.f32 0.0, %v687
      %v709 = vsub.f32 0.0, %v689
      %v710 = vsub.f32 0.0, %v692
      %v711 = vsub.f32 0.0, %v694
      %v712 = vmul.f32 %v696, 1.442695
      %v713 = vpow.pop %v712
      %v714 = vmul.f32 %v697, 1.442695
      %v715 = vpow.pop %v714
      %v716 = vmul.f32 %v698, 1.442695
      %v717 = vpow.pop %v716
      %v718 = vmul.f32 %v699, 1.442695
      %v719 = vpow.pop %v718
      %v720 = vmul.f32 %v700, 1.442695
      %v721 = vpow.pop %v720
      %v722 = vmul.f32 %v701, 1.442695
      %v723 = vpow.pop %v722
      %v724 = vmul.f32 %v702, 1.442695
      %v725 = vpow.pop %v724
      %v726 = vmul.f32 %v703, 1.442695
      %v727 = vpow.pop %v726
      %v728 = vmul.f32 %v704, 1.442695
      %v729 = vpow.pop %v728
      %v730 = vmul.f32 %v705, 1.442695
      %v731 = vpow.pop %v730
      %v732 = vmul.f32 %v706, 1.442695
      %v733 = vpow.pop %v732
      %v734 = vmul.f32 %v707, 1.442695
      %v735 = vpow.pop %v734
      %v736 = vmul.f32 %v708, 1.442695
      %v737 = vpow.pop %v736
      %v738 = vmul.f32 %v709, 1.442695
      %v739 = vpow.pop %v738
      %v740 = vmul.f32 %v710, 1.442695
      %v741 = vpow.pop %v740
      %v742 = vmul.f32 %v711, 1.442695
      %v743 = vpow.pop %v742
      %v744 = vadd.f32 %v713, 1.0
      %v745 = vadd.f32 %v715, 1.0
      %v746 = vadd.f32 %v717, 1.0
      %v747 = vadd.f32 %v719, 1.0
      %v748 = vadd.f32 %v721, 1.0
      %v749 = vadd.f32 %v723, 1.0
      %v750 = vadd.f32 %v725, 1.0
      %v751 = vadd.f32 %v727, 1.0
      %v752 = vadd.f32 %v729, 1.0
      %v753 = vadd.f32 %v731, 1.0
      %v754 = vadd.f32 %v733, 1.0
      %v755 = vadd.f32 %v735, 1.0
      %v756 = vadd.f32 %v737, 1.0
      %v757 = vadd.f32 %v739, 1.0
      %v758 = vadd.f32 %v741, 1.0
      %v759 = vadd.f32 %v743, 1.0
      %v760 = vrcp.pop %v744
      %v761 = vmul.f32 %v744, %v760
      %v762 = vsub.f32 1.0, %v761
      %v763 = vmul.f32 %v760, %v762
      %v764 = vadd.f32 %v760, %v763
      %vm765 = vweird.f32 %v744
      %vm766 = vweird.f32 %v760
      %vm767 = vmor %vm765, %vm766
      %v768 = vsel %vm767, %v760, %v764
      %v769 = vand.u32 2147483647, %v744
      %vm770 = vcmp.eq.f32.partialorder %v769, 8.507059e+37
      %v771 = vand.u32 %v744, 2147483648
      %v772 = vor.u32 1.1754944e-38, %v771
      %v773 = vsel %vm770, %v772, %v768
      %v774 = vmul.f32 1.0, %v773
      %v775 = vrcp.pop %v745
      %v776 = vmul.f32 %v745, %v775
      %v777 = vsub.f32 1.0, %v776
      %v778 = vmul.f32 %v775, %v777
      %v779 = vadd.f32 %v775, %v778
      %vm780 = vweird.f32 %v745
      %vm781 = vweird.f32 %v775
      %vm782 = vmor %vm780, %vm781
      %v783 = vsel %vm782, %v775, %v779
      %v784 = vand.u32 2147483647, %v745
      %vm785 = vcmp.eq.f32.partialorder %v784, 8.507059e+37
      %v786 = vand.u32 %v745, 2147483648
      %v787 = vor.u32 1.1754944e-38, %v786
      %v788 = vsel %vm785, %v787, %v783
      %v789 = vmul.f32 1.0, %v788
      %v790 = vrcp.pop %v746
      %v791 = vmul.f32 %v746, %v790
      %v792 = vsub.f32 1.0, %v791
      %v793 = vmul.f32 %v790, %v792
      %v794 = vadd.f32 %v790, %v793
      %vm795 = vweird.f32 %v746
      %vm796 = vweird.f32 %v790
      %vm797 = vmor %vm795, %vm796
      %v798 = vsel %vm797, %v790, %v794
      %v799 = vand.u32 2147483647, %v746
      %vm800 = vcmp.eq.f32.partialorder %v799, 8.507059e+37
      %v801 = vand.u32 %v746, 2147483648
      %v802 = vor.u32 1.1754944e-38, %v801
      %v803 = vsel %vm800, %v802, %v798
      %v804 = vmul.f32 1.0, %v803
      %v805 = vrcp.pop %v747
      %v806 = vmul.f32 %v747, %v805
      %v807 = vsub.f32 1.0, %v806
      %v808 = vmul.f32 %v805, %v807
      %v809 = vadd.f32 %v805, %v808
      %vm810 = vweird.f32 %v747
      %vm811 = vweird.f32 %v805
      %vm812 = vmor %vm810, %vm811
      %v813 = vsel %vm812, %v805, %v809
      %v814 = vand.u32 2147483647, %v747
      %vm815 = vcmp.eq.f32.partialorder %v814, 8.507059e+37
      %v816 = vand.u32 %v747, 2147483648
      %v817 = vor.u32 1.1754944e-38, %v816
      %v818 = vsel %vm815, %v817, %v813
      %v819 = vmul.f32 1.0, %v818
      %v820 = vrcp.pop %v748
      %v821 = vmul.f32 %v748, %v820
      %v822 = vsub.f32 1.0, %v821
      %v823 = vmul.f32 %v820, %v822
      %v824 = vadd.f32 %v820, %v823
      %vm825 = vweird.f32 %v748
      %vm826 = vweird.f32 %v820
      %vm827 = vmor %vm825, %vm826
      %v828 = vsel %vm827, %v820, %v824
      %v829 = vand.u32 2147483647, %v748
      %vm830 = vcmp.eq.f32.partialorder %v829, 8.507059e+37
      %v831 = vand.u32 %v748, 2147483648
      %v832 = vor.u32 1.1754944e-38, %v831
      %v833 = vsel %vm830, %v832, %v828
      %v834 = vmul.f32 1.0, %v833
      %v835 = vrcp.pop %v749
      %v836 = vmul.f32 %v749, %v835
      %v837 = vsub.f32 1.0, %v836
      %v838 = vmul.f32 %v835, %v837
      %v839 = vadd.f32 %v835, %v838
      %vm840 = vweird.f32 %v749
      %vm841 = vweird.f32 %v835
      %vm842 = vmor %vm840, %vm841
      %v843 = vsel %vm842, %v835, %v839
      %v844 = vand.u32 2147483647, %v749
      %vm845 = vcmp.eq.f32.partialorder %v844, 8.507059e+37
      %v846 = vand.u32 %v749, 2147483648
      %v847 = vor.u32 1.1754944e-38, %v846
      %v848 = vsel %vm845, %v847, %v843
      %v849 = vmul.f32 1.0, %v848
      %v850 = vrcp.pop %v750
      %v851 = vmul.f32 %v750, %v850
      %v852 = vsub.f32 1.0, %v851
      %v853 = vmul.f32 %v850, %v852
      %v854 = vadd.f32 %v850, %v853
      %vm855 = vweird.f32 %v750
      %vm856 = vweird.f32 %v850
      %vm857 = vmor %vm855, %vm856
      %v858 = vsel %vm857, %v850, %v854
      %v859 = vand.u32 2147483647, %v750
      %vm860 = vcmp.eq.f32.partialorder %v859, 8.507059e+37
      %v861 = vand.u32 %v750, 2147483648
      %v862 = vor.u32 1.1754944e-38, %v861
      %v863 = vsel %vm860, %v862, %v858
      %v864 = vmul.f32 1.0, %v863
      %v865 = vrcp.pop %v751
      %v866 = vmul.f32 %v751, %v865
      %v867 = vsub.f32 1.0, %v866
      %v868 = vmul.f32 %v865, %v867
      %v869 = vadd.f32 %v865, %v868
      %vm870 = vweird.f32 %v751
      %vm871 = vweird.f32 %v865
      %vm872 = vmor %vm870, %vm871
      %v873 = vsel %vm872, %v865, %v869
      %v874 = vand.u32 2147483647, %v751
      %vm875 = vcmp.eq.f32.partialorder %v874, 8.507059e+37
      %v876 = vand.u32 %v751, 2147483648
      %v877 = vor.u32 1.1754944e-38, %v876
      %v878 = vsel %vm875, %v877, %v873
      %v879 = vmul.f32 1.0, %v878
      %v880 = vrcp.pop %v752
      %v881 = vmul.f32 %v752, %v880
      %v882 = vsub.f32 1.0, %v881
      %v883 = vmul.f32 %v880, %v882
      %v884 = vadd.f32 %v880, %v883
      %vm885 = vweird.f32 %v752
      %vm886 = vweird.f32 %v880
      %vm887 = vmor %vm885, %vm886
      %v888 = vsel %vm887, %v880, %v884
      %v889 = vand.u32 2147483647, %v752
      %vm890 = vcmp.eq.f32.partialorder %v889, 8.507059e+37
      %v891 = vand.u32 %v752, 2147483648
      %v892 = vor.u32 1.1754944e-38, %v891
      %v893 = vsel %vm890, %v892, %v888
      %v894 = vmul.f32 1.0, %v893
      %v895 = vrcp.pop %v753
      %v896 = vmul.f32 %v753, %v895
      %v897 = vsub.f32 1.0, %v896
      %v898 = vmul.f32 %v895, %v897
      %v899 = vadd.f32 %v895, %v898
      %vm900 = vweird.f32 %v753
      %vm901 = vweird.f32 %v895
      %vm902 = vmor %vm900, %vm901
      %v903 = vsel %vm902, %v895, %v899
      %v904 = vand.u32 2147483647, %v753
      %vm905 = vcmp.eq.f32.partialorder %v904, 8.507059e+37
      %v906 = vand.u32 %v753, 2147483648
      %v907 = vor.u32 1.1754944e-38, %v906
      %v908 = vsel %vm905, %v907, %v903
      %v909 = vmul.f32 1.0, %v908
      %v910 = vrcp.pop %v754
      %v911 = vmul.f32 %v754, %v910
      %v912 = vsub.f32 1.0, %v911
      %v913 = vmul.f32 %v910, %v912
      %v914 = vadd.f32 %v910, %v913
      %vm915 = vweird.f32 %v754
      %vm916 = vweird.f32 %v910
      %vm917 = vmor %vm915, %vm916
      %v918 = vsel %vm917, %v910, %v914
      %v919 = vand.u32 2147483647, %v754
      %vm920 = vcmp.eq.f32.partialorder %v919, 8.507059e+37
      %v921 = vand.u32 %v754, 2147483648
      %v922 = vor.u32 1.1754944e-38, %v921
      %v923 = vsel %vm920, %v922, %v918
      %v924 = vmul.f32 1.0, %v923
      %v925 = vrcp.pop %v755
      %v926 = vmul.f32 %v755, %v925
      %v927 = vsub.f32 1.0, %v926
      %v928 = vmul.f32 %v925, %v927
      %v929 = vadd.f32 %v925, %v928
      %vm930 = vweird.f32 %v755
      %vm931 = vweird.f32 %v925
      %vm932 = vmor %vm930, %vm931
      %v933 = vsel %vm932, %v925, %v929
      %v934 = vand.u32 2147483647, %v755
      %vm935 = vcmp.eq.f32.partialorder %v934, 8.507059e+37
      %v936 = vand.u32 %v755, 2147483648
      %v937 = vor.u32 1.1754944e-38, %v936
      %v938 = vsel %vm935, %v937, %v933
      %v939 = vmul.f32 1.0, %v938
      %v940 = vrcp.pop %v756
      %v941 = vmul.f32 %v756, %v940
      %v942 = vsub.f32 1.0, %v941
      %v943 = vmul.f32 %v940, %v942
      %v944 = vadd.f32 %v940, %v943
      %vm945 = vweird.f32 %v756
      %vm946 = vweird.f32 %v940
      %vm947 = vmor %vm945, %vm946
      %v948 = vsel %vm947, %v940, %v944
      %v949 = vand.u32 2147483647, %v756
      %vm950 = vcmp.eq.f32.partialorder %v949, 8.507059e+37
      %v951 = vand.u32 %v756, 2147483648
      %v952 = vor.u32 1.1754944e-38, %v951
      %v953 = vsel %vm950, %v952, %v948
      %v954 = vmul.f32 1.0, %v953
      %v955 = vrcp.pop %v757
      %v956 = vmul.f32 %v757, %v955
      %v957 = vsub.f32 1.0, %v956
      %v958 = vmul.f32 %v955, %v957
      %v959 = vadd.f32 %v955, %v958
      %vm960 = vweird.f32 %v757
      %vm961 = vweird.f32 %v955
      %vm962 = vmor %vm960, %vm961
      %v963 = vsel %vm962, %v955, %v959
      %v964 = vand.u32 2147483647, %v757
      %vm965 = vcmp.eq.f32.partialorder %v964, 8.507059e+37
      %v966 = vand.u32 %v757, 2147483648
      %v967 = vor.u32 1.1754944e-38, %v966
      %v968 = vsel %vm965, %v967, %v963
      %v969 = vmul.f32 1.0, %v968
      %v970 = vrcp.pop %v758
      %v971 = vmul.f32 %v758, %v970
      %v972 = vsub.f32 1.0, %v971
      %v973 = vmul.f32 %v970, %v972
      %v974 = vadd.f32 %v970, %v973
      %vm975 = vweird.f32 %v758
      %vm976 = vweird.f32 %v970
      %vm977 = vmor %vm975, %vm976
      %v978 = vsel %vm977, %v970, %v974
      %v979 = vand.u32 2147483647, %v758
      %vm980 = vcmp.eq.f32.partialorder %v979, 8.507059e+37
      %v981 = vand.u32 %v758, 2147483648
      %v982 = vor.u32 1.1754944e-38, %v981
      %v983 = vsel %vm980, %v982, %v978
      %v984 = vmul.f32 1.0, %v983
      %v985 = vrcp.pop %v759
      %v986 = vmul.f32 %v759, %v985
      %v987 = vsub.f32 1.0, %v986
      %v988 = vmul.f32 %v985, %v987
      %v989 = vadd.f32 %v985, %v988
      %vm990 = vweird.f32 %v759
      %vm991 = vweird.f32 %v985
      %vm992 = vmor %vm990, %vm991
      %v993 = vsel %vm992, %v985, %v989
      %v994 = vand.u32 2147483647, %v759
      %vm995 = vcmp.eq.f32.partialorder %v994, 8.507059e+37
      %v996 = vand.u32 %v759, 2147483648
      %v997 = vor.u32 1.1754944e-38, %v996
      %v998 = vsel %vm995, %v997, %v993
      %v999 = vmul.f32 1.0, %v998
      %v1000 = vmul.f32 %v657, %v774
      %v1001 = vmul.f32 %v659, %v789
      %v1002 = vmul.f32 %v662, %v804
      %v1003 = vmul.f32 %v664, %v819
      %v1004 = vmul.f32 %v667, %v834
      %v1005 = vmul.f32 %v669, %v849
      %v1006 = vmul.f32 %v672, %v864
      %v1007 = vmul.f32 %v674, %v879
      %v1008 = vmul.f32 %v677, %v894
      %v1009 = vmul.f32 %v679, %v909
      %v1010 = vmul.f32 %v682, %v924
      %v1011 = vmul.f32 %v684, %v939
      %v1012 = vmul.f32 %v687, %v954
      %v1013 = vmul.f32 %v689, %v969
      %v1014 = vmul.f32 %v692, %v984
      %v1015 = vmul.f32 %v694, %v999
      %v1016 = vld [vmem:[%s483] sm:$0xf]
      %v1017 = vld [vmem:[%s483 + $0x4] sm:$0xf]
      %v1018 = vld [vmem:[%s483 + $0x8] sm:$0xf]
      %v1019 = vld [vmem:[%s483 + $0xc] sm:$0xf]
      %v1020 = vld [vmem:[%s483 + $0x10] sm:$0xf]
      %v1021 = vld [vmem:[%s483 + $0x14] sm:$0xf]
      %v1022 = vld [vmem:[%s483 + $0x18] sm:$0xf]
      %v1023 = vld [vmem:[%s483 + $0x1c] sm:$0xf]
      %v1024 = vld [vmem:[%s483 + $0x20] sm:$0xf]
      %v1025 = vld [vmem:[%s483 + $0x24] sm:$0xf]
      %v1026 = vld [vmem:[%s483 + $0x28] sm:$0xf]
      %v1027 = vld [vmem:[%s483 + $0x2c] sm:$0xf]
      %v1028 = vld [vmem:[%s483 + $0x30] sm:$0xf]
      %v1029 = vld [vmem:[%s483 + $0x34] sm:$0xf]
      %v1030 = vld [vmem:[%s483 + $0x38] sm:$0xf]
      %v1031 = vld [vmem:[%s483 + $0x3c] sm:$0xf]
      %v1032 = vld [vmem:[%s489] sm:$0xf]
      %v1033 = vld [vmem:[%s489 + $0x4] sm:$0xf]
      %v1034 = vld [vmem:[%s489 + $0x8] sm:$0xf]
      %v1035 = vld [vmem:[%s489 + $0xc] sm:$0xf]
      %v1036 = vld [vmem:[%s489 + $0x10] sm:$0xf]
      %v1037 = vld [vmem:[%s489 + $0x14] sm:$0xf]
      %v1038 = vld [vmem:[%s489 + $0x18] sm:$0xf]
      %v1039 = vld [vmem:[%s489 + $0x1c] sm:$0xf]
      %v1040 = vld [vmem:[%s489 + $0x20] sm:$0xf]
      %v1041 = vld [vmem:[%s489 + $0x24] sm:$0xf]
      %v1042 = vld [vmem:[%s489 + $0x28] sm:$0xf]
      %v1043 = vld [vmem:[%s489 + $0x2c] sm:$0xf]
      %v1044 = vld [vmem:[%s489 + $0x30] sm:$0xf]
      %v1045 = vld [vmem:[%s489 + $0x34] sm:$0xf]
      %v1046 = vld [vmem:[%s489 + $0x38] sm:$0xf]
      %v1047 = vld [vmem:[%s489 + $0x3c] sm:$0xf]
      %v1048 = vpack.c.bf16 %v1000, %v1000
      %v1049 = vpack.c.bf16 %v1001, %v1001
      %v1050 = vpack.c.bf16 %v1002, %v1002
      %v1051 = vpack.c.bf16 %v1003, %v1003
      %v1052 = vpack.c.bf16 %v1004, %v1004
      %v1053 = vpack.c.bf16 %v1005, %v1005
      %v1054 = vpack.c.bf16 %v1006, %v1006
      %v1055 = vpack.c.bf16 %v1007, %v1007
      %v1056 = vpack.c.bf16 %v1008, %v1008
      %v1057 = vpack.c.bf16 %v1009, %v1009
      %v1058 = vpack.c.bf16 %v1010, %v1010
      %v1059 = vpack.c.bf16 %v1011, %v1011
      %v1060 = vpack.c.bf16 %v1012, %v1012
      %v1061 = vpack.c.bf16 %v1013, %v1013
      %v1062 = vpack.c.bf16 %v1014, %v1014
      %v1063 = vpack.c.bf16 %v1015, %v1015
      %v1080 = vunpack.c.l.b16 %v1016
      %v1081 = vunpack.c.l.b16 %v1017
      %v1082 = vunpack.c.l.b16 %v1018
      %v1083 = vunpack.c.l.b16 %v1019
      %v1084 = vunpack.c.l.b16 %v1020
      %v1085 = vunpack.c.l.b16 %v1021
      %v1086 = vunpack.c.l.b16 %v1022
      %v1087 = vunpack.c.l.b16 %v1023
      %v1088 = vunpack.c.l.b16 %v1024
      %v1089 = vunpack.c.l.b16 %v1025
      %v1090 = vunpack.c.l.b16 %v1026
      %v1091 = vunpack.c.l.b16 %v1027
      %v1092 = vunpack.c.l.b16 %v1028
      %v1093 = vunpack.c.l.b16 %v1029
      %v1094 = vunpack.c.l.b16 %v1030
      %v1095 = vunpack.c.l.b16 %v1031
      %v1096 = vpack.c.b16 %v1081, %v1080
      %v1097 = vpack.c.b16 %v1083, %v1082
      %v1098 = vpack.c.b16 %v1085, %v1084
      %v1099 = vpack.c.b16 %v1087, %v1086
      %v1100 = vpack.c.b16 %v1089, %v1088
      %v1101 = vpack.c.b16 %v1091, %v1090
      %v1102 = vpack.c.b16 %v1093, %v1092
      %v1103 = vpack.c.b16 %v1095, %v1094
      %v1128 = vunpack.c.l.b16 %v1032
      %v1129 = vunpack.c.l.b16 %v1033
      %v1130 = vunpack.c.l.b16 %v1034
      %v1131 = vunpack.c.l.b16 %v1035
      %v1132 = vunpack.c.l.b16 %v1036
      %v1133 = vunpack.c.l.b16 %v1037
      %v1134 = vunpack.c.l.b16 %v1038
      %v1135 = vunpack.c.l.b16 %v1039
      %v1136 = vunpack.c.l.b16 %v1040
      %v1137 = vunpack.c.l.b16 %v1041
      %v1138 = vunpack.c.l.b16 %v1042
      %v1139 = vunpack.c.l.b16 %v1043
      %v1140 = vunpack.c.l.b16 %v1044
      %v1141 = vunpack.c.l.b16 %v1045
      %v1142 = vunpack.c.l.b16 %v1046
      %v1143 = vunpack.c.l.b16 %v1047
      %v1144 = vpack.c.b16 %v1129, %v1128
      %v1145 = vpack.c.b16 %v1131, %v1130
      %v1146 = vpack.c.b16 %v1133, %v1132
      %v1147 = vpack.c.b16 %v1135, %v1134
      %v1148 = vpack.c.b16 %v1137, %v1136
      %v1149 = vpack.c.b16 %v1139, %v1138
      %v1150 = vpack.c.b16 %v1141, %v1140
      %v1151 = vpack.c.b16 %v1143, %v1142
      %v1176 = vunpack.c.l.b16 %v1048
      %v1177 = vunpack.c.l.b16 %v1049
      %v1178 = vunpack.c.l.b16 %v1050
      %v1179 = vunpack.c.l.b16 %v1051
      %v1180 = vunpack.c.l.b16 %v1052
      %v1181 = vunpack.c.l.b16 %v1053
      %v1182 = vunpack.c.l.b16 %v1054
      %v1183 = vunpack.c.l.b16 %v1055
      %v1184 = vunpack.c.l.b16 %v1056
      %v1185 = vunpack.c.l.b16 %v1057
      %v1186 = vunpack.c.l.b16 %v1058
      %v1187 = vunpack.c.l.b16 %v1059
      %v1188 = vunpack.c.l.b16 %v1060
      %v1189 = vunpack.c.l.b16 %v1061
      %v1190 = vunpack.c.l.b16 %v1062
      %v1191 = vunpack.c.l.b16 %v1063
      %v1192 = vpack.c.b16 %v1177, %v1176
      %v1193 = vpack.c.b16 %v1179, %v1178
      %v1194 = vpack.c.b16 %v1181, %v1180
      %v1195 = vpack.c.b16 %v1183, %v1182
      %v1196 = vpack.c.b16 %v1185, %v1184
      %v1197 = vpack.c.b16 %v1187, %v1186
      %v1198 = vpack.c.b16 %v1189, %v1188
      %v1199 = vpack.c.b16 %v1191, %v1190
      %v1208 = vld [vmem:[%s5] sm:$0xf]
      %v1209 = vld [vmem:[%s5 + $0x4] sm:$0xf]
      %v1210 = vld [vmem:[%s5 + $0x8] sm:$0xf]
      %v1211 = vld [vmem:[%s5 + $0xc] sm:$0xf]
      %v1212 = vld [vmem:[%s5 + $0x10] sm:$0xf]
      %v1213 = vld [vmem:[%s5 + $0x14] sm:$0xf]
      %v1214 = vld [vmem:[%s5 + $0x18] sm:$0xf]
      %v1215 = vld [vmem:[%s5 + $0x1c] sm:$0xf]
      %v1216 = vld [vmem:[%s5 + $0x20] sm:$0xf]
      %v1217 = vld [vmem:[%s5 + $0x24] sm:$0xf]
      %v1218 = vld [vmem:[%s5 + $0x28] sm:$0xf]
      %v1219 = vld [vmem:[%s5 + $0x2c] sm:$0xf]
      %v1220 = vld [vmem:[%s5 + $0x30] sm:$0xf]
      %v1221 = vld [vmem:[%s5 + $0x34] sm:$0xf]
      %v1222 = vld [vmem:[%s5 + $0x38] sm:$0xf]
      %v1223 = vld [vmem:[%s5 + $0x3c] sm:$0xf]
      %v1224 = vld [vmem:[%s5 + $0x40] sm:$0xf]
      %v1225 = vld [vmem:[%s5 + $0x44] sm:$0xf]
      %v1226 = vld [vmem:[%s5 + $0x48] sm:$0xf]
      %v1227 = vld [vmem:[%s5 + $0x4c] sm:$0xf]
      %v1228 = vld [vmem:[%s5 + $0x50] sm:$0xf]
      %v1229 = vld [vmem:[%s5 + $0x54] sm:$0xf]
      %v1230 = vld [vmem:[%s5 + $0x58] sm:$0xf]
      %v1231 = vld [vmem:[%s5 + $0x5c] sm:$0xf]
      %v1232 = vld [vmem:[%s5 + $0x60] sm:$0xf]
      %v1233 = vld [vmem:[%s5 + $0x64] sm:$0xf]
      %v1234 = vld [vmem:[%s5 + $0x68] sm:$0xf]
      %v1235 = vld [vmem:[%s5 + $0x6c] sm:$0xf]
      %v1236 = vld [vmem:[%s5 + $0x70] sm:$0xf]
      %v1237 = vld [vmem:[%s5 + $0x74] sm:$0xf]
      %v1238 = vld [vmem:[%s5 + $0x78] sm:$0xf]
      %v1239 = vld [vmem:[%s5 + $0x7c] sm:$0xf]
      %v1240 = vld [vmem:[%s5 + $0x80] sm:$0xf]
      %v1241 = vld [vmem:[%s5 + $0x84] sm:$0xf]
      %v1242 = vld [vmem:[%s5 + $0x88] sm:$0xf]
      %v1243 = vld [vmem:[%s5 + $0x8c] sm:$0xf]
      %v1244 = vld [vmem:[%s5 + $0x90] sm:$0xf]
      %v1245 = vld [vmem:[%s5 + $0x94] sm:$0xf]
      %v1246 = vld [vmem:[%s5 + $0x98] sm:$0xf]
      %v1247 = vld [vmem:[%s5 + $0x9c] sm:$0xf]
      %v1248 = vld [vmem:[%s5 + $0xa0] sm:$0xf]
      %v1249 = vld [vmem:[%s5 + $0xa4] sm:$0xf]
      %v1250 = vld [vmem:[%s5 + $0xa8] sm:$0xf]
      %v1251 = vld [vmem:[%s5 + $0xac] sm:$0xf]
      %v1252 = vld [vmem:[%s5 + $0xb0] sm:$0xf]
      %v1253 = vld [vmem:[%s5 + $0xb4] sm:$0xf]
      %v1254 = vld [vmem:[%s5 + $0xb8] sm:$0xf]
      %v1255 = vld [vmem:[%s5 + $0xbc] sm:$0xf]
      %v1256 = vld [vmem:[%s6] sm:$0x1]
      %v1258 = vperm.slane %v1256, 0
      %v1308 = vunpack.c.l.b16 %v1208
      %v1309 = vunpack.c.l.b16 %v1209
      %v1310 = vunpack.c.l.b16 %v1210
      %v1311 = vunpack.c.l.b16 %v1211
      %v1312 = vunpack.c.l.b16 %v1212
      %v1313 = vunpack.c.l.b16 %v1213
      %v1314 = vunpack.c.l.b16 %v1214
      %v1315 = vunpack.c.l.b16 %v1215
      %v1316 = vunpack.c.l.b16 %v1216
      %v1317 = vunpack.c.l.b16 %v1217
      %v1318 = vunpack.c.l.b16 %v1218
      %v1319 = vunpack.c.l.b16 %v1219
      %v1320 = vunpack.c.l.b16 %v1220
      %v1321 = vunpack.c.l.b16 %v1221
      %v1322 = vunpack.c.l.b16 %v1222
      %v1323 = vunpack.c.l.b16 %v1223
      %v1324 = vunpack.c.l.b16 %v1224
      %v1325 = vunpack.c.l.b16 %v1225
      %v1326 = vunpack.c.l.b16 %v1226
      %v1327 = vunpack.c.l.b16 %v1227
      %v1328 = vunpack.c.l.b16 %v1228
      %v1329 = vunpack.c.l.b16 %v1229
      %v1330 = vunpack.c.l.b16 %v1230
      %v1331 = vunpack.c.l.b16 %v1231
      %v1332 = vunpack.c.l.b16 %v1232
      %v1333 = vunpack.c.l.b16 %v1233
      %v1334 = vunpack.c.l.b16 %v1234
      %v1335 = vunpack.c.l.b16 %v1235
      %v1336 = vunpack.c.l.b16 %v1236
      %v1337 = vunpack.c.l.b16 %v1237
      %v1338 = vunpack.c.l.b16 %v1238
      %v1339 = vunpack.c.l.b16 %v1239
      %v1340 = vunpack.c.l.b16 %v1240
      %v1341 = vunpack.c.l.b16 %v1241
      %v1342 = vunpack.c.l.b16 %v1242
      %v1343 = vunpack.c.l.b16 %v1243
      %v1344 = vunpack.c.l.b16 %v1244
      %v1345 = vunpack.c.l.b16 %v1245
      %v1346 = vunpack.c.l.b16 %v1246
      %v1347 = vunpack.c.l.b16 %v1247
      %v1348 = vunpack.c.l.b16 %v1248
      %v1349 = vunpack.c.l.b16 %v1249
      %v1350 = vunpack.c.l.b16 %v1250
      %v1351 = vunpack.c.l.b16 %v1251
      %v1352 = vunpack.c.l.b16 %v1252
      %v1353 = vunpack.c.l.b16 %v1253
      %v1354 = vunpack.c.l.b16 %v1254
      %v1355 = vunpack.c.l.b16 %v1255
      %v1356 = vpack.c.b16 %v1309, %v1308
      %v1357 = vpack.c.b16 %v1311, %v1310
      %v1358 = vpack.c.b16 %v1313, %v1312
      %v1359 = vpack.c.b16 %v1315, %v1314
      %v1360 = vpack.c.b16 %v1317, %v1316
      %v1361 = vpack.c.b16 %v1319, %v1318
      %v1362 = vpack.c.b16 %v1321, %v1320
      %v1363 = vpack.c.b16 %v1323, %v1322
      %v1364 = vpack.c.b16 %v1325, %v1324
      %v1365 = vpack.c.b16 %v1327, %v1326
      %v1366 = vpack.c.b16 %v1329, %v1328
      %v1367 = vpack.c.b16 %v1331, %v1330
      %v1368 = vpack.c.b16 %v1333, %v1332
      %v1369 = vpack.c.b16 %v1335, %v1334
      %v1370 = vpack.c.b16 %v1337, %v1336
      %v1371 = vpack.c.b16 %v1339, %v1338
      %v1372 = vpack.c.b16 %v1341, %v1340
      %v1373 = vpack.c.b16 %v1343, %v1342
      %v1374 = vpack.c.b16 %v1345, %v1344
      %v1375 = vpack.c.b16 %v1347, %v1346
      %v1376 = vpack.c.b16 %v1349, %v1348
      %v1377 = vpack.c.b16 %v1351, %v1350
      %v1378 = vpack.c.b16 %v1353, %v1352
      %v1379 = vpack.c.b16 %v1355, %v1354
      %1404 = vmatpush.bf16.msra.mxu0 %v1363
      %1405 = vmatpush.bf16.msra.mxu0 %v1362
      %1406 = vmatpush.bf16.msra.mxu0 %v1361
      %1407 = vmatpush.bf16.msra.mxu0 %v1360
      %1408 = vmatpush.bf16.msra.mxu0 %v1359
      %1409 = vmatpush.bf16.msra.mxu0 %v1358
      %1410 = vmatpush.bf16.msra.mxu0 %v1357
      %1411 = vmatpush.bf16.msra.mxu0 %v1356
      %1412 = vmatmul.bf16.gmra.mxu0 %v1096
      %v1413 = vpop.f32.mrf.mxu0
      %v1414 = vadd.f32 %v1258, %v1413
      %v1415 = vpop.f32.mrf.mxu0
      %v1416 = vadd.f32 %v1258, %v1415
      %1417 = vmatmul.bf16.gmra.mxu0 %v1097
      %v1418 = vpop.f32.mrf.mxu0
      %v1419 = vadd.f32 %v1258, %v1418
      %v1420 = vpop.f32.mrf.mxu0
      %v1421 = vadd.f32 %v1258, %v1420
      %1422 = vmatmul.bf16.gmra.mxu0 %v1098
      %v1423 = vpop.f32.mrf.mxu0
      %v1424 = vadd.f32 %v1258, %v1423
      %v1425 = vpop.f32.mrf.mxu0
      %v1426 = vadd.f32 %v1258, %v1425
      %1427 = vmatmul.bf16.gmra.mxu0 %v1099
      %v1428 = vpop.f32.mrf.mxu0
      %v1429 = vadd.f32 %v1258, %v1428
      %v1430 = vpop.f32.mrf.mxu0
      %v1431 = vadd.f32 %v1258, %v1430
      %1432 = vmatmul.bf16.gmra.mxu0 %v1100
      %v1433 = vpop.f32.mrf.mxu0
      %v1434 = vadd.f32 %v1258, %v1433
      %v1435 = vpop.f32.mrf.mxu0
      %v1436 = vadd.f32 %v1258, %v1435
      %1437 = vmatmul.bf16.gmra.mxu0 %v1101
      %v1438 = vpop.f32.mrf.mxu0
      %v1439 = vadd.f32 %v1258, %v1438
      %v1440 = vpop.f32.mrf.mxu0
      %v1441 = vadd.f32 %v1258, %v1440
      %1442 = vmatmul.bf16.gmra.mxu0 %v1102
      %v1443 = vpop.f32.mrf.mxu0
      %v1444 = vadd.f32 %v1258, %v1443
      %v1445 = vpop.f32.mrf.mxu0
      %v1446 = vadd.f32 %v1258, %v1445
      %1447 = vmatmul.bf16.gmra.mxu0 %v1103
      %v1448 = vpop.f32.mrf.mxu0
      %v1449 = vadd.f32 %v1258, %v1448
      %v1450 = vpop.f32.mrf.mxu0
      %v1451 = vadd.f32 %v1258, %v1450
      %1452 = vdwg.mxu0
      %1453 = vmatpush.bf16.msra.mxu0 %v1371
      %1454 = vmatpush.bf16.msra.mxu0 %v1370
      %1455 = vmatpush.bf16.msra.mxu0 %v1369
      %1456 = vmatpush.bf16.msra.mxu0 %v1368
      %1457 = vmatpush.bf16.msra.mxu0 %v1367
      %1458 = vmatpush.bf16.msra.mxu0 %v1366
      %1459 = vmatpush.bf16.msra.mxu0 %v1365
      %1460 = vmatpush.bf16.msra.mxu0 %v1364
      %1461 = vmatmul.bf16.gmra.mxu0 %v1144
      %v1462 = vpop.f32.mrf.mxu0
      %v1463 = vadd.f32 %v1414, %v1462
      %v1464 = vpop.f32.mrf.mxu0
      %v1465 = vadd.f32 %v1416, %v1464
      %1466 = vmatmul.bf16.gmra.mxu0 %v1145
      %v1467 = vpop.f32.mrf.mxu0
      %v1468 = vadd.f32 %v1419, %v1467
      %v1469 = vpop.f32.mrf.mxu0
      %v1470 = vadd.f32 %v1421, %v1469
      %1471 = vmatmul.bf16.gmra.mxu0 %v1146
      %v1472 = vpop.f32.mrf.mxu0
      %v1473 = vadd.f32 %v1424, %v1472
      %v1474 = vpop.f32.mrf.mxu0
      %v1475 = vadd.f32 %v1426, %v1474
      %1476 = vmatmul.bf16.gmra.mxu0 %v1147
      %v1477 = vpop.f32.mrf.mxu0
      %v1478 = vadd.f32 %v1429, %v1477
      %v1479 = vpop.f32.mrf.mxu0
      %v1480 = vadd.f32 %v1431, %v1479
      %1481 = vmatmul.bf16.gmra.mxu0 %v1148
      %v1482 = vpop.f32.mrf.mxu0
      %v1483 = vadd.f32 %v1434, %v1482
      %v1484 = vpop.f32.mrf.mxu0
      %v1485 = vadd.f32 %v1436, %v1484
      %1486 = vmatmul.bf16.gmra.mxu0 %v1149
      %v1487 = vpop.f32.mrf.mxu0
      %v1488 = vadd.f32 %v1439, %v1487
      %v1489 = vpop.f32.mrf.mxu0
      %v1490 = vadd.f32 %v1441, %v1489
      %1491 = vmatmul.bf16.gmra.mxu0 %v1150
      %v1492 = vpop.f32.mrf.mxu0
      %v1493 = vadd.f32 %v1444, %v1492
      %v1494 = vpop.f32.mrf.mxu0
      %v1495 = vadd.f32 %v1446, %v1494
      %1496 = vmatmul.bf16.gmra.mxu0 %v1151
      %v1497 = vpop.f32.mrf.mxu0
      %v1498 = vadd.f32 %v1449, %v1497
      %v1499 = vpop.f32.mrf.mxu0
      %v1500 = vadd.f32 %v1451, %v1499
      %1501 = vdwg.mxu0
      %1502 = vmatpush.bf16.msra.mxu0 %v1379
      %1503 = vmatpush.bf16.msra.mxu0 %v1378
      %1504 = vmatpush.bf16.msra.mxu0 %v1377
      %1505 = vmatpush.bf16.msra.mxu0 %v1376
      %1506 = vmatpush.bf16.msra.mxu0 %v1375
      %1507 = vmatpush.bf16.msra.mxu0 %v1374
      %1508 = vmatpush.bf16.msra.mxu0 %v1373
      %1509 = vmatpush.bf16.msra.mxu0 %v1372
      %1510 = vmatmul.bf16.gmra.mxu0 %v1192
      %v1511 = vpop.f32.mrf.mxu0
      %v1512 = vadd.f32 %v1463, %v1511
      %v1513 = vpop.f32.mrf.mxu0
      %v1514 = vadd.f32 %v1465, %v1513
      %1515 = vmatmul.bf16.gmra.mxu0 %v1193
      %v1516 = vpop.f32.mrf.mxu0
      %v1517 = vadd.f32 %v1468, %v1516
      %v1518 = vpop.f32.mrf.mxu0
      %v1519 = vadd.f32 %v1470, %v1518
      %1520 = vmatmul.bf16.gmra.mxu0 %v1194
      %v1521 = vpop.f32.mrf.mxu0
      %v1522 = vadd.f32 %v1473, %v1521
      %v1523 = vpop.f32.mrf.mxu0
      %v1524 = vadd.f32 %v1475, %v1523
      %1525 = vmatmul.bf16.gmra.mxu0 %v1195
      %v1526 = vpop.f32.mrf.mxu0
      %v1527 = vadd.f32 %v1478, %v1526
      %v1528 = vpop.f32.mrf.mxu0
      %v1529 = vadd.f32 %v1480, %v1528
      %1530 = vmatmul.bf16.gmra.mxu0 %v1196
      %v1531 = vpop.f32.mrf.mxu0
      %v1532 = vadd.f32 %v1483, %v1531
      %v1533 = vpop.f32.mrf.mxu0
      %v1534 = vadd.f32 %v1485, %v1533
      %1535 = vmatmul.bf16.gmra.mxu0 %v1197
      %v1536 = vpop.f32.mrf.mxu0
      %v1537 = vadd.f32 %v1488, %v1536
      %v1538 = vpop.f32.mrf.mxu0
      %v1539 = vadd.f32 %v1490, %v1538
      %1540 = vmatmul.bf16.gmra.mxu0 %v1198
      %v1541 = vpop.f32.mrf.mxu0
      %v1542 = vadd.f32 %v1493, %v1541
      %v1543 = vpop.f32.mrf.mxu0
      %v1544 = vadd.f32 %v1495, %v1543
      %1545 = vmatmul.bf16.gmra.mxu0 %v1199
      %v1546 = vpop.f32.mrf.mxu0
      %v1547 = vadd.f32 %v1498, %v1546
      %v1548 = vpop.f32.mrf.mxu0
      %v1549 = vadd.f32 %v1500, %v1548
      %1550 = vdwg.mxu0
      %v1551 = vsub.f32 0.0, %v1512
      %v1552 = vsub.f32 0.0, %v1514
      %v1553 = vsub.f32 0.0, %v1517
      %v1554 = vsub.f32 0.0, %v1519
      %v1555 = vsub.f32 0.0, %v1522
      %v1556 = vsub.f32 0.0, %v1524
      %v1557 = vsub.f32 0.0, %v1527
      %v1558 = vsub.f32 0.0, %v1529
      %v1559 = vsub.f32 0.0, %v1532
      %v1560 = vsub.f32 0.0, %v1534
      %v1561 = vsub.f32 0.0, %v1537
      %v1562 = vsub.f32 0.0, %v1539
      %v1563 = vsub.f32 0.0, %v1542
      %v1564 = vsub.f32 0.0, %v1544
      %v1565 = vsub.f32 0.0, %v1547
      %v1566 = vsub.f32 0.0, %v1549
      %v1567 = vmul.f32 %v1551, 1.442695
      %v1568 = vpow.pop %v1567
      %v1569 = vmul.f32 %v1552, 1.442695
      %v1570 = vpow.pop %v1569
      %v1571 = vmul.f32 %v1553, 1.442695
      %v1572 = vpow.pop %v1571
      %v1573 = vmul.f32 %v1554, 1.442695
      %v1574 = vpow.pop %v1573
      %v1575 = vmul.f32 %v1555, 1.442695
      %v1576 = vpow.pop %v1575
      %v1577 = vmul.f32 %v1556, 1.442695
      %v1578 = vpow.pop %v1577
      %v1579 = vmul.f32 %v1557, 1.442695
      %v1580 = vpow.pop %v1579
      %v1581 = vmul.f32 %v1558, 1.442695
      %v1582 = vpow.pop %v1581
      %v1583 = vmul.f32 %v1559, 1.442695
      %v1584 = vpow.pop %v1583
      %v1585 = vmul.f32 %v1560, 1.442695
      %v1586 = vpow.pop %v1585
      %v1587 = vmul.f32 %v1561, 1.442695
      %v1588 = vpow.pop %v1587
      %v1589 = vmul.f32 %v1562, 1.442695
      %v1590 = vpow.pop %v1589
      %v1591 = vmul.f32 %v1563, 1.442695
      %v1592 = vpow.pop %v1591
      %v1593 = vmul.f32 %v1564, 1.442695
      %v1594 = vpow.pop %v1593
      %v1595 = vmul.f32 %v1565, 1.442695
      %v1596 = vpow.pop %v1595
      %v1597 = vmul.f32 %v1566, 1.442695
      %v1598 = vpow.pop %v1597
      %v1599 = vadd.f32 %v1568, 1.0
      %v1600 = vadd.f32 %v1570, 1.0
      %v1601 = vadd.f32 %v1572, 1.0
      %v1602 = vadd.f32 %v1574, 1.0
      %v1603 = vadd.f32 %v1576, 1.0
      %v1604 = vadd.f32 %v1578, 1.0
      %v1605 = vadd.f32 %v1580, 1.0
      %v1606 = vadd.f32 %v1582, 1.0
      %v1607 = vadd.f32 %v1584, 1.0
      %v1608 = vadd.f32 %v1586, 1.0
      %v1609 = vadd.f32 %v1588, 1.0
      %v1610 = vadd.f32 %v1590, 1.0
      %v1611 = vadd.f32 %v1592, 1.0
      %v1612 = vadd.f32 %v1594, 1.0
      %v1613 = vadd.f32 %v1596, 1.0
      %v1614 = vadd.f32 %v1598, 1.0
      %v1615 = vrcp.pop %v1599
      %v1616 = vmul.f32 %v1599, %v1615
      %v1617 = vsub.f32 1.0, %v1616
      %v1618 = vmul.f32 %v1615, %v1617
      %v1619 = vadd.f32 %v1615, %v1618
      %vm1620 = vweird.f32 %v1599
      %vm1621 = vweird.f32 %v1615
      %vm1622 = vmor %vm1620, %vm1621
      %v1623 = vsel %vm1622, %v1615, %v1619
      %v1624 = vand.u32 2147483647, %v1599
      %vm1625 = vcmp.eq.f32.partialorder %v1624, 8.507059e+37
      %v1626 = vand.u32 %v1599, 2147483648
      %v1627 = vor.u32 1.1754944e-38, %v1626
      %v1628 = vsel %vm1625, %v1627, %v1623
      %v1629 = vmul.f32 1.0, %v1628
      %v1630 = vrcp.pop %v1600
      %v1631 = vmul.f32 %v1600, %v1630
      %v1632 = vsub.f32 1.0, %v1631
      %v1633 = vmul.f32 %v1630, %v1632
      %v1634 = vadd.f32 %v1630, %v1633
      %vm1635 = vweird.f32 %v1600
      %vm1636 = vweird.f32 %v1630
      %vm1637 = vmor %vm1635, %vm1636
      %v1638 = vsel %vm1637, %v1630, %v1634
      %v1639 = vand.u32 2147483647, %v1600
      %vm1640 = vcmp.eq.f32.partialorder %v1639, 8.507059e+37
      %v1641 = vand.u32 %v1600, 2147483648
      %v1642 = vor.u32 1.1754944e-38, %v1641
      %v1643 = vsel %vm1640, %v1642, %v1638
      %v1644 = vmul.f32 1.0, %v1643
      %v1645 = vrcp.pop %v1601
      %v1646 = vmul.f32 %v1601, %v1645
      %v1647 = vsub.f32 1.0, %v1646
      %v1648 = vmul.f32 %v1645, %v1647
      %v1649 = vadd.f32 %v1645, %v1648
      %vm1650 = vweird.f32 %v1601
      %vm1651 = vweird.f32 %v1645
      %vm1652 = vmor %vm1650, %vm1651
      %v1653 = vsel %vm1652, %v1645, %v1649
      %v1654 = vand.u32 2147483647, %v1601
      %vm1655 = vcmp.eq.f32.partialorder %v1654, 8.507059e+37
      %v1656 = vand.u32 %v1601, 2147483648
      %v1657 = vor.u32 1.1754944e-38, %v1656
      %v1658 = vsel %vm1655, %v1657, %v1653
      %v1659 = vmul.f32 1.0, %v1658
      %v1660 = vrcp.pop %v1602
      %v1661 = vmul.f32 %v1602, %v1660
      %v1662 = vsub.f32 1.0, %v1661
      %v1663 = vmul.f32 %v1660, %v1662
      %v1664 = vadd.f32 %v1660, %v1663
      %vm1665 = vweird.f32 %v1602
      %vm1666 = vweird.f32 %v1660
      %vm1667 = vmor %vm1665, %vm1666
      %v1668 = vsel %vm1667, %v1660, %v1664
      %v1669 = vand.u32 2147483647, %v1602
      %vm1670 = vcmp.eq.f32.partialorder %v1669, 8.507059e+37
      %v1671 = vand.u32 %v1602, 2147483648
      %v1672 = vor.u32 1.1754944e-38, %v1671
      %v1673 = vsel %vm1670, %v1672, %v1668
      %v1674 = vmul.f32 1.0, %v1673
      %v1675 = vrcp.pop %v1603
      %v1676 = vmul.f32 %v1603, %v1675
      %v1677 = vsub.f32 1.0, %v1676
      %v1678 = vmul.f32 %v1675, %v1677
      %v1679 = vadd.f32 %v1675, %v1678
      %vm1680 = vweird.f32 %v1603
      %vm1681 = vweird.f32 %v1675
      %vm1682 = vmor %vm1680, %vm1681
      %v1683 = vsel %vm1682, %v1675, %v1679
      %v1684 = vand.u32 2147483647, %v1603
      %vm1685 = vcmp.eq.f32.partialorder %v1684, 8.507059e+37
      %v1686 = vand.u32 %v1603, 2147483648
      %v1687 = vor.u32 1.1754944e-38, %v1686
      %v1688 = vsel %vm1685, %v1687, %v1683
      %v1689 = vmul.f32 1.0, %v1688
      %v1690 = vrcp.pop %v1604
      %v1691 = vmul.f32 %v1604, %v1690
      %v1692 = vsub.f32 1.0, %v1691
      %v1693 = vmul.f32 %v1690, %v1692
      %v1694 = vadd.f32 %v1690, %v1693
      %vm1695 = vweird.f32 %v1604
      %vm1696 = vweird.f32 %v1690
      %vm1697 = vmor %vm1695, %vm1696
      %v1698 = vsel %vm1697, %v1690, %v1694
      %v1699 = vand.u32 2147483647, %v1604
      %vm1700 = vcmp.eq.f32.partialorder %v1699, 8.507059e+37
      %v1701 = vand.u32 %v1604, 2147483648
      %v1702 = vor.u32 1.1754944e-38, %v1701
      %v1703 = vsel %vm1700, %v1702, %v1698
      %v1704 = vmul.f32 1.0, %v1703
      %v1705 = vrcp.pop %v1605
      %v1706 = vmul.f32 %v1605, %v1705
      %v1707 = vsub.f32 1.0, %v1706
      %v1708 = vmul.f32 %v1705, %v1707
      %v1709 = vadd.f32 %v1705, %v1708
      %vm1710 = vweird.f32 %v1605
      %vm1711 = vweird.f32 %v1705
      %vm1712 = vmor %vm1710, %vm1711
      %v1713 = vsel %vm1712, %v1705, %v1709
      %v1714 = vand.u32 2147483647, %v1605
      %vm1715 = vcmp.eq.f32.partialorder %v1714, 8.507059e+37
      %v1716 = vand.u32 %v1605, 2147483648
      %v1717 = vor.u32 1.1754944e-38, %v1716
      %v1718 = vsel %vm1715, %v1717, %v1713
      %v1719 = vmul.f32 1.0, %v1718
      %v1720 = vrcp.pop %v1606
      %v1721 = vmul.f32 %v1606, %v1720
      %v1722 = vsub.f32 1.0, %v1721
      %v1723 = vmul.f32 %v1720, %v1722
      %v1724 = vadd.f32 %v1720, %v1723
      %vm1725 = vweird.f32 %v1606
      %vm1726 = vweird.f32 %v1720
      %vm1727 = vmor %vm1725, %vm1726
      %v1728 = vsel %vm1727, %v1720, %v1724
      %v1729 = vand.u32 2147483647, %v1606
      %vm1730 = vcmp.eq.f32.partialorder %v1729, 8.507059e+37
      %v1731 = vand.u32 %v1606, 2147483648
      %v1732 = vor.u32 1.1754944e-38, %v1731
      %v1733 = vsel %vm1730, %v1732, %v1728
      %v1734 = vmul.f32 1.0, %v1733
      %v1735 = vrcp.pop %v1607
      %v1736 = vmul.f32 %v1607, %v1735
      %v1737 = vsub.f32 1.0, %v1736
      %v1738 = vmul.f32 %v1735, %v1737
      %v1739 = vadd.f32 %v1735, %v1738
      %vm1740 = vweird.f32 %v1607
      %vm1741 = vweird.f32 %v1735
      %vm1742 = vmor %vm1740, %vm1741
      %v1743 = vsel %vm1742, %v1735, %v1739
      %v1744 = vand.u32 2147483647, %v1607
      %vm1745 = vcmp.eq.f32.partialorder %v1744, 8.507059e+37
      %v1746 = vand.u32 %v1607, 2147483648
      %v1747 = vor.u32 1.1754944e-38, %v1746
      %v1748 = vsel %vm1745, %v1747, %v1743
      %v1749 = vmul.f32 1.0, %v1748
      %v1750 = vrcp.pop %v1608
      %v1751 = vmul.f32 %v1608, %v1750
      %v1752 = vsub.f32 1.0, %v1751
      %v1753 = vmul.f32 %v1750, %v1752
      %v1754 = vadd.f32 %v1750, %v1753
      %vm1755 = vweird.f32 %v1608
      %vm1756 = vweird.f32 %v1750
      %vm1757 = vmor %vm1755, %vm1756
      %v1758 = vsel %vm1757, %v1750, %v1754
      %v1759 = vand.u32 2147483647, %v1608
      %vm1760 = vcmp.eq.f32.partialorder %v1759, 8.507059e+37
      %v1761 = vand.u32 %v1608, 2147483648
      %v1762 = vor.u32 1.1754944e-38, %v1761
      %v1763 = vsel %vm1760, %v1762, %v1758
      %v1764 = vmul.f32 1.0, %v1763
      %v1765 = vrcp.pop %v1609
      %v1766 = vmul.f32 %v1609, %v1765
      %v1767 = vsub.f32 1.0, %v1766
      %v1768 = vmul.f32 %v1765, %v1767
      %v1769 = vadd.f32 %v1765, %v1768
      %vm1770 = vweird.f32 %v1609
      %vm1771 = vweird.f32 %v1765
      %vm1772 = vmor %vm1770, %vm1771
      %v1773 = vsel %vm1772, %v1765, %v1769
      %v1774 = vand.u32 2147483647, %v1609
      %vm1775 = vcmp.eq.f32.partialorder %v1774, 8.507059e+37
      %v1776 = vand.u32 %v1609, 2147483648
      %v1777 = vor.u32 1.1754944e-38, %v1776
      %v1778 = vsel %vm1775, %v1777, %v1773
      %v1779 = vmul.f32 1.0, %v1778
      %v1780 = vrcp.pop %v1610
      %v1781 = vmul.f32 %v1610, %v1780
      %v1782 = vsub.f32 1.0, %v1781
      %v1783 = vmul.f32 %v1780, %v1782
      %v1784 = vadd.f32 %v1780, %v1783
      %vm1785 = vweird.f32 %v1610
      %vm1786 = vweird.f32 %v1780
      %vm1787 = vmor %vm1785, %vm1786
      %v1788 = vsel %vm1787, %v1780, %v1784
      %v1789 = vand.u32 2147483647, %v1610
      %vm1790 = vcmp.eq.f32.partialorder %v1789, 8.507059e+37
      %v1791 = vand.u32 %v1610, 2147483648
      %v1792 = vor.u32 1.1754944e-38, %v1791
      %v1793 = vsel %vm1790, %v1792, %v1788
      %v1794 = vmul.f32 1.0, %v1793
      %v1795 = vrcp.pop %v1611
      %v1796 = vmul.f32 %v1611, %v1795
      %v1797 = vsub.f32 1.0, %v1796
      %v1798 = vmul.f32 %v1795, %v1797
      %v1799 = vadd.f32 %v1795, %v1798
      %vm1800 = vweird.f32 %v1611
      %vm1801 = vweird.f32 %v1795
      %vm1802 = vmor %vm1800, %vm1801
      %v1803 = vsel %vm1802, %v1795, %v1799
      %v1804 = vand.u32 2147483647, %v1611
      %vm1805 = vcmp.eq.f32.partialorder %v1804, 8.507059e+37
      %v1806 = vand.u32 %v1611, 2147483648
      %v1807 = vor.u32 1.1754944e-38, %v1806
      %v1808 = vsel %vm1805, %v1807, %v1803
      %v1809 = vmul.f32 1.0, %v1808
      %v1810 = vrcp.pop %v1612
      %v1811 = vmul.f32 %v1612, %v1810
      %v1812 = vsub.f32 1.0, %v1811
      %v1813 = vmul.f32 %v1810, %v1812
      %v1814 = vadd.f32 %v1810, %v1813
      %vm1815 = vweird.f32 %v1612
      %vm1816 = vweird.f32 %v1810
      %vm1817 = vmor %vm1815, %vm1816
      %v1818 = vsel %vm1817, %v1810, %v1814
      %v1819 = vand.u32 2147483647, %v1612
      %vm1820 = vcmp.eq.f32.partialorder %v1819, 8.507059e+37
      %v1821 = vand.u32 %v1612, 2147483648
      %v1822 = vor.u32 1.1754944e-38, %v1821
      %v1823 = vsel %vm1820, %v1822, %v1818
      %v1824 = vmul.f32 1.0, %v1823
      %v1825 = vrcp.pop %v1613
      %v1826 = vmul.f32 %v1613, %v1825
      %v1827 = vsub.f32 1.0, %v1826
      %v1828 = vmul.f32 %v1825, %v1827
      %v1829 = vadd.f32 %v1825, %v1828
      %vm1830 = vweird.f32 %v1613
      %vm1831 = vweird.f32 %v1825
      %vm1832 = vmor %vm1830, %vm1831
      %v1833 = vsel %vm1832, %v1825, %v1829
      %v1834 = vand.u32 2147483647, %v1613
      %vm1835 = vcmp.eq.f32.partialorder %v1834, 8.507059e+37
      %v1836 = vand.u32 %v1613, 2147483648
      %v1837 = vor.u32 1.1754944e-38, %v1836
      %v1838 = vsel %vm1835, %v1837, %v1833
      %v1839 = vmul.f32 1.0, %v1838
      %v1840 = vrcp.pop %v1614
      %v1841 = vmul.f32 %v1614, %v1840
      %v1842 = vsub.f32 1.0, %v1841
      %v1843 = vmul.f32 %v1840, %v1842
      %v1844 = vadd.f32 %v1840, %v1843
      %vm1845 = vweird.f32 %v1614
      %vm1846 = vweird.f32 %v1840
      %vm1847 = vmor %vm1845, %vm1846
      %v1848 = vsel %vm1847, %v1840, %v1844
      %v1849 = vand.u32 2147483647, %v1614
      %vm1850 = vcmp.eq.f32.partialorder %v1849, 8.507059e+37
      %v1851 = vand.u32 %v1614, 2147483648
      %v1852 = vor.u32 1.1754944e-38, %v1851
      %v1853 = vsel %vm1850, %v1852, %v1848
      %v1854 = vmul.f32 1.0, %v1853
      %v1855 = vmul.f32 %v1512, %v1629
      %v1856 = vmul.f32 %v1514, %v1644
      %v1857 = vmul.f32 %v1517, %v1659
      %v1858 = vmul.f32 %v1519, %v1674
      %v1859 = vmul.f32 %v1522, %v1689
      %v1860 = vmul.f32 %v1524, %v1704
      %v1861 = vmul.f32 %v1527, %v1719
      %v1862 = vmul.f32 %v1529, %v1734
      %v1863 = vmul.f32 %v1532, %v1749
      %v1864 = vmul.f32 %v1534, %v1764
      %v1865 = vmul.f32 %v1537, %v1779
      %v1866 = vmul.f32 %v1539, %v1794
      %v1867 = vmul.f32 %v1542, %v1809
      %v1868 = vmul.f32 %v1544, %v1824
      %v1869 = vmul.f32 %v1547, %v1839
      %v1870 = vmul.f32 %v1549, %v1854
      %v1871 = vpack.c.bf16 %v1855, %v1855
      %v1872 = vpack.c.bf16 %v1856, %v1856
      %v1873 = vpack.c.bf16 %v1857, %v1857
      %v1874 = vpack.c.bf16 %v1858, %v1858
      %v1875 = vpack.c.bf16 %v1859, %v1859
      %v1876 = vpack.c.bf16 %v1860, %v1860
      %v1877 = vpack.c.bf16 %v1861, %v1861
      %v1878 = vpack.c.bf16 %v1862, %v1862
      %v1879 = vpack.c.bf16 %v1863, %v1863
      %v1880 = vpack.c.bf16 %v1864, %v1864
      %v1881 = vpack.c.bf16 %v1865, %v1865
      %v1882 = vpack.c.bf16 %v1866, %v1866
      %v1883 = vpack.c.bf16 %v1867, %v1867
      %v1884 = vpack.c.bf16 %v1868, %v1868
      %v1885 = vpack.c.bf16 %v1869, %v1869
      %v1886 = vpack.c.bf16 %v1870, %v1870
      %1887 = vst [vmem:[%s501] sm:$0xf] %v1871
      %1888 = vst [vmem:[%s501 + $0x4] sm:$0xf] %v1872
      %1889 = vst [vmem:[%s501 + $0x8] sm:$0xf] %v1873
      %1890 = vst [vmem:[%s501 + $0xc] sm:$0xf] %v1874
      %1891 = vst [vmem:[%s501 + $0x10] sm:$0xf] %v1875
      %1892 = vst [vmem:[%s501 + $0x14] sm:$0xf] %v1876
      %1893 = vst [vmem:[%s501 + $0x18] sm:$0xf] %v1877
      %1894 = vst [vmem:[%s501 + $0x1c] sm:$0xf] %v1878
      %1895 = vst [vmem:[%s501 + $0x20] sm:$0xf] %v1879
      %1896 = vst [vmem:[%s501 + $0x24] sm:$0xf] %v1880
      %1897 = vst [vmem:[%s501 + $0x28] sm:$0xf] %v1881
      %1898 = vst [vmem:[%s501 + $0x2c] sm:$0xf] %v1882
      %1899 = vst [vmem:[%s501 + $0x30] sm:$0xf] %v1883
      %1900 = vst [vmem:[%s501 + $0x34] sm:$0xf] %v1884
      %1901 = vst [vmem:[%s501 + $0x38] sm:$0xf] %v1885
      %1902 = vst [vmem:[%s501 + $0x3c] sm:$0xf] %v1886
      %v1903 = vld [vmem:[%s7] sm:$0xf]
      %v1904 = vld [vmem:[%s7 + $0x4] sm:$0xf]
      %v1905 = vld [vmem:[%s7 + $0x8] sm:$0xf]
      %v1906 = vld [vmem:[%s7 + $0xc] sm:$0xf]
      %v1907 = vld [vmem:[%s7 + $0x10] sm:$0xf]
      %v1908 = vld [vmem:[%s7 + $0x14] sm:$0xf]
      %v1909 = vld [vmem:[%s7 + $0x18] sm:$0xf]
      %v1910 = vld [vmem:[%s7 + $0x1c] sm:$0xf]
      %v1911 = vld [vmem:[%s7 + $0x20] sm:$0xf]
      %v1912 = vld [vmem:[%s7 + $0x24] sm:$0xf]
      %v1913 = vld [vmem:[%s7 + $0x28] sm:$0xf]
      %v1914 = vld [vmem:[%s7 + $0x2c] sm:$0xf]
      %v1915 = vld [vmem:[%s7 + $0x30] sm:$0xf]
      %v1916 = vld [vmem:[%s7 + $0x34] sm:$0xf]
      %v1917 = vld [vmem:[%s7 + $0x38] sm:$0xf]
      %v1918 = vld [vmem:[%s7 + $0x3c] sm:$0xf]
      %v1935 = vunpack.c.l.b16 %v1903
      %v1936 = vunpack.c.l.b16 %v1904
      %v1937 = vunpack.c.l.b16 %v1905
      %v1938 = vunpack.c.l.b16 %v1906
      %v1939 = vunpack.c.l.b16 %v1907
      %v1940 = vunpack.c.l.b16 %v1908
      %v1941 = vunpack.c.l.b16 %v1909
      %v1942 = vunpack.c.l.b16 %v1910
      %v1943 = vunpack.c.l.b16 %v1911
      %v1944 = vunpack.c.l.b16 %v1912
      %v1945 = vunpack.c.l.b16 %v1913
      %v1946 = vunpack.c.l.b16 %v1914
      %v1947 = vunpack.c.l.b16 %v1915
      %v1948 = vunpack.c.l.b16 %v1916
      %v1949 = vunpack.c.l.b16 %v1917
      %v1950 = vunpack.c.l.b16 %v1918
      %v1951 = vpack.c.b16 %v1936, %v1935
      %v1952 = vpack.c.b16 %v1938, %v1937
      %v1953 = vpack.c.b16 %v1940, %v1939
      %v1954 = vpack.c.b16 %v1942, %v1941
      %v1955 = vpack.c.b16 %v1944, %v1943
      %v1956 = vpack.c.b16 %v1946, %v1945
      %v1957 = vpack.c.b16 %v1948, %v1947
      %v1958 = vpack.c.b16 %v1950, %v1949
      %1967 = vmatpush.bf16.msra.mxu0 %v1958
      %1968 = vmatpush.bf16.msra.mxu0 %v1957
      %1969 = vmatpush.bf16.msra.mxu0 %v1956
      %1970 = vmatpush.bf16.msra.mxu0 %v1955
      %1971 = vmatpush.bf16.msra.mxu0 %v1954
      %1972 = vmatpush.bf16.msra.mxu0 %v1953
      %1973 = vmatpush.bf16.msra.mxu0 %v1952
      %1974 = vmatpush.bf16.msra.mxu0 %v1951
      %1975 = vmatmul.bf16.gmra.mxu0 %v583
      %v1976 = vpop.f32.mrf.mxu0
      %v1977 = vadd.f32 0.0, %v1976
      %v1978 = vpop.f32.mrf.mxu0
      %v1979 = vadd.f32 0.0, %v1978
      %1980 = vmatmul.bf16.gmra.mxu0 %v584
      %v1981 = vpop.f32.mrf.mxu0
      %v1982 = vadd.f32 0.0, %v1981
      %v1983 = vpop.f32.mrf.mxu0
      %v1984 = vadd.f32 0.0, %v1983
      %1985 = vmatmul.bf16.gmra.mxu0 %v585
      %v1986 = vpop.f32.mrf.mxu0
      %v1987 = vadd.f32 0.0, %v1986
      %v1988 = vpop.f32.mrf.mxu0
      %v1989 = vadd.f32 0.0, %v1988
      %1990 = vmatmul.bf16.gmra.mxu0 %v586
      %v1991 = vpop.f32.mrf.mxu0
      %v1992 = vadd.f32 0.0, %v1991
      %v1993 = vpop.f32.mrf.mxu0
      %v1994 = vadd.f32 0.0, %v1993
      %1995 = vmatmul.bf16.gmra.mxu0 %v587
      %v1996 = vpop.f32.mrf.mxu0
      %v1997 = vadd.f32 0.0, %v1996
      %v1998 = vpop.f32.mrf.mxu0
      %v1999 = vadd.f32 0.0, %v1998
      %2000 = vmatmul.bf16.gmra.mxu0 %v588
      %v2001 = vpop.f32.mrf.mxu0
      %v2002 = vadd.f32 0.0, %v2001
      %v2003 = vpop.f32.mrf.mxu0
      %v2004 = vadd.f32 0.0, %v2003
      %2005 = vmatmul.bf16.gmra.mxu0 %v589
      %v2006 = vpop.f32.mrf.mxu0
      %v2007 = vadd.f32 0.0, %v2006
      %v2008 = vpop.f32.mrf.mxu0
      %v2009 = vadd.f32 0.0, %v2008
      %2010 = vmatmul.bf16.gmra.mxu0 %v590
      %v2011 = vpop.f32.mrf.mxu0
      %v2012 = vadd.f32 0.0, %v2011
      %v2013 = vpop.f32.mrf.mxu0
      %v2014 = vadd.f32 0.0, %v2013
      %2015 = vdwg.mxu0
      %v2016 = vmul.f32 %v1977, %v1855
      %v2017 = vmul.f32 %v1979, %v1856
      %v2018 = vmul.f32 %v1982, %v1857
      %v2019 = vmul.f32 %v1984, %v1858
      %v2020 = vmul.f32 %v1987, %v1859
      %v2021 = vmul.f32 %v1989, %v1860
      %v2022 = vmul.f32 %v1992, %v1861
      %v2023 = vmul.f32 %v1994, %v1862
      %v2024 = vmul.f32 %v1997, %v1863
      %v2025 = vmul.f32 %v1999, %v1864
      %v2026 = vmul.f32 %v2002, %v1865
      %v2027 = vmul.f32 %v2004, %v1866
      %v2028 = vmul.f32 %v2007, %v1867
      %v2029 = vmul.f32 %v2009, %v1868
      %v2030 = vmul.f32 %v2012, %v1869
      %v2031 = vmul.f32 %v2014, %v1870
      %v2032 = vpack.c.bf16 %v2016, %v2016
      %v2033 = vpack.c.bf16 %v2017, %v2017
      %v2034 = vpack.c.bf16 %v2018, %v2018
      %v2035 = vpack.c.bf16 %v2019, %v2019
      %v2036 = vpack.c.bf16 %v2020, %v2020
      %v2037 = vpack.c.bf16 %v2021, %v2021
      %v2038 = vpack.c.bf16 %v2022, %v2022
      %v2039 = vpack.c.bf16 %v2023, %v2023
      %v2040 = vpack.c.bf16 %v2024, %v2024
      %v2041 = vpack.c.bf16 %v2025, %v2025
      %v2042 = vpack.c.bf16 %v2026, %v2026
      %v2043 = vpack.c.bf16 %v2027, %v2027
      %v2044 = vpack.c.bf16 %v2028, %v2028
      %v2045 = vpack.c.bf16 %v2029, %v2029
      %v2046 = vpack.c.bf16 %v2030, %v2030
      %v2047 = vpack.c.bf16 %v2031, %v2031
      %2048 = vst [vmem:[%s507] sm:$0xf] %v2032
      %2049 = vst [vmem:[%s507 + $0x4] sm:$0xf] %v2033
      %2050 = vst [vmem:[%s507 + $0x8] sm:$0xf] %v2034
      %2051 = vst [vmem:[%s507 + $0xc] sm:$0xf] %v2035
      %2052 = vst [vmem:[%s507 + $0x10] sm:$0xf] %v2036
      %2053 = vst [vmem:[%s507 + $0x14] sm:$0xf] %v2037
      %2054 = vst [vmem:[%s507 + $0x18] sm:$0xf] %v2038
      %2055 = vst [vmem:[%s507 + $0x1c] sm:$0xf] %v2039
      %2056 = vst [vmem:[%s507 + $0x20] sm:$0xf] %v2040
      %2057 = vst [vmem:[%s507 + $0x24] sm:$0xf] %v2041
      %2058 = vst [vmem:[%s507 + $0x28] sm:$0xf] %v2042
      %2059 = vst [vmem:[%s507 + $0x2c] sm:$0xf] %v2043
      %2060 = vst [vmem:[%s507 + $0x30] sm:$0xf] %v2044
      %2061 = vst [vmem:[%s507 + $0x34] sm:$0xf] %v2045
      %2062 = vst [vmem:[%s507 + $0x38] sm:$0xf] %v2046
      %2063 = vst [vmem:[%s507 + $0x3c] sm:$0xf] %v2047
      %v2064 = vld [vmem:[%s8] sm:$0xf]
      %v2065 = vld [vmem:[%s8 + $0x4] sm:$0xf]
      %v2066 = vld [vmem:[%s8 + $0x8] sm:$0xf]
      %v2067 = vld [vmem:[%s8 + $0xc] sm:$0xf]
      %v2068 = vld [vmem:[%s8 + $0x10] sm:$0xf]
      %v2069 = vld [vmem:[%s8 + $0x14] sm:$0xf]
      %v2070 = vld [vmem:[%s8 + $0x18] sm:$0xf]
      %v2071 = vld [vmem:[%s8 + $0x1c] sm:$0xf]
      %v2072 = vld [vmem:[%s8 + $0x20] sm:$0xf]
      %v2073 = vld [vmem:[%s8 + $0x24] sm:$0xf]
      %v2074 = vld [vmem:[%s8 + $0x28] sm:$0xf]
      %v2075 = vld [vmem:[%s8 + $0x2c] sm:$0xf]
      %v2076 = vld [vmem:[%s8 + $0x30] sm:$0xf]
      %v2077 = vld [vmem:[%s8 + $0x34] sm:$0xf]
      %v2078 = vld [vmem:[%s8 + $0x38] sm:$0xf]
      %v2079 = vld [vmem:[%s8 + $0x3c] sm:$0xf]
      %v2096 = vunpack.c.l.b16 %v2064
      %v2097 = vunpack.c.l.b16 %v2065
      %v2098 = vunpack.c.l.b16 %v2066
      %v2099 = vunpack.c.l.b16 %v2067
      %v2100 = vunpack.c.l.b16 %v2068
      %v2101 = vunpack.c.l.b16 %v2069
      %v2102 = vunpack.c.l.b16 %v2070
      %v2103 = vunpack.c.l.b16 %v2071
      %v2104 = vunpack.c.l.b16 %v2072
      %v2105 = vunpack.c.l.b16 %v2073
      %v2106 = vunpack.c.l.b16 %v2074
      %v2107 = vunpack.c.l.b16 %v2075
      %v2108 = vunpack.c.l.b16 %v2076
      %v2109 = vunpack.c.l.b16 %v2077
      %v2110 = vunpack.c.l.b16 %v2078
      %v2111 = vunpack.c.l.b16 %v2079
      %v2112 = vpack.c.b16 %v2097, %v2096
      %v2113 = vpack.c.b16 %v2099, %v2098
      %v2114 = vpack.c.b16 %v2101, %v2100
      %v2115 = vpack.c.b16 %v2103, %v2102
      %v2116 = vpack.c.b16 %v2105, %v2104
      %v2117 = vpack.c.b16 %v2107, %v2106
      %v2118 = vpack.c.b16 %v2109, %v2108
      %v2119 = vpack.c.b16 %v2111, %v2110
      %2128 = vmatpush.bf16.msra.mxu0 %v2119
      %2129 = vmatpush.bf16.msra.mxu0 %v2118
      %2130 = vmatpush.bf16.msra.mxu0 %v2117
      %2131 = vmatpush.bf16.msra.mxu0 %v2116
      %2132 = vmatpush.bf16.msra.mxu0 %v2115
      %2133 = vmatpush.bf16.msra.mxu0 %v2114
      %2134 = vmatpush.bf16.msra.mxu0 %v2113
      %2135 = vmatpush.bf16.msra.mxu0 %v2112
      %2136 = vmatmul.bf16.gmra.mxu0 %v583
      %v2137 = vpop.f32.mrf.mxu0
      %v2138 = vadd.f32 0.0, %v2137
      %v2139 = vpop.f32.mrf.mxu0
      %v2140 = vadd.f32 0.0, %v2139
      %2141 = vmatmul.bf16.gmra.mxu0 %v584
      %v2142 = vpop.f32.mrf.mxu0
      %v2143 = vadd.f32 0.0, %v2142
      %v2144 = vpop.f32.mrf.mxu0
      %v2145 = vadd.f32 0.0, %v2144
      %2146 = vmatmul.bf16.gmra.mxu0 %v585
      %v2147 = vpop.f32.mrf.mxu0
      %v2148 = vadd.f32 0.0, %v2147
      %v2149 = vpop.f32.mrf.mxu0
      %v2150 = vadd.f32 0.0, %v2149
      %2151 = vmatmul.bf16.gmra.mxu0 %v586
      %v2152 = vpop.f32.mrf.mxu0
      %v2153 = vadd.f32 0.0, %v2152
      %v2154 = vpop.f32.mrf.mxu0
      %v2155 = vadd.f32 0.0, %v2154
      %2156 = vmatmul.bf16.gmra.mxu0 %v587
      %v2157 = vpop.f32.mrf.mxu0
      %v2158 = vadd.f32 0.0, %v2157
      %v2159 = vpop.f32.mrf.mxu0
      %v2160 = vadd.f32 0.0, %v2159
      %2161 = vmatmul.bf16.gmra.mxu0 %v588
      %v2162 = vpop.f32.mrf.mxu0
      %v2163 = vadd.f32 0.0, %v2162
      %v2164 = vpop.f32.mrf.mxu0
      %v2165 = vadd.f32 0.0, %v2164
      %2166 = vmatmul.bf16.gmra.mxu0 %v589
      %v2167 = vpop.f32.mrf.mxu0
      %v2168 = vadd.f32 0.0, %v2167
      %v2169 = vpop.f32.mrf.mxu0
      %v2170 = vadd.f32 0.0, %v2169
      %2171 = vmatmul.bf16.gmra.mxu0 %v590
      %v2172 = vpop.f32.mrf.mxu0
      %v2173 = vadd.f32 0.0, %v2172
      %v2174 = vpop.f32.mrf.mxu0
      %v2175 = vadd.f32 0.0, %v2174
      %2176 = vdwg.mxu0
      %v2177 = vld [vmem:[%s9] sm:$0xf]
      %v2178 = vld [vmem:[%s9 + $0x4] sm:$0xf]
      %v2179 = vld [vmem:[%s9 + $0x8] sm:$0xf]
      %v2180 = vld [vmem:[%s9 + $0xc] sm:$0xf]
      %v2181 = vld [vmem:[%s9 + $0x10] sm:$0xf]
      %v2182 = vld [vmem:[%s9 + $0x14] sm:$0xf]
      %v2183 = vld [vmem:[%s9 + $0x18] sm:$0xf]
      %v2184 = vld [vmem:[%s9 + $0x1c] sm:$0xf]
      %v2185 = vld [vmem:[%s9 + $0x20] sm:$0xf]
      %v2186 = vld [vmem:[%s9 + $0x24] sm:$0xf]
      %v2187 = vld [vmem:[%s9 + $0x28] sm:$0xf]
      %v2188 = vld [vmem:[%s9 + $0x2c] sm:$0xf]
      %v2189 = vld [vmem:[%s9 + $0x30] sm:$0xf]
      %v2190 = vld [vmem:[%s9 + $0x34] sm:$0xf]
      %v2191 = vld [vmem:[%s9 + $0x38] sm:$0xf]
      %v2192 = vld [vmem:[%s9 + $0x3c] sm:$0xf]
      %v2193 = vld [vmem:[%s10] sm:$0x1]
      %v2195 = vperm.slane %v2193, 0
      %v2213 = vunpack.c.l.b16 %v1871
      %v2214 = vunpack.c.l.b16 %v1872
      %v2215 = vunpack.c.l.b16 %v1873
      %v2216 = vunpack.c.l.b16 %v1874
      %v2217 = vunpack.c.l.b16 %v1875
      %v2218 = vunpack.c.l.b16 %v1876
      %v2219 = vunpack.c.l.b16 %v1877
      %v2220 = vunpack.c.l.b16 %v1878
      %v2221 = vunpack.c.l.b16 %v1879
      %v2222 = vunpack.c.l.b16 %v1880
      %v2223 = vunpack.c.l.b16 %v1881
      %v2224 = vunpack.c.l.b16 %v1882
      %v2225 = vunpack.c.l.b16 %v1883
      %v2226 = vunpack.c.l.b16 %v1884
      %v2227 = vunpack.c.l.b16 %v1885
      %v2228 = vunpack.c.l.b16 %v1886
      %v2229 = vpack.c.b16 %v2214, %v2213
      %v2230 = vpack.c.b16 %v2216, %v2215
      %v2231 = vpack.c.b16 %v2218, %v2217
      %v2232 = vpack.c.b16 %v2220, %v2219
      %v2233 = vpack.c.b16 %v2222, %v2221
      %v2234 = vpack.c.b16 %v2224, %v2223
      %v2235 = vpack.c.b16 %v2226, %v2225
      %v2236 = vpack.c.b16 %v2228, %v2227
      %v2261 = vunpack.c.l.b16 %v2177
      %v2262 = vunpack.c.l.b16 %v2178
      %v2263 = vunpack.c.l.b16 %v2179
      %v2264 = vunpack.c.l.b16 %v2180
      %v2265 = vunpack.c.l.b16 %v2181
      %v2266 = vunpack.c.l.b16 %v2182
      %v2267 = vunpack.c.l.b16 %v2183
      %v2268 = vunpack.c.l.b16 %v2184
      %v2269 = vunpack.c.l.b16 %v2185
      %v2270 = vunpack.c.l.b16 %v2186
      %v2271 = vunpack.c.l.b16 %v2187
      %v2272 = vunpack.c.l.b16 %v2188
      %v2273 = vunpack.c.l.b16 %v2189
      %v2274 = vunpack.c.l.b16 %v2190
      %v2275 = vunpack.c.l.b16 %v2191
      %v2276 = vunpack.c.l.b16 %v2192
      %v2277 = vpack.c.b16 %v2262, %v2261
      %v2278 = vpack.c.b16 %v2264, %v2263
      %v2279 = vpack.c.b16 %v2266, %v2265
      %v2280 = vpack.c.b16 %v2268, %v2267
      %v2281 = vpack.c.b16 %v2270, %v2269
      %v2282 = vpack.c.b16 %v2272, %v2271
      %v2283 = vpack.c.b16 %v2274, %v2273
      %v2284 = vpack.c.b16 %v2276, %v2275
      %2293 = vmatpush.bf16.msra.mxu0 %v2284
      %2294 = vmatpush.bf16.msra.mxu0 %v2283
      %2295 = vmatpush.bf16.msra.mxu0 %v2282
      %2296 = vmatpush.bf16.msra.mxu0 %v2281
      %2297 = vmatpush.bf16.msra.mxu0 %v2280
      %2298 = vmatpush.bf16.msra.mxu0 %v2279
      %2299 = vmatpush.bf16.msra.mxu0 %v2278
      %2300 = vmatpush.bf16.msra.mxu0 %v2277
      %2301 = vmatmul.bf16.gmra.mxu0 %v2229
      %v2302 = vpop.f32.mrf.mxu0
      %v2303 = vadd.f32 %v2195, %v2302
      %v2304 = vpop.f32.mrf.mxu0
      %v2305 = vadd.f32 %v2195, %v2304
      %2306 = vmatmul.bf16.gmra.mxu0 %v2230
      %v2307 = vpop.f32.mrf.mxu0
      %v2308 = vadd.f32 %v2195, %v2307
      %v2309 = vpop.f32.mrf.mxu0
      %v2310 = vadd.f32 %v2195, %v2309
      %2311 = vmatmul.bf16.gmra.mxu0 %v2231
      %v2312 = vpop.f32.mrf.mxu0
      %v2313 = vadd.f32 %v2195, %v2312
      %v2314 = vpop.f32.mrf.mxu0
      %v2315 = vadd.f32 %v2195, %v2314
      %2316 = vmatmul.bf16.gmra.mxu0 %v2232
      %v2317 = vpop.f32.mrf.mxu0
      %v2318 = vadd.f32 %v2195, %v2317
      %v2319 = vpop.f32.mrf.mxu0
      %v2320 = vadd.f32 %v2195, %v2319
      %2321 = vmatmul.bf16.gmra.mxu0 %v2233
      %v2322 = vpop.f32.mrf.mxu0
      %v2323 = vadd.f32 %v2195, %v2322
      %v2324 = vpop.f32.mrf.mxu0
      %v2325 = vadd.f32 %v2195, %v2324
      %2326 = vmatmul.bf16.gmra.mxu0 %v2234
      %v2327 = vpop.f32.mrf.mxu0
      %v2328 = vadd.f32 %v2195, %v2327
      %v2329 = vpop.f32.mrf.mxu0
      %v2330 = vadd.f32 %v2195, %v2329
      %2331 = vmatmul.bf16.gmra.mxu0 %v2235
      %v2332 = vpop.f32.mrf.mxu0
      %v2333 = vadd.f32 %v2195, %v2332
      %v2334 = vpop.f32.mrf.mxu0
      %v2335 = vadd.f32 %v2195, %v2334
      %2336 = vmatmul.bf16.gmra.mxu0 %v2236
      %v2337 = vpop.f32.mrf.mxu0
      %v2338 = vadd.f32 %v2195, %v2337
      %v2339 = vpop.f32.mrf.mxu0
      %v2340 = vadd.f32 %v2195, %v2339
      %2341 = vdwg.mxu0
      %v2342 = vsub.f32 0.0, %v2303
      %v2343 = vsub.f32 0.0, %v2305
      %v2344 = vsub.f32 0.0, %v2308
      %v2345 = vsub.f32 0.0, %v2310
      %v2346 = vsub.f32 0.0, %v2313
      %v2347 = vsub.f32 0.0, %v2315
      %v2348 = vsub.f32 0.0, %v2318
      %v2349 = vsub.f32 0.0, %v2320
      %v2350 = vsub.f32 0.0, %v2323
      %v2351 = vsub.f32 0.0, %v2325
      %v2352 = vsub.f32 0.0, %v2328
      %v2353 = vsub.f32 0.0, %v2330
      %v2354 = vsub.f32 0.0, %v2333
      %v2355 = vsub.f32 0.0, %v2335
      %v2356 = vsub.f32 0.0, %v2338
      %v2357 = vsub.f32 0.0, %v2340
      %v2358 = vmul.f32 %v2342, 1.442695
      %v2359 = vpow.pop %v2358
      %v2360 = vmul.f32 %v2343, 1.442695
      %v2361 = vpow.pop %v2360
      %v2362 = vmul.f32 %v2344, 1.442695
      %v2363 = vpow.pop %v2362
      %v2364 = vmul.f32 %v2345, 1.442695
      %v2365 = vpow.pop %v2364
      %v2366 = vmul.f32 %v2346, 1.442695
      %v2367 = vpow.pop %v2366
      %v2368 = vmul.f32 %v2347, 1.442695
      %v2369 = vpow.pop %v2368
      %v2370 = vmul.f32 %v2348, 1.442695
      %v2371 = vpow.pop %v2370
      %v2372 = vmul.f32 %v2349, 1.442695
      %v2373 = vpow.pop %v2372
      %v2374 = vmul.f32 %v2350, 1.442695
      %v2375 = vpow.pop %v2374
      %v2376 = vmul.f32 %v2351, 1.442695
      %v2377 = vpow.pop %v2376
      %v2378 = vmul.f32 %v2352, 1.442695
      %v2379 = vpow.pop %v2378
      %v2380 = vmul.f32 %v2353, 1.442695
      %v2381 = vpow.pop %v2380
      %v2382 = vmul.f32 %v2354, 1.442695
      %v2383 = vpow.pop %v2382
      %v2384 = vmul.f32 %v2355, 1.442695
      %v2385 = vpow.pop %v2384
      %v2386 = vmul.f32 %v2356, 1.442695
      %v2387 = vpow.pop %v2386
      %v2388 = vmul.f32 %v2357, 1.442695
      %v2389 = vpow.pop %v2388
      %v2390 = vadd.f32 %v2359, 1.0
      %v2391 = vadd.f32 %v2361, 1.0
      %v2392 = vadd.f32 %v2363, 1.0
      %v2393 = vadd.f32 %v2365, 1.0
      %v2394 = vadd.f32 %v2367, 1.0
      %v2395 = vadd.f32 %v2369, 1.0
      %v2396 = vadd.f32 %v2371, 1.0
      %v2397 = vadd.f32 %v2373, 1.0
      %v2398 = vadd.f32 %v2375, 1.0
      %v2399 = vadd.f32 %v2377, 1.0
      %v2400 = vadd.f32 %v2379, 1.0
      %v2401 = vadd.f32 %v2381, 1.0
      %v2402 = vadd.f32 %v2383, 1.0
      %v2403 = vadd.f32 %v2385, 1.0
      %v2404 = vadd.f32 %v2387, 1.0
      %v2405 = vadd.f32 %v2389, 1.0
      %v2406 = vrcp.pop %v2390
      %v2407 = vmul.f32 %v2390, %v2406
      %v2408 = vsub.f32 1.0, %v2407
      %v2409 = vmul.f32 %v2406, %v2408
      %v2410 = vadd.f32 %v2406, %v2409
      %vm2411 = vweird.f32 %v2390
      %vm2412 = vweird.f32 %v2406
      %vm2413 = vmor %vm2411, %vm2412
      %v2414 = vsel %vm2413, %v2406, %v2410
      %v2415 = vand.u32 2147483647, %v2390
      %vm2416 = vcmp.eq.f32.partialorder %v2415, 8.507059e+37
      %v2417 = vand.u32 %v2390, 2147483648
      %v2418 = vor.u32 1.1754944e-38, %v2417
      %v2419 = vsel %vm2416, %v2418, %v2414
      %v2420 = vmul.f32 1.0, %v2419
      %v2421 = vrcp.pop %v2391
      %v2422 = vmul.f32 %v2391, %v2421
      %v2423 = vsub.f32 1.0, %v2422
      %v2424 = vmul.f32 %v2421, %v2423
      %v2425 = vadd.f32 %v2421, %v2424
      %vm2426 = vweird.f32 %v2391
      %vm2427 = vweird.f32 %v2421
      %vm2428 = vmor %vm2426, %vm2427
      %v2429 = vsel %vm2428, %v2421, %v2425
      %v2430 = vand.u32 2147483647, %v2391
      %vm2431 = vcmp.eq.f32.partialorder %v2430, 8.507059e+37
      %v2432 = vand.u32 %v2391, 2147483648
      %v2433 = vor.u32 1.1754944e-38, %v2432
      %v2434 = vsel %vm2431, %v2433, %v2429
      %v2435 = vmul.f32 1.0, %v2434
      %v2436 = vrcp.pop %v2392
      %v2437 = vmul.f32 %v2392, %v2436
      %v2438 = vsub.f32 1.0, %v2437
      %v2439 = vmul.f32 %v2436, %v2438
      %v2440 = vadd.f32 %v2436, %v2439
      %vm2441 = vweird.f32 %v2392
      %vm2442 = vweird.f32 %v2436
      %vm2443 = vmor %vm2441, %vm2442
      %v2444 = vsel %vm2443, %v2436, %v2440
      %v2445 = vand.u32 2147483647, %v2392
      %vm2446 = vcmp.eq.f32.partialorder %v2445, 8.507059e+37
      %v2447 = vand.u32 %v2392, 2147483648
      %v2448 = vor.u32 1.1754944e-38, %v2447
      %v2449 = vsel %vm2446, %v2448, %v2444
      %v2450 = vmul.f32 1.0, %v2449
      %v2451 = vrcp.pop %v2393
      %v2452 = vmul.f32 %v2393, %v2451
      %v2453 = vsub.f32 1.0, %v2452
      %v2454 = vmul.f32 %v2451, %v2453
      %v2455 = vadd.f32 %v2451, %v2454
      %vm2456 = vweird.f32 %v2393
      %vm2457 = vweird.f32 %v2451
      %vm2458 = vmor %vm2456, %vm2457
      %v2459 = vsel %vm2458, %v2451, %v2455
      %v2460 = vand.u32 2147483647, %v2393
      %vm2461 = vcmp.eq.f32.partialorder %v2460, 8.507059e+37
      %v2462 = vand.u32 %v2393, 2147483648
      %v2463 = vor.u32 1.1754944e-38, %v2462
      %v2464 = vsel %vm2461, %v2463, %v2459
      %v2465 = vmul.f32 1.0, %v2464
      %v2466 = vrcp.pop %v2394
      %v2467 = vmul.f32 %v2394, %v2466
      %v2468 = vsub.f32 1.0, %v2467
      %v2469 = vmul.f32 %v2466, %v2468
      %v2470 = vadd.f32 %v2466, %v2469
      %vm2471 = vweird.f32 %v2394
      %vm2472 = vweird.f32 %v2466
      %vm2473 = vmor %vm2471, %vm2472
      %v2474 = vsel %vm2473, %v2466, %v2470
      %v2475 = vand.u32 2147483647, %v2394
      %vm2476 = vcmp.eq.f32.partialorder %v2475, 8.507059e+37
      %v2477 = vand.u32 %v2394, 2147483648
      %v2478 = vor.u32 1.1754944e-38, %v2477
      %v2479 = vsel %vm2476, %v2478, %v2474
      %v2480 = vmul.f32 1.0, %v2479
      %v2481 = vrcp.pop %v2395
      %v2482 = vmul.f32 %v2395, %v2481
      %v2483 = vsub.f32 1.0, %v2482
      %v2484 = vmul.f32 %v2481, %v2483
      %v2485 = vadd.f32 %v2481, %v2484
      %vm2486 = vweird.f32 %v2395
      %vm2487 = vweird.f32 %v2481
      %vm2488 = vmor %vm2486, %vm2487
      %v2489 = vsel %vm2488, %v2481, %v2485
      %v2490 = vand.u32 2147483647, %v2395
      %vm2491 = vcmp.eq.f32.partialorder %v2490, 8.507059e+37
      %v2492 = vand.u32 %v2395, 2147483648
      %v2493 = vor.u32 1.1754944e-38, %v2492
      %v2494 = vsel %vm2491, %v2493, %v2489
      %v2495 = vmul.f32 1.0, %v2494
      %v2496 = vrcp.pop %v2396
      %v2497 = vmul.f32 %v2396, %v2496
      %v2498 = vsub.f32 1.0, %v2497
      %v2499 = vmul.f32 %v2496, %v2498
      %v2500 = vadd.f32 %v2496, %v2499
      %vm2501 = vweird.f32 %v2396
      %vm2502 = vweird.f32 %v2496
      %vm2503 = vmor %vm2501, %vm2502
      %v2504 = vsel %vm2503, %v2496, %v2500
      %v2505 = vand.u32 2147483647, %v2396
      %vm2506 = vcmp.eq.f32.partialorder %v2505, 8.507059e+37
      %v2507 = vand.u32 %v2396, 2147483648
      %v2508 = vor.u32 1.1754944e-38, %v2507
      %v2509 = vsel %vm2506, %v2508, %v2504
      %v2510 = vmul.f32 1.0, %v2509
      %v2511 = vrcp.pop %v2397
      %v2512 = vmul.f32 %v2397, %v2511
      %v2513 = vsub.f32 1.0, %v2512
      %v2514 = vmul.f32 %v2511, %v2513
      %v2515 = vadd.f32 %v2511, %v2514
      %vm2516 = vweird.f32 %v2397
      %vm2517 = vweird.f32 %v2511
      %vm2518 = vmor %vm2516, %vm2517
      %v2519 = vsel %vm2518, %v2511, %v2515
      %v2520 = vand.u32 2147483647, %v2397
      %vm2521 = vcmp.eq.f32.partialorder %v2520, 8.507059e+37
      %v2522 = vand.u32 %v2397, 2147483648
      %v2523 = vor.u32 1.1754944e-38, %v2522
      %v2524 = vsel %vm2521, %v2523, %v2519
      %v2525 = vmul.f32 1.0, %v2524
      %v2526 = vrcp.pop %v2398
      %v2527 = vmul.f32 %v2398, %v2526
      %v2528 = vsub.f32 1.0, %v2527
      %v2529 = vmul.f32 %v2526, %v2528
      %v2530 = vadd.f32 %v2526, %v2529
      %vm2531 = vweird.f32 %v2398
      %vm2532 = vweird.f32 %v2526
      %vm2533 = vmor %vm2531, %vm2532
      %v2534 = vsel %vm2533, %v2526, %v2530
      %v2535 = vand.u32 2147483647, %v2398
      %vm2536 = vcmp.eq.f32.partialorder %v2535, 8.507059e+37
      %v2537 = vand.u32 %v2398, 2147483648
      %v2538 = vor.u32 1.1754944e-38, %v2537
      %v2539 = vsel %vm2536, %v2538, %v2534
      %v2540 = vmul.f32 1.0, %v2539
      %v2541 = vrcp.pop %v2399
      %v2542 = vmul.f32 %v2399, %v2541
      %v2543 = vsub.f32 1.0, %v2542
      %v2544 = vmul.f32 %v2541, %v2543
      %v2545 = vadd.f32 %v2541, %v2544
      %vm2546 = vweird.f32 %v2399
      %vm2547 = vweird.f32 %v2541
      %vm2548 = vmor %vm2546, %vm2547
      %v2549 = vsel %vm2548, %v2541, %v2545
      %v2550 = vand.u32 2147483647, %v2399
      %vm2551 = vcmp.eq.f32.partialorder %v2550, 8.507059e+37
      %v2552 = vand.u32 %v2399, 2147483648
      %v2553 = vor.u32 1.1754944e-38, %v2552
      %v2554 = vsel %vm2551, %v2553, %v2549
      %v2555 = vmul.f32 1.0, %v2554
      %v2556 = vrcp.pop %v2400
      %v2557 = vmul.f32 %v2400, %v2556
      %v2558 = vsub.f32 1.0, %v2557
      %v2559 = vmul.f32 %v2556, %v2558
      %v2560 = vadd.f32 %v2556, %v2559
      %vm2561 = vweird.f32 %v2400
      %vm2562 = vweird.f32 %v2556
      %vm2563 = vmor %vm2561, %vm2562
      %v2564 = vsel %vm2563, %v2556, %v2560
      %v2565 = vand.u32 2147483647, %v2400
      %vm2566 = vcmp.eq.f32.partialorder %v2565, 8.507059e+37
      %v2567 = vand.u32 %v2400, 2147483648
      %v2568 = vor.u32 1.1754944e-38, %v2567
      %v2569 = vsel %vm2566, %v2568, %v2564
      %v2570 = vmul.f32 1.0, %v2569
      %v2571 = vrcp.pop %v2401
      %v2572 = vmul.f32 %v2401, %v2571
      %v2573 = vsub.f32 1.0, %v2572
      %v2574 = vmul.f32 %v2571, %v2573
      %v2575 = vadd.f32 %v2571, %v2574
      %vm2576 = vweird.f32 %v2401
      %vm2577 = vweird.f32 %v2571
      %vm2578 = vmor %vm2576, %vm2577
      %v2579 = vsel %vm2578, %v2571, %v2575
      %v2580 = vand.u32 2147483647, %v2401
      %vm2581 = vcmp.eq.f32.partialorder %v2580, 8.507059e+37
      %v2582 = vand.u32 %v2401, 2147483648
      %v2583 = vor.u32 1.1754944e-38, %v2582
      %v2584 = vsel %vm2581, %v2583, %v2579
      %v2585 = vmul.f32 1.0, %v2584
      %v2586 = vrcp.pop %v2402
      %v2587 = vmul.f32 %v2402, %v2586
      %v2588 = vsub.f32 1.0, %v2587
      %v2589 = vmul.f32 %v2586, %v2588
      %v2590 = vadd.f32 %v2586, %v2589
      %vm2591 = vweird.f32 %v2402
      %vm2592 = vweird.f32 %v2586
      %vm2593 = vmor %vm2591, %vm2592
      %v2594 = vsel %vm2593, %v2586, %v2590
      %v2595 = vand.u32 2147483647, %v2402
      %vm2596 = vcmp.eq.f32.partialorder %v2595, 8.507059e+37
      %v2597 = vand.u32 %v2402, 2147483648
      %v2598 = vor.u32 1.1754944e-38, %v2597
      %v2599 = vsel %vm2596, %v2598, %v2594
      %v2600 = vmul.f32 1.0, %v2599
      %v2601 = vrcp.pop %v2403
      %v2602 = vmul.f32 %v2403, %v2601
      %v2603 = vsub.f32 1.0, %v2602
      %v2604 = vmul.f32 %v2601, %v2603
      %v2605 = vadd.f32 %v2601, %v2604
      %vm2606 = vweird.f32 %v2403
      %vm2607 = vweird.f32 %v2601
      %vm2608 = vmor %vm2606, %vm2607
      %v2609 = vsel %vm2608, %v2601, %v2605
      %v2610 = vand.u32 2147483647, %v2403
      %vm2611 = vcmp.eq.f32.partialorder %v2610, 8.507059e+37
      %v2612 = vand.u32 %v2403, 2147483648
      %v2613 = vor.u32 1.1754944e-38, %v2612
      %v2614 = vsel %vm2611, %v2613, %v2609
      %v2615 = vmul.f32 1.0, %v2614
      %v2616 = vrcp.pop %v2404
      %v2617 = vmul.f32 %v2404, %v2616
      %v2618 = vsub.f32 1.0, %v2617
      %v2619 = vmul.f32 %v2616, %v2618
      %v2620 = vadd.f32 %v2616, %v2619
      %vm2621 = vweird.f32 %v2404
      %vm2622 = vweird.f32 %v2616
      %vm2623 = vmor %vm2621, %vm2622
      %v2624 = vsel %vm2623, %v2616, %v2620
      %v2625 = vand.u32 2147483647, %v2404
      %vm2626 = vcmp.eq.f32.partialorder %v2625, 8.507059e+37
      %v2627 = vand.u32 %v2404, 2147483648
      %v2628 = vor.u32 1.1754944e-38, %v2627
      %v2629 = vsel %vm2626, %v2628, %v2624
      %v2630 = vmul.f32 1.0, %v2629
      %v2631 = vrcp.pop %v2405
      %v2632 = vmul.f32 %v2405, %v2631
      %v2633 = vsub.f32 1.0, %v2632
      %v2634 = vmul.f32 %v2631, %v2633
      %v2635 = vadd.f32 %v2631, %v2634
      %vm2636 = vweird.f32 %v2405
      %vm2637 = vweird.f32 %v2631
      %vm2638 = vmor %vm2636, %vm2637
      %v2639 = vsel %vm2638, %v2631, %v2635
      %v2640 = vand.u32 2147483647, %v2405
      %vm2641 = vcmp.eq.f32.partialorder %v2640, 8.507059e+37
      %v2642 = vand.u32 %v2405, 2147483648
      %v2643 = vor.u32 1.1754944e-38, %v2642
      %v2644 = vsel %vm2641, %v2643, %v2639
      %v2645 = vmul.f32 1.0, %v2644
      %v2646 = vmul.f32 %v2303, %v2420
      %v2647 = vmul.f32 %v2305, %v2435
      %v2648 = vmul.f32 %v2308, %v2450
      %v2649 = vmul.f32 %v2310, %v2465
      %v2650 = vmul.f32 %v2313, %v2480
      %v2651 = vmul.f32 %v2315, %v2495
      %v2652 = vmul.f32 %v2318, %v2510
      %v2653 = vmul.f32 %v2320, %v2525
      %v2654 = vmul.f32 %v2323, %v2540
      %v2655 = vmul.f32 %v2325, %v2555
      %v2656 = vmul.f32 %v2328, %v2570
      %v2657 = vmul.f32 %v2330, %v2585
      %v2658 = vmul.f32 %v2333, %v2600
      %v2659 = vmul.f32 %v2335, %v2615
      %v2660 = vmul.f32 %v2338, %v2630
      %v2661 = vmul.f32 %v2340, %v2645
      %v2662 = vmul.f32 %v2646, %v2138
      %v2663 = vmul.f32 %v2647, %v2140
      %v2664 = vmul.f32 %v2648, %v2143
      %v2665 = vmul.f32 %v2649, %v2145
      %v2666 = vmul.f32 %v2650, %v2148
      %v2667 = vmul.f32 %v2651, %v2150
      %v2668 = vmul.f32 %v2652, %v2153
      %v2669 = vmul.f32 %v2653, %v2155
      %v2670 = vmul.f32 %v2654, %v2158
      %v2671 = vmul.f32 %v2655, %v2160
      %v2672 = vmul.f32 %v2656, %v2163
      %v2673 = vmul.f32 %v2657, %v2165
      %v2674 = vmul.f32 %v2658, %v2168
      %v2675 = vmul.f32 %v2659, %v2170
      %v2676 = vmul.f32 %v2660, %v2173
      %v2677 = vmul.f32 %v2661, %v2175
      %v2678 = vpack.c.bf16 %v2662, %v2662
      %v2679 = vpack.c.bf16 %v2663, %v2663
      %v2680 = vpack.c.bf16 %v2664, %v2664
      %v2681 = vpack.c.bf16 %v2665, %v2665
      %v2682 = vpack.c.bf16 %v2666, %v2666
      %v2683 = vpack.c.bf16 %v2667, %v2667
      %v2684 = vpack.c.bf16 %v2668, %v2668
      %v2685 = vpack.c.bf16 %v2669, %v2669
      %v2686 = vpack.c.bf16 %v2670, %v2670
      %v2687 = vpack.c.bf16 %v2671, %v2671
      %v2688 = vpack.c.bf16 %v2672, %v2672
      %v2689 = vpack.c.bf16 %v2673, %v2673
      %v2690 = vpack.c.bf16 %v2674, %v2674
      %v2691 = vpack.c.bf16 %v2675, %v2675
      %v2692 = vpack.c.bf16 %v2676, %v2676
      %v2693 = vpack.c.bf16 %v2677, %v2677
      %2694 = vst [vmem:[%s513] sm:$0xf] %v2678
      %2695 = vst [vmem:[%s513 + $0x4] sm:$0xf] %v2679
      %2696 = vst [vmem:[%s513 + $0x8] sm:$0xf] %v2680
      %2697 = vst [vmem:[%s513 + $0xc] sm:$0xf] %v2681
      %2698 = vst [vmem:[%s513 + $0x10] sm:$0xf] %v2682
      %2699 = vst [vmem:[%s513 + $0x14] sm:$0xf] %v2683
      %2700 = vst [vmem:[%s513 + $0x18] sm:$0xf] %v2684
      %2701 = vst [vmem:[%s513 + $0x1c] sm:$0xf] %v2685
      %2702 = vst [vmem:[%s513 + $0x20] sm:$0xf] %v2686
      %2703 = vst [vmem:[%s513 + $0x24] sm:$0xf] %v2687
      %2704 = vst [vmem:[%s513 + $0x28] sm:$0xf] %v2688
      %2705 = vst [vmem:[%s513 + $0x2c] sm:$0xf] %v2689
      %2706 = vst [vmem:[%s513 + $0x30] sm:$0xf] %v2690
      %2707 = vst [vmem:[%s513 + $0x34] sm:$0xf] %v2691
      %2708 = vst [vmem:[%s513 + $0x38] sm:$0xf] %v2692
      %2709 = vst [vmem:[%s513 + $0x3c] sm:$0xf] %v2693
      %s2710 = smul.u32 16, %s25
      %p2711 = scmp.lt.s32.totalorder %s2710, 31
      %s2712 = scalar_select %p2711, %s2710, 31
      %s2713 = smul.addr %s2712, 4
      %s2714 = scalar_lea.vmem %s11, %s2713
      %s2715 = smul.u32 16, %s25
      %p2716 = scmp.lt.s32.totalorder %s2715, 31
      %s2717 = scalar_select %p2716, %s2715, 31
      %s2718 = smul.addr %s2717, 4
      %s2719 = scalar_lea.vmem %s12, %s2718
      %s2720 = smul.u32 16, %s25
      %p2721 = scmp.lt.s32.totalorder %s2720, 31
      %s2722 = scalar_select %p2721, %s2720, 31
      %s2723 = smul.addr %s2722, 4
      %s2724 = scalar_lea.vmem %s13, %s2723
      // Predicated region
      $region65: #{_forward_device.4} parent=63 // pred_check
        %p2725 = pneg %p289
      $region66: #{_forward_device.4} parent=63 // pred_check_branch
        %2727 = sbr.rel (%p2725) target = $region68
      $region67: #{_forward_device.4} parent=63 // pred_region
        %s2728 = smul.u32 16, %s25
      $region68: #{_forward_device.4} parent=63 // pred_fallthru
        _
      // Predicated region
      $region69: #{_forward_device.4} parent=63 // pred_check
        %p2729 = pneg %p315
      $region70: #{_forward_device.4} parent=63 // pred_check_branch
        %2731 = sbr.rel (%p2729) target = $region72
      $region71: #{_forward_device.4} parent=63 // pred_region
        %s2732 = smul.u32 16, %s25
      $region72: #{_forward_device.4} parent=63 // pred_fallthru
        _
      // Predicated region
      $region73: #{_forward_device.4} parent=63 // pred_check
        %p2733 = pneg %p341
      $region74: #{_forward_device.4} parent=63 // pred_check_branch
        %2735 = sbr.rel (%p2733) target = $region76
      $region75: #{_forward_device.4} parent=63 // pred_region
        %s2736 = smul.u32 16, %s25
      $region76: #{_forward_device.4} parent=63 // pred_fallthru
        _
    $region64: #{_forward_device.4} parent=5 // pred_fallthru
      _
    %p2737 = scmp.le.s32.totalorder 2, %s20
    // Predicated region
    $region77: #{_forward_device.4} parent=5 // pred_check
      %p2738 = pneg %p2737
    $region78: #{_forward_device.4} parent=5 // pred_check_branch
      %2740 = sbr.rel (%p2738) target = $region80
    $region79: #{_forward_device.4} parent=5 // pred_region
      %s2741 = ssub.s32 %s20, 2
      // Predicated region
      $region81: #{_forward_device.4} parent=79 // pred_check
        %p2742 = pneg %p295
      $region82: #{_forward_device.4} parent=79 // pred_check_branch
        %2744 = sbr.rel (%p2742) target = $region84
      $region83: #{_forward_device.4} parent=79 // pred_region
        %s2745 = smul.u32 16, %s26
        %p2746 = scmp.lt.s32.totalorder %s2745, 31
        %s2747 = scalar_select %p2746, %s2745, 31
        %s2748 = smul.addr %s2747, 4
        %s2749 = scalar_lea.vmem %s11, %s2748
      $region84: #{_forward_device.4} parent=79 // pred_fallthru
        _
      // Predicated region
      $region85: #{_forward_device.4} parent=79 // pred_check
        %p2750 = pneg %p321
      $region86: #{_forward_device.4} parent=79 // pred_check_branch
        %2752 = sbr.rel (%p2750) target = $region88
      $region87: #{_forward_device.4} parent=79 // pred_region
        %s2753 = smul.u32 16, %s26
        %p2754 = scmp.lt.s32.totalorder %s2753, 31
        %s2755 = scalar_select %p2754, %s2753, 31
        %s2756 = smul.addr %s2755, 4
        %s2757 = scalar_lea.vmem %s12, %s2756
      $region88: #{_forward_device.4} parent=79 // pred_fallthru
        _
      // Predicated region
      $region89: #{_forward_device.4} parent=79 // pred_check
        %p2758 = pneg %p347
      $region90: #{_forward_device.4} parent=79 // pred_check_branch
        %2760 = sbr.rel (%p2758) target = $region92
      $region91: #{_forward_device.4} parent=79 // pred_region
        %s2761 = smul.u32 16, %s26
        %p2762 = scmp.lt.s32.totalorder %s2761, 31
        %s2763 = scalar_select %p2762, %s2761, 31
        %s2764 = smul.addr %s2763, 4
        %s2765 = scalar_lea.vmem %s13, %s2764
      $region92: #{_forward_device.4} parent=79 // pred_fallthru
        _
    $region80: #{_forward_device.4} parent=5 // pred_fallthru
      _
  $region6: #{_forward_device.4} parent=0 // loop_footer
    %s24 = sadd.s32 1, %s20
  $region7: #{_forward_device.4} parent=0 // loop_footer_branch
    %19 = sbr.rel target = $region3
  $region8: #{_forward_device.4} parent=0 // loop_exit
    _

// kernel: _forward_device.6
$region0: #{_forward_device.6}
  #allocation0 [shape = 'u32[]', space=smem, size = 0x4, offset = 0x4, fixed_abs, tag = 'smem constant byte address 0x4 - core index']
  #allocation1 [shape = 'u32[72,128]{1,0:T(1,128)}', space=vmem, size = 0x9000, scoped, tag = 'internal scratch']
  %s0 = inlined_call_operand.vmem [shape: bf16[256,128], index: 0, kind: input, shape index: {}]
  %s1 = inlined_call_operand.vmem [shape: bf16[256,128], index: 1, kind: input, shape index: {}]
  %s2 = inlined_call_operand.vmem [shape: bf16[256,128], index: 2, kind: input, shape index: {}]
  %s3 = inlined_call_operand.vmem [shape: bf16[128,128], index: 3, kind: input, shape index: {}]
  %s4 = inlined_call_operand.vmem [shape: f32[1,128], index: 4, kind: input, shape index: {}]
  %s5 = inlined_call_operand.vmem [shape: bf16[128,128], index: 5, kind: input, shape index: {}]
  %s6 = inlined_call_operand.vmem [shape: f32[1,128], index: 6, kind: input, shape index: {}]
  %s7 = inlined_call_operand.vmem [shape: bf16[128,128], index: 7, kind: input, shape index: {}]
  %s8 = inlined_call_operand.hbm [shape: bf16[256,128], index: 8, kind: output, shape index: {0}]
  %s9 = inlined_call_operand.vmem [shape: bf16[256,128], index: 9, kind: output, shape index: {1}]
  %10 = xla_tuple %s8, %s9
  %s11 = sld [smem:[#allocation0]]
  $region73: #{_forward_device.6} parent=0
    _
  %s13 = ssub.s32 1, %s11
  %s14 = scalar_select 0, %s13, %s11
  $region1: #{_forward_device.6} parent=0
    #allocation2 [shape = 'u8[65536]{0}', space=vmem, size = 0x10000, scoped, tag = 'output window, operand 0']
    #allocation3 [shape = 's32[2]{0}', space=sflag, size = 0x8, scoped, tag = 'scoped memory for _forward_device.6']
    %15 = vsyncpa [#allocation3], 0
    %s16 = scalar_lea.sflag [#allocation3], 1
    %17 = vsyncpa %s16, 0
    loop: start=0, step=1, limit=4
    $region2: #{_forward_device.6} parent=1 // loop_pre_header
      _
    $region3: #{_forward_device.6} parent=1 // loop_header
      %s19 = sphi 0, %s23
      %p20 = scmp.ge.s32.totalorder %s19, 4
      %s29 = sphi 0, %s31
      %s32 = sphi 0, %s29
      %s33 = sphi 0, %s32
      %s49 = sphi 0, %s33
      %s55 = sphi 0, %s57
      %s58 = sphi 0, %s55
      %s59 = sphi 0, %s58
      %s75 = sphi 0, %s59
      %s81 = sphi 0, %s83
      %s84 = sphi 0, %s81
      %s85 = sphi 0, %s84
      %s101 = sphi 0, %s85
      %s105 = sphi 0, %s105
      %s107 = sphi 0, %s105
      %s108 = sphi 0, %s107
      %s122 = sphi 0, %s108
      %s126 = sphi 0, %s126
      %s128 = sphi 0, %s126
      %s129 = sphi 0, %s128
      %s143 = sphi 0, %s129
      %s147 = sphi 0, %s147
      %s149 = sphi 0, %s147
      %s150 = sphi 0, %s149
      %s164 = sphi 0, %s150
      %s168 = sphi 0, %s168
      %s170 = sphi 0, %s168
      %s171 = sphi 0, %s170
      %s185 = sphi 0, %s171
      %s189 = sphi 0, %s189
      %s191 = sphi 0, %s189
      %s192 = sphi 0, %s191
      %s206 = sphi 0, %s192
      %s212 = sphi 0, %s214
      %s215 = sphi 0, %s212
      %s216 = sphi 0, %s215
      %s232 = sphi 0, %s216
      %s238 = sphi 0, %s240
      %s241 = sphi 0, %s238
      %s242 = sphi 0, %s241
      %s258 = sphi 0, %s242
    $region4: #{_forward_device.6} parent=1 // loop_header_branch
      %22 = sbr.rel (%p20) target = $region8
    $region5: #{_forward_device.6} parent=1 // loop_body
      %s24 = ssub.s32 %s19, 1
      %s25 = ssub.s32 %s19, 2
      %s26 = sadd.s32 %s19, 1
      %s27 = ssub.s32 %s19, %s26
      %p28 = scmp.eq.s32.totalorder %s27, 0
      %s30 = sadd.s32 %s29, 1
      %s31 = scalar_select %p28, %s29, %s30
      %p34 = pneg %p28
      %p35 = scmp.eq.s32.totalorder %s19, 1
      %p36 = por %p34, %p35
      %p37 = scmp.ne.s32.totalorder %s29, %s32
      %p38 = scmp.eq.s32.totalorder %s19, 0
      %p39 = por %p37, %p38
      %p40 = scmp.ne.s32.totalorder %s29, %s32
      %p41 = scmp.eq.s32.totalorder %s24, 1
      %p42 = por %p40, %p41
      %p43 = scmp.ne.s32.totalorder %s32, %s33
      %p44 = scmp.eq.s32.totalorder %s24, 0
      %p45 = por %p43, %p44
      %p46 = scmp.ne.s32.totalorder %s32, %s33
      %p47 = scmp.eq.s32.totalorder %s25, 1
      %p48 = por %p46, %p47
      %p50 = scmp.ne.s32.totalorder %s33, %s49
      %p51 = scmp.eq.s32.totalorder %s25, 0
      %p52 = por %p50, %p51
      %s53 = ssub.s32 %s19, %s26
      %p54 = scmp.eq.s32.totalorder %s53, 0
      %s56 = sadd.s32 %s55, 1
      %s57 = scalar_select %p54, %s55, %s56
      %p60 = pneg %p54
      %p61 = scmp.eq.s32.totalorder %s19, 1
      %p62 = por %p60, %p61
      %p63 = scmp.ne.s32.totalorder %s55, %s58
      %p64 = scmp.eq.s32.totalorder %s19, 0
      %p65 = por %p63, %p64
      %p66 = scmp.ne.s32.totalorder %s55, %s58
      %p67 = scmp.eq.s32.totalorder %s24, 1
      %p68 = por %p66, %p67
      %p69 = scmp.ne.s32.totalorder %s58, %s59
      %p70 = scmp.eq.s32.totalorder %s24, 0
      %p71 = por %p69, %p70
      %p72 = scmp.ne.s32.totalorder %s58, %s59
      %p73 = scmp.eq.s32.totalorder %s25, 1
      %p74 = por %p72, %p73
      %p76 = scmp.ne.s32.totalorder %s59, %s75
      %p77 = scmp.eq.s32.totalorder %s25, 0
      %p78 = por %p76, %p77
      %s79 = ssub.s32 %s19, %s26
      %p80 = scmp.eq.s32.totalorder %s79, 0
      %s82 = sadd.s32 %s81, 1
      %s83 = scalar_select %p80, %s81, %s82
      %p86 = pneg %p80
      %p87 = scmp.eq.s32.totalorder %s19, 1
      %p88 = por %p86, %p87
      %p89 = scmp.ne.s32.totalorder %s81, %s84
      %p90 = scmp.eq.s32.totalorder %s19, 0
      %p91 = por %p89, %p90
      %p92 = scmp.ne.s32.totalorder %s81, %s84
      %p93 = scmp.eq.s32.totalorder %s24, 1
      %p94 = por %p92, %p93
      %p95 = scmp.ne.s32.totalorder %s84, %s85
      %p96 = scmp.eq.s32.totalorder %s24, 0
      %p97 = por %p95, %p96
      %p98 = scmp.ne.s32.totalorder %s84, %s85
      %p99 = scmp.eq.s32.totalorder %s25, 1
      %p100 = por %p98, %p99
      %p102 = scmp.ne.s32.totalorder %s85, %s101
      %p103 = scmp.eq.s32.totalorder %s25, 0
      %p104 = por %p102, %p103
      %s106 = sadd.s32 %s105, 1
      %p109 = scmp.eq.s32.totalorder %s19, 1
      %p110 = scmp.ne.s32.totalorder %s105, %s107
      %p111 = scmp.eq.s32.totalorder %s19, 0
      %p112 = por %p110, %p111
      %p113 = scmp.ne.s32.totalorder %s105, %s107
      %p114 = scmp.eq.s32.totalorder %s24, 1
      %p115 = por %p113, %p114
      %p116 = scmp.ne.s32.totalorder %s107, %s108
      %p117 = scmp.eq.s32.totalorder %s24, 0
      %p118 = por %p116, %p117
      %p119 = scmp.ne.s32.totalorder %s107, %s108
      %p120 = scmp.eq.s32.totalorder %s25, 1
      %p121 = por %p119, %p120
      %p123 = scmp.ne.s32.totalorder %s108, %s122
      %p124 = scmp.eq.s32.totalorder %s25, 0
      %p125 = por %p123, %p124
      %s127 = sadd.s32 %s126, 1
      %p130 = scmp.eq.s32.totalorder %s19, 1
      %p131 = scmp.ne.s32.totalorder %s126, %s128
      %p132 = scmp.eq.s32.totalorder %s19, 0
      %p133 = por %p131, %p132
      %p134 = scmp.ne.s32.totalorder %s126, %s128
      %p135 = scmp.eq.s32.totalorder %s24, 1
      %p136 = por %p134, %p135
      %p137 = scmp.ne.s32.totalorder %s128, %s129
      %p138 = scmp.eq.s32.totalorder %s24, 0
      %p139 = por %p137, %p138
      %p140 = scmp.ne.s32.totalorder %s128, %s129
      %p141 = scmp.eq.s32.totalorder %s25, 1
      %p142 = por %p140, %p141
      %p144 = scmp.ne.s32.totalorder %s129, %s143
      %p145 = scmp.eq.s32.totalorder %s25, 0
      %p146 = por %p144, %p145
      %s148 = sadd.s32 %s147, 1
      %p151 = scmp.eq.s32.totalorder %s19, 1
      %p152 = scmp.ne.s32.totalorder %s147, %s149
      %p153 = scmp.eq.s32.totalorder %s19, 0
      %p154 = por %p152, %p153
      %p155 = scmp.ne.s32.totalorder %s147, %s149
      %p156 = scmp.eq.s32.totalorder %s24, 1
      %p157 = por %p155, %p156
      %p158 = scmp.ne.s32.totalorder %s149, %s150
      %p159 = scmp.eq.s32.totalorder %s24, 0
      %p160 = por %p158, %p159
      %p161 = scmp.ne.s32.totalorder %s149, %s150
      %p162 = scmp.eq.s32.totalorder %s25, 1
      %p163 = por %p161, %p162
      %p165 = scmp.ne.s32.totalorder %s150, %s164
      %p166 = scmp.eq.s32.totalorder %s25, 0
      %p167 = por %p165, %p166
      %s169 = sadd.s32 %s168, 1
      %p172 = scmp.eq.s32.totalorder %s19, 1
      %p173 = scmp.ne.s32.totalorder %s168, %s170
      %p174 = scmp.eq.s32.totalorder %s19, 0
      %p175 = por %p173, %p174
      %p176 = scmp.ne.s32.totalorder %s168, %s170
      %p177 = scmp.eq.s32.totalorder %s24, 1
      %p178 = por %p176, %p177
      %p179 = scmp.ne.s32.totalorder %s170, %s171
      %p180 = scmp.eq.s32.totalorder %s24, 0
      %p181 = por %p179, %p180
      %p182 = scmp.ne.s32.totalorder %s170, %s171
      %p183 = scmp.eq.s32.totalorder %s25, 1
      %p184 = por %p182, %p183
      %p186 = scmp.ne.s32.totalorder %s171, %s185
      %p187 = scmp.eq.s32.totalorder %s25, 0
      %p188 = por %p186, %p187
      %s190 = sadd.s32 %s189, 1
      %p193 = scmp.eq.s32.totalorder %s19, 1
      %p194 = scmp.ne.s32.totalorder %s189, %s191
      %p195 = scmp.eq.s32.totalorder %s19, 0
      %p196 = por %p194, %p195
      %p197 = scmp.ne.s32.totalorder %s189, %s191
      %p198 = scmp.eq.s32.totalorder %s24, 1
      %p199 = por %p197, %p198
      %p200 = scmp.ne.s32.totalorder %s191, %s192
      %p201 = scmp.eq.s32.totalorder %s24, 0
      %p202 = por %p200, %p201
      %p203 = scmp.ne.s32.totalorder %s191, %s192
      %p204 = scmp.eq.s32.totalorder %s25, 1
      %p205 = por %p203, %p204
      %p207 = scmp.ne.s32.totalorder %s192, %s206
      %p208 = scmp.eq.s32.totalorder %s25, 0
      %p209 = por %p207, %p208
      %s210 = ssub.s32 %s19, %s26
      %p211 = scmp.eq.s32.totalorder %s210, 0
      %s213 = sadd.s32 %s212, 1
      %s214 = scalar_select %p211, %s212, %s213
      %p217 = pneg %p211
      %p218 = scmp.eq.s32.totalorder %s19, 1
      %p219 = por %p217, %p218
      %p220 = scmp.ne.s32.totalorder %s212, %s215
      %p221 = scmp.eq.s32.totalorder %s19, 0
      %p222 = por %p220, %p221
      %p223 = scmp.ne.s32.totalorder %s212, %s215
      %p224 = scmp.eq.s32.totalorder %s24, 1
      %p225 = por %p223, %p224
      %p226 = scmp.ne.s32.totalorder %s215, %s216
      %p227 = scmp.eq.s32.totalorder %s24, 0
      %p228 = por %p226, %p227
      %p229 = scmp.ne.s32.totalorder %s215, %s216
      %p230 = scmp.eq.s32.totalorder %s25, 1
      %p231 = por %p229, %p230
      %p233 = scmp.ne.s32.totalorder %s216, %s232
      %p234 = scmp.eq.s32.totalorder %s25, 0
      %p235 = por %p233, %p234
      %s236 = ssub.s32 %s19, %s26
      %p237 = scmp.eq.s32.totalorder %s236, 0
      %s239 = sadd.s32 %s238, 1
      %s240 = scalar_select %p237, %s238, %s239
      %p243 = pneg %p237
      %p244 = scmp.eq.s32.totalorder %s19, 1
      %p245 = por %p243, %p244
      %p246 = scmp.ne.s32.totalorder %s238, %s241
      %p247 = scmp.eq.s32.totalorder %s19, 0
      %p248 = por %p246, %p247
      %p249 = scmp.ne.s32.totalorder %s238, %s241
      %p250 = scmp.eq.s32.totalorder %s24, 1
      %p251 = por %p249, %p250
      %p252 = scmp.ne.s32.totalorder %s241, %s242
      %p253 = scmp.eq.s32.totalorder %s24, 0
      %p254 = por %p252, %p253
      %p255 = scmp.ne.s32.totalorder %s241, %s242
      %p256 = scmp.eq.s32.totalorder %s25, 1
      %p257 = por %p255, %p256
      %p259 = scmp.ne.s32.totalorder %s242, %s258
      %p260 = scmp.eq.s32.totalorder %s25, 0
      %p261 = por %p259, %p260
      %p262 = scmp.le.s32.totalorder 1, %s19
      %p263 = scmp.lt.s32.totalorder %s19, 3
      %p264 = pnand %p262, %p263
      %p265 = pneg %p264
      // Predicated region
      $region9: #{_forward_device.6} parent=5 // pred_check
        _
      $region10: #{_forward_device.6} parent=5 // pred_check_branch
        %267 = sbr.rel (%p264) target = $region12
      $region11: #{_forward_device.6} parent=5 // pred_region
        %s268 = ssub.s32 %s19, 1
        // Predicated region
        $region13: #{_forward_device.6} parent=11 // pred_check
          %p269 = pneg %p118
        $region14: #{_forward_device.6} parent=11 // pred_check_branch
          %271 = sbr.rel (%p269) target = $region16
        $region15: #{_forward_device.6} parent=11 // pred_region
          _
        $region16: #{_forward_device.6} parent=11 // pred_fallthru
          _
        // Predicated region
        $region17: #{_forward_device.6} parent=11 // pred_check
          %p272 = pneg %p139
        $region18: #{_forward_device.6} parent=11 // pred_check_branch
          %274 = sbr.rel (%p272) target = $region20
        $region19: #{_forward_device.6} parent=11 // pred_region
          _
        $region20: #{_forward_device.6} parent=11 // pred_fallthru
          _
        // Predicated region
        $region21: #{_forward_device.6} parent=11 // pred_check
          %p275 = pneg %p160
        $region22: #{_forward_device.6} parent=11 // pred_check_branch
          %277 = sbr.rel (%p275) target = $region24
        $region23: #{_forward_device.6} parent=11 // pred_region
          _
        $region24: #{_forward_device.6} parent=11 // pred_fallthru
          _
        // Predicated region
        $region25: #{_forward_device.6} parent=11 // pred_check
          %p278 = pneg %p181
        $region26: #{_forward_device.6} parent=11 // pred_check_branch
          %280 = sbr.rel (%p278) target = $region28
        $region27: #{_forward_device.6} parent=11 // pred_region
          _
        $region28: #{_forward_device.6} parent=11 // pred_fallthru
          _
        // Predicated region
        $region29: #{_forward_device.6} parent=11 // pred_check
          %p281 = pneg %p202
        $region30: #{_forward_device.6} parent=11 // pred_check_branch
          %283 = sbr.rel (%p281) target = $region32
        $region31: #{_forward_device.6} parent=11 // pred_region
          _
        $region32: #{_forward_device.6} parent=11 // pred_fallthru
          _
      $region12: #{_forward_device.6} parent=5 // pred_fallthru
        _
      %p284 = scmp.lt.s32.totalorder %s19, 2
      // Predicated region
      $region33: #{_forward_device.6} parent=5 // pred_check
        %p285 = pneg %p284
      $region34: #{_forward_device.6} parent=5 // pred_check_branch
        %287 = sbr.rel (%p285) target = $region36
      $region35: #{_forward_device.6} parent=5 // pred_region
        // Predicated region
        $region37: #{_forward_device.6} parent=35 // pred_check
          %p288 = pneg %p39
        $region38: #{_forward_device.6} parent=35 // pred_check_branch
          %290 = sbr.rel (%p288) target = $region40
        $region39: #{_forward_device.6} parent=35 // pred_region
          %s291 = smul.u32 16, %s19
          %p292 = scmp.lt.s32.totalorder %s291, 31
          %s293 = scalar_select %p292, %s291, 31
          %s294 = smul.addr %s293, 4
          %s295 = scalar_lea.vmem %s0, %s294
          %s296 = smul.u32 16, %s19
        $region40: #{_forward_device.6} parent=35 // pred_fallthru
          _
        // Predicated region
        $region41: #{_forward_device.6} parent=35 // pred_check
          %p297 = pneg %p65
        $region42: #{_forward_device.6} parent=35 // pred_check_branch
          %299 = sbr.rel (%p297) target = $region44
        $region43: #{_forward_device.6} parent=35 // pred_region
          %s300 = smul.u32 16, %s19
          %p301 = scmp.lt.s32.totalorder %s300, 31
          %s302 = scalar_select %p301, %s300, 31
          %s303 = smul.addr %s302, 4
          %s304 = scalar_lea.vmem %s1, %s303
          %s305 = smul.u32 16, %s19
        $region44: #{_forward_device.6} parent=35 // pred_fallthru
          _
        // Predicated region
        $region45: #{_forward_device.6} parent=35 // pred_check
          %p306 = pneg %p91
        $region46: #{_forward_device.6} parent=35 // pred_check_branch
          %308 = sbr.rel (%p306) target = $region48
        $region47: #{_forward_device.6} parent=35 // pred_region
          %s309 = smul.u32 16, %s19
          %p310 = scmp.lt.s32.totalorder %s309, 31
          %s311 = scalar_select %p310, %s309, 31
          %s312 = smul.addr %s311, 4
          %s313 = scalar_lea.vmem %s2, %s312
          %s314 = smul.u32 16, %s19
        $region48: #{_forward_device.6} parent=35 // pred_fallthru
          _
      $region36: #{_forward_device.6} parent=5 // pred_fallthru
        _
      %p315 = scmp.le.s32.totalorder 1, %s19
      %p316 = scmp.lt.s32.totalorder %s19, 3
      %p317 = pnand %p315, %p316
      %p318 = pneg %p317
      // Predicated region
      $region49: #{_forward_device.6} parent=5 // pred_check
        _
      $region50: #{_forward_device.6} parent=5 // pred_check_branch
        %320 = sbr.rel (%p317) target = $region52
      $region51: #{_forward_device.6} parent=5 // pred_region
        %s321 = ssub.s32 %s19, 1
        %s322 = smul.u32 16, %s24
        %p323 = scmp.lt.s32.totalorder %s322, 31
        %s324 = scalar_select %p323, %s322, 31
        %s325 = smul.addr %s324, 4
        %s326 = scalar_lea.vmem %s0, %s325
        %p327 = pneg %p45
        %p328 = pneg %p42
        %s329 = smul.u32 16, %s24
        %p330 = scmp.lt.s32.totalorder %s329, 31
        %s331 = scalar_select %p330, %s329, 31
        %s332 = smul.addr %s331, 4
        %s333 = scalar_lea.vmem %s1, %s332
        %p334 = pneg %p71
        %p335 = pneg %p68
        %s336 = smul.u32 16, %s24
        %p337 = scmp.lt.s32.totalorder %s336, 31
        %s338 = scalar_select %p337, %s336, 31
        %s339 = smul.addr %s338, 4
        %s340 = scalar_lea.vmem %s2, %s339
        %p341 = pneg %p97
        %p342 = pneg %p94
        %p343 = pneg %p118
        %p344 = pneg %p115
        %p345 = pneg %p139
        %p346 = pneg %p136
        %p347 = pneg %p160
        %p348 = pneg %p157
        %p349 = pneg %p181
        %p350 = pneg %p178
        %p351 = pneg %p202
        %p352 = pneg %p199
        %p353 = pneg %p228
        %p354 = pneg %p225
        %s355 = sand.u32 %s215, 1
        %s356 = scalar_lea.sflag [#allocation3], %s355
        %s357 = sand.u32 %s215, 1
        %s358 = smul.addr %s357, 64
        %s359 = scalar_lea.vmem [#allocation2], %s358
        %p360 = pneg %p254
        %p361 = pneg %p251
        %s362 = smul.u32 16, %s24
        %p363 = scmp.lt.s32.totalorder %s362, 31
        %s364 = scalar_select %p363, %s362, 31
        %s365 = smul.addr %s364, 4
        %s366 = scalar_lea.vmem %s9, %s365
        %s367 = smul.u32 16, %s24
        %p368 = scmp.lt.s32.totalorder %s367, 31
        %s369 = scalar_select %p368, %s367, 31
        %s370 = smul.addr %s369, 4
        %s371 = scalar_lea.vmem %s0, %s370
        %s372 = smul.u32 16, %s24
        %s373 = smul.u32 16, %s24
        %p374 = scmp.lt.s32.totalorder %s373, 31
        %s375 = scalar_select %p374, %s373, 31
        %s376 = smul.addr %s375, 4
        %s377 = scalar_lea.vmem %s1, %s376
        %s378 = smul.u32 16, %s24
        %s379 = smul.u32 16, %s24
        %p380 = scmp.lt.s32.totalorder %s379, 31
        %s381 = scalar_select %p380, %s379, 31
        %s382 = smul.addr %s381, 4
        %s383 = scalar_lea.vmem %s2, %s382
        %s384 = smul.u32 16, %s24
        %s385 = smul.u32 16, %s24
        %s386 = smul.u32 16, %s24
        %p387 = scmp.lt.s32.totalorder %s386, 31
        %s388 = scalar_select %p387, %s386, 31
        %s389 = smul.addr %s388, 4
        %s390 = scalar_lea.vmem %s9, %s389
        %s391 = smul.u32 16, %s24
        %v392 = vld [vmem:[%s371] sm:$0xf]
        %v393 = vld [vmem:[%s371 + $0x4] sm:$0xf]
        %v394 = vld [vmem:[%s371 + $0x8] sm:$0xf]
        %v395 = vld [vmem:[%s371 + $0xc] sm:$0xf]
        %v396 = vld [vmem:[%s371 + $0x10] sm:$0xf]
        %v397 = vld [vmem:[%s371 + $0x14] sm:$0xf]
        %v398 = vld [vmem:[%s371 + $0x18] sm:$0xf]
        %v399 = vld [vmem:[%s371 + $0x1c] sm:$0xf]
        %v400 = vld [vmem:[%s371 + $0x20] sm:$0xf]
        %v401 = vld [vmem:[%s371 + $0x24] sm:$0xf]
        %v402 = vld [vmem:[%s371 + $0x28] sm:$0xf]
        %v403 = vld [vmem:[%s371 + $0x2c] sm:$0xf]
        %v404 = vld [vmem:[%s371 + $0x30] sm:$0xf]
        %v405 = vld [vmem:[%s371 + $0x34] sm:$0xf]
        %v406 = vld [vmem:[%s371 + $0x38] sm:$0xf]
        %v407 = vld [vmem:[%s371 + $0x3c] sm:$0xf]
        %v408 = vld [vmem:[%s3] sm:$0xf]
        %v409 = vld [vmem:[%s3 + $0x4] sm:$0xf]
        %v410 = vld [vmem:[%s3 + $0x8] sm:$0xf]
        %v411 = vld [vmem:[%s3 + $0xc] sm:$0xf]
        %v412 = vld [vmem:[%s3 + $0x10] sm:$0xf]
        %v413 = vld [vmem:[%s3 + $0x14] sm:$0xf]
        %v414 = vld [vmem:[%s3 + $0x18] sm:$0xf]
        %v415 = vld [vmem:[%s3 + $0x1c] sm:$0xf]
        %v416 = vld [vmem:[%s3 + $0x20] sm:$0xf]
        %v417 = vld [vmem:[%s3 + $0x24] sm:$0xf]
        %v418 = vld [vmem:[%s3 + $0x28] sm:$0xf]
        %v419 = vld [vmem:[%s3 + $0x2c] sm:$0xf]
        %v420 = vld [vmem:[%s3 + $0x30] sm:$0xf]
        %v421 = vld [vmem:[%s3 + $0x34] sm:$0xf]
        %v422 = vld [vmem:[%s3 + $0x38] sm:$0xf]
        %v423 = vld [vmem:[%s3 + $0x3c] sm:$0xf]
        %v424 = vld [vmem:[%s4] sm:$0x1]
        %v426 = vperm.slane %v424, 0
        %v444 = vunpack.c.l.b16 %v392
        %v445 = vunpack.c.l.b16 %v393
        %v446 = vunpack.c.l.b16 %v394
        %v447 = vunpack.c.l.b16 %v395
        %v448 = vunpack.c.l.b16 %v396
        %v449 = vunpack.c.l.b16 %v397
        %v450 = vunpack.c.l.b16 %v398
        %v451 = vunpack.c.l.b16 %v399
        %v452 = vunpack.c.l.b16 %v400
        %v453 = vunpack.c.l.b16 %v401
        %v454 = vunpack.c.l.b16 %v402
        %v455 = vunpack.c.l.b16 %v403
        %v456 = vunpack.c.l.b16 %v404
        %v457 = vunpack.c.l.b16 %v405
        %v458 = vunpack.c.l.b16 %v406
        %v459 = vunpack.c.l.b16 %v407
        %v460 = vpack.c.b16 %v445, %v444
        %v461 = vpack.c.b16 %v447, %v446
        %v462 = vpack.c.b16 %v449, %v448
        %v463 = vpack.c.b16 %v451, %v450
        %v464 = vpack.c.b16 %v453, %v452
        %v465 = vpack.c.b16 %v455, %v454
        %v466 = vpack.c.b16 %v457, %v456
        %v467 = vpack.c.b16 %v459, %v458
        %v492 = vunpack.c.l.b16 %v408
        %v493 = vunpack.c.l.b16 %v409
        %v494 = vunpack.c.l.b16 %v410
        %v495 = vunpack.c.l.b16 %v411
        %v496 = vunpack.c.l.b16 %v412
        %v497 = vunpack.c.l.b16 %v413
        %v498 = vunpack.c.l.b16 %v414
        %v499 = vunpack.c.l.b16 %v415
        %v500 = vunpack.c.l.b16 %v416
        %v501 = vunpack.c.l.b16 %v417
        %v502 = vunpack.c.l.b16 %v418
        %v503 = vunpack.c.l.b16 %v419
        %v504 = vunpack.c.l.b16 %v420
        %v505 = vunpack.c.l.b16 %v421
        %v506 = vunpack.c.l.b16 %v422
        %v507 = vunpack.c.l.b16 %v423
        %v508 = vpack.c.b16 %v493, %v492
        %v509 = vpack.c.b16 %v495, %v494
        %v510 = vpack.c.b16 %v497, %v496
        %v511 = vpack.c.b16 %v499, %v498
        %v512 = vpack.c.b16 %v501, %v500
        %v513 = vpack.c.b16 %v503, %v502
        %v514 = vpack.c.b16 %v505, %v504
        %v515 = vpack.c.b16 %v507, %v506
        %524 = vmatpush.bf16.msra.mxu0 %v515
        %525 = vmatpush.bf16.msra.mxu0 %v514
        %526 = vmatpush.bf16.msra.mxu0 %v513
        %527 = vmatpush.bf16.msra.mxu0 %v512
        %528 = vmatpush.bf16.msra.mxu0 %v511
        %529 = vmatpush.bf16.msra.mxu0 %v510
        %530 = vmatpush.bf16.msra.mxu0 %v509
        %531 = vmatpush.bf16.msra.mxu0 %v508
        %532 = vmatmul.bf16.gmra.mxu0 %v460
        %v533 = vpop.f32.mrf.mxu0
        %v534 = vadd.f32 %v426, %v533
        %v535 = vpop.f32.mrf.mxu0
        %v536 = vadd.f32 %v426, %v535
        %537 = vmatmul.bf16.gmra.mxu0 %v461
        %v538 = vpop.f32.mrf.mxu0
        %v539 = vadd.f32 %v426, %v538
        %v540 = vpop.f32.mrf.mxu0
        %v541 = vadd.f32 %v426, %v540
        %542 = vmatmul.bf16.gmra.mxu0 %v462
        %v543 = vpop.f32.mrf.mxu0
        %v544 = vadd.f32 %v426, %v543
        %v545 = vpop.f32.mrf.mxu0
        %v546 = vadd.f32 %v426, %v545
        %547 = vmatmul.bf16.gmra.mxu0 %v463
        %v548 = vpop.f32.mrf.mxu0
        %v549 = vadd.f32 %v426, %v548
        %v550 = vpop.f32.mrf.mxu0
        %v551 = vadd.f32 %v426, %v550
        %552 = vmatmul.bf16.gmra.mxu0 %v464
        %v553 = vpop.f32.mrf.mxu0
        %v554 = vadd.f32 %v426, %v553
        %v555 = vpop.f32.mrf.mxu0
        %v556 = vadd.f32 %v426, %v555
        %557 = vmatmul.bf16.gmra.mxu0 %v465
        %v558 = vpop.f32.mrf.mxu0
        %v559 = vadd.f32 %v426, %v558
        %v560 = vpop.f32.mrf.mxu0
        %v561 = vadd.f32 %v426, %v560
        %562 = vmatmul.bf16.gmra.mxu0 %v466
        %v563 = vpop.f32.mrf.mxu0
        %v564 = vadd.f32 %v426, %v563
        %v565 = vpop.f32.mrf.mxu0
        %v566 = vadd.f32 %v426, %v565
        %567 = vmatmul.bf16.gmra.mxu0 %v467
        %v568 = vpop.f32.mrf.mxu0
        %v569 = vadd.f32 %v426, %v568
        %v570 = vpop.f32.mrf.mxu0
        %v571 = vadd.f32 %v426, %v570
        %572 = vdwg.mxu0
        %v573 = vsub.f32 0.0, %v534
        %v574 = vsub.f32 0.0, %v536
        %v575 = vsub.f32 0.0, %v539
        %v576 = vsub.f32 0.0, %v541
        %v577 = vsub.f32 0.0, %v544
        %v578 = vsub.f32 0.0, %v546
        %v579 = vsub.f32 0.0, %v549
        %v580 = vsub.f32 0.0, %v551
        %v581 = vsub.f32 0.0, %v554
        %v582 = vsub.f32 0.0, %v556
        %v583 = vsub.f32 0.0, %v559
        %v584 = vsub.f32 0.0, %v561
        %v585 = vsub.f32 0.0, %v564
        %v586 = vsub.f32 0.0, %v566
        %v587 = vsub.f32 0.0, %v569
        %v588 = vsub.f32 0.0, %v571
        %v589 = vmul.f32 %v573, 1.442695
        %v590 = vpow.pop %v589
        %v591 = vmul.f32 %v574, 1.442695
        %v592 = vpow.pop %v591
        %v593 = vmul.f32 %v575, 1.442695
        %v594 = vpow.pop %v593
        %v595 = vmul.f32 %v576, 1.442695
        %v596 = vpow.pop %v595
        %v597 = vmul.f32 %v577, 1.442695
        %v598 = vpow.pop %v597
        %v599 = vmul.f32 %v578, 1.442695
        %v600 = vpow.pop %v599
        %v601 = vmul.f32 %v579, 1.442695
        %v602 = vpow.pop %v601
        %v603 = vmul.f32 %v580, 1.442695
        %v604 = vpow.pop %v603
        %v605 = vmul.f32 %v581, 1.442695
        %v606 = vpow.pop %v605
        %v607 = vmul.f32 %v582, 1.442695
        %v608 = vpow.pop %v607
        %v609 = vmul.f32 %v583, 1.442695
        %v610 = vpow.pop %v609
        %v611 = vmul.f32 %v584, 1.442695
        %v612 = vpow.pop %v611
        %v613 = vmul.f32 %v585, 1.442695
        %v614 = vpow.pop %v613
        %v615 = vmul.f32 %v586, 1.442695
        %v616 = vpow.pop %v615
        %v617 = vmul.f32 %v587, 1.442695
        %v618 = vpow.pop %v617
        %v619 = vmul.f32 %v588, 1.442695
        %v620 = vpow.pop %v619
        %v621 = vadd.f32 %v590, 1.0
        %v622 = vadd.f32 %v592, 1.0
        %v623 = vadd.f32 %v594, 1.0
        %v624 = vadd.f32 %v596, 1.0
        %v625 = vadd.f32 %v598, 1.0
        %v626 = vadd.f32 %v600, 1.0
        %v627 = vadd.f32 %v602, 1.0
        %v628 = vadd.f32 %v604, 1.0
        %v629 = vadd.f32 %v606, 1.0
        %v630 = vadd.f32 %v608, 1.0
        %v631 = vadd.f32 %v610, 1.0
        %v632 = vadd.f32 %v612, 1.0
        %v633 = vadd.f32 %v614, 1.0
        %v634 = vadd.f32 %v616, 1.0
        %v635 = vadd.f32 %v618, 1.0
        %v636 = vadd.f32 %v620, 1.0
        %v637 = vrcp.pop %v621
        %v638 = vmul.f32 %v621, %v637
        %v639 = vsub.f32 1.0, %v638
        %v640 = vmul.f32 %v637, %v639
        %v641 = vadd.f32 %v637, %v640
        %vm642 = vweird.f32 %v621
        %vm643 = vweird.f32 %v637
        %vm644 = vmor %vm642, %vm643
        %v645 = vsel %vm644, %v637, %v641
        %v646 = vand.u32 2147483647, %v621
        %vm647 = vcmp.eq.f32.partialorder %v646, 8.507059e+37
        %v648 = vand.u32 %v621, 2147483648
        %v649 = vor.u32 1.1754944e-38, %v648
        %v650 = vsel %vm647, %v649, %v645
        %v651 = vmul.f32 1.0, %v650
        %v652 = vrcp.pop %v622
        %v653 = vmul.f32 %v622, %v652
        %v654 = vsub.f32 1.0, %v653
        %v655 = vmul.f32 %v652, %v654
        %v656 = vadd.f32 %v652, %v655
        %vm657 = vweird.f32 %v622
        %vm658 = vweird.f32 %v652
        %vm659 = vmor %vm657, %vm658
        %v660 = vsel %vm659, %v652, %v656
        %v661 = vand.u32 2147483647, %v622
        %vm662 = vcmp.eq.f32.partialorder %v661, 8.507059e+37
        %v663 = vand.u32 %v622, 2147483648
        %v664 = vor.u32 1.1754944e-38, %v663
        %v665 = vsel %vm662, %v664, %v660
        %v666 = vmul.f32 1.0, %v665
        %v667 = vrcp.pop %v623
        %v668 = vmul.f32 %v623, %v667
        %v669 = vsub.f32 1.0, %v668
        %v670 = vmul.f32 %v667, %v669
        %v671 = vadd.f32 %v667, %v670
        %vm672 = vweird.f32 %v623
        %vm673 = vweird.f32 %v667
        %vm674 = vmor %vm672, %vm673
        %v675 = vsel %vm674, %v667, %v671
        %v676 = vand.u32 2147483647, %v623
        %vm677 = vcmp.eq.f32.partialorder %v676, 8.507059e+37
        %v678 = vand.u32 %v623, 2147483648
        %v679 = vor.u32 1.1754944e-38, %v678
        %v680 = vsel %vm677, %v679, %v675
        %v681 = vmul.f32 1.0, %v680
        %v682 = vrcp.pop %v624
        %v683 = vmul.f32 %v624, %v682
        %v684 = vsub.f32 1.0, %v683
        %v685 = vmul.f32 %v682, %v684
        %v686 = vadd.f32 %v682, %v685
        %vm687 = vweird.f32 %v624
        %vm688 = vweird.f32 %v682
        %vm689 = vmor %vm687, %vm688
        %v690 = vsel %vm689, %v682, %v686
        %v691 = vand.u32 2147483647, %v624
        %vm692 = vcmp.eq.f32.partialorder %v691, 8.507059e+37
        %v693 = vand.u32 %v624, 2147483648
        %v694 = vor.u32 1.1754944e-38, %v693
        %v695 = vsel %vm692, %v694, %v690
        %v696 = vmul.f32 1.0, %v695
        %v697 = vrcp.pop %v625
        %v698 = vmul.f32 %v625, %v697
        %v699 = vsub.f32 1.0, %v698
        %v700 = vmul.f32 %v697, %v699
        %v701 = vadd.f32 %v697, %v700
        %vm702 = vweird.f32 %v625
        %vm703 = vweird.f32 %v697
        %vm704 = vmor %vm702, %vm703
        %v705 = vsel %vm704, %v697, %v701
        %v706 = vand.u32 2147483647, %v625
        %vm707 = vcmp.eq.f32.partialorder %v706, 8.507059e+37
        %v708 = vand.u32 %v625, 2147483648
        %v709 = vor.u32 1.1754944e-38, %v708
        %v710 = vsel %vm707, %v709, %v705
        %v711 = vmul.f32 1.0, %v710
        %v712 = vrcp.pop %v626
        %v713 = vmul.f32 %v626, %v712
        %v714 = vsub.f32 1.0, %v713
        %v715 = vmul.f32 %v712, %v714
        %v716 = vadd.f32 %v712, %v715
        %vm717 = vweird.f32 %v626
        %vm718 = vweird.f32 %v712
        %vm719 = vmor %vm717, %vm718
        %v720 = vsel %vm719, %v712, %v716
        %v721 = vand.u32 2147483647, %v626
        %vm722 = vcmp.eq.f32.partialorder %v721, 8.507059e+37
        %v723 = vand.u32 %v626, 2147483648
        %v724 = vor.u32 1.1754944e-38, %v723
        %v725 = vsel %vm722, %v724, %v720
        %v726 = vmul.f32 1.0, %v725
        %v727 = vrcp.pop %v627
        %v728 = vmul.f32 %v627, %v727
        %v729 = vsub.f32 1.0, %v728
        %v730 = vmul.f32 %v727, %v729
        %v731 = vadd.f32 %v727, %v730
        %vm732 = vweird.f32 %v627
        %vm733 = vweird.f32 %v727
        %vm734 = vmor %vm732, %vm733
        %v735 = vsel %vm734, %v727, %v731
        %v736 = vand.u32 2147483647, %v627
        %vm737 = vcmp.eq.f32.partialorder %v736, 8.507059e+37
        %v738 = vand.u32 %v627, 2147483648
        %v739 = vor.u32 1.1754944e-38, %v738
        %v740 = vsel %vm737, %v739, %v735
        %v741 = vmul.f32 1.0, %v740
        %v742 = vrcp.pop %v628
        %v743 = vmul.f32 %v628, %v742
        %v744 = vsub.f32 1.0, %v743
        %v745 = vmul.f32 %v742, %v744
        %v746 = vadd.f32 %v742, %v745
        %vm747 = vweird.f32 %v628
        %vm748 = vweird.f32 %v742
        %vm749 = vmor %vm747, %vm748
        %v750 = vsel %vm749, %v742, %v746
        %v751 = vand.u32 2147483647, %v628
        %vm752 = vcmp.eq.f32.partialorder %v751, 8.507059e+37
        %v753 = vand.u32 %v628, 2147483648
        %v754 = vor.u32 1.1754944e-38, %v753
        %v755 = vsel %vm752, %v754, %v750
        %v756 = vmul.f32 1.0, %v755
        %v757 = vrcp.pop %v629
        %v758 = vmul.f32 %v629, %v757
        %v759 = vsub.f32 1.0, %v758
        %v760 = vmul.f32 %v757, %v759
        %v761 = vadd.f32 %v757, %v760
        %vm762 = vweird.f32 %v629
        %vm763 = vweird.f32 %v757
        %vm764 = vmor %vm762, %vm763
        %v765 = vsel %vm764, %v757, %v761
        %v766 = vand.u32 2147483647, %v629
        %vm767 = vcmp.eq.f32.partialorder %v766, 8.507059e+37
        %v768 = vand.u32 %v629, 2147483648
        %v769 = vor.u32 1.1754944e-38, %v768
        %v770 = vsel %vm767, %v769, %v765
        %v771 = vmul.f32 1.0, %v770
        %v772 = vrcp.pop %v630
        %v773 = vmul.f32 %v630, %v772
        %v774 = vsub.f32 1.0, %v773
        %v775 = vmul.f32 %v772, %v774
        %v776 = vadd.f32 %v772, %v775
        %vm777 = vweird.f32 %v630
        %vm778 = vweird.f32 %v772
        %vm779 = vmor %vm777, %vm778
        %v780 = vsel %vm779, %v772, %v776
        %v781 = vand.u32 2147483647, %v630
        %vm782 = vcmp.eq.f32.partialorder %v781, 8.507059e+37
        %v783 = vand.u32 %v630, 2147483648
        %v784 = vor.u32 1.1754944e-38, %v783
        %v785 = vsel %vm782, %v784, %v780
        %v786 = vmul.f32 1.0, %v785
        %v787 = vrcp.pop %v631
        %v788 = vmul.f32 %v631, %v787
        %v789 = vsub.f32 1.0, %v788
        %v790 = vmul.f32 %v787, %v789
        %v791 = vadd.f32 %v787, %v790
        %vm792 = vweird.f32 %v631
        %vm793 = vweird.f32 %v787
        %vm794 = vmor %vm792, %vm793
        %v795 = vsel %vm794, %v787, %v791
        %v796 = vand.u32 2147483647, %v631
        %vm797 = vcmp.eq.f32.partialorder %v796, 8.507059e+37
        %v798 = vand.u32 %v631, 2147483648
        %v799 = vor.u32 1.1754944e-38, %v798
        %v800 = vsel %vm797, %v799, %v795
        %v801 = vmul.f32 1.0, %v800
        %v802 = vrcp.pop %v632
        %v803 = vmul.f32 %v632, %v802
        %v804 = vsub.f32 1.0, %v803
        %v805 = vmul.f32 %v802, %v804
        %v806 = vadd.f32 %v802, %v805
        %vm807 = vweird.f32 %v632
        %vm808 = vweird.f32 %v802
        %vm809 = vmor %vm807, %vm808
        %v810 = vsel %vm809, %v802, %v806
        %v811 = vand.u32 2147483647, %v632
        %vm812 = vcmp.eq.f32.partialorder %v811, 8.507059e+37
        %v813 = vand.u32 %v632, 2147483648
        %v814 = vor.u32 1.1754944e-38, %v813
        %v815 = vsel %vm812, %v814, %v810
        %v816 = vmul.f32 1.0, %v815
        %v817 = vrcp.pop %v633
        %v818 = vmul.f32 %v633, %v817
        %v819 = vsub.f32 1.0, %v818
        %v820 = vmul.f32 %v817, %v819
        %v821 = vadd.f32 %v817, %v820
        %vm822 = vweird.f32 %v633
        %vm823 = vweird.f32 %v817
        %vm824 = vmor %vm822, %vm823
        %v825 = vsel %vm824, %v817, %v821
        %v826 = vand.u32 2147483647, %v633
        %vm827 = vcmp.eq.f32.partialorder %v826, 8.507059e+37
        %v828 = vand.u32 %v633, 2147483648
        %v829 = vor.u32 1.1754944e-38, %v828
        %v830 = vsel %vm827, %v829, %v825
        %v831 = vmul.f32 1.0, %v830
        %v832 = vrcp.pop %v634
        %v833 = vmul.f32 %v634, %v832
        %v834 = vsub.f32 1.0, %v833
        %v835 = vmul.f32 %v832, %v834
        %v836 = vadd.f32 %v832, %v835
        %vm837 = vweird.f32 %v634
        %vm838 = vweird.f32 %v832
        %vm839 = vmor %vm837, %vm838
        %v840 = vsel %vm839, %v832, %v836
        %v841 = vand.u32 2147483647, %v634
        %vm842 = vcmp.eq.f32.partialorder %v841, 8.507059e+37
        %v843 = vand.u32 %v634, 2147483648
        %v844 = vor.u32 1.1754944e-38, %v843
        %v845 = vsel %vm842, %v844, %v840
        %v846 = vmul.f32 1.0, %v845
        %v847 = vrcp.pop %v635
        %v848 = vmul.f32 %v635, %v847
        %v849 = vsub.f32 1.0, %v848
        %v850 = vmul.f32 %v847, %v849
        %v851 = vadd.f32 %v847, %v850
        %vm852 = vweird.f32 %v635
        %vm853 = vweird.f32 %v847
        %vm854 = vmor %vm852, %vm853
        %v855 = vsel %vm854, %v847, %v851
        %v856 = vand.u32 2147483647, %v635
        %vm857 = vcmp.eq.f32.partialorder %v856, 8.507059e+37
        %v858 = vand.u32 %v635, 2147483648
        %v859 = vor.u32 1.1754944e-38, %v858
        %v860 = vsel %vm857, %v859, %v855
        %v861 = vmul.f32 1.0, %v860
        %v862 = vrcp.pop %v636
        %v863 = vmul.f32 %v636, %v862
        %v864 = vsub.f32 1.0, %v863
        %v865 = vmul.f32 %v862, %v864
        %v866 = vadd.f32 %v862, %v865
        %vm867 = vweird.f32 %v636
        %vm868 = vweird.f32 %v862
        %vm869 = vmor %vm867, %vm868
        %v870 = vsel %vm869, %v862, %v866
        %v871 = vand.u32 2147483647, %v636
        %vm872 = vcmp.eq.f32.partialorder %v871, 8.507059e+37
        %v873 = vand.u32 %v636, 2147483648
        %v874 = vor.u32 1.1754944e-38, %v873
        %v875 = vsel %vm872, %v874, %v870
        %v876 = vmul.f32 1.0, %v875
        %v877 = vmul.f32 %v534, %v651
        %v878 = vmul.f32 %v536, %v666
        %v879 = vmul.f32 %v539, %v681
        %v880 = vmul.f32 %v541, %v696
        %v881 = vmul.f32 %v544, %v711
        %v882 = vmul.f32 %v546, %v726
        %v883 = vmul.f32 %v549, %v741
        %v884 = vmul.f32 %v551, %v756
        %v885 = vmul.f32 %v554, %v771
        %v886 = vmul.f32 %v556, %v786
        %v887 = vmul.f32 %v559, %v801
        %v888 = vmul.f32 %v561, %v816
        %v889 = vmul.f32 %v564, %v831
        %v890 = vmul.f32 %v566, %v846
        %v891 = vmul.f32 %v569, %v861
        %v892 = vmul.f32 %v571, %v876
        %v893 = vld [vmem:[%s377] sm:$0xf]
        %v894 = vld [vmem:[%s377 + $0x4] sm:$0xf]
        %v895 = vld [vmem:[%s377 + $0x8] sm:$0xf]
        %v896 = vld [vmem:[%s377 + $0xc] sm:$0xf]
        %v897 = vld [vmem:[%s377 + $0x10] sm:$0xf]
        %v898 = vld [vmem:[%s377 + $0x14] sm:$0xf]
        %v899 = vld [vmem:[%s377 + $0x18] sm:$0xf]
        %v900 = vld [vmem:[%s377 + $0x1c] sm:$0xf]
        %v901 = vld [vmem:[%s377 + $0x20] sm:$0xf]
        %v902 = vld [vmem:[%s377 + $0x24] sm:$0xf]
        %v903 = vld [vmem:[%s377 + $0x28] sm:$0xf]
        %v904 = vld [vmem:[%s377 + $0x2c] sm:$0xf]
        %v905 = vld [vmem:[%s377 + $0x30] sm:$0xf]
        %v906 = vld [vmem:[%s377 + $0x34] sm:$0xf]
        %v907 = vld [vmem:[%s377 + $0x38] sm:$0xf]
        %v908 = vld [vmem:[%s377 + $0x3c] sm:$0xf]
        %v909 = vunpack.c.l.bf16 %v893
        %v910 = vunpack.c.l.bf16 %v894
        %v911 = vunpack.c.l.bf16 %v895
        %v912 = vunpack.c.l.bf16 %v896
        %v913 = vunpack.c.l.bf16 %v897
        %v914 = vunpack.c.l.bf16 %v898
        %v915 = vunpack.c.l.bf16 %v899
        %v916 = vunpack.c.l.bf16 %v900
        %v917 = vunpack.c.l.bf16 %v901
        %v918 = vunpack.c.l.bf16 %v902
        %v919 = vunpack.c.l.bf16 %v903
        %v920 = vunpack.c.l.bf16 %v904
        %v921 = vunpack.c.l.bf16 %v905
        %v922 = vunpack.c.l.bf16 %v906
        %v923 = vunpack.c.l.bf16 %v907
        %v924 = vunpack.c.l.bf16 %v908
        %v925 = vadd.f32 %v877, %v909
        %v926 = vadd.f32 %v878, %v910
        %v927 = vadd.f32 %v879, %v911
        %v928 = vadd.f32 %v880, %v912
        %v929 = vadd.f32 %v881, %v913
        %v930 = vadd.f32 %v882, %v914
        %v931 = vadd.f32 %v883, %v915
        %v932 = vadd.f32 %v884, %v916
        %v933 = vadd.f32 %v885, %v917
        %v934 = vadd.f32 %v886, %v918
        %v935 = vadd.f32 %v887, %v919
        %v936 = vadd.f32 %v888, %v920
        %v937 = vadd.f32 %v889, %v921
        %v938 = vadd.f32 %v890, %v922
        %v939 = vadd.f32 %v891, %v923
        %v940 = vadd.f32 %v892, %v924
        %v941 = vpack.c.bf16 %v926, %v925
        %v942 = vpack.c.bf16 %v928, %v927
        %v943 = vpack.c.bf16 %v930, %v929
        %v944 = vpack.c.bf16 %v932, %v931
        %v945 = vpack.c.bf16 %v934, %v933
        %v946 = vpack.c.bf16 %v936, %v935
        %v947 = vpack.c.bf16 %v938, %v937
        %v948 = vpack.c.bf16 %v940, %v939
        %v949 = vld [vmem:[%s5] sm:$0xf]
        %v950 = vld [vmem:[%s5 + $0x4] sm:$0xf]
        %v951 = vld [vmem:[%s5 + $0x8] sm:$0xf]
        %v952 = vld [vmem:[%s5 + $0xc] sm:$0xf]
        %v953 = vld [vmem:[%s5 + $0x10] sm:$0xf]
        %v954 = vld [vmem:[%s5 + $0x14] sm:$0xf]
        %v955 = vld [vmem:[%s5 + $0x18] sm:$0xf]
        %v956 = vld [vmem:[%s5 + $0x1c] sm:$0xf]
        %v957 = vld [vmem:[%s5 + $0x20] sm:$0xf]
        %v958 = vld [vmem:[%s5 + $0x24] sm:$0xf]
        %v959 = vld [vmem:[%s5 + $0x28] sm:$0xf]
        %v960 = vld [vmem:[%s5 + $0x2c] sm:$0xf]
        %v961 = vld [vmem:[%s5 + $0x30] sm:$0xf]
        %v962 = vld [vmem:[%s5 + $0x34] sm:$0xf]
        %v963 = vld [vmem:[%s5 + $0x38] sm:$0xf]
        %v964 = vld [vmem:[%s5 + $0x3c] sm:$0xf]
        %v965 = vld [vmem:[%s6] sm:$0x1]
        %v967 = vperm.slane %v965, 0
        %v985 = vunpack.c.l.b16 %v949
        %v986 = vunpack.c.l.b16 %v950
        %v987 = vunpack.c.l.b16 %v951
        %v988 = vunpack.c.l.b16 %v952
        %v989 = vunpack.c.l.b16 %v953
        %v990 = vunpack.c.l.b16 %v954
        %v991 = vunpack.c.l.b16 %v955
        %v992 = vunpack.c.l.b16 %v956
        %v993 = vunpack.c.l.b16 %v957
        %v994 = vunpack.c.l.b16 %v958
        %v995 = vunpack.c.l.b16 %v959
        %v996 = vunpack.c.l.b16 %v960
        %v997 = vunpack.c.l.b16 %v961
        %v998 = vunpack.c.l.b16 %v962
        %v999 = vunpack.c.l.b16 %v963
        %v1000 = vunpack.c.l.b16 %v964
        %v1001 = vpack.c.b16 %v986, %v985
        %v1002 = vpack.c.b16 %v988, %v987
        %v1003 = vpack.c.b16 %v990, %v989
        %v1004 = vpack.c.b16 %v992, %v991
        %v1005 = vpack.c.b16 %v994, %v993
        %v1006 = vpack.c.b16 %v996, %v995
        %v1007 = vpack.c.b16 %v998, %v997
        %v1008 = vpack.c.b16 %v1000, %v999
        %1017 = vmatpush.bf16.msra.mxu0 %v1008
        %1018 = vmatpush.bf16.msra.mxu0 %v1007
        %1019 = vmatpush.bf16.msra.mxu0 %v1006
        %1020 = vmatpush.bf16.msra.mxu0 %v1005
        %1021 = vmatpush.bf16.msra.mxu0 %v1004
        %1022 = vmatpush.bf16.msra.mxu0 %v1003
        %1023 = vmatpush.bf16.msra.mxu0 %v1002
        %1024 = vmatpush.bf16.msra.mxu0 %v1001
        %1025 = vmatmul.bf16.gmra.mxu0 %v941
        %v1026 = vpop.f32.mrf.mxu0
        %v1027 = vadd.f32 %v967, %v1026
        %v1028 = vpop.f32.mrf.mxu0
        %v1029 = vadd.f32 %v967, %v1028
        %1030 = vmatmul.bf16.gmra.mxu0 %v942
        %v1031 = vpop.f32.mrf.mxu0
        %v1032 = vadd.f32 %v967, %v1031
        %v1033 = vpop.f32.mrf.mxu0
        %v1034 = vadd.f32 %v967, %v1033
        %1035 = vmatmul.bf16.gmra.mxu0 %v943
        %v1036 = vpop.f32.mrf.mxu0
        %v1037 = vadd.f32 %v967, %v1036
        %v1038 = vpop.f32.mrf.mxu0
        %v1039 = vadd.f32 %v967, %v1038
        %1040 = vmatmul.bf16.gmra.mxu0 %v944
        %v1041 = vpop.f32.mrf.mxu0
        %v1042 = vadd.f32 %v967, %v1041
        %v1043 = vpop.f32.mrf.mxu0
        %v1044 = vadd.f32 %v967, %v1043
        %1045 = vmatmul.bf16.gmra.mxu0 %v945
        %v1046 = vpop.f32.mrf.mxu0
        %v1047 = vadd.f32 %v967, %v1046
        %v1048 = vpop.f32.mrf.mxu0
        %v1049 = vadd.f32 %v967, %v1048
        %1050 = vmatmul.bf16.gmra.mxu0 %v946
        %v1051 = vpop.f32.mrf.mxu0
        %v1052 = vadd.f32 %v967, %v1051
        %v1053 = vpop.f32.mrf.mxu0
        %v1054 = vadd.f32 %v967, %v1053
        %1055 = vmatmul.bf16.gmra.mxu0 %v947
        %v1056 = vpop.f32.mrf.mxu0
        %v1057 = vadd.f32 %v967, %v1056
        %v1058 = vpop.f32.mrf.mxu0
        %v1059 = vadd.f32 %v967, %v1058
        %1060 = vmatmul.bf16.gmra.mxu0 %v948
        %v1061 = vpop.f32.mrf.mxu0
        %v1062 = vadd.f32 %v967, %v1061
        %v1063 = vpop.f32.mrf.mxu0
        %v1064 = vadd.f32 %v967, %v1063
        %1065 = vdwg.mxu0
        %v1066 = vsub.f32 0.0, %v1027
        %v1067 = vsub.f32 0.0, %v1029
        %v1068 = vsub.f32 0.0, %v1032
        %v1069 = vsub.f32 0.0, %v1034
        %v1070 = vsub.f32 0.0, %v1037
        %v1071 = vsub.f32 0.0, %v1039
        %v1072 = vsub.f32 0.0, %v1042
        %v1073 = vsub.f32 0.0, %v1044
        %v1074 = vsub.f32 0.0, %v1047
        %v1075 = vsub.f32 0.0, %v1049
        %v1076 = vsub.f32 0.0, %v1052
        %v1077 = vsub.f32 0.0, %v1054
        %v1078 = vsub.f32 0.0, %v1057
        %v1079 = vsub.f32 0.0, %v1059
        %v1080 = vsub.f32 0.0, %v1062
        %v1081 = vsub.f32 0.0, %v1064
        %v1082 = vmul.f32 %v1066, 1.442695
        %v1083 = vpow.pop %v1082
        %v1084 = vmul.f32 %v1067, 1.442695
        %v1085 = vpow.pop %v1084
        %v1086 = vmul.f32 %v1068, 1.442695
        %v1087 = vpow.pop %v1086
        %v1088 = vmul.f32 %v1069, 1.442695
        %v1089 = vpow.pop %v1088
        %v1090 = vmul.f32 %v1070, 1.442695
        %v1091 = vpow.pop %v1090
        %v1092 = vmul.f32 %v1071, 1.442695
        %v1093 = vpow.pop %v1092
        %v1094 = vmul.f32 %v1072, 1.442695
        %v1095 = vpow.pop %v1094
        %v1096 = vmul.f32 %v1073, 1.442695
        %v1097 = vpow.pop %v1096
        %v1098 = vmul.f32 %v1074, 1.442695
        %v1099 = vpow.pop %v1098
        %v1100 = vmul.f32 %v1075, 1.442695
        %v1101 = vpow.pop %v1100
        %v1102 = vmul.f32 %v1076, 1.442695
        %v1103 = vpow.pop %v1102
        %v1104 = vmul.f32 %v1077, 1.442695
        %v1105 = vpow.pop %v1104
        %v1106 = vmul.f32 %v1078, 1.442695
        %v1107 = vpow.pop %v1106
        %v1108 = vmul.f32 %v1079, 1.442695
        %v1109 = vpow.pop %v1108
        %v1110 = vmul.f32 %v1080, 1.442695
        %v1111 = vpow.pop %v1110
        %v1112 = vmul.f32 %v1081, 1.442695
        %v1113 = vpow.pop %v1112
        %v1114 = vadd.f32 %v1083, 1.0
        %v1115 = vadd.f32 %v1085, 1.0
        %v1116 = vadd.f32 %v1087, 1.0
        %v1117 = vadd.f32 %v1089, 1.0
        %v1118 = vadd.f32 %v1091, 1.0
        %v1119 = vadd.f32 %v1093, 1.0
        %v1120 = vadd.f32 %v1095, 1.0
        %v1121 = vadd.f32 %v1097, 1.0
        %v1122 = vadd.f32 %v1099, 1.0
        %v1123 = vadd.f32 %v1101, 1.0
        %v1124 = vadd.f32 %v1103, 1.0
        %v1125 = vadd.f32 %v1105, 1.0
        %v1126 = vadd.f32 %v1107, 1.0
        %v1127 = vadd.f32 %v1109, 1.0
        %v1128 = vadd.f32 %v1111, 1.0
        %v1129 = vadd.f32 %v1113, 1.0
        %v1130 = vrcp.pop %v1114
        %v1131 = vmul.f32 %v1114, %v1130
        %v1132 = vsub.f32 1.0, %v1131
        %v1133 = vmul.f32 %v1130, %v1132
        %v1134 = vadd.f32 %v1130, %v1133
        %vm1135 = vweird.f32 %v1114
        %vm1136 = vweird.f32 %v1130
        %vm1137 = vmor %vm1135, %vm1136
        %v1138 = vsel %vm1137, %v1130, %v1134
        %v1139 = vand.u32 2147483647, %v1114
        %vm1140 = vcmp.eq.f32.partialorder %v1139, 8.507059e+37
        %v1141 = vand.u32 %v1114, 2147483648
        %v1142 = vor.u32 1.1754944e-38, %v1141
        %v1143 = vsel %vm1140, %v1142, %v1138
        %v1144 = vmul.f32 1.0, %v1143
        %v1145 = vrcp.pop %v1115
        %v1146 = vmul.f32 %v1115, %v1145
        %v1147 = vsub.f32 1.0, %v1146
        %v1148 = vmul.f32 %v1145, %v1147
        %v1149 = vadd.f32 %v1145, %v1148
        %vm1150 = vweird.f32 %v1115
        %vm1151 = vweird.f32 %v1145
        %vm1152 = vmor %vm1150, %vm1151
        %v1153 = vsel %vm1152, %v1145, %v1149
        %v1154 = vand.u32 2147483647, %v1115
        %vm1155 = vcmp.eq.f32.partialorder %v1154, 8.507059e+37
        %v1156 = vand.u32 %v1115, 2147483648
        %v1157 = vor.u32 1.1754944e-38, %v1156
        %v1158 = vsel %vm1155, %v1157, %v1153
        %v1159 = vmul.f32 1.0, %v1158
        %v1160 = vrcp.pop %v1116
        %v1161 = vmul.f32 %v1116, %v1160
        %v1162 = vsub.f32 1.0, %v1161
        %v1163 = vmul.f32 %v1160, %v1162
        %v1164 = vadd.f32 %v1160, %v1163
        %vm1165 = vweird.f32 %v1116
        %vm1166 = vweird.f32 %v1160
        %vm1167 = vmor %vm1165, %vm1166
        %v1168 = vsel %vm1167, %v1160, %v1164
        %v1169 = vand.u32 2147483647, %v1116
        %vm1170 = vcmp.eq.f32.partialorder %v1169, 8.507059e+37
        %v1171 = vand.u32 %v1116, 2147483648
        %v1172 = vor.u32 1.1754944e-38, %v1171
        %v1173 = vsel %vm1170, %v1172, %v1168
        %v1174 = vmul.f32 1.0, %v1173
        %v1175 = vrcp.pop %v1117
        %v1176 = vmul.f32 %v1117, %v1175
        %v1177 = vsub.f32 1.0, %v1176
        %v1178 = vmul.f32 %v1175, %v1177
        %v1179 = vadd.f32 %v1175, %v1178
        %vm1180 = vweird.f32 %v1117
        %vm1181 = vweird.f32 %v1175
        %vm1182 = vmor %vm1180, %vm1181
        %v1183 = vsel %vm1182, %v1175, %v1179
        %v1184 = vand.u32 2147483647, %v1117
        %vm1185 = vcmp.eq.f32.partialorder %v1184, 8.507059e+37
        %v1186 = vand.u32 %v1117, 2147483648
        %v1187 = vor.u32 1.1754944e-38, %v1186
        %v1188 = vsel %vm1185, %v1187, %v1183
        %v1189 = vmul.f32 1.0, %v1188
        %v1190 = vrcp.pop %v1118
        %v1191 = vmul.f32 %v1118, %v1190
        %v1192 = vsub.f32 1.0, %v1191
        %v1193 = vmul.f32 %v1190, %v1192
        %v1194 = vadd.f32 %v1190, %v1193
        %vm1195 = vweird.f32 %v1118
        %vm1196 = vweird.f32 %v1190
        %vm1197 = vmor %vm1195, %vm1196
        %v1198 = vsel %vm1197, %v1190, %v1194
        %v1199 = vand.u32 2147483647, %v1118
        %vm1200 = vcmp.eq.f32.partialorder %v1199, 8.507059e+37
        %v1201 = vand.u32 %v1118, 2147483648
        %v1202 = vor.u32 1.1754944e-38, %v1201
        %v1203 = vsel %vm1200, %v1202, %v1198
        %v1204 = vmul.f32 1.0, %v1203
        %v1205 = vrcp.pop %v1119
        %v1206 = vmul.f32 %v1119, %v1205
        %v1207 = vsub.f32 1.0, %v1206
        %v1208 = vmul.f32 %v1205, %v1207
        %v1209 = vadd.f32 %v1205, %v1208
        %vm1210 = vweird.f32 %v1119
        %vm1211 = vweird.f32 %v1205
        %vm1212 = vmor %vm1210, %vm1211
        %v1213 = vsel %vm1212, %v1205, %v1209
        %v1214 = vand.u32 2147483647, %v1119
        %vm1215 = vcmp.eq.f32.partialorder %v1214, 8.507059e+37
        %v1216 = vand.u32 %v1119, 2147483648
        %v1217 = vor.u32 1.1754944e-38, %v1216
        %v1218 = vsel %vm1215, %v1217, %v1213
        %v1219 = vmul.f32 1.0, %v1218
        %v1220 = vrcp.pop %v1120
        %v1221 = vmul.f32 %v1120, %v1220
        %v1222 = vsub.f32 1.0, %v1221
        %v1223 = vmul.f32 %v1220, %v1222
        %v1224 = vadd.f32 %v1220, %v1223
        %vm1225 = vweird.f32 %v1120
        %vm1226 = vweird.f32 %v1220
        %vm1227 = vmor %vm1225, %vm1226
        %v1228 = vsel %vm1227, %v1220, %v1224
        %v1229 = vand.u32 2147483647, %v1120
        %vm1230 = vcmp.eq.f32.partialorder %v1229, 8.507059e+37
        %v1231 = vand.u32 %v1120, 2147483648
        %v1232 = vor.u32 1.1754944e-38, %v1231
        %v1233 = vsel %vm1230, %v1232, %v1228
        %v1234 = vmul.f32 1.0, %v1233
        %v1235 = vrcp.pop %v1121
        %v1236 = vmul.f32 %v1121, %v1235
        %v1237 = vsub.f32 1.0, %v1236
        %v1238 = vmul.f32 %v1235, %v1237
        %v1239 = vadd.f32 %v1235, %v1238
        %vm1240 = vweird.f32 %v1121
        %vm1241 = vweird.f32 %v1235
        %vm1242 = vmor %vm1240, %vm1241
        %v1243 = vsel %vm1242, %v1235, %v1239
        %v1244 = vand.u32 2147483647, %v1121
        %vm1245 = vcmp.eq.f32.partialorder %v1244, 8.507059e+37
        %v1246 = vand.u32 %v1121, 2147483648
        %v1247 = vor.u32 1.1754944e-38, %v1246
        %v1248 = vsel %vm1245, %v1247, %v1243
        %v1249 = vmul.f32 1.0, %v1248
        %v1250 = vrcp.pop %v1122
        %v1251 = vmul.f32 %v1122, %v1250
        %v1252 = vsub.f32 1.0, %v1251
        %v1253 = vmul.f32 %v1250, %v1252
        %v1254 = vadd.f32 %v1250, %v1253
        %vm1255 = vweird.f32 %v1122
        %vm1256 = vweird.f32 %v1250
        %vm1257 = vmor %vm1255, %vm1256
        %v1258 = vsel %vm1257, %v1250, %v1254
        %v1259 = vand.u32 2147483647, %v1122
        %vm1260 = vcmp.eq.f32.partialorder %v1259, 8.507059e+37
        %v1261 = vand.u32 %v1122, 2147483648
        %v1262 = vor.u32 1.1754944e-38, %v1261
        %v1263 = vsel %vm1260, %v1262, %v1258
        %v1264 = vmul.f32 1.0, %v1263
        %v1265 = vrcp.pop %v1123
        %v1266 = vmul.f32 %v1123, %v1265
        %v1267 = vsub.f32 1.0, %v1266
        %v1268 = vmul.f32 %v1265, %v1267
        %v1269 = vadd.f32 %v1265, %v1268
        %vm1270 = vweird.f32 %v1123
        %vm1271 = vweird.f32 %v1265
        %vm1272 = vmor %vm1270, %vm1271
        %v1273 = vsel %vm1272, %v1265, %v1269
        %v1274 = vand.u32 2147483647, %v1123
        %vm1275 = vcmp.eq.f32.partialorder %v1274, 8.507059e+37
        %v1276 = vand.u32 %v1123, 2147483648
        %v1277 = vor.u32 1.1754944e-38, %v1276
        %v1278 = vsel %vm1275, %v1277, %v1273
        %v1279 = vmul.f32 1.0, %v1278
        %v1280 = vrcp.pop %v1124
        %v1281 = vmul.f32 %v1124, %v1280
        %v1282 = vsub.f32 1.0, %v1281
        %v1283 = vmul.f32 %v1280, %v1282
        %v1284 = vadd.f32 %v1280, %v1283
        %vm1285 = vweird.f32 %v1124
        %vm1286 = vweird.f32 %v1280
        %vm1287 = vmor %vm1285, %vm1286
        %v1288 = vsel %vm1287, %v1280, %v1284
        %v1289 = vand.u32 2147483647, %v1124
        %vm1290 = vcmp.eq.f32.partialorder %v1289, 8.507059e+37
        %v1291 = vand.u32 %v1124, 2147483648
        %v1292 = vor.u32 1.1754944e-38, %v1291
        %v1293 = vsel %vm1290, %v1292, %v1288
        %v1294 = vmul.f32 1.0, %v1293
        %v1295 = vrcp.pop %v1125
        %v1296 = vmul.f32 %v1125, %v1295
        %v1297 = vsub.f32 1.0, %v1296
        %v1298 = vmul.f32 %v1295, %v1297
        %v1299 = vadd.f32 %v1295, %v1298
        %vm1300 = vweird.f32 %v1125
        %vm1301 = vweird.f32 %v1295
        %vm1302 = vmor %vm1300, %vm1301
        %v1303 = vsel %vm1302, %v1295, %v1299
        %v1304 = vand.u32 2147483647, %v1125
        %vm1305 = vcmp.eq.f32.partialorder %v1304, 8.507059e+37
        %v1306 = vand.u32 %v1125, 2147483648
        %v1307 = vor.u32 1.1754944e-38, %v1306
        %v1308 = vsel %vm1305, %v1307, %v1303
        %v1309 = vmul.f32 1.0, %v1308
        %v1310 = vrcp.pop %v1126
        %v1311 = vmul.f32 %v1126, %v1310
        %v1312 = vsub.f32 1.0, %v1311
        %v1313 = vmul.f32 %v1310, %v1312
        %v1314 = vadd.f32 %v1310, %v1313
        %vm1315 = vweird.f32 %v1126
        %vm1316 = vweird.f32 %v1310
        %vm1317 = vmor %vm1315, %vm1316
        %v1318 = vsel %vm1317, %v1310, %v1314
        %v1319 = vand.u32 2147483647, %v1126
        %vm1320 = vcmp.eq.f32.partialorder %v1319, 8.507059e+37
        %v1321 = vand.u32 %v1126, 2147483648
        %v1322 = vor.u32 1.1754944e-38, %v1321
        %v1323 = vsel %vm1320, %v1322, %v1318
        %v1324 = vmul.f32 1.0, %v1323
        %v1325 = vrcp.pop %v1127
        %v1326 = vmul.f32 %v1127, %v1325
        %v1327 = vsub.f32 1.0, %v1326
        %v1328 = vmul.f32 %v1325, %v1327
        %v1329 = vadd.f32 %v1325, %v1328
        %vm1330 = vweird.f32 %v1127
        %vm1331 = vweird.f32 %v1325
        %vm1332 = vmor %vm1330, %vm1331
        %v1333 = vsel %vm1332, %v1325, %v1329
        %v1334 = vand.u32 2147483647, %v1127
        %vm1335 = vcmp.eq.f32.partialorder %v1334, 8.507059e+37
        %v1336 = vand.u32 %v1127, 2147483648
        %v1337 = vor.u32 1.1754944e-38, %v1336
        %v1338 = vsel %vm1335, %v1337, %v1333
        %v1339 = vmul.f32 1.0, %v1338
        %v1340 = vrcp.pop %v1128
        %v1341 = vmul.f32 %v1128, %v1340
        %v1342 = vsub.f32 1.0, %v1341
        %v1343 = vmul.f32 %v1340, %v1342
        %v1344 = vadd.f32 %v1340, %v1343
        %vm1345 = vweird.f32 %v1128
        %vm1346 = vweird.f32 %v1340
        %vm1347 = vmor %vm1345, %vm1346
        %v1348 = vsel %vm1347, %v1340, %v1344
        %v1349 = vand.u32 2147483647, %v1128
        %vm1350 = vcmp.eq.f32.partialorder %v1349, 8.507059e+37
        %v1351 = vand.u32 %v1128, 2147483648
        %v1352 = vor.u32 1.1754944e-38, %v1351
        %v1353 = vsel %vm1350, %v1352, %v1348
        %v1354 = vmul.f32 1.0, %v1353
        %v1355 = vrcp.pop %v1129
        %v1356 = vmul.f32 %v1129, %v1355
        %v1357 = vsub.f32 1.0, %v1356
        %v1358 = vmul.f32 %v1355, %v1357
        %v1359 = vadd.f32 %v1355, %v1358
        %vm1360 = vweird.f32 %v1129
        %vm1361 = vweird.f32 %v1355
        %vm1362 = vmor %vm1360, %vm1361
        %v1363 = vsel %vm1362, %v1355, %v1359
        %v1364 = vand.u32 2147483647, %v1129
        %vm1365 = vcmp.eq.f32.partialorder %v1364, 8.507059e+37
        %v1366 = vand.u32 %v1129, 2147483648
        %v1367 = vor.u32 1.1754944e-38, %v1366
        %v1368 = vsel %vm1365, %v1367, %v1363
        %v1369 = vmul.f32 1.0, %v1368
        %v1370 = vmul.f32 %v1027, %v1144
        %v1371 = vmul.f32 %v1029, %v1159
        %v1372 = vmul.f32 %v1032, %v1174
        %v1373 = vmul.f32 %v1034, %v1189
        %v1374 = vmul.f32 %v1037, %v1204
        %v1375 = vmul.f32 %v1039, %v1219
        %v1376 = vmul.f32 %v1042, %v1234
        %v1377 = vmul.f32 %v1044, %v1249
        %v1378 = vmul.f32 %v1047, %v1264
        %v1379 = vmul.f32 %v1049, %v1279
        %v1380 = vmul.f32 %v1052, %v1294
        %v1381 = vmul.f32 %v1054, %v1309
        %v1382 = vmul.f32 %v1057, %v1324
        %v1383 = vmul.f32 %v1059, %v1339
        %v1384 = vmul.f32 %v1062, %v1354
        %v1385 = vmul.f32 %v1064, %v1369
        %v1386 = vld [vmem:[%s383] sm:$0xf]
        %v1387 = vld [vmem:[%s383 + $0x4] sm:$0xf]
        %v1388 = vld [vmem:[%s383 + $0x8] sm:$0xf]
        %v1389 = vld [vmem:[%s383 + $0xc] sm:$0xf]
        %v1390 = vld [vmem:[%s383 + $0x10] sm:$0xf]
        %v1391 = vld [vmem:[%s383 + $0x14] sm:$0xf]
        %v1392 = vld [vmem:[%s383 + $0x18] sm:$0xf]
        %v1393 = vld [vmem:[%s383 + $0x1c] sm:$0xf]
        %v1394 = vld [vmem:[%s383 + $0x20] sm:$0xf]
        %v1395 = vld [vmem:[%s383 + $0x24] sm:$0xf]
        %v1396 = vld [vmem:[%s383 + $0x28] sm:$0xf]
        %v1397 = vld [vmem:[%s383 + $0x2c] sm:$0xf]
        %v1398 = vld [vmem:[%s383 + $0x30] sm:$0xf]
        %v1399 = vld [vmem:[%s383 + $0x34] sm:$0xf]
        %v1400 = vld [vmem:[%s383 + $0x38] sm:$0xf]
        %v1401 = vld [vmem:[%s383 + $0x3c] sm:$0xf]
        %v1402 = vld [vmem:[%s7] sm:$0xf]
        %v1403 = vld [vmem:[%s7 + $0x4] sm:$0xf]
        %v1404 = vld [vmem:[%s7 + $0x8] sm:$0xf]
        %v1405 = vld [vmem:[%s7 + $0xc] sm:$0xf]
        %v1406 = vld [vmem:[%s7 + $0x10] sm:$0xf]
        %v1407 = vld [vmem:[%s7 + $0x14] sm:$0xf]
        %v1408 = vld [vmem:[%s7 + $0x18] sm:$0xf]
        %v1409 = vld [vmem:[%s7 + $0x1c] sm:$0xf]
        %v1410 = vld [vmem:[%s7 + $0x20] sm:$0xf]
        %v1411 = vld [vmem:[%s7 + $0x24] sm:$0xf]
        %v1412 = vld [vmem:[%s7 + $0x28] sm:$0xf]
        %v1413 = vld [vmem:[%s7 + $0x2c] sm:$0xf]
        %v1414 = vld [vmem:[%s7 + $0x30] sm:$0xf]
        %v1415 = vld [vmem:[%s7 + $0x34] sm:$0xf]
        %v1416 = vld [vmem:[%s7 + $0x38] sm:$0xf]
        %v1417 = vld [vmem:[%s7 + $0x3c] sm:$0xf]
        %v1434 = vunpack.c.l.b16 %v1386
        %v1435 = vunpack.c.l.b16 %v1387
        %v1436 = vunpack.c.l.b16 %v1388
        %v1437 = vunpack.c.l.b16 %v1389
        %v1438 = vunpack.c.l.b16 %v1390
        %v1439 = vunpack.c.l.b16 %v1391
        %v1440 = vunpack.c.l.b16 %v1392
        %v1441 = vunpack.c.l.b16 %v1393
        %v1442 = vunpack.c.l.b16 %v1394
        %v1443 = vunpack.c.l.b16 %v1395
        %v1444 = vunpack.c.l.b16 %v1396
        %v1445 = vunpack.c.l.b16 %v1397
        %v1446 = vunpack.c.l.b16 %v1398
        %v1447 = vunpack.c.l.b16 %v1399
        %v1448 = vunpack.c.l.b16 %v1400
        %v1449 = vunpack.c.l.b16 %v1401
        %v1450 = vpack.c.b16 %v1435, %v1434
        %v1451 = vpack.c.b16 %v1437, %v1436
        %v1452 = vpack.c.b16 %v1439, %v1438
        %v1453 = vpack.c.b16 %v1441, %v1440
        %v1454 = vpack.c.b16 %v1443, %v1442
        %v1455 = vpack.c.b16 %v1445, %v1444
        %v1456 = vpack.c.b16 %v1447, %v1446
        %v1457 = vpack.c.b16 %v1449, %v1448
        %v1482 = vunpack.c.l.b16 %v1402
        %v1483 = vunpack.c.l.b16 %v1403
        %v1484 = vunpack.c.l.b16 %v1404
        %v1485 = vunpack.c.l.b16 %v1405
        %v1486 = vunpack.c.l.b16 %v1406
        %v1487 = vunpack.c.l.b16 %v1407
        %v1488 = vunpack.c.l.b16 %v1408
        %v1489 = vunpack.c.l.b16 %v1409
        %v1490 = vunpack.c.l.b16 %v1410
        %v1491 = vunpack.c.l.b16 %v1411
        %v1492 = vunpack.c.l.b16 %v1412
        %v1493 = vunpack.c.l.b16 %v1413
        %v1494 = vunpack.c.l.b16 %v1414
        %v1495 = vunpack.c.l.b16 %v1415
        %v1496 = vunpack.c.l.b16 %v1416
        %v1497 = vunpack.c.l.b16 %v1417
        %v1498 = vpack.c.b16 %v1483, %v1482
        %v1499 = vpack.c.b16 %v1485, %v1484
        %v1500 = vpack.c.b16 %v1487, %v1486
        %v1501 = vpack.c.b16 %v1489, %v1488
        %v1502 = vpack.c.b16 %v1491, %v1490
        %v1503 = vpack.c.b16 %v1493, %v1492
        %v1504 = vpack.c.b16 %v1495, %v1494
        %v1505 = vpack.c.b16 %v1497, %v1496
        %1514 = vmatpush.bf16.msra.mxu0 %v1505
        %1515 = vmatpush.bf16.msra.mxu0 %v1504
        %1516 = vmatpush.bf16.msra.mxu0 %v1503
        %1517 = vmatpush.bf16.msra.mxu0 %v1502
        %1518 = vmatpush.bf16.msra.mxu0 %v1501
        %1519 = vmatpush.bf16.msra.mxu0 %v1500
        %1520 = vmatpush.bf16.msra.mxu0 %v1499
        %1521 = vmatpush.bf16.msra.mxu0 %v1498
        %1522 = vmatmul.bf16.gmra.mxu0 %v1450
        %v1523 = vpop.f32.mrf.mxu0
        %v1524 = vadd.f32 0.0, %v1523
        %v1525 = vpop.f32.mrf.mxu0
        %v1526 = vadd.f32 0.0, %v1525
        %1527 = vmatmul.bf16.gmra.mxu0 %v1451
        %v1528 = vpop.f32.mrf.mxu0
        %v1529 = vadd.f32 0.0, %v1528
        %v1530 = vpop.f32.mrf.mxu0
        %v1531 = vadd.f32 0.0, %v1530
        %1532 = vmatmul.bf16.gmra.mxu0 %v1452
        %v1533 = vpop.f32.mrf.mxu0
        %v1534 = vadd.f32 0.0, %v1533
        %v1535 = vpop.f32.mrf.mxu0
        %v1536 = vadd.f32 0.0, %v1535
        %1537 = vmatmul.bf16.gmra.mxu0 %v1453
        %v1538 = vpop.f32.mrf.mxu0
        %v1539 = vadd.f32 0.0, %v1538
        %v1540 = vpop.f32.mrf.mxu0
        %v1541 = vadd.f32 0.0, %v1540
        %1542 = vmatmul.bf16.gmra.mxu0 %v1454
        %v1543 = vpop.f32.mrf.mxu0
        %v1544 = vadd.f32 0.0, %v1543
        %v1545 = vpop.f32.mrf.mxu0
        %v1546 = vadd.f32 0.0, %v1545
        %1547 = vmatmul.bf16.gmra.mxu0 %v1455
        %v1548 = vpop.f32.mrf.mxu0
        %v1549 = vadd.f32 0.0, %v1548
        %v1550 = vpop.f32.mrf.mxu0
        %v1551 = vadd.f32 0.0, %v1550
        %1552 = vmatmul.bf16.gmra.mxu0 %v1456
        %v1553 = vpop.f32.mrf.mxu0
        %v1554 = vadd.f32 0.0, %v1553
        %v1555 = vpop.f32.mrf.mxu0
        %v1556 = vadd.f32 0.0, %v1555
        %1557 = vmatmul.bf16.gmra.mxu0 %v1457
        %v1558 = vpop.f32.mrf.mxu0
        %v1559 = vadd.f32 0.0, %v1558
        %v1560 = vpop.f32.mrf.mxu0
        %v1561 = vadd.f32 0.0, %v1560
        %1562 = vdwg.mxu0
        %v1563 = vmul.f32 %v1524, %v1370
        %v1564 = vmul.f32 %v1526, %v1371
        %v1565 = vmul.f32 %v1529, %v1372
        %v1566 = vmul.f32 %v1531, %v1373
        %v1567 = vmul.f32 %v1534, %v1374
        %v1568 = vmul.f32 %v1536, %v1375
        %v1569 = vmul.f32 %v1539, %v1376
        %v1570 = vmul.f32 %v1541, %v1377
        %v1571 = vmul.f32 %v1544, %v1378
        %v1572 = vmul.f32 %v1546, %v1379
        %v1573 = vmul.f32 %v1549, %v1380
        %v1574 = vmul.f32 %v1551, %v1381
        %v1575 = vmul.f32 %v1554, %v1382
        %v1576 = vmul.f32 %v1556, %v1383
        %v1577 = vmul.f32 %v1559, %v1384
        %v1578 = vmul.f32 %v1561, %v1385
        %v1579 = vpack.c.bf16 %v1370, %v1370
        %v1580 = vpack.c.bf16 %v1371, %v1371
        %v1581 = vpack.c.bf16 %v1372, %v1372
        %v1582 = vpack.c.bf16 %v1373, %v1373
        %v1583 = vpack.c.bf16 %v1374, %v1374
        %v1584 = vpack.c.bf16 %v1375, %v1375
        %v1585 = vpack.c.bf16 %v1376, %v1376
        %v1586 = vpack.c.bf16 %v1377, %v1377
        %v1587 = vpack.c.bf16 %v1378, %v1378
        %v1588 = vpack.c.bf16 %v1379, %v1379
        %v1589 = vpack.c.bf16 %v1380, %v1380
        %v1590 = vpack.c.bf16 %v1381, %v1381
        %v1591 = vpack.c.bf16 %v1382, %v1382
        %v1592 = vpack.c.bf16 %v1383, %v1383
        %v1593 = vpack.c.bf16 %v1384, %v1384
        %v1594 = vpack.c.bf16 %v1385, %v1385
        %1595 = vst [vmem:[%s359] sm:$0xf] %v1579
        %1596 = vst [vmem:[%s359 + $0x4] sm:$0xf] %v1580
        %1597 = vst [vmem:[%s359 + $0x8] sm:$0xf] %v1581
        %1598 = vst [vmem:[%s359 + $0xc] sm:$0xf] %v1582
        %1599 = vst [vmem:[%s359 + $0x10] sm:$0xf] %v1583
        %1600 = vst [vmem:[%s359 + $0x14] sm:$0xf] %v1584
        %1601 = vst [vmem:[%s359 + $0x18] sm:$0xf] %v1585
        %1602 = vst [vmem:[%s359 + $0x1c] sm:$0xf] %v1586
        %1603 = vst [vmem:[%s359 + $0x20] sm:$0xf] %v1587
        %1604 = vst [vmem:[%s359 + $0x24] sm:$0xf] %v1588
        %1605 = vst [vmem:[%s359 + $0x28] sm:$0xf] %v1589
        %1606 = vst [vmem:[%s359 + $0x2c] sm:$0xf] %v1590
        %1607 = vst [vmem:[%s359 + $0x30] sm:$0xf] %v1591
        %1608 = vst [vmem:[%s359 + $0x34] sm:$0xf] %v1592
        %1609 = vst [vmem:[%s359 + $0x38] sm:$0xf] %v1593
        %1610 = vst [vmem:[%s359 + $0x3c] sm:$0xf] %v1594
        %v1611 = vpack.c.bf16 %v1563, %v1563
        %v1612 = vpack.c.bf16 %v1564, %v1564
        %v1613 = vpack.c.bf16 %v1565, %v1565
        %v1614 = vpack.c.bf16 %v1566, %v1566
        %v1615 = vpack.c.bf16 %v1567, %v1567
        %v1616 = vpack.c.bf16 %v1568, %v1568
        %v1617 = vpack.c.bf16 %v1569, %v1569
        %v1618 = vpack.c.bf16 %v1570, %v1570
        %v1619 = vpack.c.bf16 %v1571, %v1571
        %v1620 = vpack.c.bf16 %v1572, %v1572
        %v1621 = vpack.c.bf16 %v1573, %v1573
        %v1622 = vpack.c.bf16 %v1574, %v1574
        %v1623 = vpack.c.bf16 %v1575, %v1575
        %v1624 = vpack.c.bf16 %v1576, %v1576
        %v1625 = vpack.c.bf16 %v1577, %v1577
        %v1626 = vpack.c.bf16 %v1578, %v1578
        %1627 = vst [vmem:[%s390] sm:$0xf] %v1611
        %1628 = vst [vmem:[%s390 + $0x4] sm:$0xf] %v1612
        %1629 = vst [vmem:[%s390 + $0x8] sm:$0xf] %v1613
        %1630 = vst [vmem:[%s390 + $0xc] sm:$0xf] %v1614
        %1631 = vst [vmem:[%s390 + $0x10] sm:$0xf] %v1615
        %1632 = vst [vmem:[%s390 + $0x14] sm:$0xf] %v1616
        %1633 = vst [vmem:[%s390 + $0x18] sm:$0xf] %v1617
        %1634 = vst [vmem:[%s390 + $0x1c] sm:$0xf] %v1618
        %1635 = vst [vmem:[%s390 + $0x20] sm:$0xf] %v1619
        %1636 = vst [vmem:[%s390 + $0x24] sm:$0xf] %v1620
        %1637 = vst [vmem:[%s390 + $0x28] sm:$0xf] %v1621
        %1638 = vst [vmem:[%s390 + $0x2c] sm:$0xf] %v1622
        %1639 = vst [vmem:[%s390 + $0x30] sm:$0xf] %v1623
        %1640 = vst [vmem:[%s390 + $0x34] sm:$0xf] %v1624
        %1641 = vst [vmem:[%s390 + $0x38] sm:$0xf] %v1625
        %1642 = vst [vmem:[%s390 + $0x3c] sm:$0xf] %v1626
        %s1643 = sand.u32 %s215, 1
        %s1644 = scalar_lea.sflag [#allocation3], %s1643
        %s1645 = sand.u32 %s215, 1
        %s1646 = smul.addr %s1645, 64
        %s1647 = scalar_lea.vmem [#allocation2], %s1646
        %s1648 = smul.u32 16, %s24
        %p1649 = scmp.lt.s32.totalorder %s1648, 31
        %s1650 = scalar_select %p1649, %s1648, 31
        %s1651 = smul.addr %s1650, 4
        %s1652 = scalar_lea.vmem %s9, %s1651
        // Predicated region
        $region53: #{_forward_device.6} parent=51 // pred_check
          %p1653 = pneg %p225
        $region54: #{_forward_device.6} parent=51 // pred_check_branch
          %1655 = sbr.rel (%p1653) target = $region56
        $region55: #{_forward_device.6} parent=51 // pred_region
          %s1656 = smul.u32 16, %s24
          %1658 = vsyncadd %s1644, 0
          %s1659 = smul.addr %s1656, 4
          %s1660 = scalar_lea.hbm %s8, %s1659
          %s1661 = sshll.u32 %s1647, 4
          %s1662 = int_to_ptr.vmem [resolvable:$true] %s1661
          %s1663 = sshll.u32 %s1660, 4
          %s1664 = int_to_ptr.hbm [resolvable:$true] %s1663
          %1669 = dma.vmem_to_hbm [thread:$0]  %s1662, 1024, %s1664, %s1644, 64, 64, 4
        $region56: #{_forward_device.6} parent=51 // pred_fallthru
          _
        // Predicated region
        $region57: #{_forward_device.6} parent=51 // pred_check
          %p1670 = pneg %p251
        $region58: #{_forward_device.6} parent=51 // pred_check_branch
          %1672 = sbr.rel (%p1670) target = $region60
        $region59: #{_forward_device.6} parent=51 // pred_region
          %s1673 = smul.u32 16, %s24
        $region60: #{_forward_device.6} parent=51 // pred_fallthru
          _
      $region52: #{_forward_device.6} parent=5 // pred_fallthru
        _
      %p1674 = scmp.le.s32.totalorder 2, %s19
      // Predicated region
      $region61: #{_forward_device.6} parent=5 // pred_check
        %p1675 = pneg %p1674
      $region62: #{_forward_device.6} parent=5 // pred_check_branch
        %1677 = sbr.rel (%p1675) target = $region64
      $region63: #{_forward_device.6} parent=5 // pred_region
        %s1678 = ssub.s32 %s19, 2
        // Predicated region
        $region65: #{_forward_device.6} parent=63 // pred_check
          %p1679 = pneg %p231
        $region66: #{_forward_device.6} parent=63 // pred_check_branch
          %1681 = sbr.rel (%p1679) target = $region68
        $region67: #{_forward_device.6} parent=63 // pred_region
          %s1682 = sand.u32 %s216, 1
          %s1683 = scalar_lea.sflag [#allocation3], %s1682
          %s1684 = sand.u32 %s216, 1
          %s1685 = smul.addr %s1684, 64
          %s1686 = scalar_lea.vmem [#allocation2], %s1685
          %1688 = dma.done %s1683, 1024
        $region68: #{_forward_device.6} parent=63 // pred_fallthru
          _
        // Predicated region
        $region69: #{_forward_device.6} parent=63 // pred_check
          %p1689 = pneg %p257
        $region70: #{_forward_device.6} parent=63 // pred_check_branch
          %1691 = sbr.rel (%p1689) target = $region72
        $region71: #{_forward_device.6} parent=63 // pred_region
          %s1692 = smul.u32 16, %s25
          %p1693 = scmp.lt.s32.totalorder %s1692, 31
          %s1694 = scalar_select %p1693, %s1692, 31
          %s1695 = smul.addr %s1694, 4
          %s1696 = scalar_lea.vmem %s9, %s1695
        $region72: #{_forward_device.6} parent=63 // pred_fallthru
          _
      $region64: #{_forward_device.6} parent=5 // pred_fallthru
        _
    $region6: #{_forward_device.6} parent=1 // loop_footer
      %s23 = sadd.s32 1, %s19
    $region7: #{_forward_device.6} parent=1 // loop_footer_branch
      %18 = sbr.rel target = $region3
    $region8: #{_forward_device.6} parent=1 // loop_exit
      _
    %1697 = vsyncpa [#allocation3], 1
    %s1698 = scalar_lea.sflag [#allocation3], 1
    %1699 = vsyncpa %s1698, 1

// kernel: _forward_device.5
$region0: #{_forward_device.5}
  #allocation0 [shape = 'u32[]', space=smem, size = 0x4, offset = 0x4, fixed_abs, tag = 'smem constant byte address 0x4 - core index']
  #allocation1 [shape = 'u32[72,128]{1,0:T(1,128)}', space=vmem, size = 0x9000, scoped, tag = 'internal scratch']
  %s0 = inlined_call_operand.vmem [shape: bf16[512,128], index: 0, kind: input, shape index: {}]
  %s1 = inlined_call_operand.vmem [shape: bf16[512,128], index: 1, kind: input, shape index: {}]
  %s2 = inlined_call_operand.vmem [shape: bf16[128,8], index: 2, kind: input, shape index: {}]
  %s3 = inlined_call_operand.vmem [shape: bf16[8,128,128], index: 3, kind: input, shape index: {}]
  %s4 = inlined_call_operand.vmem [shape: bf16[512,128], index: 4, kind: output, shape index: {}]
  %s5 = sld [smem:[#allocation0]]
  $region49: #{_forward_device.5} parent=0
    _
  %s7 = ssub.s32 1, %s5
  %s8 = scalar_select 0, %s7, %s5
  loop: start=0, step=1, limit=4
  $region2: #{_forward_device.5} parent=0 // loop_pre_header
    _
  $region3: #{_forward_device.5} parent=0 // loop_header
    %s10 = sphi 0, %s14
    %p11 = scmp.ge.s32.totalorder %s10, 4
    %s20 = sphi 0, %s22
    %s23 = sphi 0, %s20
    %s24 = sphi 0, %s23
    %s40 = sphi 0, %s24
    %s46 = sphi 0, %s48
    %s49 = sphi 0, %s46
    %s50 = sphi 0, %s49
    %s66 = sphi 0, %s50
    %s70 = sphi 0, %s70
    %s72 = sphi 0, %s70
    %s73 = sphi 0, %s72
    %s87 = sphi 0, %s73
    %s91 = sphi 0, %s91
    %s93 = sphi 0, %s91
    %s94 = sphi 0, %s93
    %s108 = sphi 0, %s94
    %s114 = sphi 0, %s116
    %s117 = sphi 0, %s114
    %s118 = sphi 0, %s117
    %s134 = sphi 0, %s118
  $region4: #{_forward_device.5} parent=0 // loop_header_branch
    %13 = sbr.rel (%p11) target = $region8
  $region5: #{_forward_device.5} parent=0 // loop_body
    %s15 = ssub.s32 %s10, 1
    %s16 = ssub.s32 %s10, 2
    %s17 = sadd.s32 %s10, 1
    %s18 = ssub.s32 %s10, %s17
    %p19 = scmp.eq.s32.totalorder %s18, 0
    %s21 = sadd.s32 %s20, 1
    %s22 = scalar_select %p19, %s20, %s21
    %p25 = pneg %p19
    %p26 = scmp.eq.s32.totalorder %s10, 1
    %p27 = por %p25, %p26
    %p28 = scmp.ne.s32.totalorder %s20, %s23
    %p29 = scmp.eq.s32.totalorder %s10, 0
    %p30 = por %p28, %p29
    %p31 = scmp.ne.s32.totalorder %s20, %s23
    %p32 = scmp.eq.s32.totalorder %s15, 1
    %p33 = por %p31, %p32
    %p34 = scmp.ne.s32.totalorder %s23, %s24
    %p35 = scmp.eq.s32.totalorder %s15, 0
    %p36 = por %p34, %p35
    %p37 = scmp.ne.s32.totalorder %s23, %s24
    %p38 = scmp.eq.s32.totalorder %s16, 1
    %p39 = por %p37, %p38
    %p41 = scmp.ne.s32.totalorder %s24, %s40
    %p42 = scmp.eq.s32.totalorder %s16, 0
    %p43 = por %p41, %p42
    %s44 = ssub.s32 %s10, %s17
    %p45 = scmp.eq.s32.totalorder %s44, 0
    %s47 = sadd.s32 %s46, 1
    %s48 = scalar_select %p45, %s46, %s47
    %p51 = pneg %p45
    %p52 = scmp.eq.s32.totalorder %s10, 1
    %p53 = por %p51, %p52
    %p54 = scmp.ne.s32.totalorder %s46, %s49
    %p55 = scmp.eq.s32.totalorder %s10, 0
    %p56 = por %p54, %p55
    %p57 = scmp.ne.s32.totalorder %s46, %s49
    %p58 = scmp.eq.s32.totalorder %s15, 1
    %p59 = por %p57, %p58
    %p60 = scmp.ne.s32.totalorder %s49, %s50
    %p61 = scmp.eq.s32.totalorder %s15, 0
    %p62 = por %p60, %p61
    %p63 = scmp.ne.s32.totalorder %s49, %s50
    %p64 = scmp.eq.s32.totalorder %s16, 1
    %p65 = por %p63, %p64
    %p67 = scmp.ne.s32.totalorder %s50, %s66
    %p68 = scmp.eq.s32.totalorder %s16, 0
    %p69 = por %p67, %p68
    %s71 = sadd.s32 %s70, 1
    %p74 = scmp.eq.s32.totalorder %s10, 1
    %p75 = scmp.ne.s32.totalorder %s70, %s72
    %p76 = scmp.eq.s32.totalorder %s10, 0
    %p77 = por %p75, %p76
    %p78 = scmp.ne.s32.totalorder %s70, %s72
    %p79 = scmp.eq.s32.totalorder %s15, 1
    %p80 = por %p78, %p79
    %p81 = scmp.ne.s32.totalorder %s72, %s73
    %p82 = scmp.eq.s32.totalorder %s15, 0
    %p83 = por %p81, %p82
    %p84 = scmp.ne.s32.totalorder %s72, %s73
    %p85 = scmp.eq.s32.totalorder %s16, 1
    %p86 = por %p84, %p85
    %p88 = scmp.ne.s32.totalorder %s73, %s87
    %p89 = scmp.eq.s32.totalorder %s16, 0
    %p90 = por %p88, %p89
    %s92 = sadd.s32 %s91, 1
    %p95 = scmp.eq.s32.totalorder %s10, 1
    %p96 = scmp.ne.s32.totalorder %s91, %s93
    %p97 = scmp.eq.s32.totalorder %s10, 0
    %p98 = por %p96, %p97
    %p99 = scmp.ne.s32.totalorder %s91, %s93
    %p100 = scmp.eq.s32.totalorder %s15, 1
    %p101 = por %p99, %p100
    %p102 = scmp.ne.s32.totalorder %s93, %s94
    %p103 = scmp.eq.s32.totalorder %s15, 0
    %p104 = por %p102, %p103
    %p105 = scmp.ne.s32.totalorder %s93, %s94
    %p106 = scmp.eq.s32.totalorder %s16, 1
    %p107 = por %p105, %p106
    %p109 = scmp.ne.s32.totalorder %s94, %s108
    %p110 = scmp.eq.s32.totalorder %s16, 0
    %p111 = por %p109, %p110
    %s112 = ssub.s32 %s10, %s17
    %p113 = scmp.eq.s32.totalorder %s112, 0
    %s115 = sadd.s32 %s114, 1
    %s116 = scalar_select %p113, %s114, %s115
    %p119 = pneg %p113
    %p120 = scmp.eq.s32.totalorder %s10, 1
    %p121 = por %p119, %p120
    %p122 = scmp.ne.s32.totalorder %s114, %s117
    %p123 = scmp.eq.s32.totalorder %s10, 0
    %p124 = por %p122, %p123
    %p125 = scmp.ne.s32.totalorder %s114, %s117
    %p126 = scmp.eq.s32.totalorder %s15, 1
    %p127 = por %p125, %p126
    %p128 = scmp.ne.s32.totalorder %s117, %s118
    %p129 = scmp.eq.s32.totalorder %s15, 0
    %p130 = por %p128, %p129
    %p131 = scmp.ne.s32.totalorder %s117, %s118
    %p132 = scmp.eq.s32.totalorder %s16, 1
    %p133 = por %p131, %p132
    %p135 = scmp.ne.s32.totalorder %s118, %s134
    %p136 = scmp.eq.s32.totalorder %s16, 0
    %p137 = por %p135, %p136
    %p138 = scmp.le.s32.totalorder 1, %s10
    %p139 = scmp.lt.s32.totalorder %s10, 3
    %p140 = pnand %p138, %p139
    %p141 = pneg %p140
    // Predicated region
    $region9: #{_forward_device.5} parent=5 // pred_check
      _
    $region10: #{_forward_device.5} parent=5 // pred_check_branch
      %143 = sbr.rel (%p140) target = $region12
    $region11: #{_forward_device.5} parent=5 // pred_region
      %s144 = ssub.s32 %s10, 1
      // Predicated region
      $region13: #{_forward_device.5} parent=11 // pred_check
        %p145 = pneg %p83
      $region14: #{_forward_device.5} parent=11 // pred_check_branch
        %147 = sbr.rel (%p145) target = $region16
      $region15: #{_forward_device.5} parent=11 // pred_region
        _
      $region16: #{_forward_device.5} parent=11 // pred_fallthru
        _
      // Predicated region
      $region17: #{_forward_device.5} parent=11 // pred_check
        %p148 = pneg %p104
      $region18: #{_forward_device.5} parent=11 // pred_check_branch
        %150 = sbr.rel (%p148) target = $region20
      $region19: #{_forward_device.5} parent=11 // pred_region
        _
      $region20: #{_forward_device.5} parent=11 // pred_fallthru
        _
    $region12: #{_forward_device.5} parent=5 // pred_fallthru
      _
    %p151 = scmp.lt.s32.totalorder %s10, 2
    // Predicated region
    $region21: #{_forward_device.5} parent=5 // pred_check
      %p152 = pneg %p151
    $region22: #{_forward_device.5} parent=5 // pred_check_branch
      %154 = sbr.rel (%p152) target = $region24
    $region23: #{_forward_device.5} parent=5 // pred_region
      // Predicated region
      $region25: #{_forward_device.5} parent=23 // pred_check
        %p155 = pneg %p30
      $region26: #{_forward_device.5} parent=23 // pred_check_branch
        %157 = sbr.rel (%p155) target = $region28
      $region27: #{_forward_device.5} parent=23 // pred_region
        %s158 = smul.u32 32, %s10
        %p159 = scmp.lt.s32.totalorder %s158, 63
        %s160 = scalar_select %p159, %s158, 63
        %s161 = smul.addr %s160, 4
        %s162 = scalar_lea.vmem %s0, %s161
        %s163 = smul.u32 32, %s10
      $region28: #{_forward_device.5} parent=23 // pred_fallthru
        _
      // Predicated region
      $region29: #{_forward_device.5} parent=23 // pred_check
        %p164 = pneg %p56
      $region30: #{_forward_device.5} parent=23 // pred_check_branch
        %166 = sbr.rel (%p164) target = $region32
      $region31: #{_forward_device.5} parent=23 // pred_region
        %s167 = smul.u32 32, %s10
        %p168 = scmp.lt.s32.totalorder %s167, 63
        %s169 = scalar_select %p168, %s167, 63
        %s170 = smul.addr %s169, 4
        %s171 = scalar_lea.vmem %s1, %s170
        %s172 = smul.u32 32, %s10
      $region32: #{_forward_device.5} parent=23 // pred_fallthru
        _
    $region24: #{_forward_device.5} parent=5 // pred_fallthru
      _
    %p173 = scmp.le.s32.totalorder 1, %s10
    %p174 = scmp.lt.s32.totalorder %s10, 3
    %p175 = pnand %p173, %p174
    %p176 = pneg %p175
    // Predicated region
    $region33: #{_forward_device.5} parent=5 // pred_check
      _
    $region34: #{_forward_device.5} parent=5 // pred_check_branch
      %178 = sbr.rel (%p175) target = $region36
    $region35: #{_forward_device.5} parent=5 // pred_region
      %s179 = ssub.s32 %s10, 1
      %s180 = smul.u32 32, %s15
      %p181 = scmp.lt.s32.totalorder %s180, 63
      %s182 = scalar_select %p181, %s180, 63
      %s183 = smul.addr %s182, 4
      %s184 = scalar_lea.vmem %s0, %s183
      %p185 = pneg %p36
      %p186 = pneg %p33
      %s187 = smul.u32 32, %s15
      %p188 = scmp.lt.s32.totalorder %s187, 63
      %s189 = scalar_select %p188, %s187, 63
      %s190 = smul.addr %s189, 4
      %s191 = scalar_lea.vmem %s1, %s190
      %p192 = pneg %p62
      %p193 = pneg %p59
      %p194 = pneg %p83
      %p195 = pneg %p80
      %p196 = pneg %p104
      %p197 = pneg %p101
      %p198 = pneg %p130
      %p199 = pneg %p127
      %s200 = smul.u32 32, %s15
      %p201 = scmp.lt.s32.totalorder %s200, 63
      %s202 = scalar_select %p201, %s200, 63
      %s203 = smul.addr %s202, 4
      %s204 = scalar_lea.vmem %s4, %s203
      %s205 = smul.u32 32, %s15
      %p206 = scmp.lt.s32.totalorder %s205, 63
      %s207 = scalar_select %p206, %s205, 63
      %s208 = smul.addr %s207, 4
      %s209 = scalar_lea.vmem %s0, %s208
      %s210 = smul.u32 32, %s15
      %s211 = smul.u32 32, %s15
      %p212 = scmp.lt.s32.totalorder %s211, 63
      %s213 = scalar_select %p212, %s211, 63
      %s214 = smul.addr %s213, 4
      %s215 = scalar_lea.vmem %s1, %s214
      %s216 = smul.u32 32, %s15
      %s217 = smul.u32 32, %s15
      %p218 = scmp.lt.s32.totalorder %s217, 63
      %s219 = scalar_select %p218, %s217, 63
      %s220 = smul.addr %s219, 4
      %s221 = scalar_lea.vmem %s4, %s220
      %s222 = smul.u32 32, %s15
      %v223 = vld [vmem:[%s209] sm:$0xf]
      %v224 = vld [vmem:[%s209 + $0x4] sm:$0xf]
      %v225 = vld [vmem:[%s209 + $0x8] sm:$0xf]
      %v226 = vld [vmem:[%s209 + $0xc] sm:$0xf]
      %v227 = vld [vmem:[%s209 + $0x10] sm:$0xf]
      %v228 = vld [vmem:[%s209 + $0x14] sm:$0xf]
      %v229 = vld [vmem:[%s209 + $0x18] sm:$0xf]
      %v230 = vld [vmem:[%s209 + $0x1c] sm:$0xf]
      %v231 = vld [vmem:[%s209 + $0x20] sm:$0xf]
      %v232 = vld [vmem:[%s209 + $0x24] sm:$0xf]
      %v233 = vld [vmem:[%s209 + $0x28] sm:$0xf]
      %v234 = vld [vmem:[%s209 + $0x2c] sm:$0xf]
      %v235 = vld [vmem:[%s209 + $0x30] sm:$0xf]
      %v236 = vld [vmem:[%s209 + $0x34] sm:$0xf]
      %v237 = vld [vmem:[%s209 + $0x38] sm:$0xf]
      %v238 = vld [vmem:[%s209 + $0x3c] sm:$0xf]
      %v239 = vld [vmem:[%s209 + $0x40] sm:$0xf]
      %v240 = vld [vmem:[%s209 + $0x44] sm:$0xf]
      %v241 = vld [vmem:[%s209 + $0x48] sm:$0xf]
      %v242 = vld [vmem:[%s209 + $0x4c] sm:$0xf]
      %v243 = vld [vmem:[%s209 + $0x50] sm:$0xf]
      %v244 = vld [vmem:[%s209 + $0x54] sm:$0xf]
      %v245 = vld [vmem:[%s209 + $0x58] sm:$0xf]
      %v246 = vld [vmem:[%s209 + $0x5c] sm:$0xf]
      %v247 = vld [vmem:[%s209 + $0x60] sm:$0xf]
      %v248 = vld [vmem:[%s209 + $0x64] sm:$0xf]
      %v249 = vld [vmem:[%s209 + $0x68] sm:$0xf]
      %v250 = vld [vmem:[%s209 + $0x6c] sm:$0xf]
      %v251 = vld [vmem:[%s209 + $0x70] sm:$0xf]
      %v252 = vld [vmem:[%s209 + $0x74] sm:$0xf]
      %v253 = vld [vmem:[%s209 + $0x78] sm:$0xf]
      %v254 = vld [vmem:[%s209 + $0x7c] sm:$0xf]
      %v255 = vld [vmem:[%s215] sm:$0xf]
      %v256 = vld [vmem:[%s215 + $0x4] sm:$0xf]
      %v257 = vld [vmem:[%s215 + $0x8] sm:$0xf]
      %v258 = vld [vmem:[%s215 + $0xc] sm:$0xf]
      %v259 = vld [vmem:[%s215 + $0x10] sm:$0xf]
      %v260 = vld [vmem:[%s215 + $0x14] sm:$0xf]
      %v261 = vld [vmem:[%s215 + $0x18] sm:$0xf]
      %v262 = vld [vmem:[%s215 + $0x1c] sm:$0xf]
      %v263 = vld [vmem:[%s215 + $0x20] sm:$0xf]
      %v264 = vld [vmem:[%s215 + $0x24] sm:$0xf]
      %v265 = vld [vmem:[%s215 + $0x28] sm:$0xf]
      %v266 = vld [vmem:[%s215 + $0x2c] sm:$0xf]
      %v267 = vld [vmem:[%s215 + $0x30] sm:$0xf]
      %v268 = vld [vmem:[%s215 + $0x34] sm:$0xf]
      %v269 = vld [vmem:[%s215 + $0x38] sm:$0xf]
      %v270 = vld [vmem:[%s215 + $0x3c] sm:$0xf]
      %v271 = vld [vmem:[%s215 + $0x40] sm:$0xf]
      %v272 = vld [vmem:[%s215 + $0x44] sm:$0xf]
      %v273 = vld [vmem:[%s215 + $0x48] sm:$0xf]
      %v274 = vld [vmem:[%s215 + $0x4c] sm:$0xf]
      %v275 = vld [vmem:[%s215 + $0x50] sm:$0xf]
      %v276 = vld [vmem:[%s215 + $0x54] sm:$0xf]
      %v277 = vld [vmem:[%s215 + $0x58] sm:$0xf]
      %v278 = vld [vmem:[%s215 + $0x5c] sm:$0xf]
      %v279 = vld [vmem:[%s215 + $0x60] sm:$0xf]
      %v280 = vld [vmem:[%s215 + $0x64] sm:$0xf]
      %v281 = vld [vmem:[%s215 + $0x68] sm:$0xf]
      %v282 = vld [vmem:[%s215 + $0x6c] sm:$0xf]
      %v283 = vld [vmem:[%s215 + $0x70] sm:$0xf]
      %v284 = vld [vmem:[%s215 + $0x74] sm:$0xf]
      %v285 = vld [vmem:[%s215 + $0x78] sm:$0xf]
      %v286 = vld [vmem:[%s215 + $0x7c] sm:$0xf]
      %v287 = vld [vmem:[%s2] sm:$0xf]
      %v288 = vld [vmem:[%s2 + $0x4] sm:$0xf]
      %v289 = vld [vmem:[%s2 + $0x8] sm:$0xf]
      %v290 = vld [vmem:[%s2 + $0xc] sm:$0xf]
      %v291 = vld [vmem:[%s2 + $0x10] sm:$0xf]
      %v292 = vld [vmem:[%s2 + $0x14] sm:$0xf]
      %v293 = vld [vmem:[%s2 + $0x18] sm:$0xf]
      %v294 = vld [vmem:[%s2 + $0x1c] sm:$0xf]
      %v295 = vld [vmem:[%s2 + $0x20] sm:$0xf]
      %v296 = vld [vmem:[%s2 + $0x24] sm:$0xf]
      %v297 = vld [vmem:[%s2 + $0x28] sm:$0xf]
      %v298 = vld [vmem:[%s2 + $0x2c] sm:$0xf]
      %v299 = vld [vmem:[%s2 + $0x30] sm:$0xf]
      %v300 = vld [vmem:[%s2 + $0x34] sm:$0xf]
      %v301 = vld [vmem:[%s2 + $0x38] sm:$0xf]
      %v302 = vld [vmem:[%s2 + $0x3c] sm:$0xf]
      %v335 = vunpack.c.l.b16 %v255
      %v336 = vunpack.c.l.b16 %v256
      %v337 = vunpack.c.l.b16 %v257
      %v338 = vunpack.c.l.b16 %v258
      %v339 = vunpack.c.l.b16 %v259
      %v340 = vunpack.c.l.b16 %v260
      %v341 = vunpack.c.l.b16 %v261
      %v342 = vunpack.c.l.b16 %v262
      %v343 = vunpack.c.l.b16 %v263
      %v344 = vunpack.c.l.b16 %v264
      %v345 = vunpack.c.l.b16 %v265
      %v346 = vunpack.c.l.b16 %v266
      %v347 = vunpack.c.l.b16 %v267
      %v348 = vunpack.c.l.b16 %v268
      %v349 = vunpack.c.l.b16 %v269
      %v350 = vunpack.c.l.b16 %v270
      %v351 = vunpack.c.l.b16 %v271
      %v352 = vunpack.c.l.b16 %v272
      %v353 = vunpack.c.l.b16 %v273
      %v354 = vunpack.c.l.b16 %v274
      %v355 = vunpack.c.l.b16 %v275
      %v356 = vunpack.c.l.b16 %v276
      %v357 = vunpack.c.l.b16 %v277
      %v358 = vunpack.c.l.b16 %v278
      %v359 = vunpack.c.l.b16 %v279
      %v360 = vunpack.c.l.b16 %v280
      %v361 = vunpack.c.l.b16 %v281
      %v362 = vunpack.c.l.b16 %v282
      %v363 = vunpack.c.l.b16 %v283
      %v364 = vunpack.c.l.b16 %v284
      %v365 = vunpack.c.l.b16 %v285
      %v366 = vunpack.c.l.b16 %v286
      %v367 = vpack.c.b16 %v336, %v335
      %v368 = vpack.c.b16 %v338, %v337
      %v369 = vpack.c.b16 %v340, %v339
      %v370 = vpack.c.b16 %v342, %v341
      %v371 = vpack.c.b16 %v344, %v343
      %v372 = vpack.c.b16 %v346, %v345
      %v373 = vpack.c.b16 %v348, %v347
      %v374 = vpack.c.b16 %v350, %v349
      %v375 = vpack.c.b16 %v352, %v351
      %v376 = vpack.c.b16 %v354, %v353
      %v377 = vpack.c.b16 %v356, %v355
      %v378 = vpack.c.b16 %v358, %v357
      %v379 = vpack.c.b16 %v360, %v359
      %v380 = vpack.c.b16 %v362, %v361
      %v381 = vpack.c.b16 %v364, %v363
      %v382 = vpack.c.b16 %v366, %v365
      %v415 = vunpack.c.l.b16 %v287
      %v416 = vunpack.c.l.b16 %v288
      %v417 = vunpack.c.l.b16 %v289
      %v418 = vunpack.c.l.b16 %v290
      %v419 = vunpack.c.l.b16 %v291
      %v420 = vunpack.c.l.b16 %v292
      %v421 = vunpack.c.l.b16 %v293
      %v422 = vunpack.c.l.b16 %v294
      %v423 = vunpack.c.l.b16 %v295
      %v424 = vunpack.c.l.b16 %v296
      %v425 = vunpack.c.l.b16 %v297
      %v426 = vunpack.c.l.b16 %v298
      %v427 = vunpack.c.l.b16 %v299
      %v428 = vunpack.c.l.b16 %v300
      %v429 = vunpack.c.l.b16 %v301
      %v430 = vunpack.c.l.b16 %v302
      %v431 = vpack.c.b16 %v416, %v415
      %v432 = vpack.c.b16 %v418, %v417
      %v433 = vpack.c.b16 %v420, %v419
      %v434 = vpack.c.b16 %v422, %v421
      %v435 = vpack.c.b16 %v424, %v423
      %v436 = vpack.c.b16 %v426, %v425
      %v437 = vpack.c.b16 %v428, %v427
      %v438 = vpack.c.b16 %v430, %v429
      %447 = vmatpush.bf16.msra.mxu0 %v438
      %448 = vmatpush.bf16.msra.mxu0 %v437
      %449 = vmatpush.bf16.msra.mxu0 %v436
      %450 = vmatpush.bf16.msra.mxu0 %v435
      %451 = vmatpush.bf16.msra.mxu0 %v434
      %452 = vmatpush.bf16.msra.mxu0 %v433
      %453 = vmatpush.bf16.msra.mxu0 %v432
      %454 = vmatpush.bf16.msra.mxu0 %v431
      %455 = vmatmul.bf16.gmra.mxu0 %v367
      %v456 = vpop.f32.mrf.mxu0
      %v457 = vadd.f32 0.0, %v456
      %v458 = vpop.f32.mrf.mxu0
      %v459 = vadd.f32 0.0, %v458
      %460 = vmatmul.bf16.gmra.mxu0 %v368
      %v461 = vpop.f32.mrf.mxu0
      %v462 = vadd.f32 0.0, %v461
      %v463 = vpop.f32.mrf.mxu0
      %v464 = vadd.f32 0.0, %v463
      %465 = vmatmul.bf16.gmra.mxu0 %v369
      %v466 = vpop.f32.mrf.mxu0
      %v467 = vadd.f32 0.0, %v466
      %v468 = vpop.f32.mrf.mxu0
      %v469 = vadd.f32 0.0, %v468
      %470 = vmatmul.bf16.gmra.mxu0 %v370
      %v471 = vpop.f32.mrf.mxu0
      %v472 = vadd.f32 0.0, %v471
      %v473 = vpop.f32.mrf.mxu0
      %v474 = vadd.f32 0.0, %v473
      %475 = vmatmul.bf16.gmra.mxu0 %v371
      %v476 = vpop.f32.mrf.mxu0
      %v477 = vadd.f32 0.0, %v476
      %v478 = vpop.f32.mrf.mxu0
      %v479 = vadd.f32 0.0, %v478
      %480 = vmatmul.bf16.gmra.mxu0 %v372
      %v481 = vpop.f32.mrf.mxu0
      %v482 = vadd.f32 0.0, %v481
      %v483 = vpop.f32.mrf.mxu0
      %v484 = vadd.f32 0.0, %v483
      %485 = vmatmul.bf16.gmra.mxu0 %v373
      %v486 = vpop.f32.mrf.mxu0
      %v487 = vadd.f32 0.0, %v486
      %v488 = vpop.f32.mrf.mxu0
      %v489 = vadd.f32 0.0, %v488
      %490 = vmatmul.bf16.gmra.mxu0 %v374
      %v491 = vpop.f32.mrf.mxu0
      %v492 = vadd.f32 0.0, %v491
      %v493 = vpop.f32.mrf.mxu0
      %v494 = vadd.f32 0.0, %v493
      %495 = vmatmul.bf16.gmra.mxu0 %v375
      %v496 = vpop.f32.mrf.mxu0
      %v497 = vadd.f32 0.0, %v496
      %v498 = vpop.f32.mrf.mxu0
      %v499 = vadd.f32 0.0, %v498
      %500 = vmatmul.bf16.gmra.mxu0 %v376
      %v501 = vpop.f32.mrf.mxu0
      %v502 = vadd.f32 0.0, %v501
      %v503 = vpop.f32.mrf.mxu0
      %v504 = vadd.f32 0.0, %v503
      %505 = vmatmul.bf16.gmra.mxu0 %v377
      %v506 = vpop.f32.mrf.mxu0
      %v507 = vadd.f32 0.0, %v506
      %v508 = vpop.f32.mrf.mxu0
      %v509 = vadd.f32 0.0, %v508
      %510 = vmatmul.bf16.gmra.mxu0 %v378
      %v511 = vpop.f32.mrf.mxu0
      %v512 = vadd.f32 0.0, %v511
      %v513 = vpop.f32.mrf.mxu0
      %v514 = vadd.f32 0.0, %v513
      %515 = vmatmul.bf16.gmra.mxu0 %v379
      %v516 = vpop.f32.mrf.mxu0
      %v517 = vadd.f32 0.0, %v516
      %v518 = vpop.f32.mrf.mxu0
      %v519 = vadd.f32 0.0, %v518
      %520 = vmatmul.bf16.gmra.mxu0 %v380
      %v521 = vpop.f32.mrf.mxu0
      %v522 = vadd.f32 0.0, %v521
      %v523 = vpop.f32.mrf.mxu0
      %v524 = vadd.f32 0.0, %v523
      %525 = vmatmul.bf16.gmra.mxu0 %v381
      %v526 = vpop.f32.mrf.mxu0
      %v527 = vadd.f32 0.0, %v526
      %v528 = vpop.f32.mrf.mxu0
      %v529 = vadd.f32 0.0, %v528
      %530 = vmatmul.bf16.gmra.mxu0 %v382
      %v531 = vpop.f32.mrf.mxu0
      %v532 = vadd.f32 0.0, %v531
      %v533 = vpop.f32.mrf.mxu0
      %v534 = vadd.f32 0.0, %v533
      %535 = vdwg.mxu0
      %v536 = vld [vmem:[%s3] sm:$0xf]
      %v537 = vld [vmem:[%s3 + $0x4] sm:$0xf]
      %v538 = vld [vmem:[%s3 + $0x8] sm:$0xf]
      %v539 = vld [vmem:[%s3 + $0xc] sm:$0xf]
      %v540 = vld [vmem:[%s3 + $0x10] sm:$0xf]
      %v541 = vld [vmem:[%s3 + $0x14] sm:$0xf]
      %v542 = vld [vmem:[%s3 + $0x18] sm:$0xf]
      %v543 = vld [vmem:[%s3 + $0x1c] sm:$0xf]
      %v544 = vld [vmem:[%s3 + $0x20] sm:$0xf]
      %v545 = vld [vmem:[%s3 + $0x24] sm:$0xf]
      %v546 = vld [vmem:[%s3 + $0x28] sm:$0xf]
      %v547 = vld [vmem:[%s3 + $0x2c] sm:$0xf]
      %v548 = vld [vmem:[%s3 + $0x30] sm:$0xf]
      %v549 = vld [vmem:[%s3 + $0x34] sm:$0xf]
      %v550 = vld [vmem:[%s3 + $0x38] sm:$0xf]
      %v551 = vld [vmem:[%s3 + $0x3c] sm:$0xf]
      %v584 = vunpack.c.l.b16 %v223
      %v585 = vunpack.c.l.b16 %v224
      %v586 = vunpack.c.l.b16 %v225
      %v587 = vunpack.c.l.b16 %v226
      %v588 = vunpack.c.l.b16 %v227
      %v589 = vunpack.c.l.b16 %v228
      %v590 = vunpack.c.l.b16 %v229
      %v591 = vunpack.c.l.b16 %v230
      %v592 = vunpack.c.l.b16 %v231
      %v593 = vunpack.c.l.b16 %v232
      %v594 = vunpack.c.l.b16 %v233
      %v595 = vunpack.c.l.b16 %v234
      %v596 = vunpack.c.l.b16 %v235
      %v597 = vunpack.c.l.b16 %v236
      %v598 = vunpack.c.l.b16 %v237
      %v599 = vunpack.c.l.b16 %v238
      %v600 = vunpack.c.l.b16 %v239
      %v601 = vunpack.c.l.b16 %v240
      %v602 = vunpack.c.l.b16 %v241
      %v603 = vunpack.c.l.b16 %v242
      %v604 = vunpack.c.l.b16 %v243
      %v605 = vunpack.c.l.b16 %v244
      %v606 = vunpack.c.l.b16 %v245
      %v607 = vunpack.c.l.b16 %v246
      %v608 = vunpack.c.l.b16 %v247
      %v609 = vunpack.c.l.b16 %v248
      %v610 = vunpack.c.l.b16 %v249
      %v611 = vunpack.c.l.b16 %v250
      %v612 = vunpack.c.l.b16 %v251
      %v613 = vunpack.c.l.b16 %v252
      %v614 = vunpack.c.l.b16 %v253
      %v615 = vunpack.c.l.b16 %v254
      %v616 = vpack.c.b16 %v585, %v584
      %v617 = vpack.c.b16 %v587, %v586
      %v618 = vpack.c.b16 %v589, %v588
      %v619 = vpack.c.b16 %v591, %v590
      %v620 = vpack.c.b16 %v593, %v592
      %v621 = vpack.c.b16 %v595, %v594
      %v622 = vpack.c.b16 %v597, %v596
      %v623 = vpack.c.b16 %v599, %v598
      %v624 = vpack.c.b16 %v601, %v600
      %v625 = vpack.c.b16 %v603, %v602
      %v626 = vpack.c.b16 %v605, %v604
      %v627 = vpack.c.b16 %v607, %v606
      %v628 = vpack.c.b16 %v609, %v608
      %v629 = vpack.c.b16 %v611, %v610
      %v630 = vpack.c.b16 %v613, %v612
      %v631 = vpack.c.b16 %v615, %v614
      %v664 = vunpack.c.l.b16 %v536
      %v665 = vunpack.c.l.b16 %v537
      %v666 = vunpack.c.l.b16 %v538
      %v667 = vunpack.c.l.b16 %v539
      %v668 = vunpack.c.l.b16 %v540
      %v669 = vunpack.c.l.b16 %v541
      %v670 = vunpack.c.l.b16 %v542
      %v671 = vunpack.c.l.b16 %v543
      %v672 = vunpack.c.l.b16 %v544
      %v673 = vunpack.c.l.b16 %v545
      %v674 = vunpack.c.l.b16 %v546
      %v675 = vunpack.c.l.b16 %v547
      %v676 = vunpack.c.l.b16 %v548
      %v677 = vunpack.c.l.b16 %v549
      %v678 = vunpack.c.l.b16 %v550
      %v679 = vunpack.c.l.b16 %v551
      %v680 = vpack.c.b16 %v665, %v664
      %v681 = vpack.c.b16 %v667, %v666
      %v682 = vpack.c.b16 %v669, %v668
      %v683 = vpack.c.b16 %v671, %v670
      %v684 = vpack.c.b16 %v673, %v672
      %v685 = vpack.c.b16 %v675, %v674
      %v686 = vpack.c.b16 %v677, %v676
      %v687 = vpack.c.b16 %v679, %v678
      %696 = vmatpush.bf16.msra.mxu0 %v687
      %697 = vmatpush.bf16.msra.mxu0 %v686
      %698 = vmatpush.bf16.msra.mxu0 %v685
      %699 = vmatpush.bf16.msra.mxu0 %v684
      %700 = vmatpush.bf16.msra.mxu0 %v683
      %701 = vmatpush.bf16.msra.mxu0 %v682
      %702 = vmatpush.bf16.msra.mxu0 %v681
      %703 = vmatpush.bf16.msra.mxu0 %v680
      %704 = vmatmul.bf16.gmra.mxu0 %v616
      %v705 = vpop.f32.mrf.mxu0
      %v706 = vadd.f32 0.0, %v705
      %v707 = vpop.f32.mrf.mxu0
      %v708 = vadd.f32 0.0, %v707
      %709 = vmatmul.bf16.gmra.mxu0 %v617
      %v710 = vpop.f32.mrf.mxu0
      %v711 = vadd.f32 0.0, %v710
      %v712 = vpop.f32.mrf.mxu0
      %v713 = vadd.f32 0.0, %v712
      %714 = vmatmul.bf16.gmra.mxu0 %v618
      %v715 = vpop.f32.mrf.mxu0
      %v716 = vadd.f32 0.0, %v715
      %v717 = vpop.f32.mrf.mxu0
      %v718 = vadd.f32 0.0, %v717
      %719 = vmatmul.bf16.gmra.mxu0 %v619
      %v720 = vpop.f32.mrf.mxu0
      %v721 = vadd.f32 0.0, %v720
      %v722 = vpop.f32.mrf.mxu0
      %v723 = vadd.f32 0.0, %v722
      %724 = vmatmul.bf16.gmra.mxu0 %v620
      %v725 = vpop.f32.mrf.mxu0
      %v726 = vadd.f32 0.0, %v725
      %v727 = vpop.f32.mrf.mxu0
      %v728 = vadd.f32 0.0, %v727
      %729 = vmatmul.bf16.gmra.mxu0 %v621
      %v730 = vpop.f32.mrf.mxu0
      %v731 = vadd.f32 0.0, %v730
      %v732 = vpop.f32.mrf.mxu0
      %v733 = vadd.f32 0.0, %v732
      %734 = vmatmul.bf16.gmra.mxu0 %v622
      %v735 = vpop.f32.mrf.mxu0
      %v736 = vadd.f32 0.0, %v735
      %v737 = vpop.f32.mrf.mxu0
      %v738 = vadd.f32 0.0, %v737
      %739 = vmatmul.bf16.gmra.mxu0 %v623
      %v740 = vpop.f32.mrf.mxu0
      %v741 = vadd.f32 0.0, %v740
      %v742 = vpop.f32.mrf.mxu0
      %v743 = vadd.f32 0.0, %v742
      %744 = vmatmul.bf16.gmra.mxu0 %v624
      %v745 = vpop.f32.mrf.mxu0
      %v746 = vadd.f32 0.0, %v745
      %v747 = vpop.f32.mrf.mxu0
      %v748 = vadd.f32 0.0, %v747
      %749 = vmatmul.bf16.gmra.mxu0 %v625
      %v750 = vpop.f32.mrf.mxu0
      %v751 = vadd.f32 0.0, %v750
      %v752 = vpop.f32.mrf.mxu0
      %v753 = vadd.f32 0.0, %v752
      %754 = vmatmul.bf16.gmra.mxu0 %v626
      %v755 = vpop.f32.mrf.mxu0
      %v756 = vadd.f32 0.0, %v755
      %v757 = vpop.f32.mrf.mxu0
      %v758 = vadd.f32 0.0, %v757
      %759 = vmatmul.bf16.gmra.mxu0 %v627
      %v760 = vpop.f32.mrf.mxu0
      %v761 = vadd.f32 0.0, %v760
      %v762 = vpop.f32.mrf.mxu0
      %v763 = vadd.f32 0.0, %v762
      %764 = vmatmul.bf16.gmra.mxu0 %v628
      %v765 = vpop.f32.mrf.mxu0
      %v766 = vadd.f32 0.0, %v765
      %v767 = vpop.f32.mrf.mxu0
      %v768 = vadd.f32 0.0, %v767
      %769 = vmatmul.bf16.gmra.mxu0 %v629
      %v770 = vpop.f32.mrf.mxu0
      %v771 = vadd.f32 0.0, %v770
      %v772 = vpop.f32.mrf.mxu0
      %v773 = vadd.f32 0.0, %v772
      %774 = vmatmul.bf16.gmra.mxu0 %v630
      %v775 = vpop.f32.mrf.mxu0
      %v776 = vadd.f32 0.0, %v775
      %v777 = vpop.f32.mrf.mxu0
      %v778 = vadd.f32 0.0, %v777
      %779 = vmatmul.bf16.gmra.mxu0 %v631
      %v780 = vpop.f32.mrf.mxu0
      %v781 = vadd.f32 0.0, %v780
      %v782 = vpop.f32.mrf.mxu0
      %v783 = vadd.f32 0.0, %v782
      %784 = vdwg.mxu0
      %786 = vset.pattern.permute.xlu0 0
      %787 = vperm.xlu0 %786, %v457
      %v788 = vpop.permute.xlu0 %787
      %791 = vset.pattern.permute.xlu0 0
      %792 = vperm.xlu0 %791, %v459
      %v793 = vpop.permute.xlu0 %792
      %796 = vset.pattern.permute.xlu0 0
      %797 = vperm.xlu0 %796, %v462
      %v798 = vpop.permute.xlu0 %797
      %801 = vset.pattern.permute.xlu0 0
      %802 = vperm.xlu0 %801, %v464
      %v803 = vpop.permute.xlu0 %802
      %806 = vset.pattern.permute.xlu0 0
      %807 = vperm.xlu0 %806, %v467
      %v808 = vpop.permute.xlu0 %807
      %811 = vset.pattern.permute.xlu0 0
      %812 = vperm.xlu0 %811, %v469
      %v813 = vpop.permute.xlu0 %812
      %816 = vset.pattern.permute.xlu0 0
      %817 = vperm.xlu0 %816, %v472
      %v818 = vpop.permute.xlu0 %817
      %821 = vset.pattern.permute.xlu0 0
      %822 = vperm.xlu0 %821, %v474
      %v823 = vpop.permute.xlu0 %822
      %826 = vset.pattern.permute.xlu0 0
      %827 = vperm.xlu0 %826, %v477
      %v828 = vpop.permute.xlu0 %827
      %831 = vset.pattern.permute.xlu0 0
      %832 = vperm.xlu0 %831, %v479
      %v833 = vpop.permute.xlu0 %832
      %836 = vset.pattern.permute.xlu0 0
      %837 = vperm.xlu0 %836, %v482
      %v838 = vpop.permute.xlu0 %837
      %841 = vset.pattern.permute.xlu0 0
      %842 = vperm.xlu0 %841, %v484
      %v843 = vpop.permute.xlu0 %842
      %846 = vset.pattern.permute.xlu0 0
      %847 = vperm.xlu0 %846, %v487
      %v848 = vpop.permute.xlu0 %847
      %851 = vset.pattern.permute.xlu0 0
      %852 = vperm.xlu0 %851, %v489
      %v853 = vpop.permute.xlu0 %852
      %856 = vset.pattern.permute.xlu0 0
      %857 = vperm.xlu0 %856, %v492
      %v858 = vpop.permute.xlu0 %857
      %861 = vset.pattern.permute.xlu0 0
      %862 = vperm.xlu0 %861, %v494
      %v863 = vpop.permute.xlu0 %862
      %866 = vset.pattern.permute.xlu0 0
      %867 = vperm.xlu0 %866, %v497
      %v868 = vpop.permute.xlu0 %867
      %871 = vset.pattern.permute.xlu0 0
      %872 = vperm.xlu0 %871, %v499
      %v873 = vpop.permute.xlu0 %872
      %876 = vset.pattern.permute.xlu0 0
      %877 = vperm.xlu0 %876, %v502
      %v878 = vpop.permute.xlu0 %877
      %881 = vset.pattern.permute.xlu0 0
      %882 = vperm.xlu0 %881, %v504
      %v883 = vpop.permute.xlu0 %882
      %886 = vset.pattern.permute.xlu0 0
      %887 = vperm.xlu0 %886, %v507
      %v888 = vpop.permute.xlu0 %887
      %891 = vset.pattern.permute.xlu0 0
      %892 = vperm.xlu0 %891, %v509
      %v893 = vpop.permute.xlu0 %892
      %896 = vset.pattern.permute.xlu0 0
      %897 = vperm.xlu0 %896, %v512
      %v898 = vpop.permute.xlu0 %897
      %901 = vset.pattern.permute.xlu0 0
      %902 = vperm.xlu0 %901, %v514
      %v903 = vpop.permute.xlu0 %902
      %906 = vset.pattern.permute.xlu0 0
      %907 = vperm.xlu0 %906, %v517
      %v908 = vpop.permute.xlu0 %907
      %911 = vset.pattern.permute.xlu0 0
      %912 = vperm.xlu0 %911, %v519
      %v913 = vpop.permute.xlu0 %912
      %916 = vset.pattern.permute.xlu0 0
      %917 = vperm.xlu0 %916, %v522
      %v918 = vpop.permute.xlu0 %917
      %921 = vset.pattern.permute.xlu0 0
      %922 = vperm.xlu0 %921, %v524
      %v923 = vpop.permute.xlu0 %922
      %926 = vset.pattern.permute.xlu0 0
      %927 = vperm.xlu0 %926, %v527
      %v928 = vpop.permute.xlu0 %927
      %931 = vset.pattern.permute.xlu0 0
      %932 = vperm.xlu0 %931, %v529
      %v933 = vpop.permute.xlu0 %932
      %936 = vset.pattern.permute.xlu0 0
      %937 = vperm.xlu0 %936, %v532
      %v938 = vpop.permute.xlu0 %937
      %941 = vset.pattern.permute.xlu0 0
      %942 = vperm.xlu0 %941, %v534
      %v943 = vpop.permute.xlu0 %942
      %v945 = vmul.f32 %v788, %v706
      %v946 = vmul.f32 %v793, %v708
      %v947 = vmul.f32 %v798, %v711
      %v948 = vmul.f32 %v803, %v713
      %v949 = vmul.f32 %v808, %v716
      %v950 = vmul.f32 %v813, %v718
      %v951 = vmul.f32 %v818, %v721
      %v952 = vmul.f32 %v823, %v723
      %v953 = vmul.f32 %v828, %v726
      %v954 = vmul.f32 %v833, %v728
      %v955 = vmul.f32 %v838, %v731
      %v956 = vmul.f32 %v843, %v733
      %v957 = vmul.f32 %v848, %v736
      %v958 = vmul.f32 %v853, %v738
      %v959 = vmul.f32 %v858, %v741
      %v960 = vmul.f32 %v863, %v743
      %v961 = vmul.f32 %v868, %v746
      %v962 = vmul.f32 %v873, %v748
      %v963 = vmul.f32 %v878, %v751
      %v964 = vmul.f32 %v883, %v753
      %v965 = vmul.f32 %v888, %v756
      %v966 = vmul.f32 %v893, %v758
      %v967 = vmul.f32 %v898, %v761
      %v968 = vmul.f32 %v903, %v763
      %v969 = vmul.f32 %v908, %v766
      %v970 = vmul.f32 %v913, %v768
      %v971 = vmul.f32 %v918, %v771
      %v972 = vmul.f32 %v923, %v773
      %v973 = vmul.f32 %v928, %v776
      %v974 = vmul.f32 %v933, %v778
      %v975 = vmul.f32 %v938, %v781
      %v976 = vmul.f32 %v943, %v783
      %s977 = scalar_lea.vmem %s3, 64
      %v978 = vld [vmem:[%s977] sm:$0xf]
      %v979 = vld [vmem:[%s977 + $0x4] sm:$0xf]
      %v980 = vld [vmem:[%s977 + $0x8] sm:$0xf]
      %v981 = vld [vmem:[%s977 + $0xc] sm:$0xf]
      %v982 = vld [vmem:[%s977 + $0x10] sm:$0xf]
      %v983 = vld [vmem:[%s977 + $0x14] sm:$0xf]
      %v984 = vld [vmem:[%s977 + $0x18] sm:$0xf]
      %v985 = vld [vmem:[%s977 + $0x1c] sm:$0xf]
      %v986 = vld [vmem:[%s977 + $0x20] sm:$0xf]
      %v987 = vld [vmem:[%s977 + $0x24] sm:$0xf]
      %v988 = vld [vmem:[%s977 + $0x28] sm:$0xf]
      %v989 = vld [vmem:[%s977 + $0x2c] sm:$0xf]
      %v990 = vld [vmem:[%s977 + $0x30] sm:$0xf]
      %v991 = vld [vmem:[%s977 + $0x34] sm:$0xf]
      %v992 = vld [vmem:[%s977 + $0x38] sm:$0xf]
      %v993 = vld [vmem:[%s977 + $0x3c] sm:$0xf]
      %v1010 = vunpack.c.l.b16 %v978
      %v1011 = vunpack.c.l.b16 %v979
      %v1012 = vunpack.c.l.b16 %v980
      %v1013 = vunpack.c.l.b16 %v981
      %v1014 = vunpack.c.l.b16 %v982
      %v1015 = vunpack.c.l.b16 %v983
      %v1016 = vunpack.c.l.b16 %v984
      %v1017 = vunpack.c.l.b16 %v985
      %v1018 = vunpack.c.l.b16 %v986
      %v1019 = vunpack.c.l.b16 %v987
      %v1020 = vunpack.c.l.b16 %v988
      %v1021 = vunpack.c.l.b16 %v989
      %v1022 = vunpack.c.l.b16 %v990
      %v1023 = vunpack.c.l.b16 %v991
      %v1024 = vunpack.c.l.b16 %v992
      %v1025 = vunpack.c.l.b16 %v993
      %v1026 = vpack.c.b16 %v1011, %v1010
      %v1027 = vpack.c.b16 %v1013, %v1012
      %v1028 = vpack.c.b16 %v1015, %v1014
      %v1029 = vpack.c.b16 %v1017, %v1016
      %v1030 = vpack.c.b16 %v1019, %v1018
      %v1031 = vpack.c.b16 %v1021, %v1020
      %v1032 = vpack.c.b16 %v1023, %v1022
      %v1033 = vpack.c.b16 %v1025, %v1024
      %1042 = vmatpush.bf16.msra.mxu0 %v1033
      %1043 = vmatpush.bf16.msra.mxu0 %v1032
      %1044 = vmatpush.bf16.msra.mxu0 %v1031
      %1045 = vmatpush.bf16.msra.mxu0 %v1030
      %1046 = vmatpush.bf16.msra.mxu0 %v1029
      %1047 = vmatpush.bf16.msra.mxu0 %v1028
      %1048 = vmatpush.bf16.msra.mxu0 %v1027
      %1049 = vmatpush.bf16.msra.mxu0 %v1026
      %1050 = vmatmul.bf16.gmra.mxu0 %v616
      %v1051 = vpop.f32.mrf.mxu0
      %v1052 = vadd.f32 0.0, %v1051
      %v1053 = vpop.f32.mrf.mxu0
      %v1054 = vadd.f32 0.0, %v1053
      %1055 = vmatmul.bf16.gmra.mxu0 %v617
      %v1056 = vpop.f32.mrf.mxu0
      %v1057 = vadd.f32 0.0, %v1056
      %v1058 = vpop.f32.mrf.mxu0
      %v1059 = vadd.f32 0.0, %v1058
      %1060 = vmatmul.bf16.gmra.mxu0 %v618
      %v1061 = vpop.f32.mrf.mxu0
      %v1062 = vadd.f32 0.0, %v1061
      %v1063 = vpop.f32.mrf.mxu0
      %v1064 = vadd.f32 0.0, %v1063
      %1065 = vmatmul.bf16.gmra.mxu0 %v619
      %v1066 = vpop.f32.mrf.mxu0
      %v1067 = vadd.f32 0.0, %v1066
      %v1068 = vpop.f32.mrf.mxu0
      %v1069 = vadd.f32 0.0, %v1068
      %1070 = vmatmul.bf16.gmra.mxu0 %v620
      %v1071 = vpop.f32.mrf.mxu0
      %v1072 = vadd.f32 0.0, %v1071
      %v1073 = vpop.f32.mrf.mxu0
      %v1074 = vadd.f32 0.0, %v1073
      %1075 = vmatmul.bf16.gmra.mxu0 %v621
      %v1076 = vpop.f32.mrf.mxu0
      %v1077 = vadd.f32 0.0, %v1076
      %v1078 = vpop.f32.mrf.mxu0
      %v1079 = vadd.f32 0.0, %v1078
      %1080 = vmatmul.bf16.gmra.mxu0 %v622
      %v1081 = vpop.f32.mrf.mxu0
      %v1082 = vadd.f32 0.0, %v1081
      %v1083 = vpop.f32.mrf.mxu0
      %v1084 = vadd.f32 0.0, %v1083
      %1085 = vmatmul.bf16.gmra.mxu0 %v623
      %v1086 = vpop.f32.mrf.mxu0
      %v1087 = vadd.f32 0.0, %v1086
      %v1088 = vpop.f32.mrf.mxu0
      %v1089 = vadd.f32 0.0, %v1088
      %1090 = vmatmul.bf16.gmra.mxu0 %v624
      %v1091 = vpop.f32.mrf.mxu0
      %v1092 = vadd.f32 0.0, %v1091
      %v1093 = vpop.f32.mrf.mxu0
      %v1094 = vadd.f32 0.0, %v1093
      %1095 = vmatmul.bf16.gmra.mxu0 %v625
      %v1096 = vpop.f32.mrf.mxu0
      %v1097 = vadd.f32 0.0, %v1096
      %v1098 = vpop.f32.mrf.mxu0
      %v1099 = vadd.f32 0.0, %v1098
      %1100 = vmatmul.bf16.gmra.mxu0 %v626
      %v1101 = vpop.f32.mrf.mxu0
      %v1102 = vadd.f32 0.0, %v1101
      %v1103 = vpop.f32.mrf.mxu0
      %v1104 = vadd.f32 0.0, %v1103
      %1105 = vmatmul.bf16.gmra.mxu0 %v627
      %v1106 = vpop.f32.mrf.mxu0
      %v1107 = vadd.f32 0.0, %v1106
      %v1108 = vpop.f32.mrf.mxu0
      %v1109 = vadd.f32 0.0, %v1108
      %1110 = vmatmul.bf16.gmra.mxu0 %v628
      %v1111 = vpop.f32.mrf.mxu0
      %v1112 = vadd.f32 0.0, %v1111
      %v1113 = vpop.f32.mrf.mxu0
      %v1114 = vadd.f32 0.0, %v1113
      %1115 = vmatmul.bf16.gmra.mxu0 %v629
      %v1116 = vpop.f32.mrf.mxu0
      %v1117 = vadd.f32 0.0, %v1116
      %v1118 = vpop.f32.mrf.mxu0
      %v1119 = vadd.f32 0.0, %v1118
      %1120 = vmatmul.bf16.gmra.mxu0 %v630
      %v1121 = vpop.f32.mrf.mxu0
      %v1122 = vadd.f32 0.0, %v1121
      %v1123 = vpop.f32.mrf.mxu0
      %v1124 = vadd.f32 0.0, %v1123
      %1125 = vmatmul.bf16.gmra.mxu0 %v631
      %v1126 = vpop.f32.mrf.mxu0
      %v1127 = vadd.f32 0.0, %v1126
      %v1128 = vpop.f32.mrf.mxu0
      %v1129 = vadd.f32 0.0, %v1128
      %1130 = vdwg.mxu0
      %1131 = vset.pattern.permute.xlu0 1
      %1132 = vperm.xlu0 %1131, %v457
      %v1133 = vpop.permute.xlu0 %1132
      %1135 = vset.pattern.permute.xlu0 1
      %1136 = vperm.xlu0 %1135, %v459
      %v1137 = vpop.permute.xlu0 %1136
      %1139 = vset.pattern.permute.xlu0 1
      %1140 = vperm.xlu0 %1139, %v462
      %v1141 = vpop.permute.xlu0 %1140
      %1143 = vset.pattern.permute.xlu0 1
      %1144 = vperm.xlu0 %1143, %v464
      %v1145 = vpop.permute.xlu0 %1144
      %1147 = vset.pattern.permute.xlu0 1
      %1148 = vperm.xlu0 %1147, %v467
      %v1149 = vpop.permute.xlu0 %1148
      %1151 = vset.pattern.permute.xlu0 1
      %1152 = vperm.xlu0 %1151, %v469
      %v1153 = vpop.permute.xlu0 %1152
      %1155 = vset.pattern.permute.xlu0 1
      %1156 = vperm.xlu0 %1155, %v472
      %v1157 = vpop.permute.xlu0 %1156
      %1159 = vset.pattern.permute.xlu0 1
      %1160 = vperm.xlu0 %1159, %v474
      %v1161 = vpop.permute.xlu0 %1160
      %1163 = vset.pattern.permute.xlu0 1
      %1164 = vperm.xlu0 %1163, %v477
      %v1165 = vpop.permute.xlu0 %1164
      %1167 = vset.pattern.permute.xlu0 1
      %1168 = vperm.xlu0 %1167, %v479
      %v1169 = vpop.permute.xlu0 %1168
      %1171 = vset.pattern.permute.xlu0 1
      %1172 = vperm.xlu0 %1171, %v482
      %v1173 = vpop.permute.xlu0 %1172
      %1175 = vset.pattern.permute.xlu0 1
      %1176 = vperm.xlu0 %1175, %v484
      %v1177 = vpop.permute.xlu0 %1176
      %1179 = vset.pattern.permute.xlu0 1
      %1180 = vperm.xlu0 %1179, %v487
      %v1181 = vpop.permute.xlu0 %1180
      %1183 = vset.pattern.permute.xlu0 1
      %1184 = vperm.xlu0 %1183, %v489
      %v1185 = vpop.permute.xlu0 %1184
      %1187 = vset.pattern.permute.xlu0 1
      %1188 = vperm.xlu0 %1187, %v492
      %v1189 = vpop.permute.xlu0 %1188
      %1191 = vset.pattern.permute.xlu0 1
      %1192 = vperm.xlu0 %1191, %v494
      %v1193 = vpop.permute.xlu0 %1192
      %1195 = vset.pattern.permute.xlu0 1
      %1196 = vperm.xlu0 %1195, %v497
      %v1197 = vpop.permute.xlu0 %1196
      %1199 = vset.pattern.permute.xlu0 1
      %1200 = vperm.xlu0 %1199, %v499
      %v1201 = vpop.permute.xlu0 %1200
      %1203 = vset.pattern.permute.xlu0 1
      %1204 = vperm.xlu0 %1203, %v502
      %v1205 = vpop.permute.xlu0 %1204
      %1207 = vset.pattern.permute.xlu0 1
      %1208 = vperm.xlu0 %1207, %v504
      %v1209 = vpop.permute.xlu0 %1208
      %1211 = vset.pattern.permute.xlu0 1
      %1212 = vperm.xlu0 %1211, %v507
      %v1213 = vpop.permute.xlu0 %1212
      %1215 = vset.pattern.permute.xlu0 1
      %1216 = vperm.xlu0 %1215, %v509
      %v1217 = vpop.permute.xlu0 %1216
      %1219 = vset.pattern.permute.xlu0 1
      %1220 = vperm.xlu0 %1219, %v512
      %v1221 = vpop.permute.xlu0 %1220
      %1223 = vset.pattern.permute.xlu0 1
      %1224 = vperm.xlu0 %1223, %v514
      %v1225 = vpop.permute.xlu0 %1224
      %1227 = vset.pattern.permute.xlu0 1
      %1228 = vperm.xlu0 %1227, %v517
      %v1229 = vpop.permute.xlu0 %1228
      %1231 = vset.pattern.permute.xlu0 1
      %1232 = vperm.xlu0 %1231, %v519
      %v1233 = vpop.permute.xlu0 %1232
      %1235 = vset.pattern.permute.xlu0 1
      %1236 = vperm.xlu0 %1235, %v522
      %v1237 = vpop.permute.xlu0 %1236
      %1239 = vset.pattern.permute.xlu0 1
      %1240 = vperm.xlu0 %1239, %v524
      %v1241 = vpop.permute.xlu0 %1240
      %1243 = vset.pattern.permute.xlu0 1
      %1244 = vperm.xlu0 %1243, %v527
      %v1245 = vpop.permute.xlu0 %1244
      %1247 = vset.pattern.permute.xlu0 1
      %1248 = vperm.xlu0 %1247, %v529
      %v1249 = vpop.permute.xlu0 %1248
      %1251 = vset.pattern.permute.xlu0 1
      %1252 = vperm.xlu0 %1251, %v532
      %v1253 = vpop.permute.xlu0 %1252
      %1255 = vset.pattern.permute.xlu0 1
      %1256 = vperm.xlu0 %1255, %v534
      %v1257 = vpop.permute.xlu0 %1256
      %v1259 = vmul.f32 %v1133, %v1052
      %v1260 = vmul.f32 %v1137, %v1054
      %v1261 = vmul.f32 %v1141, %v1057
      %v1262 = vmul.f32 %v1145, %v1059
      %v1263 = vmul.f32 %v1149, %v1062
      %v1264 = vmul.f32 %v1153, %v1064
      %v1265 = vmul.f32 %v1157, %v1067
      %v1266 = vmul.f32 %v1161, %v1069
      %v1267 = vmul.f32 %v1165, %v1072
      %v1268 = vmul.f32 %v1169, %v1074
      %v1269 = vmul.f32 %v1173, %v1077
      %v1270 = vmul.f32 %v1177, %v1079
      %v1271 = vmul.f32 %v1181, %v1082
      %v1272 = vmul.f32 %v1185, %v1084
      %v1273 = vmul.f32 %v1189, %v1087
      %v1274 = vmul.f32 %v1193, %v1089
      %v1275 = vmul.f32 %v1197, %v1092
      %v1276 = vmul.f32 %v1201, %v1094
      %v1277 = vmul.f32 %v1205, %v1097
      %v1278 = vmul.f32 %v1209, %v1099
      %v1279 = vmul.f32 %v1213, %v1102
      %v1280 = vmul.f32 %v1217, %v1104
      %v1281 = vmul.f32 %v1221, %v1107
      %v1282 = vmul.f32 %v1225, %v1109
      %v1283 = vmul.f32 %v1229, %v1112
      %v1284 = vmul.f32 %v1233, %v1114
      %v1285 = vmul.f32 %v1237, %v1117
      %v1286 = vmul.f32 %v1241, %v1119
      %v1287 = vmul.f32 %v1245, %v1122
      %v1288 = vmul.f32 %v1249, %v1124
      %v1289 = vmul.f32 %v1253, %v1127
      %v1290 = vmul.f32 %v1257, %v1129
      %v1291 = vadd.f32 %v945, %v1259
      %v1292 = vadd.f32 %v946, %v1260
      %v1293 = vadd.f32 %v947, %v1261
      %v1294 = vadd.f32 %v948, %v1262
      %v1295 = vadd.f32 %v949, %v1263
      %v1296 = vadd.f32 %v950, %v1264
      %v1297 = vadd.f32 %v951, %v1265
      %v1298 = vadd.f32 %v952, %v1266
      %v1299 = vadd.f32 %v953, %v1267
      %v1300 = vadd.f32 %v954, %v1268
      %v1301 = vadd.f32 %v955, %v1269
      %v1302 = vadd.f32 %v956, %v1270
      %v1303 = vadd.f32 %v957, %v1271
      %v1304 = vadd.f32 %v958, %v1272
      %v1305 = vadd.f32 %v959, %v1273
      %v1306 = vadd.f32 %v960, %v1274
      %v1307 = vadd.f32 %v961, %v1275
      %v1308 = vadd.f32 %v962, %v1276
      %v1309 = vadd.f32 %v963, %v1277
      %v1310 = vadd.f32 %v964, %v1278
      %v1311 = vadd.f32 %v965, %v1279
      %v1312 = vadd.f32 %v966, %v1280
      %v1313 = vadd.f32 %v967, %v1281
      %v1314 = vadd.f32 %v968, %v1282
      %v1315 = vadd.f32 %v969, %v1283
      %v1316 = vadd.f32 %v970, %v1284
      %v1317 = vadd.f32 %v971, %v1285
      %v1318 = vadd.f32 %v972, %v1286
      %v1319 = vadd.f32 %v973, %v1287
      %v1320 = vadd.f32 %v974, %v1288
      %v1321 = vadd.f32 %v975, %v1289
      %v1322 = vadd.f32 %v976, %v1290
      %s1323 = scalar_lea.vmem %s3, 128
      %v1324 = vld [vmem:[%s1323] sm:$0xf]
      %v1325 = vld [vmem:[%s1323 + $0x4] sm:$0xf]
      %v1326 = vld [vmem:[%s1323 + $0x8] sm:$0xf]
      %v1327 = vld [vmem:[%s1323 + $0xc] sm:$0xf]
      %v1328 = vld [vmem:[%s1323 + $0x10] sm:$0xf]
      %v1329 = vld [vmem:[%s1323 + $0x14] sm:$0xf]
      %v1330 = vld [vmem:[%s1323 + $0x18] sm:$0xf]
      %v1331 = vld [vmem:[%s1323 + $0x1c] sm:$0xf]
      %v1332 = vld [vmem:[%s1323 + $0x20] sm:$0xf]
      %v1333 = vld [vmem:[%s1323 + $0x24] sm:$0xf]
      %v1334 = vld [vmem:[%s1323 + $0x28] sm:$0xf]
      %v1335 = vld [vmem:[%s1323 + $0x2c] sm:$0xf]
      %v1336 = vld [vmem:[%s1323 + $0x30] sm:$0xf]
      %v1337 = vld [vmem:[%s1323 + $0x34] sm:$0xf]
      %v1338 = vld [vmem:[%s1323 + $0x38] sm:$0xf]
      %v1339 = vld [vmem:[%s1323 + $0x3c] sm:$0xf]
      %v1356 = vunpack.c.l.b16 %v1324
      %v1357 = vunpack.c.l.b16 %v1325
      %v1358 = vunpack.c.l.b16 %v1326
      %v1359 = vunpack.c.l.b16 %v1327
      %v1360 = vunpack.c.l.b16 %v1328
      %v1361 = vunpack.c.l.b16 %v1329
      %v1362 = vunpack.c.l.b16 %v1330
      %v1363 = vunpack.c.l.b16 %v1331
      %v1364 = vunpack.c.l.b16 %v1332
      %v1365 = vunpack.c.l.b16 %v1333
      %v1366 = vunpack.c.l.b16 %v1334
      %v1367 = vunpack.c.l.b16 %v1335
      %v1368 = vunpack.c.l.b16 %v1336
      %v1369 = vunpack.c.l.b16 %v1337
      %v1370 = vunpack.c.l.b16 %v1338
      %v1371 = vunpack.c.l.b16 %v1339
      %v1372 = vpack.c.b16 %v1357, %v1356
      %v1373 = vpack.c.b16 %v1359, %v1358
      %v1374 = vpack.c.b16 %v1361, %v1360
      %v1375 = vpack.c.b16 %v1363, %v1362
      %v1376 = vpack.c.b16 %v1365, %v1364
      %v1377 = vpack.c.b16 %v1367, %v1366
      %v1378 = vpack.c.b16 %v1369, %v1368
      %v1379 = vpack.c.b16 %v1371, %v1370
      %1388 = vmatpush.bf16.msra.mxu0 %v1379
      %1389 = vmatpush.bf16.msra.mxu0 %v1378
      %1390 = vmatpush.bf16.msra.mxu0 %v1377
      %1391 = vmatpush.bf16.msra.mxu0 %v1376
      %1392 = vmatpush.bf16.msra.mxu0 %v1375
      %1393 = vmatpush.bf16.msra.mxu0 %v1374
      %1394 = vmatpush.bf16.msra.mxu0 %v1373
      %1395 = vmatpush.bf16.msra.mxu0 %v1372
      %1396 = vmatmul.bf16.gmra.mxu0 %v616
      %v1397 = vpop.f32.mrf.mxu0
      %v1398 = vadd.f32 0.0, %v1397
      %v1399 = vpop.f32.mrf.mxu0
      %v1400 = vadd.f32 0.0, %v1399
      %1401 = vmatmul.bf16.gmra.mxu0 %v617
      %v1402 = vpop.f32.mrf.mxu0
      %v1403 = vadd.f32 0.0, %v1402
      %v1404 = vpop.f32.mrf.mxu0
      %v1405 = vadd.f32 0.0, %v1404
      %1406 = vmatmul.bf16.gmra.mxu0 %v618
      %v1407 = vpop.f32.mrf.mxu0
      %v1408 = vadd.f32 0.0, %v1407
      %v1409 = vpop.f32.mrf.mxu0
      %v1410 = vadd.f32 0.0, %v1409
      %1411 = vmatmul.bf16.gmra.mxu0 %v619
      %v1412 = vpop.f32.mrf.mxu0
      %v1413 = vadd.f32 0.0, %v1412
      %v1414 = vpop.f32.mrf.mxu0
      %v1415 = vadd.f32 0.0, %v1414
      %1416 = vmatmul.bf16.gmra.mxu0 %v620
      %v1417 = vpop.f32.mrf.mxu0
      %v1418 = vadd.f32 0.0, %v1417
      %v1419 = vpop.f32.mrf.mxu0
      %v1420 = vadd.f32 0.0, %v1419
      %1421 = vmatmul.bf16.gmra.mxu0 %v621
      %v1422 = vpop.f32.mrf.mxu0
      %v1423 = vadd.f32 0.0, %v1422
      %v1424 = vpop.f32.mrf.mxu0
      %v1425 = vadd.f32 0.0, %v1424
      %1426 = vmatmul.bf16.gmra.mxu0 %v622
      %v1427 = vpop.f32.mrf.mxu0
      %v1428 = vadd.f32 0.0, %v1427
      %v1429 = vpop.f32.mrf.mxu0
      %v1430 = vadd.f32 0.0, %v1429
      %1431 = vmatmul.bf16.gmra.mxu0 %v623
      %v1432 = vpop.f32.mrf.mxu0
      %v1433 = vadd.f32 0.0, %v1432
      %v1434 = vpop.f32.mrf.mxu0
      %v1435 = vadd.f32 0.0, %v1434
      %1436 = vmatmul.bf16.gmra.mxu0 %v624
      %v1437 = vpop.f32.mrf.mxu0
      %v1438 = vadd.f32 0.0, %v1437
      %v1439 = vpop.f32.mrf.mxu0
      %v1440 = vadd.f32 0.0, %v1439
      %1441 = vmatmul.bf16.gmra.mxu0 %v625
      %v1442 = vpop.f32.mrf.mxu0
      %v1443 = vadd.f32 0.0, %v1442
      %v1444 = vpop.f32.mrf.mxu0
      %v1445 = vadd.f32 0.0, %v1444
      %1446 = vmatmul.bf16.gmra.mxu0 %v626
      %v1447 = vpop.f32.mrf.mxu0
      %v1448 = vadd.f32 0.0, %v1447
      %v1449 = vpop.f32.mrf.mxu0
      %v1450 = vadd.f32 0.0, %v1449
      %1451 = vmatmul.bf16.gmra.mxu0 %v627
      %v1452 = vpop.f32.mrf.mxu0
      %v1453 = vadd.f32 0.0, %v1452
      %v1454 = vpop.f32.mrf.mxu0
      %v1455 = vadd.f32 0.0, %v1454
      %1456 = vmatmul.bf16.gmra.mxu0 %v628
      %v1457 = vpop.f32.mrf.mxu0
      %v1458 = vadd.f32 0.0, %v1457
      %v1459 = vpop.f32.mrf.mxu0
      %v1460 = vadd.f32 0.0, %v1459
      %1461 = vmatmul.bf16.gmra.mxu0 %v629
      %v1462 = vpop.f32.mrf.mxu0
      %v1463 = vadd.f32 0.0, %v1462
      %v1464 = vpop.f32.mrf.mxu0
      %v1465 = vadd.f32 0.0, %v1464
      %1466 = vmatmul.bf16.gmra.mxu0 %v630
      %v1467 = vpop.f32.mrf.mxu0
      %v1468 = vadd.f32 0.0, %v1467
      %v1469 = vpop.f32.mrf.mxu0
      %v1470 = vadd.f32 0.0, %v1469
      %1471 = vmatmul.bf16.gmra.mxu0 %v631
      %v1472 = vpop.f32.mrf.mxu0
      %v1473 = vadd.f32 0.0, %v1472
      %v1474 = vpop.f32.mrf.mxu0
      %v1475 = vadd.f32 0.0, %v1474
      %1476 = vdwg.mxu0
      %1477 = vset.pattern.permute.xlu0 2
      %1478 = vperm.xlu0 %1477, %v457
      %v1479 = vpop.permute.xlu0 %1478
      %1481 = vset.pattern.permute.xlu0 2
      %1482 = vperm.xlu0 %1481, %v459
      %v1483 = vpop.permute.xlu0 %1482
      %1485 = vset.pattern.permute.xlu0 2
      %1486 = vperm.xlu0 %1485, %v462
      %v1487 = vpop.permute.xlu0 %1486
      %1489 = vset.pattern.permute.xlu0 2
      %1490 = vperm.xlu0 %1489, %v464
      %v1491 = vpop.permute.xlu0 %1490
      %1493 = vset.pattern.permute.xlu0 2
      %1494 = vperm.xlu0 %1493, %v467
      %v1495 = vpop.permute.xlu0 %1494
      %1497 = vset.pattern.permute.xlu0 2
      %1498 = vperm.xlu0 %1497, %v469
      %v1499 = vpop.permute.xlu0 %1498
      %1501 = vset.pattern.permute.xlu0 2
      %1502 = vperm.xlu0 %1501, %v472
      %v1503 = vpop.permute.xlu0 %1502
      %1505 = vset.pattern.permute.xlu0 2
      %1506 = vperm.xlu0 %1505, %v474
      %v1507 = vpop.permute.xlu0 %1506
      %1509 = vset.pattern.permute.xlu0 2
      %1510 = vperm.xlu0 %1509, %v477
      %v1511 = vpop.permute.xlu0 %1510
      %1513 = vset.pattern.permute.xlu0 2
      %1514 = vperm.xlu0 %1513, %v479
      %v1515 = vpop.permute.xlu0 %1514
      %1517 = vset.pattern.permute.xlu0 2
      %1518 = vperm.xlu0 %1517, %v482
      %v1519 = vpop.permute.xlu0 %1518
      %1521 = vset.pattern.permute.xlu0 2
      %1522 = vperm.xlu0 %1521, %v484
      %v1523 = vpop.permute.xlu0 %1522
      %1525 = vset.pattern.permute.xlu0 2
      %1526 = vperm.xlu0 %1525, %v487
      %v1527 = vpop.permute.xlu0 %1526
      %1529 = vset.pattern.permute.xlu0 2
      %1530 = vperm.xlu0 %1529, %v489
      %v1531 = vpop.permute.xlu0 %1530
      %1533 = vset.pattern.permute.xlu0 2
      %1534 = vperm.xlu0 %1533, %v492
      %v1535 = vpop.permute.xlu0 %1534
      %1537 = vset.pattern.permute.xlu0 2
      %1538 = vperm.xlu0 %1537, %v494
      %v1539 = vpop.permute.xlu0 %1538
      %1541 = vset.pattern.permute.xlu0 2
      %1542 = vperm.xlu0 %1541, %v497
      %v1543 = vpop.permute.xlu0 %1542
      %1545 = vset.pattern.permute.xlu0 2
      %1546 = vperm.xlu0 %1545, %v499
      %v1547 = vpop.permute.xlu0 %1546
      %1549 = vset.pattern.permute.xlu0 2
      %1550 = vperm.xlu0 %1549, %v502
      %v1551 = vpop.permute.xlu0 %1550
      %1553 = vset.pattern.permute.xlu0 2
      %1554 = vperm.xlu0 %1553, %v504
      %v1555 = vpop.permute.xlu0 %1554
      %1557 = vset.pattern.permute.xlu0 2
      %1558 = vperm.xlu0 %1557, %v507
      %v1559 = vpop.permute.xlu0 %1558
      %1561 = vset.pattern.permute.xlu0 2
      %1562 = vperm.xlu0 %1561, %v509
      %v1563 = vpop.permute.xlu0 %1562
      %1565 = vset.pattern.permute.xlu0 2
      %1566 = vperm.xlu0 %1565, %v512
      %v1567 = vpop.permute.xlu0 %1566
      %1569 = vset.pattern.permute.xlu0 2
      %1570 = vperm.xlu0 %1569, %v514
      %v1571 = vpop.permute.xlu0 %1570
      %1573 = vset.pattern.permute.xlu0 2
      %1574 = vperm.xlu0 %1573, %v517
      %v1575 = vpop.permute.xlu0 %1574
      %1577 = vset.pattern.permute.xlu0 2
      %1578 = vperm.xlu0 %1577, %v519
      %v1579 = vpop.permute.xlu0 %1578
      %1581 = vset.pattern.permute.xlu0 2
      %1582 = vperm.xlu0 %1581, %v522
      %v1583 = vpop.permute.xlu0 %1582
      %1585 = vset.pattern.permute.xlu0 2
      %1586 = vperm.xlu0 %1585, %v524
      %v1587 = vpop.permute.xlu0 %1586
      %1589 = vset.pattern.permute.xlu0 2
      %1590 = vperm.xlu0 %1589, %v527
      %v1591 = vpop.permute.xlu0 %1590
      %1593 = vset.pattern.permute.xlu0 2
      %1594 = vperm.xlu0 %1593, %v529
      %v1595 = vpop.permute.xlu0 %1594
      %1597 = vset.pattern.permute.xlu0 2
      %1598 = vperm.xlu0 %1597, %v532
      %v1599 = vpop.permute.xlu0 %1598
      %1601 = vset.pattern.permute.xlu0 2
      %1602 = vperm.xlu0 %1601, %v534
      %v1603 = vpop.permute.xlu0 %1602
      %v1605 = vmul.f32 %v1479, %v1398
      %v1606 = vmul.f32 %v1483, %v1400
      %v1607 = vmul.f32 %v1487, %v1403
      %v1608 = vmul.f32 %v1491, %v1405
      %v1609 = vmul.f32 %v1495, %v1408
      %v1610 = vmul.f32 %v1499, %v1410
      %v1611 = vmul.f32 %v1503, %v1413
      %v1612 = vmul.f32 %v1507, %v1415
      %v1613 = vmul.f32 %v1511, %v1418
      %v1614 = vmul.f32 %v1515, %v1420
      %v1615 = vmul.f32 %v1519, %v1423
      %v1616 = vmul.f32 %v1523, %v1425
      %v1617 = vmul.f32 %v1527, %v1428
      %v1618 = vmul.f32 %v1531, %v1430
      %v1619 = vmul.f32 %v1535, %v1433
      %v1620 = vmul.f32 %v1539, %v1435
      %v1621 = vmul.f32 %v1543, %v1438
      %v1622 = vmul.f32 %v1547, %v1440
      %v1623 = vmul.f32 %v1551, %v1443
      %v1624 = vmul.f32 %v1555, %v1445
      %v1625 = vmul.f32 %v1559, %v1448
      %v1626 = vmul.f32 %v1563, %v1450
      %v1627 = vmul.f32 %v1567, %v1453
      %v1628 = vmul.f32 %v1571, %v1455
      %v1629 = vmul.f32 %v1575, %v1458
      %v1630 = vmul.f32 %v1579, %v1460
      %v1631 = vmul.f32 %v1583, %v1463
      %v1632 = vmul.f32 %v1587, %v1465
      %v1633 = vmul.f32 %v1591, %v1468
      %v1634 = vmul.f32 %v1595, %v1470
      %v1635 = vmul.f32 %v1599, %v1473
      %v1636 = vmul.f32 %v1603, %v1475
      %v1637 = vadd.f32 %v1291, %v1605
      %v1638 = vadd.f32 %v1292, %v1606
      %v1639 = vadd.f32 %v1293, %v1607
      %v1640 = vadd.f32 %v1294, %v1608
      %v1641 = vadd.f32 %v1295, %v1609
      %v1642 = vadd.f32 %v1296, %v1610
      %v1643 = vadd.f32 %v1297, %v1611
      %v1644 = vadd.f32 %v1298, %v1612
      %v1645 = vadd.f32 %v1299, %v1613
      %v1646 = vadd.f32 %v1300, %v1614
      %v1647 = vadd.f32 %v1301, %v1615
      %v1648 = vadd.f32 %v1302, %v1616
      %v1649 = vadd.f32 %v1303, %v1617
      %v1650 = vadd.f32 %v1304, %v1618
      %v1651 = vadd.f32 %v1305, %v1619
      %v1652 = vadd.f32 %v1306, %v1620
      %v1653 = vadd.f32 %v1307, %v1621
      %v1654 = vadd.f32 %v1308, %v1622
      %v1655 = vadd.f32 %v1309, %v1623
      %v1656 = vadd.f32 %v1310, %v1624
      %v1657 = vadd.f32 %v1311, %v1625
      %v1658 = vadd.f32 %v1312, %v1626
      %v1659 = vadd.f32 %v1313, %v1627
      %v1660 = vadd.f32 %v1314, %v1628
      %v1661 = vadd.f32 %v1315, %v1629
      %v1662 = vadd.f32 %v1316, %v1630
      %v1663 = vadd.f32 %v1317, %v1631
      %v1664 = vadd.f32 %v1318, %v1632
      %v1665 = vadd.f32 %v1319, %v1633
      %v1666 = vadd.f32 %v1320, %v1634
      %v1667 = vadd.f32 %v1321, %v1635
      %v1668 = vadd.f32 %v1322, %v1636
      %s1669 = scalar_lea.vmem %s3, 192
      %v1670 = vld [vmem:[%s1669] sm:$0xf]
      %v1671 = vld [vmem:[%s1669 + $0x4] sm:$0xf]
      %v1672 = vld [vmem:[%s1669 + $0x8] sm:$0xf]
      %v1673 = vld [vmem:[%s1669 + $0xc] sm:$0xf]
      %v1674 = vld [vmem:[%s1669 + $0x10] sm:$0xf]
      %v1675 = vld [vmem:[%s1669 + $0x14] sm:$0xf]
      %v1676 = vld [vmem:[%s1669 + $0x18] sm:$0xf]
      %v1677 = vld [vmem:[%s1669 + $0x1c] sm:$0xf]
      %v1678 = vld [vmem:[%s1669 + $0x20] sm:$0xf]
      %v1679 = vld [vmem:[%s1669 + $0x24] sm:$0xf]
      %v1680 = vld [vmem:[%s1669 + $0x28] sm:$0xf]
      %v1681 = vld [vmem:[%s1669 + $0x2c] sm:$0xf]
      %v1682 = vld [vmem:[%s1669 + $0x30] sm:$0xf]
      %v1683 = vld [vmem:[%s1669 + $0x34] sm:$0xf]
      %v1684 = vld [vmem:[%s1669 + $0x38] sm:$0xf]
      %v1685 = vld [vmem:[%s1669 + $0x3c] sm:$0xf]
      %v1702 = vunpack.c.l.b16 %v1670
      %v1703 = vunpack.c.l.b16 %v1671
      %v1704 = vunpack.c.l.b16 %v1672
      %v1705 = vunpack.c.l.b16 %v1673
      %v1706 = vunpack.c.l.b16 %v1674
      %v1707 = vunpack.c.l.b16 %v1675
      %v1708 = vunpack.c.l.b16 %v1676
      %v1709 = vunpack.c.l.b16 %v1677
      %v1710 = vunpack.c.l.b16 %v1678
      %v1711 = vunpack.c.l.b16 %v1679
      %v1712 = vunpack.c.l.b16 %v1680
      %v1713 = vunpack.c.l.b16 %v1681
      %v1714 = vunpack.c.l.b16 %v1682
      %v1715 = vunpack.c.l.b16 %v1683
      %v1716 = vunpack.c.l.b16 %v1684
      %v1717 = vunpack.c.l.b16 %v1685
      %v1718 = vpack.c.b16 %v1703, %v1702
      %v1719 = vpack.c.b16 %v1705, %v1704
      %v1720 = vpack.c.b16 %v1707, %v1706
      %v1721 = vpack.c.b16 %v1709, %v1708
      %v1722 = vpack.c.b16 %v1711, %v1710
      %v1723 = vpack.c.b16 %v1713, %v1712
      %v1724 = vpack.c.b16 %v1715, %v1714
      %v1725 = vpack.c.b16 %v1717, %v1716
      %1734 = vmatpush.bf16.msra.mxu0 %v1725
      %1735 = vmatpush.bf16.msra.mxu0 %v1724
      %1736 = vmatpush.bf16.msra.mxu0 %v1723
      %1737 = vmatpush.bf16.msra.mxu0 %v1722
      %1738 = vmatpush.bf16.msra.mxu0 %v1721
      %1739 = vmatpush.bf16.msra.mxu0 %v1720
      %1740 = vmatpush.bf16.msra.mxu0 %v1719
      %1741 = vmatpush.bf16.msra.mxu0 %v1718
      %1742 = vmatmul.bf16.gmra.mxu0 %v616
      %v1743 = vpop.f32.mrf.mxu0
      %v1744 = vadd.f32 0.0, %v1743
      %v1745 = vpop.f32.mrf.mxu0
      %v1746 = vadd.f32 0.0, %v1745
      %1747 = vmatmul.bf16.gmra.mxu0 %v617
      %v1748 = vpop.f32.mrf.mxu0
      %v1749 = vadd.f32 0.0, %v1748
      %v1750 = vpop.f32.mrf.mxu0
      %v1751 = vadd.f32 0.0, %v1750
      %1752 = vmatmul.bf16.gmra.mxu0 %v618
      %v1753 = vpop.f32.mrf.mxu0
      %v1754 = vadd.f32 0.0, %v1753
      %v1755 = vpop.f32.mrf.mxu0
      %v1756 = vadd.f32 0.0, %v1755
      %1757 = vmatmul.bf16.gmra.mxu0 %v619
      %v1758 = vpop.f32.mrf.mxu0
      %v1759 = vadd.f32 0.0, %v1758
      %v1760 = vpop.f32.mrf.mxu0
      %v1761 = vadd.f32 0.0, %v1760
      %1762 = vmatmul.bf16.gmra.mxu0 %v620
      %v1763 = vpop.f32.mrf.mxu0
      %v1764 = vadd.f32 0.0, %v1763
      %v1765 = vpop.f32.mrf.mxu0
      %v1766 = vadd.f32 0.0, %v1765
      %1767 = vmatmul.bf16.gmra.mxu0 %v621
      %v1768 = vpop.f32.mrf.mxu0
      %v1769 = vadd.f32 0.0, %v1768
      %v1770 = vpop.f32.mrf.mxu0
      %v1771 = vadd.f32 0.0, %v1770
      %1772 = vmatmul.bf16.gmra.mxu0 %v622
      %v1773 = vpop.f32.mrf.mxu0
      %v1774 = vadd.f32 0.0, %v1773
      %v1775 = vpop.f32.mrf.mxu0
      %v1776 = vadd.f32 0.0, %v1775
      %1777 = vmatmul.bf16.gmra.mxu0 %v623
      %v1778 = vpop.f32.mrf.mxu0
      %v1779 = vadd.f32 0.0, %v1778
      %v1780 = vpop.f32.mrf.mxu0
      %v1781 = vadd.f32 0.0, %v1780
      %1782 = vmatmul.bf16.gmra.mxu0 %v624
      %v1783 = vpop.f32.mrf.mxu0
      %v1784 = vadd.f32 0.0, %v1783
      %v1785 = vpop.f32.mrf.mxu0
      %v1786 = vadd.f32 0.0, %v1785
      %1787 = vmatmul.bf16.gmra.mxu0 %v625
      %v1788 = vpop.f32.mrf.mxu0
      %v1789 = vadd.f32 0.0, %v1788
      %v1790 = vpop.f32.mrf.mxu0
      %v1791 = vadd.f32 0.0, %v1790
      %1792 = vmatmul.bf16.gmra.mxu0 %v626
      %v1793 = vpop.f32.mrf.mxu0
      %v1794 = vadd.f32 0.0, %v1793
      %v1795 = vpop.f32.mrf.mxu0
      %v1796 = vadd.f32 0.0, %v1795
      %1797 = vmatmul.bf16.gmra.mxu0 %v627
      %v1798 = vpop.f32.mrf.mxu0
      %v1799 = vadd.f32 0.0, %v1798
      %v1800 = vpop.f32.mrf.mxu0
      %v1801 = vadd.f32 0.0, %v1800
      %1802 = vmatmul.bf16.gmra.mxu0 %v628
      %v1803 = vpop.f32.mrf.mxu0
      %v1804 = vadd.f32 0.0, %v1803
      %v1805 = vpop.f32.mrf.mxu0
      %v1806 = vadd.f32 0.0, %v1805
      %1807 = vmatmul.bf16.gmra.mxu0 %v629
      %v1808 = vpop.f32.mrf.mxu0
      %v1809 = vadd.f32 0.0, %v1808
      %v1810 = vpop.f32.mrf.mxu0
      %v1811 = vadd.f32 0.0, %v1810
      %1812 = vmatmul.bf16.gmra.mxu0 %v630
      %v1813 = vpop.f32.mrf.mxu0
      %v1814 = vadd.f32 0.0, %v1813
      %v1815 = vpop.f32.mrf.mxu0
      %v1816 = vadd.f32 0.0, %v1815
      %1817 = vmatmul.bf16.gmra.mxu0 %v631
      %v1818 = vpop.f32.mrf.mxu0
      %v1819 = vadd.f32 0.0, %v1818
      %v1820 = vpop.f32.mrf.mxu0
      %v1821 = vadd.f32 0.0, %v1820
      %1822 = vdwg.mxu0
      %1823 = vset.pattern.permute.xlu0 3
      %1824 = vperm.xlu0 %1823, %v457
      %v1825 = vpop.permute.xlu0 %1824
      %1827 = vset.pattern.permute.xlu0 3
      %1828 = vperm.xlu0 %1827, %v459
      %v1829 = vpop.permute.xlu0 %1828
      %1831 = vset.pattern.permute.xlu0 3
      %1832 = vperm.xlu0 %1831, %v462
      %v1833 = vpop.permute.xlu0 %1832
      %1835 = vset.pattern.permute.xlu0 3
      %1836 = vperm.xlu0 %1835, %v464
      %v1837 = vpop.permute.xlu0 %1836
      %1839 = vset.pattern.permute.xlu0 3
      %1840 = vperm.xlu0 %1839, %v467
      %v1841 = vpop.permute.xlu0 %1840
      %1843 = vset.pattern.permute.xlu0 3
      %1844 = vperm.xlu0 %1843, %v469
      %v1845 = vpop.permute.xlu0 %1844
      %1847 = vset.pattern.permute.xlu0 3
      %1848 = vperm.xlu0 %1847, %v472
      %v1849 = vpop.permute.xlu0 %1848
      %1851 = vset.pattern.permute.xlu0 3
      %1852 = vperm.xlu0 %1851, %v474
      %v1853 = vpop.permute.xlu0 %1852
      %1855 = vset.pattern.permute.xlu0 3
      %1856 = vperm.xlu0 %1855, %v477
      %v1857 = vpop.permute.xlu0 %1856
      %1859 = vset.pattern.permute.xlu0 3
      %1860 = vperm.xlu0 %1859, %v479
      %v1861 = vpop.permute.xlu0 %1860
      %1863 = vset.pattern.permute.xlu0 3
      %1864 = vperm.xlu0 %1863, %v482
      %v1865 = vpop.permute.xlu0 %1864
      %1867 = vset.pattern.permute.xlu0 3
      %1868 = vperm.xlu0 %1867, %v484
      %v1869 = vpop.permute.xlu0 %1868
      %1871 = vset.pattern.permute.xlu0 3
      %1872 = vperm.xlu0 %1871, %v487
      %v1873 = vpop.permute.xlu0 %1872
      %1875 = vset.pattern.permute.xlu0 3
      %1876 = vperm.xlu0 %1875, %v489
      %v1877 = vpop.permute.xlu0 %1876
      %1879 = vset.pattern.permute.xlu0 3
      %1880 = vperm.xlu0 %1879, %v492
      %v1881 = vpop.permute.xlu0 %1880
      %1883 = vset.pattern.permute.xlu0 3
      %1884 = vperm.xlu0 %1883, %v494
      %v1885 = vpop.permute.xlu0 %1884
      %1887 = vset.pattern.permute.xlu0 3
      %1888 = vperm.xlu0 %1887, %v497
      %v1889 = vpop.permute.xlu0 %1888
      %1891 = vset.pattern.permute.xlu0 3
      %1892 = vperm.xlu0 %1891, %v499
      %v1893 = vpop.permute.xlu0 %1892
      %1895 = vset.pattern.permute.xlu0 3
      %1896 = vperm.xlu0 %1895, %v502
      %v1897 = vpop.permute.xlu0 %1896
      %1899 = vset.pattern.permute.xlu0 3
      %1900 = vperm.xlu0 %1899, %v504
      %v1901 = vpop.permute.xlu0 %1900
      %1903 = vset.pattern.permute.xlu0 3
      %1904 = vperm.xlu0 %1903, %v507
      %v1905 = vpop.permute.xlu0 %1904
      %1907 = vset.pattern.permute.xlu0 3
      %1908 = vperm.xlu0 %1907, %v509
      %v1909 = vpop.permute.xlu0 %1908
      %1911 = vset.pattern.permute.xlu0 3
      %1912 = vperm.xlu0 %1911, %v512
      %v1913 = vpop.permute.xlu0 %1912
      %1915 = vset.pattern.permute.xlu0 3
      %1916 = vperm.xlu0 %1915, %v514
      %v1917 = vpop.permute.xlu0 %1916
      %1919 = vset.pattern.permute.xlu0 3
      %1920 = vperm.xlu0 %1919, %v517
      %v1921 = vpop.permute.xlu0 %1920
      %1923 = vset.pattern.permute.xlu0 3
      %1924 = vperm.xlu0 %1923, %v519
      %v1925 = vpop.permute.xlu0 %1924
      %1927 = vset.pattern.permute.xlu0 3
      %1928 = vperm.xlu0 %1927, %v522
      %v1929 = vpop.permute.xlu0 %1928
      %1931 = vset.pattern.permute.xlu0 3
      %1932 = vperm.xlu0 %1931, %v524
      %v1933 = vpop.permute.xlu0 %1932
      %1935 = vset.pattern.permute.xlu0 3
      %1936 = vperm.xlu0 %1935, %v527
      %v1937 = vpop.permute.xlu0 %1936
      %1939 = vset.pattern.permute.xlu0 3
      %1940 = vperm.xlu0 %1939, %v529
      %v1941 = vpop.permute.xlu0 %1940
      %1943 = vset.pattern.permute.xlu0 3
      %1944 = vperm.xlu0 %1943, %v532
      %v1945 = vpop.permute.xlu0 %1944
      %1947 = vset.pattern.permute.xlu0 3
      %1948 = vperm.xlu0 %1947, %v534
      %v1949 = vpop.permute.xlu0 %1948
      %v1951 = vmul.f32 %v1825, %v1744
      %v1952 = vmul.f32 %v1829, %v1746
      %v1953 = vmul.f32 %v1833, %v1749
      %v1954 = vmul.f32 %v1837, %v1751
      %v1955 = vmul.f32 %v1841, %v1754
      %v1956 = vmul.f32 %v1845, %v1756
      %v1957 = vmul.f32 %v1849, %v1759
      %v1958 = vmul.f32 %v1853, %v1761
      %v1959 = vmul.f32 %v1857, %v1764
      %v1960 = vmul.f32 %v1861, %v1766
      %v1961 = vmul.f32 %v1865, %v1769
      %v1962 = vmul.f32 %v1869, %v1771
      %v1963 = vmul.f32 %v1873, %v1774
      %v1964 = vmul.f32 %v1877, %v1776
      %v1965 = vmul.f32 %v1881, %v1779
      %v1966 = vmul.f32 %v1885, %v1781
      %v1967 = vmul.f32 %v1889, %v1784
      %v1968 = vmul.f32 %v1893, %v1786
      %v1969 = vmul.f32 %v1897, %v1789
      %v1970 = vmul.f32 %v1901, %v1791
      %v1971 = vmul.f32 %v1905, %v1794
      %v1972 = vmul.f32 %v1909, %v1796
      %v1973 = vmul.f32 %v1913, %v1799
      %v1974 = vmul.f32 %v1917, %v1801
      %v1975 = vmul.f32 %v1921, %v1804
      %v1976 = vmul.f32 %v1925, %v1806
      %v1977 = vmul.f32 %v1929, %v1809
      %v1978 = vmul.f32 %v1933, %v1811
      %v1979 = vmul.f32 %v1937, %v1814
      %v1980 = vmul.f32 %v1941, %v1816
      %v1981 = vmul.f32 %v1945, %v1819
      %v1982 = vmul.f32 %v1949, %v1821
      %v1983 = vadd.f32 %v1637, %v1951
      %v1984 = vadd.f32 %v1638, %v1952
      %v1985 = vadd.f32 %v1639, %v1953
      %v1986 = vadd.f32 %v1640, %v1954
      %v1987 = vadd.f32 %v1641, %v1955
      %v1988 = vadd.f32 %v1642, %v1956
      %v1989 = vadd.f32 %v1643, %v1957
      %v1990 = vadd.f32 %v1644, %v1958
      %v1991 = vadd.f32 %v1645, %v1959
      %v1992 = vadd.f32 %v1646, %v1960
      %v1993 = vadd.f32 %v1647, %v1961
      %v1994 = vadd.f32 %v1648, %v1962
      %v1995 = vadd.f32 %v1649, %v1963
      %v1996 = vadd.f32 %v1650, %v1964
      %v1997 = vadd.f32 %v1651, %v1965
      %v1998 = vadd.f32 %v1652, %v1966
      %v1999 = vadd.f32 %v1653, %v1967
      %v2000 = vadd.f32 %v1654, %v1968
      %v2001 = vadd.f32 %v1655, %v1969
      %v2002 = vadd.f32 %v1656, %v1970
      %v2003 = vadd.f32 %v1657, %v1971
      %v2004 = vadd.f32 %v1658, %v1972
      %v2005 = vadd.f32 %v1659, %v1973
      %v2006 = vadd.f32 %v1660, %v1974
      %v2007 = vadd.f32 %v1661, %v1975
      %v2008 = vadd.f32 %v1662, %v1976
      %v2009 = vadd.f32 %v1663, %v1977
      %v2010 = vadd.f32 %v1664, %v1978
      %v2011 = vadd.f32 %v1665, %v1979
      %v2012 = vadd.f32 %v1666, %v1980
      %v2013 = vadd.f32 %v1667, %v1981
      %v2014 = vadd.f32 %v1668, %v1982
      %s2015 = scalar_lea.vmem %s3, 256
      %v2016 = vld [vmem:[%s2015] sm:$0xf]
      %v2017 = vld [vmem:[%s2015 + $0x4] sm:$0xf]
      %v2018 = vld [vmem:[%s2015 + $0x8] sm:$0xf]
      %v2019 = vld [vmem:[%s2015 + $0xc] sm:$0xf]
      %v2020 = vld [vmem:[%s2015 + $0x10] sm:$0xf]
      %v2021 = vld [vmem:[%s2015 + $0x14] sm:$0xf]
      %v2022 = vld [vmem:[%s2015 + $0x18] sm:$0xf]
      %v2023 = vld [vmem:[%s2015 + $0x1c] sm:$0xf]
      %v2024 = vld [vmem:[%s2015 + $0x20] sm:$0xf]
      %v2025 = vld [vmem:[%s2015 + $0x24] sm:$0xf]
      %v2026 = vld [vmem:[%s2015 + $0x28] sm:$0xf]
      %v2027 = vld [vmem:[%s2015 + $0x2c] sm:$0xf]
      %v2028 = vld [vmem:[%s2015 + $0x30] sm:$0xf]
      %v2029 = vld [vmem:[%s2015 + $0x34] sm:$0xf]
      %v2030 = vld [vmem:[%s2015 + $0x38] sm:$0xf]
      %v2031 = vld [vmem:[%s2015 + $0x3c] sm:$0xf]
      %v2048 = vunpack.c.l.b16 %v2016
      %v2049 = vunpack.c.l.b16 %v2017
      %v2050 = vunpack.c.l.b16 %v2018
      %v2051 = vunpack.c.l.b16 %v2019
      %v2052 = vunpack.c.l.b16 %v2020
      %v2053 = vunpack.c.l.b16 %v2021
      %v2054 = vunpack.c.l.b16 %v2022
      %v2055 = vunpack.c.l.b16 %v2023
      %v2056 = vunpack.c.l.b16 %v2024
      %v2057 = vunpack.c.l.b16 %v2025
      %v2058 = vunpack.c.l.b16 %v2026
      %v2059 = vunpack.c.l.b16 %v2027
      %v2060 = vunpack.c.l.b16 %v2028
      %v2061 = vunpack.c.l.b16 %v2029
      %v2062 = vunpack.c.l.b16 %v2030
      %v2063 = vunpack.c.l.b16 %v2031
      %v2064 = vpack.c.b16 %v2049, %v2048
      %v2065 = vpack.c.b16 %v2051, %v2050
      %v2066 = vpack.c.b16 %v2053, %v2052
      %v2067 = vpack.c.b16 %v2055, %v2054
      %v2068 = vpack.c.b16 %v2057, %v2056
      %v2069 = vpack.c.b16 %v2059, %v2058
      %v2070 = vpack.c.b16 %v2061, %v2060
      %v2071 = vpack.c.b16 %v2063, %v2062
      %2080 = vmatpush.bf16.msra.mxu0 %v2071
      %2081 = vmatpush.bf16.msra.mxu0 %v2070
      %2082 = vmatpush.bf16.msra.mxu0 %v2069
      %2083 = vmatpush.bf16.msra.mxu0 %v2068
      %2084 = vmatpush.bf16.msra.mxu0 %v2067
      %2085 = vmatpush.bf16.msra.mxu0 %v2066
      %2086 = vmatpush.bf16.msra.mxu0 %v2065
      %2087 = vmatpush.bf16.msra.mxu0 %v2064
      %2088 = vmatmul.bf16.gmra.mxu0 %v616
      %v2089 = vpop.f32.mrf.mxu0
      %v2090 = vadd.f32 0.0, %v2089
      %v2091 = vpop.f32.mrf.mxu0
      %v2092 = vadd.f32 0.0, %v2091
      %2093 = vmatmul.bf16.gmra.mxu0 %v617
      %v2094 = vpop.f32.mrf.mxu0
      %v2095 = vadd.f32 0.0, %v2094
      %v2096 = vpop.f32.mrf.mxu0
      %v2097 = vadd.f32 0.0, %v2096
      %2098 = vmatmul.bf16.gmra.mxu0 %v618
      %v2099 = vpop.f32.mrf.mxu0
      %v2100 = vadd.f32 0.0, %v2099
      %v2101 = vpop.f32.mrf.mxu0
      %v2102 = vadd.f32 0.0, %v2101
      %2103 = vmatmul.bf16.gmra.mxu0 %v619
      %v2104 = vpop.f32.mrf.mxu0
      %v2105 = vadd.f32 0.0, %v2104
      %v2106 = vpop.f32.mrf.mxu0
      %v2107 = vadd.f32 0.0, %v2106
      %2108 = vmatmul.bf16.gmra.mxu0 %v620
      %v2109 = vpop.f32.mrf.mxu0
      %v2110 = vadd.f32 0.0, %v2109
      %v2111 = vpop.f32.mrf.mxu0
      %v2112 = vadd.f32 0.0, %v2111
      %2113 = vmatmul.bf16.gmra.mxu0 %v621
      %v2114 = vpop.f32.mrf.mxu0
      %v2115 = vadd.f32 0.0, %v2114
      %v2116 = vpop.f32.mrf.mxu0
      %v2117 = vadd.f32 0.0, %v2116
      %2118 = vmatmul.bf16.gmra.mxu0 %v622
      %v2119 = vpop.f32.mrf.mxu0
      %v2120 = vadd.f32 0.0, %v2119
      %v2121 = vpop.f32.mrf.mxu0
      %v2122 = vadd.f32 0.0, %v2121
      %2123 = vmatmul.bf16.gmra.mxu0 %v623
      %v2124 = vpop.f32.mrf.mxu0
      %v2125 = vadd.f32 0.0, %v2124
      %v2126 = vpop.f32.mrf.mxu0
      %v2127 = vadd.f32 0.0, %v2126
      %2128 = vmatmul.bf16.gmra.mxu0 %v624
      %v2129 = vpop.f32.mrf.mxu0
      %v2130 = vadd.f32 0.0, %v2129
      %v2131 = vpop.f32.mrf.mxu0
      %v2132 = vadd.f32 0.0, %v2131
      %2133 = vmatmul.bf16.gmra.mxu0 %v625
      %v2134 = vpop.f32.mrf.mxu0
      %v2135 = vadd.f32 0.0, %v2134
      %v2136 = vpop.f32.mrf.mxu0
      %v2137 = vadd.f32 0.0, %v2136
      %2138 = vmatmul.bf16.gmra.mxu0 %v626
      %v2139 = vpop.f32.mrf.mxu0
      %v2140 = vadd.f32 0.0, %v2139
      %v2141 = vpop.f32.mrf.mxu0
      %v2142 = vadd.f32 0.0, %v2141
      %2143 = vmatmul.bf16.gmra.mxu0 %v627
      %v2144 = vpop.f32.mrf.mxu0
      %v2145 = vadd.f32 0.0, %v2144
      %v2146 = vpop.f32.mrf.mxu0
      %v2147 = vadd.f32 0.0, %v2146
      %2148 = vmatmul.bf16.gmra.mxu0 %v628
      %v2149 = vpop.f32.mrf.mxu0
      %v2150 = vadd.f32 0.0, %v2149
      %v2151 = vpop.f32.mrf.mxu0
      %v2152 = vadd.f32 0.0, %v2151
      %2153 = vmatmul.bf16.gmra.mxu0 %v629
      %v2154 = vpop.f32.mrf.mxu0
      %v2155 = vadd.f32 0.0, %v2154
      %v2156 = vpop.f32.mrf.mxu0
      %v2157 = vadd.f32 0.0, %v2156
      %2158 = vmatmul.bf16.gmra.mxu0 %v630
      %v2159 = vpop.f32.mrf.mxu0
      %v2160 = vadd.f32 0.0, %v2159
      %v2161 = vpop.f32.mrf.mxu0
      %v2162 = vadd.f32 0.0, %v2161
      %2163 = vmatmul.bf16.gmra.mxu0 %v631
      %v2164 = vpop.f32.mrf.mxu0
      %v2165 = vadd.f32 0.0, %v2164
      %v2166 = vpop.f32.mrf.mxu0
      %v2167 = vadd.f32 0.0, %v2166
      %2168 = vdwg.mxu0
      %2169 = vset.pattern.permute.xlu0 4
      %2170 = vperm.xlu0 %2169, %v457
      %v2171 = vpop.permute.xlu0 %2170
      %2173 = vset.pattern.permute.xlu0 4
      %2174 = vperm.xlu0 %2173, %v459
      %v2175 = vpop.permute.xlu0 %2174
      %2177 = vset.pattern.permute.xlu0 4
      %2178 = vperm.xlu0 %2177, %v462
      %v2179 = vpop.permute.xlu0 %2178
      %2181 = vset.pattern.permute.xlu0 4
      %2182 = vperm.xlu0 %2181, %v464
      %v2183 = vpop.permute.xlu0 %2182
      %2185 = vset.pattern.permute.xlu0 4
      %2186 = vperm.xlu0 %2185, %v467
      %v2187 = vpop.permute.xlu0 %2186
      %2189 = vset.pattern.permute.xlu0 4
      %2190 = vperm.xlu0 %2189, %v469
      %v2191 = vpop.permute.xlu0 %2190
      %2193 = vset.pattern.permute.xlu0 4
      %2194 = vperm.xlu0 %2193, %v472
      %v2195 = vpop.permute.xlu0 %2194
      %2197 = vset.pattern.permute.xlu0 4
      %2198 = vperm.xlu0 %2197, %v474
      %v2199 = vpop.permute.xlu0 %2198
      %2201 = vset.pattern.permute.xlu0 4
      %2202 = vperm.xlu0 %2201, %v477
      %v2203 = vpop.permute.xlu0 %2202
      %2205 = vset.pattern.permute.xlu0 4
      %2206 = vperm.xlu0 %2205, %v479
      %v2207 = vpop.permute.xlu0 %2206
      %2209 = vset.pattern.permute.xlu0 4
      %2210 = vperm.xlu0 %2209, %v482
      %v2211 = vpop.permute.xlu0 %2210
      %2213 = vset.pattern.permute.xlu0 4
      %2214 = vperm.xlu0 %2213, %v484
      %v2215 = vpop.permute.xlu0 %2214
      %2217 = vset.pattern.permute.xlu0 4
      %2218 = vperm.xlu0 %2217, %v487
      %v2219 = vpop.permute.xlu0 %2218
      %2221 = vset.pattern.permute.xlu0 4
      %2222 = vperm.xlu0 %2221, %v489
      %v2223 = vpop.permute.xlu0 %2222
      %2225 = vset.pattern.permute.xlu0 4
      %2226 = vperm.xlu0 %2225, %v492
      %v2227 = vpop.permute.xlu0 %2226
      %2229 = vset.pattern.permute.xlu0 4
      %2230 = vperm.xlu0 %2229, %v494
      %v2231 = vpop.permute.xlu0 %2230
      %2233 = vset.pattern.permute.xlu0 4
      %2234 = vperm.xlu0 %2233, %v497
      %v2235 = vpop.permute.xlu0 %2234
      %2237 = vset.pattern.permute.xlu0 4
      %2238 = vperm.xlu0 %2237, %v499
      %v2239 = vpop.permute.xlu0 %2238
      %2241 = vset.pattern.permute.xlu0 4
      %2242 = vperm.xlu0 %2241, %v502
      %v2243 = vpop.permute.xlu0 %2242
      %2245 = vset.pattern.permute.xlu0 4
      %2246 = vperm.xlu0 %2245, %v504
      %v2247 = vpop.permute.xlu0 %2246
      %2249 = vset.pattern.permute.xlu0 4
      %2250 = vperm.xlu0 %2249, %v507
      %v2251 = vpop.permute.xlu0 %2250
      %2253 = vset.pattern.permute.xlu0 4
      %2254 = vperm.xlu0 %2253, %v509
      %v2255 = vpop.permute.xlu0 %2254
      %2257 = vset.pattern.permute.xlu0 4
      %2258 = vperm.xlu0 %2257, %v512
      %v2259 = vpop.permute.xlu0 %2258
      %2261 = vset.pattern.permute.xlu0 4
      %2262 = vperm.xlu0 %2261, %v514
      %v2263 = vpop.permute.xlu0 %2262
      %2265 = vset.pattern.permute.xlu0 4
      %2266 = vperm.xlu0 %2265, %v517
      %v2267 = vpop.permute.xlu0 %2266
      %2269 = vset.pattern.permute.xlu0 4
      %2270 = vperm.xlu0 %2269, %v519
      %v2271 = vpop.permute.xlu0 %2270
      %2273 = vset.pattern.permute.xlu0 4
      %2274 = vperm.xlu0 %2273, %v522
      %v2275 = vpop.permute.xlu0 %2274
      %2277 = vset.pattern.permute.xlu0 4
      %2278 = vperm.xlu0 %2277, %v524
      %v2279 = vpop.permute.xlu0 %2278
      %2281 = vset.pattern.permute.xlu0 4
      %2282 = vperm.xlu0 %2281, %v527
      %v2283 = vpop.permute.xlu0 %2282
      %2285 = vset.pattern.permute.xlu0 4
      %2286 = vperm.xlu0 %2285, %v529
      %v2287 = vpop.permute.xlu0 %2286
      %2289 = vset.pattern.permute.xlu0 4
      %2290 = vperm.xlu0 %2289, %v532
      %v2291 = vpop.permute.xlu0 %2290
      %2293 = vset.pattern.permute.xlu0 4
      %2294 = vperm.xlu0 %2293, %v534
      %v2295 = vpop.permute.xlu0 %2294
      %v2297 = vmul.f32 %v2171, %v2090
      %v2298 = vmul.f32 %v2175, %v2092
      %v2299 = vmul.f32 %v2179, %v2095
      %v2300 = vmul.f32 %v2183, %v2097
      %v2301 = vmul.f32 %v2187, %v2100
      %v2302 = vmul.f32 %v2191, %v2102
      %v2303 = vmul.f32 %v2195, %v2105
      %v2304 = vmul.f32 %v2199, %v2107
      %v2305 = vmul.f32 %v2203, %v2110
      %v2306 = vmul.f32 %v2207, %v2112
      %v2307 = vmul.f32 %v2211, %v2115
      %v2308 = vmul.f32 %v2215, %v2117
      %v2309 = vmul.f32 %v2219, %v2120
      %v2310 = vmul.f32 %v2223, %v2122
      %v2311 = vmul.f32 %v2227, %v2125
      %v2312 = vmul.f32 %v2231, %v2127
      %v2313 = vmul.f32 %v2235, %v2130
      %v2314 = vmul.f32 %v2239, %v2132
      %v2315 = vmul.f32 %v2243, %v2135
      %v2316 = vmul.f32 %v2247, %v2137
      %v2317 = vmul.f32 %v2251, %v2140
      %v2318 = vmul.f32 %v2255, %v2142
      %v2319 = vmul.f32 %v2259, %v2145
      %v2320 = vmul.f32 %v2263, %v2147
      %v2321 = vmul.f32 %v2267, %v2150
      %v2322 = vmul.f32 %v2271, %v2152
      %v2323 = vmul.f32 %v2275, %v2155
      %v2324 = vmul.f32 %v2279, %v2157
      %v2325 = vmul.f32 %v2283, %v2160
      %v2326 = vmul.f32 %v2287, %v2162
      %v2327 = vmul.f32 %v2291, %v2165
      %v2328 = vmul.f32 %v2295, %v2167
      %v2329 = vadd.f32 %v1983, %v2297
      %v2330 = vadd.f32 %v1984, %v2298
      %v2331 = vadd.f32 %v1985, %v2299
      %v2332 = vadd.f32 %v1986, %v2300
      %v2333 = vadd.f32 %v1987, %v2301
      %v2334 = vadd.f32 %v1988, %v2302
      %v2335 = vadd.f32 %v1989, %v2303
      %v2336 = vadd.f32 %v1990, %v2304
      %v2337 = vadd.f32 %v1991, %v2305
      %v2338 = vadd.f32 %v1992, %v2306
      %v2339 = vadd.f32 %v1993, %v2307
      %v2340 = vadd.f32 %v1994, %v2308
      %v2341 = vadd.f32 %v1995, %v2309
      %v2342 = vadd.f32 %v1996, %v2310
      %v2343 = vadd.f32 %v1997, %v2311
      %v2344 = vadd.f32 %v1998, %v2312
      %v2345 = vadd.f32 %v1999, %v2313
      %v2346 = vadd.f32 %v2000, %v2314
      %v2347 = vadd.f32 %v2001, %v2315
      %v2348 = vadd.f32 %v2002, %v2316
      %v2349 = vadd.f32 %v2003, %v2317
      %v2350 = vadd.f32 %v2004, %v2318
      %v2351 = vadd.f32 %v2005, %v2319
      %v2352 = vadd.f32 %v2006, %v2320
      %v2353 = vadd.f32 %v2007, %v2321
      %v2354 = vadd.f32 %v2008, %v2322
      %v2355 = vadd.f32 %v2009, %v2323
      %v2356 = vadd.f32 %v2010, %v2324
      %v2357 = vadd.f32 %v2011, %v2325
      %v2358 = vadd.f32 %v2012, %v2326
      %v2359 = vadd.f32 %v2013, %v2327
      %v2360 = vadd.f32 %v2014, %v2328
      %s2361 = scalar_lea.vmem %s3, 320
      %v2362 = vld [vmem:[%s2361] sm:$0xf]
      %v2363 = vld [vmem:[%s2361 + $0x4] sm:$0xf]
      %v2364 = vld [vmem:[%s2361 + $0x8] sm:$0xf]
      %v2365 = vld [vmem:[%s2361 + $0xc] sm:$0xf]
      %v2366 = vld [vmem:[%s2361 + $0x10] sm:$0xf]
      %v2367 = vld [vmem:[%s2361 + $0x14] sm:$0xf]
      %v2368 = vld [vmem:[%s2361 + $0x18] sm:$0xf]
      %v2369 = vld [vmem:[%s2361 + $0x1c] sm:$0xf]
      %v2370 = vld [vmem:[%s2361 + $0x20] sm:$0xf]
      %v2371 = vld [vmem:[%s2361 + $0x24] sm:$0xf]
      %v2372 = vld [vmem:[%s2361 + $0x28] sm:$0xf]
      %v2373 = vld [vmem:[%s2361 + $0x2c] sm:$0xf]
      %v2374 = vld [vmem:[%s2361 + $0x30] sm:$0xf]
      %v2375 = vld [vmem:[%s2361 + $0x34] sm:$0xf]
      %v2376 = vld [vmem:[%s2361 + $0x38] sm:$0xf]
      %v2377 = vld [vmem:[%s2361 + $0x3c] sm:$0xf]
      %v2394 = vunpack.c.l.b16 %v2362
      %v2395 = vunpack.c.l.b16 %v2363
      %v2396 = vunpack.c.l.b16 %v2364
      %v2397 = vunpack.c.l.b16 %v2365
      %v2398 = vunpack.c.l.b16 %v2366
      %v2399 = vunpack.c.l.b16 %v2367
      %v2400 = vunpack.c.l.b16 %v2368
      %v2401 = vunpack.c.l.b16 %v2369
      %v2402 = vunpack.c.l.b16 %v2370
      %v2403 = vunpack.c.l.b16 %v2371
      %v2404 = vunpack.c.l.b16 %v2372
      %v2405 = vunpack.c.l.b16 %v2373
      %v2406 = vunpack.c.l.b16 %v2374
      %v2407 = vunpack.c.l.b16 %v2375
      %v2408 = vunpack.c.l.b16 %v2376
      %v2409 = vunpack.c.l.b16 %v2377
      %v2410 = vpack.c.b16 %v2395, %v2394
      %v2411 = vpack.c.b16 %v2397, %v2396
      %v2412 = vpack.c.b16 %v2399, %v2398
      %v2413 = vpack.c.b16 %v2401, %v2400
      %v2414 = vpack.c.b16 %v2403, %v2402
      %v2415 = vpack.c.b16 %v2405, %v2404
      %v2416 = vpack.c.b16 %v2407, %v2406
      %v2417 = vpack.c.b16 %v2409, %v2408
      %2426 = vmatpush.bf16.msra.mxu0 %v2417
      %2427 = vmatpush.bf16.msra.mxu0 %v2416
      %2428 = vmatpush.bf16.msra.mxu0 %v2415
      %2429 = vmatpush.bf16.msra.mxu0 %v2414
      %2430 = vmatpush.bf16.msra.mxu0 %v2413
      %2431 = vmatpush.bf16.msra.mxu0 %v2412
      %2432 = vmatpush.bf16.msra.mxu0 %v2411
      %2433 = vmatpush.bf16.msra.mxu0 %v2410
      %2434 = vmatmul.bf16.gmra.mxu0 %v616
      %v2435 = vpop.f32.mrf.mxu0
      %v2436 = vadd.f32 0.0, %v2435
      %v2437 = vpop.f32.mrf.mxu0
      %v2438 = vadd.f32 0.0, %v2437
      %2439 = vmatmul.bf16.gmra.mxu0 %v617
      %v2440 = vpop.f32.mrf.mxu0
      %v2441 = vadd.f32 0.0, %v2440
      %v2442 = vpop.f32.mrf.mxu0
      %v2443 = vadd.f32 0.0, %v2442
      %2444 = vmatmul.bf16.gmra.mxu0 %v618
      %v2445 = vpop.f32.mrf.mxu0
      %v2446 = vadd.f32 0.0, %v2445
      %v2447 = vpop.f32.mrf.mxu0
      %v2448 = vadd.f32 0.0, %v2447
      %2449 = vmatmul.bf16.gmra.mxu0 %v619
      %v2450 = vpop.f32.mrf.mxu0
      %v2451 = vadd.f32 0.0, %v2450
      %v2452 = vpop.f32.mrf.mxu0
      %v2453 = vadd.f32 0.0, %v2452
      %2454 = vmatmul.bf16.gmra.mxu0 %v620
      %v2455 = vpop.f32.mrf.mxu0
      %v2456 = vadd.f32 0.0, %v2455
      %v2457 = vpop.f32.mrf.mxu0
      %v2458 = vadd.f32 0.0, %v2457
      %2459 = vmatmul.bf16.gmra.mxu0 %v621
      %v2460 = vpop.f32.mrf.mxu0
      %v2461 = vadd.f32 0.0, %v2460
      %v2462 = vpop.f32.mrf.mxu0
      %v2463 = vadd.f32 0.0, %v2462
      %2464 = vmatmul.bf16.gmra.mxu0 %v622
      %v2465 = vpop.f32.mrf.mxu0
      %v2466 = vadd.f32 0.0, %v2465
      %v2467 = vpop.f32.mrf.mxu0
      %v2468 = vadd.f32 0.0, %v2467
      %2469 = vmatmul.bf16.gmra.mxu0 %v623
      %v2470 = vpop.f32.mrf.mxu0
      %v2471 = vadd.f32 0.0, %v2470
      %v2472 = vpop.f32.mrf.mxu0
      %v2473 = vadd.f32 0.0, %v2472
      %2474 = vmatmul.bf16.gmra.mxu0 %v624
      %v2475 = vpop.f32.mrf.mxu0
      %v2476 = vadd.f32 0.0, %v2475
      %v2477 = vpop.f32.mrf.mxu0
      %v2478 = vadd.f32 0.0, %v2477
      %2479 = vmatmul.bf16.gmra.mxu0 %v625
      %v2480 = vpop.f32.mrf.mxu0
      %v2481 = vadd.f32 0.0, %v2480
      %v2482 = vpop.f32.mrf.mxu0
      %v2483 = vadd.f32 0.0, %v2482
      %2484 = vmatmul.bf16.gmra.mxu0 %v626
      %v2485 = vpop.f32.mrf.mxu0
      %v2486 = vadd.f32 0.0, %v2485
      %v2487 = vpop.f32.mrf.mxu0
      %v2488 = vadd.f32 0.0, %v2487
      %2489 = vmatmul.bf16.gmra.mxu0 %v627
      %v2490 = vpop.f32.mrf.mxu0
      %v2491 = vadd.f32 0.0, %v2490
      %v2492 = vpop.f32.mrf.mxu0
      %v2493 = vadd.f32 0.0, %v2492
      %2494 = vmatmul.bf16.gmra.mxu0 %v628
      %v2495 = vpop.f32.mrf.mxu0
      %v2496 = vadd.f32 0.0, %v2495
      %v2497 = vpop.f32.mrf.mxu0
      %v2498 = vadd.f32 0.0, %v2497
      %2499 = vmatmul.bf16.gmra.mxu0 %v629
      %v2500 = vpop.f32.mrf.mxu0
      %v2501 = vadd.f32 0.0, %v2500
      %v2502 = vpop.f32.mrf.mxu0
      %v2503 = vadd.f32 0.0, %v2502
      %2504 = vmatmul.bf16.gmra.mxu0 %v630
      %v2505 = vpop.f32.mrf.mxu0
      %v2506 = vadd.f32 0.0, %v2505
      %v2507 = vpop.f32.mrf.mxu0
      %v2508 = vadd.f32 0.0, %v2507
      %2509 = vmatmul.bf16.gmra.mxu0 %v631
      %v2510 = vpop.f32.mrf.mxu0
      %v2511 = vadd.f32 0.0, %v2510
      %v2512 = vpop.f32.mrf.mxu0
      %v2513 = vadd.f32 0.0, %v2512
      %2514 = vdwg.mxu0
      %2515 = vset.pattern.permute.xlu0 5
      %2516 = vperm.xlu0 %2515, %v457
      %v2517 = vpop.permute.xlu0 %2516
      %2519 = vset.pattern.permute.xlu0 5
      %2520 = vperm.xlu0 %2519, %v459
      %v2521 = vpop.permute.xlu0 %2520
      %2523 = vset.pattern.permute.xlu0 5
      %2524 = vperm.xlu0 %2523, %v462
      %v2525 = vpop.permute.xlu0 %2524
      %2527 = vset.pattern.permute.xlu0 5
      %2528 = vperm.xlu0 %2527, %v464
      %v2529 = vpop.permute.xlu0 %2528
      %2531 = vset.pattern.permute.xlu0 5
      %2532 = vperm.xlu0 %2531, %v467
      %v2533 = vpop.permute.xlu0 %2532
      %2535 = vset.pattern.permute.xlu0 5
      %2536 = vperm.xlu0 %2535, %v469
      %v2537 = vpop.permute.xlu0 %2536
      %2539 = vset.pattern.permute.xlu0 5
      %2540 = vperm.xlu0 %2539, %v472
      %v2541 = vpop.permute.xlu0 %2540
      %2543 = vset.pattern.permute.xlu0 5
      %2544 = vperm.xlu0 %2543, %v474
      %v2545 = vpop.permute.xlu0 %2544
      %2547 = vset.pattern.permute.xlu0 5
      %2548 = vperm.xlu0 %2547, %v477
      %v2549 = vpop.permute.xlu0 %2548
      %2551 = vset.pattern.permute.xlu0 5
      %2552 = vperm.xlu0 %2551, %v479
      %v2553 = vpop.permute.xlu0 %2552
      %2555 = vset.pattern.permute.xlu0 5
      %2556 = vperm.xlu0 %2555, %v482
      %v2557 = vpop.permute.xlu0 %2556
      %2559 = vset.pattern.permute.xlu0 5
      %2560 = vperm.xlu0 %2559, %v484
      %v2561 = vpop.permute.xlu0 %2560
      %2563 = vset.pattern.permute.xlu0 5
      %2564 = vperm.xlu0 %2563, %v487
      %v2565 = vpop.permute.xlu0 %2564
      %2567 = vset.pattern.permute.xlu0 5
      %2568 = vperm.xlu0 %2567, %v489
      %v2569 = vpop.permute.xlu0 %2568
      %2571 = vset.pattern.permute.xlu0 5
      %2572 = vperm.xlu0 %2571, %v492
      %v2573 = vpop.permute.xlu0 %2572
      %2575 = vset.pattern.permute.xlu0 5
      %2576 = vperm.xlu0 %2575, %v494
      %v2577 = vpop.permute.xlu0 %2576
      %2579 = vset.pattern.permute.xlu0 5
      %2580 = vperm.xlu0 %2579, %v497
      %v2581 = vpop.permute.xlu0 %2580
      %2583 = vset.pattern.permute.xlu0 5
      %2584 = vperm.xlu0 %2583, %v499
      %v2585 = vpop.permute.xlu0 %2584
      %2587 = vset.pattern.permute.xlu0 5
      %2588 = vperm.xlu0 %2587, %v502
      %v2589 = vpop.permute.xlu0 %2588
      %2591 = vset.pattern.permute.xlu0 5
      %2592 = vperm.xlu0 %2591, %v504
      %v2593 = vpop.permute.xlu0 %2592
      %2595 = vset.pattern.permute.xlu0 5
      %2596 = vperm.xlu0 %2595, %v507
      %v2597 = vpop.permute.xlu0 %2596
      %2599 = vset.pattern.permute.xlu0 5
      %2600 = vperm.xlu0 %2599, %v509
      %v2601 = vpop.permute.xlu0 %2600
      %2603 = vset.pattern.permute.xlu0 5
      %2604 = vperm.xlu0 %2603, %v512
      %v2605 = vpop.permute.xlu0 %2604
      %2607 = vset.pattern.permute.xlu0 5
      %2608 = vperm.xlu0 %2607, %v514
      %v2609 = vpop.permute.xlu0 %2608
      %2611 = vset.pattern.permute.xlu0 5
      %2612 = vperm.xlu0 %2611, %v517
      %v2613 = vpop.permute.xlu0 %2612
      %2615 = vset.pattern.permute.xlu0 5
      %2616 = vperm.xlu0 %2615, %v519
      %v2617 = vpop.permute.xlu0 %2616
      %2619 = vset.pattern.permute.xlu0 5
      %2620 = vperm.xlu0 %2619, %v522
      %v2621 = vpop.permute.xlu0 %2620
      %2623 = vset.pattern.permute.xlu0 5
      %2624 = vperm.xlu0 %2623, %v524
      %v2625 = vpop.permute.xlu0 %2624
      %2627 = vset.pattern.permute.xlu0 5
      %2628 = vperm.xlu0 %2627, %v527
      %v2629 = vpop.permute.xlu0 %2628
      %2631 = vset.pattern.permute.xlu0 5
      %2632 = vperm.xlu0 %2631, %v529
      %v2633 = vpop.permute.xlu0 %2632
      %2635 = vset.pattern.permute.xlu0 5
      %2636 = vperm.xlu0 %2635, %v532
      %v2637 = vpop.permute.xlu0 %2636
      %2639 = vset.pattern.permute.xlu0 5
      %2640 = vperm.xlu0 %2639, %v534
      %v2641 = vpop.permute.xlu0 %2640
      %v2643 = vmul.f32 %v2517, %v2436
      %v2644 = vmul.f32 %v2521, %v2438
      %v2645 = vmul.f32 %v2525, %v2441
      %v2646 = vmul.f32 %v2529, %v2443
      %v2647 = vmul.f32 %v2533, %v2446
      %v2648 = vmul.f32 %v2537, %v2448
      %v2649 = vmul.f32 %v2541, %v2451
      %v2650 = vmul.f32 %v2545, %v2453
      %v2651 = vmul.f32 %v2549, %v2456
      %v2652 = vmul.f32 %v2553, %v2458
      %v2653 = vmul.f32 %v2557, %v2461
      %v2654 = vmul.f32 %v2561, %v2463
      %v2655 = vmul.f32 %v2565, %v2466
      %v2656 = vmul.f32 %v2569, %v2468
      %v2657 = vmul.f32 %v2573, %v2471
      %v2658 = vmul.f32 %v2577, %v2473
      %v2659 = vmul.f32 %v2581, %v2476
      %v2660 = vmul.f32 %v2585, %v2478
      %v2661 = vmul.f32 %v2589, %v2481
      %v2662 = vmul.f32 %v2593, %v2483
      %v2663 = vmul.f32 %v2597, %v2486
      %v2664 = vmul.f32 %v2601, %v2488
      %v2665 = vmul.f32 %v2605, %v2491
      %v2666 = vmul.f32 %v2609, %v2493
      %v2667 = vmul.f32 %v2613, %v2496
      %v2668 = vmul.f32 %v2617, %v2498
      %v2669 = vmul.f32 %v2621, %v2501
      %v2670 = vmul.f32 %v2625, %v2503
      %v2671 = vmul.f32 %v2629, %v2506
      %v2672 = vmul.f32 %v2633, %v2508
      %v2673 = vmul.f32 %v2637, %v2511
      %v2674 = vmul.f32 %v2641, %v2513
      %v2675 = vadd.f32 %v2329, %v2643
      %v2676 = vadd.f32 %v2330, %v2644
      %v2677 = vadd.f32 %v2331, %v2645
      %v2678 = vadd.f32 %v2332, %v2646
      %v2679 = vadd.f32 %v2333, %v2647
      %v2680 = vadd.f32 %v2334, %v2648
      %v2681 = vadd.f32 %v2335, %v2649
      %v2682 = vadd.f32 %v2336, %v2650
      %v2683 = vadd.f32 %v2337, %v2651
      %v2684 = vadd.f32 %v2338, %v2652
      %v2685 = vadd.f32 %v2339, %v2653
      %v2686 = vadd.f32 %v2340, %v2654
      %v2687 = vadd.f32 %v2341, %v2655
      %v2688 = vadd.f32 %v2342, %v2656
      %v2689 = vadd.f32 %v2343, %v2657
      %v2690 = vadd.f32 %v2344, %v2658
      %v2691 = vadd.f32 %v2345, %v2659
      %v2692 = vadd.f32 %v2346, %v2660
      %v2693 = vadd.f32 %v2347, %v2661
      %v2694 = vadd.f32 %v2348, %v2662
      %v2695 = vadd.f32 %v2349, %v2663
      %v2696 = vadd.f32 %v2350, %v2664
      %v2697 = vadd.f32 %v2351, %v2665
      %v2698 = vadd.f32 %v2352, %v2666
      %v2699 = vadd.f32 %v2353, %v2667
      %v2700 = vadd.f32 %v2354, %v2668
      %v2701 = vadd.f32 %v2355, %v2669
      %v2702 = vadd.f32 %v2356, %v2670
      %v2703 = vadd.f32 %v2357, %v2671
      %v2704 = vadd.f32 %v2358, %v2672
      %v2705 = vadd.f32 %v2359, %v2673
      %v2706 = vadd.f32 %v2360, %v2674
      %s2707 = scalar_lea.vmem %s3, 384
      %v2708 = vld [vmem:[%s2707] sm:$0xf]
      %v2709 = vld [vmem:[%s2707 + $0x4] sm:$0xf]
      %v2710 = vld [vmem:[%s2707 + $0x8] sm:$0xf]
      %v2711 = vld [vmem:[%s2707 + $0xc] sm:$0xf]
      %v2712 = vld [vmem:[%s2707 + $0x10] sm:$0xf]
      %v2713 = vld [vmem:[%s2707 + $0x14] sm:$0xf]
      %v2714 = vld [vmem:[%s2707 + $0x18] sm:$0xf]
      %v2715 = vld [vmem:[%s2707 + $0x1c] sm:$0xf]
      %v2716 = vld [vmem:[%s2707 + $0x20] sm:$0xf]
      %v2717 = vld [vmem:[%s2707 + $0x24] sm:$0xf]
      %v2718 = vld [vmem:[%s2707 + $0x28] sm:$0xf]
      %v2719 = vld [vmem:[%s2707 + $0x2c] sm:$0xf]
      %v2720 = vld [vmem:[%s2707 + $0x30] sm:$0xf]
      %v2721 = vld [vmem:[%s2707 + $0x34] sm:$0xf]
      %v2722 = vld [vmem:[%s2707 + $0x38] sm:$0xf]
      %v2723 = vld [vmem:[%s2707 + $0x3c] sm:$0xf]
      %v2740 = vunpack.c.l.b16 %v2708
      %v2741 = vunpack.c.l.b16 %v2709
      %v2742 = vunpack.c.l.b16 %v2710
      %v2743 = vunpack.c.l.b16 %v2711
      %v2744 = vunpack.c.l.b16 %v2712
      %v2745 = vunpack.c.l.b16 %v2713
      %v2746 = vunpack.c.l.b16 %v2714
      %v2747 = vunpack.c.l.b16 %v2715
      %v2748 = vunpack.c.l.b16 %v2716
      %v2749 = vunpack.c.l.b16 %v2717
      %v2750 = vunpack.c.l.b16 %v2718
      %v2751 = vunpack.c.l.b16 %v2719
      %v2752 = vunpack.c.l.b16 %v2720
      %v2753 = vunpack.c.l.b16 %v2721
      %v2754 = vunpack.c.l.b16 %v2722
      %v2755 = vunpack.c.l.b16 %v2723
      %v2756 = vpack.c.b16 %v2741, %v2740
      %v2757 = vpack.c.b16 %v2743, %v2742
      %v2758 = vpack.c.b16 %v2745, %v2744
      %v2759 = vpack.c.b16 %v2747, %v2746
      %v2760 = vpack.c.b16 %v2749, %v2748
      %v2761 = vpack.c.b16 %v2751, %v2750
      %v2762 = vpack.c.b16 %v2753, %v2752
      %v2763 = vpack.c.b16 %v2755, %v2754
      %2772 = vmatpush.bf16.msra.mxu0 %v2763
      %2773 = vmatpush.bf16.msra.mxu0 %v2762
      %2774 = vmatpush.bf16.msra.mxu0 %v2761
      %2775 = vmatpush.bf16.msra.mxu0 %v2760
      %2776 = vmatpush.bf16.msra.mxu0 %v2759
      %2777 = vmatpush.bf16.msra.mxu0 %v2758
      %2778 = vmatpush.bf16.msra.mxu0 %v2757
      %2779 = vmatpush.bf16.msra.mxu0 %v2756
      %2780 = vmatmul.bf16.gmra.mxu0 %v616
      %v2781 = vpop.f32.mrf.mxu0
      %v2782 = vadd.f32 0.0, %v2781
      %v2783 = vpop.f32.mrf.mxu0
      %v2784 = vadd.f32 0.0, %v2783
      %2785 = vmatmul.bf16.gmra.mxu0 %v617
      %v2786 = vpop.f32.mrf.mxu0
      %v2787 = vadd.f32 0.0, %v2786
      %v2788 = vpop.f32.mrf.mxu0
      %v2789 = vadd.f32 0.0, %v2788
      %2790 = vmatmul.bf16.gmra.mxu0 %v618
      %v2791 = vpop.f32.mrf.mxu0
      %v2792 = vadd.f32 0.0, %v2791
      %v2793 = vpop.f32.mrf.mxu0
      %v2794 = vadd.f32 0.0, %v2793
      %2795 = vmatmul.bf16.gmra.mxu0 %v619
      %v2796 = vpop.f32.mrf.mxu0
      %v2797 = vadd.f32 0.0, %v2796
      %v2798 = vpop.f32.mrf.mxu0
      %v2799 = vadd.f32 0.0, %v2798
      %2800 = vmatmul.bf16.gmra.mxu0 %v620
      %v2801 = vpop.f32.mrf.mxu0
      %v2802 = vadd.f32 0.0, %v2801
      %v2803 = vpop.f32.mrf.mxu0
      %v2804 = vadd.f32 0.0, %v2803
      %2805 = vmatmul.bf16.gmra.mxu0 %v621
      %v2806 = vpop.f32.mrf.mxu0
      %v2807 = vadd.f32 0.0, %v2806
      %v2808 = vpop.f32.mrf.mxu0
      %v2809 = vadd.f32 0.0, %v2808
      %2810 = vmatmul.bf16.gmra.mxu0 %v622
      %v2811 = vpop.f32.mrf.mxu0
      %v2812 = vadd.f32 0.0, %v2811
      %v2813 = vpop.f32.mrf.mxu0
      %v2814 = vadd.f32 0.0, %v2813
      %2815 = vmatmul.bf16.gmra.mxu0 %v623
      %v2816 = vpop.f32.mrf.mxu0
      %v2817 = vadd.f32 0.0, %v2816
      %v2818 = vpop.f32.mrf.mxu0
      %v2819 = vadd.f32 0.0, %v2818
      %2820 = vmatmul.bf16.gmra.mxu0 %v624
      %v2821 = vpop.f32.mrf.mxu0
      %v2822 = vadd.f32 0.0, %v2821
      %v2823 = vpop.f32.mrf.mxu0
      %v2824 = vadd.f32 0.0, %v2823
      %2825 = vmatmul.bf16.gmra.mxu0 %v625
      %v2826 = vpop.f32.mrf.mxu0
      %v2827 = vadd.f32 0.0, %v2826
      %v2828 = vpop.f32.mrf.mxu0
      %v2829 = vadd.f32 0.0, %v2828
      %2830 = vmatmul.bf16.gmra.mxu0 %v626
      %v2831 = vpop.f32.mrf.mxu0
      %v2832 = vadd.f32 0.0, %v2831
      %v2833 = vpop.f32.mrf.mxu0
      %v2834 = vadd.f32 0.0, %v2833
      %2835 = vmatmul.bf16.gmra.mxu0 %v627
      %v2836 = vpop.f32.mrf.mxu0
      %v2837 = vadd.f32 0.0, %v2836
      %v2838 = vpop.f32.mrf.mxu0
      %v2839 = vadd.f32 0.0, %v2838
      %2840 = vmatmul.bf16.gmra.mxu0 %v628
      %v2841 = vpop.f32.mrf.mxu0
      %v2842 = vadd.f32 0.0, %v2841
      %v2843 = vpop.f32.mrf.mxu0
      %v2844 = vadd.f32 0.0, %v2843
      %2845 = vmatmul.bf16.gmra.mxu0 %v629
      %v2846 = vpop.f32.mrf.mxu0
      %v2847 = vadd.f32 0.0, %v2846
      %v2848 = vpop.f32.mrf.mxu0
      %v2849 = vadd.f32 0.0, %v2848
      %2850 = vmatmul.bf16.gmra.mxu0 %v630
      %v2851 = vpop.f32.mrf.mxu0
      %v2852 = vadd.f32 0.0, %v2851
      %v2853 = vpop.f32.mrf.mxu0
      %v2854 = vadd.f32 0.0, %v2853
      %2855 = vmatmul.bf16.gmra.mxu0 %v631
      %v2856 = vpop.f32.mrf.mxu0
      %v2857 = vadd.f32 0.0, %v2856
      %v2858 = vpop.f32.mrf.mxu0
      %v2859 = vadd.f32 0.0, %v2858
      %2860 = vdwg.mxu0
      %2861 = vset.pattern.permute.xlu0 6
      %2862 = vperm.xlu0 %2861, %v457
      %v2863 = vpop.permute.xlu0 %2862
      %2865 = vset.pattern.permute.xlu0 6
      %2866 = vperm.xlu0 %2865, %v459
      %v2867 = vpop.permute.xlu0 %2866
      %2869 = vset.pattern.permute.xlu0 6
      %2870 = vperm.xlu0 %2869, %v462
      %v2871 = vpop.permute.xlu0 %2870
      %2873 = vset.pattern.permute.xlu0 6
      %2874 = vperm.xlu0 %2873, %v464
      %v2875 = vpop.permute.xlu0 %2874
      %2877 = vset.pattern.permute.xlu0 6
      %2878 = vperm.xlu0 %2877, %v467
      %v2879 = vpop.permute.xlu0 %2878
      %2881 = vset.pattern.permute.xlu0 6
      %2882 = vperm.xlu0 %2881, %v469
      %v2883 = vpop.permute.xlu0 %2882
      %2885 = vset.pattern.permute.xlu0 6
      %2886 = vperm.xlu0 %2885, %v472
      %v2887 = vpop.permute.xlu0 %2886
      %2889 = vset.pattern.permute.xlu0 6
      %2890 = vperm.xlu0 %2889, %v474
      %v2891 = vpop.permute.xlu0 %2890
      %2893 = vset.pattern.permute.xlu0 6
      %2894 = vperm.xlu0 %2893, %v477
      %v2895 = vpop.permute.xlu0 %2894
      %2897 = vset.pattern.permute.xlu0 6
      %2898 = vperm.xlu0 %2897, %v479
      %v2899 = vpop.permute.xlu0 %2898
      %2901 = vset.pattern.permute.xlu0 6
      %2902 = vperm.xlu0 %2901, %v482
      %v2903 = vpop.permute.xlu0 %2902
      %2905 = vset.pattern.permute.xlu0 6
      %2906 = vperm.xlu0 %2905, %v484
      %v2907 = vpop.permute.xlu0 %2906
      %2909 = vset.pattern.permute.xlu0 6
      %2910 = vperm.xlu0 %2909, %v487
      %v2911 = vpop.permute.xlu0 %2910
      %2913 = vset.pattern.permute.xlu0 6
      %2914 = vperm.xlu0 %2913, %v489
      %v2915 = vpop.permute.xlu0 %2914
      %2917 = vset.pattern.permute.xlu0 6
      %2918 = vperm.xlu0 %2917, %v492
      %v2919 = vpop.permute.xlu0 %2918
      %2921 = vset.pattern.permute.xlu0 6
      %2922 = vperm.xlu0 %2921, %v494
      %v2923 = vpop.permute.xlu0 %2922
      %2925 = vset.pattern.permute.xlu0 6
      %2926 = vperm.xlu0 %2925, %v497
      %v2927 = vpop.permute.xlu0 %2926
      %2929 = vset.pattern.permute.xlu0 6
      %2930 = vperm.xlu0 %2929, %v499
      %v2931 = vpop.permute.xlu0 %2930
      %2933 = vset.pattern.permute.xlu0 6
      %2934 = vperm.xlu0 %2933, %v502
      %v2935 = vpop.permute.xlu0 %2934
      %2937 = vset.pattern.permute.xlu0 6
      %2938 = vperm.xlu0 %2937, %v504
      %v2939 = vpop.permute.xlu0 %2938
      %2941 = vset.pattern.permute.xlu0 6
      %2942 = vperm.xlu0 %2941, %v507
      %v2943 = vpop.permute.xlu0 %2942
      %2945 = vset.pattern.permute.xlu0 6
      %2946 = vperm.xlu0 %2945, %v509
      %v2947 = vpop.permute.xlu0 %2946
      %2949 = vset.pattern.permute.xlu0 6
      %2950 = vperm.xlu0 %2949, %v512
      %v2951 = vpop.permute.xlu0 %2950
      %2953 = vset.pattern.permute.xlu0 6
      %2954 = vperm.xlu0 %2953, %v514
      %v2955 = vpop.permute.xlu0 %2954
      %2957 = vset.pattern.permute.xlu0 6
      %2958 = vperm.xlu0 %2957, %v517
      %v2959 = vpop.permute.xlu0 %2958
      %2961 = vset.pattern.permute.xlu0 6
      %2962 = vperm.xlu0 %2961, %v519
      %v2963 = vpop.permute.xlu0 %2962
      %2965 = vset.pattern.permute.xlu0 6
      %2966 = vperm.xlu0 %2965, %v522
      %v2967 = vpop.permute.xlu0 %2966
      %2969 = vset.pattern.permute.xlu0 6
      %2970 = vperm.xlu0 %2969, %v524
      %v2971 = vpop.permute.xlu0 %2970
      %2973 = vset.pattern.permute.xlu0 6
      %2974 = vperm.xlu0 %2973, %v527
      %v2975 = vpop.permute.xlu0 %2974
      %2977 = vset.pattern.permute.xlu0 6
      %2978 = vperm.xlu0 %2977, %v529
      %v2979 = vpop.permute.xlu0 %2978
      %2981 = vset.pattern.permute.xlu0 6
      %2982 = vperm.xlu0 %2981, %v532
      %v2983 = vpop.permute.xlu0 %2982
      %2985 = vset.pattern.permute.xlu0 6
      %2986 = vperm.xlu0 %2985, %v534
      %v2987 = vpop.permute.xlu0 %2986
      %v2989 = vmul.f32 %v2863, %v2782
      %v2990 = vmul.f32 %v2867, %v2784
      %v2991 = vmul.f32 %v2871, %v2787
      %v2992 = vmul.f32 %v2875, %v2789
      %v2993 = vmul.f32 %v2879, %v2792
      %v2994 = vmul.f32 %v2883, %v2794
      %v2995 = vmul.f32 %v2887, %v2797
      %v2996 = vmul.f32 %v2891, %v2799
      %v2997 = vmul.f32 %v2895, %v2802
      %v2998 = vmul.f32 %v2899, %v2804
      %v2999 = vmul.f32 %v2903, %v2807
      %v3000 = vmul.f32 %v2907, %v2809
      %v3001 = vmul.f32 %v2911, %v2812
      %v3002 = vmul.f32 %v2915, %v2814
      %v3003 = vmul.f32 %v2919, %v2817
      %v3004 = vmul.f32 %v2923, %v2819
      %v3005 = vmul.f32 %v2927, %v2822
      %v3006 = vmul.f32 %v2931, %v2824
      %v3007 = vmul.f32 %v2935, %v2827
      %v3008 = vmul.f32 %v2939, %v2829
      %v3009 = vmul.f32 %v2943, %v2832
      %v3010 = vmul.f32 %v2947, %v2834
      %v3011 = vmul.f32 %v2951, %v2837
      %v3012 = vmul.f32 %v2955, %v2839
      %v3013 = vmul.f32 %v2959, %v2842
      %v3014 = vmul.f32 %v2963, %v2844
      %v3015 = vmul.f32 %v2967, %v2847
      %v3016 = vmul.f32 %v2971, %v2849
      %v3017 = vmul.f32 %v2975, %v2852
      %v3018 = vmul.f32 %v2979, %v2854
      %v3019 = vmul.f32 %v2983, %v2857
      %v3020 = vmul.f32 %v2987, %v2859
      %v3021 = vadd.f32 %v2675, %v2989
      %v3022 = vadd.f32 %v2676, %v2990
      %v3023 = vadd.f32 %v2677, %v2991
      %v3024 = vadd.f32 %v2678, %v2992
      %v3025 = vadd.f32 %v2679, %v2993
      %v3026 = vadd.f32 %v2680, %v2994
      %v3027 = vadd.f32 %v2681, %v2995
      %v3028 = vadd.f32 %v2682, %v2996
      %v3029 = vadd.f32 %v2683, %v2997
      %v3030 = vadd.f32 %v2684, %v2998
      %v3031 = vadd.f32 %v2685, %v2999
      %v3032 = vadd.f32 %v2686, %v3000
      %v3033 = vadd.f32 %v2687, %v3001
      %v3034 = vadd.f32 %v2688, %v3002
      %v3035 = vadd.f32 %v2689, %v3003
      %v3036 = vadd.f32 %v2690, %v3004
      %v3037 = vadd.f32 %v2691, %v3005
      %v3038 = vadd.f32 %v2692, %v3006
      %v3039 = vadd.f32 %v2693, %v3007
      %v3040 = vadd.f32 %v2694, %v3008
      %v3041 = vadd.f32 %v2695, %v3009
      %v3042 = vadd.f32 %v2696, %v3010
      %v3043 = vadd.f32 %v2697, %v3011
      %v3044 = vadd.f32 %v2698, %v3012
      %v3045 = vadd.f32 %v2699, %v3013
      %v3046 = vadd.f32 %v2700, %v3014
      %v3047 = vadd.f32 %v2701, %v3015
      %v3048 = vadd.f32 %v2702, %v3016
      %v3049 = vadd.f32 %v2703, %v3017
      %v3050 = vadd.f32 %v2704, %v3018
      %v3051 = vadd.f32 %v2705, %v3019
      %v3052 = vadd.f32 %v2706, %v3020
      %s3053 = scalar_lea.vmem %s3, 448
      %v3054 = vld [vmem:[%s3053] sm:$0xf]
      %v3055 = vld [vmem:[%s3053 + $0x4] sm:$0xf]
      %v3056 = vld [vmem:[%s3053 + $0x8] sm:$0xf]
      %v3057 = vld [vmem:[%s3053 + $0xc] sm:$0xf]
      %v3058 = vld [vmem:[%s3053 + $0x10] sm:$0xf]
      %v3059 = vld [vmem:[%s3053 + $0x14] sm:$0xf]
      %v3060 = vld [vmem:[%s3053 + $0x18] sm:$0xf]
      %v3061 = vld [vmem:[%s3053 + $0x1c] sm:$0xf]
      %v3062 = vld [vmem:[%s3053 + $0x20] sm:$0xf]
      %v3063 = vld [vmem:[%s3053 + $0x24] sm:$0xf]
      %v3064 = vld [vmem:[%s3053 + $0x28] sm:$0xf]
      %v3065 = vld [vmem:[%s3053 + $0x2c] sm:$0xf]
      %v3066 = vld [vmem:[%s3053 + $0x30] sm:$0xf]
      %v3067 = vld [vmem:[%s3053 + $0x34] sm:$0xf]
      %v3068 = vld [vmem:[%s3053 + $0x38] sm:$0xf]
      %v3069 = vld [vmem:[%s3053 + $0x3c] sm:$0xf]
      %v3086 = vunpack.c.l.b16 %v3054
      %v3087 = vunpack.c.l.b16 %v3055
      %v3088 = vunpack.c.l.b16 %v3056
      %v3089 = vunpack.c.l.b16 %v3057
      %v3090 = vunpack.c.l.b16 %v3058
      %v3091 = vunpack.c.l.b16 %v3059
      %v3092 = vunpack.c.l.b16 %v3060
      %v3093 = vunpack.c.l.b16 %v3061
      %v3094 = vunpack.c.l.b16 %v3062
      %v3095 = vunpack.c.l.b16 %v3063
      %v3096 = vunpack.c.l.b16 %v3064
      %v3097 = vunpack.c.l.b16 %v3065
      %v3098 = vunpack.c.l.b16 %v3066
      %v3099 = vunpack.c.l.b16 %v3067
      %v3100 = vunpack.c.l.b16 %v3068
      %v3101 = vunpack.c.l.b16 %v3069
      %v3102 = vpack.c.b16 %v3087, %v3086
      %v3103 = vpack.c.b16 %v3089, %v3088
      %v3104 = vpack.c.b16 %v3091, %v3090
      %v3105 = vpack.c.b16 %v3093, %v3092
      %v3106 = vpack.c.b16 %v3095, %v3094
      %v3107 = vpack.c.b16 %v3097, %v3096
      %v3108 = vpack.c.b16 %v3099, %v3098
      %v3109 = vpack.c.b16 %v3101, %v3100
      %3118 = vmatpush.bf16.msra.mxu0 %v3109
      %3119 = vmatpush.bf16.msra.mxu0 %v3108
      %3120 = vmatpush.bf16.msra.mxu0 %v3107
      %3121 = vmatpush.bf16.msra.mxu0 %v3106
      %3122 = vmatpush.bf16.msra.mxu0 %v3105
      %3123 = vmatpush.bf16.msra.mxu0 %v3104
      %3124 = vmatpush.bf16.msra.mxu0 %v3103
      %3125 = vmatpush.bf16.msra.mxu0 %v3102
      %3126 = vmatmul.bf16.gmra.mxu0 %v616
      %v3127 = vpop.f32.mrf.mxu0
      %v3128 = vadd.f32 0.0, %v3127
      %v3129 = vpop.f32.mrf.mxu0
      %v3130 = vadd.f32 0.0, %v3129
      %3131 = vmatmul.bf16.gmra.mxu0 %v617
      %v3132 = vpop.f32.mrf.mxu0
      %v3133 = vadd.f32 0.0, %v3132
      %v3134 = vpop.f32.mrf.mxu0
      %v3135 = vadd.f32 0.0, %v3134
      %3136 = vmatmul.bf16.gmra.mxu0 %v618
      %v3137 = vpop.f32.mrf.mxu0
      %v3138 = vadd.f32 0.0, %v3137
      %v3139 = vpop.f32.mrf.mxu0
      %v3140 = vadd.f32 0.0, %v3139
      %3141 = vmatmul.bf16.gmra.mxu0 %v619
      %v3142 = vpop.f32.mrf.mxu0
      %v3143 = vadd.f32 0.0, %v3142
      %v3144 = vpop.f32.mrf.mxu0
      %v3145 = vadd.f32 0.0, %v3144
      %3146 = vmatmul.bf16.gmra.mxu0 %v620
      %v3147 = vpop.f32.mrf.mxu0
      %v3148 = vadd.f32 0.0, %v3147
      %v3149 = vpop.f32.mrf.mxu0
      %v3150 = vadd.f32 0.0, %v3149
      %3151 = vmatmul.bf16.gmra.mxu0 %v621
      %v3152 = vpop.f32.mrf.mxu0
      %v3153 = vadd.f32 0.0, %v3152
      %v3154 = vpop.f32.mrf.mxu0
      %v3155 = vadd.f32 0.0, %v3154
      %3156 = vmatmul.bf16.gmra.mxu0 %v622
      %v3157 = vpop.f32.mrf.mxu0
      %v3158 = vadd.f32 0.0, %v3157
      %v3159 = vpop.f32.mrf.mxu0
      %v3160 = vadd.f32 0.0, %v3159
      %3161 = vmatmul.bf16.gmra.mxu0 %v623
      %v3162 = vpop.f32.mrf.mxu0
      %v3163 = vadd.f32 0.0, %v3162
      %v3164 = vpop.f32.mrf.mxu0
      %v3165 = vadd.f32 0.0, %v3164
      %3166 = vmatmul.bf16.gmra.mxu0 %v624
      %v3167 = vpop.f32.mrf.mxu0
      %v3168 = vadd.f32 0.0, %v3167
      %v3169 = vpop.f32.mrf.mxu0
      %v3170 = vadd.f32 0.0, %v3169
      %3171 = vmatmul.bf16.gmra.mxu0 %v625
      %v3172 = vpop.f32.mrf.mxu0
      %v3173 = vadd.f32 0.0, %v3172
      %v3174 = vpop.f32.mrf.mxu0
      %v3175 = vadd.f32 0.0, %v3174
      %3176 = vmatmul.bf16.gmra.mxu0 %v626
      %v3177 = vpop.f32.mrf.mxu0
      %v3178 = vadd.f32 0.0, %v3177
      %v3179 = vpop.f32.mrf.mxu0
      %v3180 = vadd.f32 0.0, %v3179
      %3181 = vmatmul.bf16.gmra.mxu0 %v627
      %v3182 = vpop.f32.mrf.mxu0
      %v3183 = vadd.f32 0.0, %v3182
      %v3184 = vpop.f32.mrf.mxu0
      %v3185 = vadd.f32 0.0, %v3184
      %3186 = vmatmul.bf16.gmra.mxu0 %v628
      %v3187 = vpop.f32.mrf.mxu0
      %v3188 = vadd.f32 0.0, %v3187
      %v3189 = vpop.f32.mrf.mxu0
      %v3190 = vadd.f32 0.0, %v3189
      %3191 = vmatmul.bf16.gmra.mxu0 %v629
      %v3192 = vpop.f32.mrf.mxu0
      %v3193 = vadd.f32 0.0, %v3192
      %v3194 = vpop.f32.mrf.mxu0
      %v3195 = vadd.f32 0.0, %v3194
      %3196 = vmatmul.bf16.gmra.mxu0 %v630
      %v3197 = vpop.f32.mrf.mxu0
      %v3198 = vadd.f32 0.0, %v3197
      %v3199 = vpop.f32.mrf.mxu0
      %v3200 = vadd.f32 0.0, %v3199
      %3201 = vmatmul.bf16.gmra.mxu0 %v631
      %v3202 = vpop.f32.mrf.mxu0
      %v3203 = vadd.f32 0.0, %v3202
      %v3204 = vpop.f32.mrf.mxu0
      %v3205 = vadd.f32 0.0, %v3204
      %3206 = vdwg.mxu0
      %3207 = vset.pattern.permute.xlu0 7
      %3208 = vperm.xlu0 %3207, %v457
      %v3209 = vpop.permute.xlu0 %3208
      %3211 = vset.pattern.permute.xlu0 7
      %3212 = vperm.xlu0 %3211, %v459
      %v3213 = vpop.permute.xlu0 %3212
      %3215 = vset.pattern.permute.xlu0 7
      %3216 = vperm.xlu0 %3215, %v462
      %v3217 = vpop.permute.xlu0 %3216
      %3219 = vset.pattern.permute.xlu0 7
      %3220 = vperm.xlu0 %3219, %v464
      %v3221 = vpop.permute.xlu0 %3220
      %3223 = vset.pattern.permute.xlu0 7
      %3224 = vperm.xlu0 %3223, %v467
      %v3225 = vpop.permute.xlu0 %3224
      %3227 = vset.pattern.permute.xlu0 7
      %3228 = vperm.xlu0 %3227, %v469
      %v3229 = vpop.permute.xlu0 %3228
      %3231 = vset.pattern.permute.xlu0 7
      %3232 = vperm.xlu0 %3231, %v472
      %v3233 = vpop.permute.xlu0 %3232
      %3235 = vset.pattern.permute.xlu0 7
      %3236 = vperm.xlu0 %3235, %v474
      %v3237 = vpop.permute.xlu0 %3236
      %3239 = vset.pattern.permute.xlu0 7
      %3240 = vperm.xlu0 %3239, %v477
      %v3241 = vpop.permute.xlu0 %3240
      %3243 = vset.pattern.permute.xlu0 7
      %3244 = vperm.xlu0 %3243, %v479
      %v3245 = vpop.permute.xlu0 %3244
      %3247 = vset.pattern.permute.xlu0 7
      %3248 = vperm.xlu0 %3247, %v482
      %v3249 = vpop.permute.xlu0 %3248
      %3251 = vset.pattern.permute.xlu0 7
      %3252 = vperm.xlu0 %3251, %v484
      %v3253 = vpop.permute.xlu0 %3252
      %3255 = vset.pattern.permute.xlu0 7
      %3256 = vperm.xlu0 %3255, %v487
      %v3257 = vpop.permute.xlu0 %3256
      %3259 = vset.pattern.permute.xlu0 7
      %3260 = vperm.xlu0 %3259, %v489
      %v3261 = vpop.permute.xlu0 %3260
      %3263 = vset.pattern.permute.xlu0 7
      %3264 = vperm.xlu0 %3263, %v492
      %v3265 = vpop.permute.xlu0 %3264
      %3267 = vset.pattern.permute.xlu0 7
      %3268 = vperm.xlu0 %3267, %v494
      %v3269 = vpop.permute.xlu0 %3268
      %3271 = vset.pattern.permute.xlu0 7
      %3272 = vperm.xlu0 %3271, %v497
      %v3273 = vpop.permute.xlu0 %3272
      %3275 = vset.pattern.permute.xlu0 7
      %3276 = vperm.xlu0 %3275, %v499
      %v3277 = vpop.permute.xlu0 %3276
      %3279 = vset.pattern.permute.xlu0 7
      %3280 = vperm.xlu0 %3279, %v502
      %v3281 = vpop.permute.xlu0 %3280
      %3283 = vset.pattern.permute.xlu0 7
      %3284 = vperm.xlu0 %3283, %v504
      %v3285 = vpop.permute.xlu0 %3284
      %3287 = vset.pattern.permute.xlu0 7
      %3288 = vperm.xlu0 %3287, %v507
      %v3289 = vpop.permute.xlu0 %3288
      %3291 = vset.pattern.permute.xlu0 7
      %3292 = vperm.xlu0 %3291, %v509
      %v3293 = vpop.permute.xlu0 %3292
      %3295 = vset.pattern.permute.xlu0 7
      %3296 = vperm.xlu0 %3295, %v512
      %v3297 = vpop.permute.xlu0 %3296
      %3299 = vset.pattern.permute.xlu0 7
      %3300 = vperm.xlu0 %3299, %v514
      %v3301 = vpop.permute.xlu0 %3300
      %3303 = vset.pattern.permute.xlu0 7
      %3304 = vperm.xlu0 %3303, %v517
      %v3305 = vpop.permute.xlu0 %3304
      %3307 = vset.pattern.permute.xlu0 7
      %3308 = vperm.xlu0 %3307, %v519
      %v3309 = vpop.permute.xlu0 %3308
      %3311 = vset.pattern.permute.xlu0 7
      %3312 = vperm.xlu0 %3311, %v522
      %v3313 = vpop.permute.xlu0 %3312
      %3315 = vset.pattern.permute.xlu0 7
      %3316 = vperm.xlu0 %3315, %v524
      %v3317 = vpop.permute.xlu0 %3316
      %3319 = vset.pattern.permute.xlu0 7
      %3320 = vperm.xlu0 %3319, %v527
      %v3321 = vpop.permute.xlu0 %3320
      %3323 = vset.pattern.permute.xlu0 7
      %3324 = vperm.xlu0 %3323, %v529
      %v3325 = vpop.permute.xlu0 %3324
      %3327 = vset.pattern.permute.xlu0 7
      %3328 = vperm.xlu0 %3327, %v532
      %v3329 = vpop.permute.xlu0 %3328
      %3331 = vset.pattern.permute.xlu0 7
      %3332 = vperm.xlu0 %3331, %v534
      %v3333 = vpop.permute.xlu0 %3332
      %v3335 = vmul.f32 %v3209, %v3128
      %v3336 = vmul.f32 %v3213, %v3130
      %v3337 = vmul.f32 %v3217, %v3133
      %v3338 = vmul.f32 %v3221, %v3135
      %v3339 = vmul.f32 %v3225, %v3138
      %v3340 = vmul.f32 %v3229, %v3140
      %v3341 = vmul.f32 %v3233, %v3143
      %v3342 = vmul.f32 %v3237, %v3145
      %v3343 = vmul.f32 %v3241, %v3148
      %v3344 = vmul.f32 %v3245, %v3150
      %v3345 = vmul.f32 %v3249, %v3153
      %v3346 = vmul.f32 %v3253, %v3155
      %v3347 = vmul.f32 %v3257, %v3158
      %v3348 = vmul.f32 %v3261, %v3160
      %v3349 = vmul.f32 %v3265, %v3163
      %v3350 = vmul.f32 %v3269, %v3165
      %v3351 = vmul.f32 %v3273, %v3168
      %v3352 = vmul.f32 %v3277, %v3170
      %v3353 = vmul.f32 %v3281, %v3173
      %v3354 = vmul.f32 %v3285, %v3175
      %v3355 = vmul.f32 %v3289, %v3178
      %v3356 = vmul.f32 %v3293, %v3180
      %v3357 = vmul.f32 %v3297, %v3183
      %v3358 = vmul.f32 %v3301, %v3185
      %v3359 = vmul.f32 %v3305, %v3188
      %v3360 = vmul.f32 %v3309, %v3190
      %v3361 = vmul.f32 %v3313, %v3193
      %v3362 = vmul.f32 %v3317, %v3195
      %v3363 = vmul.f32 %v3321, %v3198
      %v3364 = vmul.f32 %v3325, %v3200
      %v3365 = vmul.f32 %v3329, %v3203
      %v3366 = vmul.f32 %v3333, %v3205
      %v3367 = vadd.f32 %v3021, %v3335
      %v3368 = vadd.f32 %v3022, %v3336
      %v3369 = vadd.f32 %v3023, %v3337
      %v3370 = vadd.f32 %v3024, %v3338
      %v3371 = vadd.f32 %v3025, %v3339
      %v3372 = vadd.f32 %v3026, %v3340
      %v3373 = vadd.f32 %v3027, %v3341
      %v3374 = vadd.f32 %v3028, %v3342
      %v3375 = vadd.f32 %v3029, %v3343
      %v3376 = vadd.f32 %v3030, %v3344
      %v3377 = vadd.f32 %v3031, %v3345
      %v3378 = vadd.f32 %v3032, %v3346
      %v3379 = vadd.f32 %v3033, %v3347
      %v3380 = vadd.f32 %v3034, %v3348
      %v3381 = vadd.f32 %v3035, %v3349
      %v3382 = vadd.f32 %v3036, %v3350
      %v3383 = vadd.f32 %v3037, %v3351
      %v3384 = vadd.f32 %v3038, %v3352
      %v3385 = vadd.f32 %v3039, %v3353
      %v3386 = vadd.f32 %v3040, %v3354
      %v3387 = vadd.f32 %v3041, %v3355
      %v3388 = vadd.f32 %v3042, %v3356
      %v3389 = vadd.f32 %v3043, %v3357
      %v3390 = vadd.f32 %v3044, %v3358
      %v3391 = vadd.f32 %v3045, %v3359
      %v3392 = vadd.f32 %v3046, %v3360
      %v3393 = vadd.f32 %v3047, %v3361
      %v3394 = vadd.f32 %v3048, %v3362
      %v3395 = vadd.f32 %v3049, %v3363
      %v3396 = vadd.f32 %v3050, %v3364
      %v3397 = vadd.f32 %v3051, %v3365
      %v3398 = vadd.f32 %v3052, %v3366
      %v3399 = vpack.c.bf16 %v3367, %v3367
      %v3400 = vpack.c.bf16 %v3368, %v3368
      %v3401 = vpack.c.bf16 %v3369, %v3369
      %v3402 = vpack.c.bf16 %v3370, %v3370
      %v3403 = vpack.c.bf16 %v3371, %v3371
      %v3404 = vpack.c.bf16 %v3372, %v3372
      %v3405 = vpack.c.bf16 %v3373, %v3373
      %v3406 = vpack.c.bf16 %v3374, %v3374
      %v3407 = vpack.c.bf16 %v3375, %v3375
      %v3408 = vpack.c.bf16 %v3376, %v3376
      %v3409 = vpack.c.bf16 %v3377, %v3377
      %v3410 = vpack.c.bf16 %v3378, %v3378
      %v3411 = vpack.c.bf16 %v3379, %v3379
      %v3412 = vpack.c.bf16 %v3380, %v3380
      %v3413 = vpack.c.bf16 %v3381, %v3381
      %v3414 = vpack.c.bf16 %v3382, %v3382
      %v3415 = vpack.c.bf16 %v3383, %v3383
      %v3416 = vpack.c.bf16 %v3384, %v3384
      %v3417 = vpack.c.bf16 %v3385, %v3385
      %v3418 = vpack.c.bf16 %v3386, %v3386
      %v3419 = vpack.c.bf16 %v3387, %v3387
      %v3420 = vpack.c.bf16 %v3388, %v3388
      %v3421 = vpack.c.bf16 %v3389, %v3389
      %v3422 = vpack.c.bf16 %v3390, %v3390
      %v3423 = vpack.c.bf16 %v3391, %v3391
      %v3424 = vpack.c.bf16 %v3392, %v3392
      %v3425 = vpack.c.bf16 %v3393, %v3393
      %v3426 = vpack.c.bf16 %v3394, %v3394
      %v3427 = vpack.c.bf16 %v3395, %v3395
      %v3428 = vpack.c.bf16 %v3396, %v3396
      %v3429 = vpack.c.bf16 %v3397, %v3397
      %v3430 = vpack.c.bf16 %v3398, %v3398
      %3431 = vst [vmem:[%s221] sm:$0xf] %v3399
      %3432 = vst [vmem:[%s221 + $0x4] sm:$0xf] %v3400
      %3433 = vst [vmem:[%s221 + $0x8] sm:$0xf] %v3401
      %3434 = vst [vmem:[%s221 + $0xc] sm:$0xf] %v3402
      %3435 = vst [vmem:[%s221 + $0x10] sm:$0xf] %v3403
      %3436 = vst [vmem:[%s221 + $0x14] sm:$0xf] %v3404
      %3437 = vst [vmem:[%s221 + $0x18] sm:$0xf] %v3405
      %3438 = vst [vmem:[%s221 + $0x1c] sm:$0xf] %v3406
      %3439 = vst [vmem:[%s221 + $0x20] sm:$0xf] %v3407
      %3440 = vst [vmem:[%s221 + $0x24] sm:$0xf] %v3408
      %3441 = vst [vmem:[%s221 + $0x28] sm:$0xf] %v3409
      %3442 = vst [vmem:[%s221 + $0x2c] sm:$0xf] %v3410
      %3443 = vst [vmem:[%s221 + $0x30] sm:$0xf] %v3411
      %3444 = vst [vmem:[%s221 + $0x34] sm:$0xf] %v3412
      %3445 = vst [vmem:[%s221 + $0x38] sm:$0xf] %v3413
      %3446 = vst [vmem:[%s221 + $0x3c] sm:$0xf] %v3414
      %3447 = vst [vmem:[%s221 + $0x40] sm:$0xf] %v3415
      %3448 = vst [vmem:[%s221 + $0x44] sm:$0xf] %v3416
      %3449 = vst [vmem:[%s221 + $0x48] sm:$0xf] %v3417
      %3450 = vst [vmem:[%s221 + $0x4c] sm:$0xf] %v3418
      %3451 = vst [vmem:[%s221 + $0x50] sm:$0xf] %v3419
      %3452 = vst [vmem:[%s221 + $0x54] sm:$0xf] %v3420
      %3453 = vst [vmem:[%s221 + $0x58] sm:$0xf] %v3421
      %3454 = vst [vmem:[%s221 + $0x5c] sm:$0xf] %v3422
      %3455 = vst [vmem:[%s221 + $0x60] sm:$0xf] %v3423
      %3456 = vst [vmem:[%s221 + $0x64] sm:$0xf] %v3424
      %3457 = vst [vmem:[%s221 + $0x68] sm:$0xf] %v3425
      %3458 = vst [vmem:[%s221 + $0x6c] sm:$0xf] %v3426
      %3459 = vst [vmem:[%s221 + $0x70] sm:$0xf] %v3427
      %3460 = vst [vmem:[%s221 + $0x74] sm:$0xf] %v3428
      %3461 = vst [vmem:[%s221 + $0x78] sm:$0xf] %v3429
      %3462 = vst [vmem:[%s221 + $0x7c] sm:$0xf] %v3430
      %s3463 = smul.u32 32, %s15
      %p3464 = scmp.lt.s32.totalorder %s3463, 63
      %s3465 = scalar_select %p3464, %s3463, 63
      %s3466 = smul.addr %s3465, 4
      %s3467 = scalar_lea.vmem %s4, %s3466
      // Predicated region
      $region37: #{_forward_device.5} parent=35 // pred_check
        %p3468 = pneg %p127
      $region38: #{_forward_device.5} parent=35 // pred_check_branch
        %3470 = sbr.rel (%p3468) target = $region40
      $region39: #{_forward_device.5} parent=35 // pred_region
        %s3471 = smul.u32 32, %s15
      $region40: #{_forward_device.5} parent=35 // pred_fallthru
        _
    $region36: #{_forward_device.5} parent=5 // pred_fallthru
      _
    %p3472 = scmp.le.s32.totalorder 2, %s10
    // Predicated region
    $region41: #{_forward_device.5} parent=5 // pred_check
      %p3473 = pneg %p3472
    $region42: #{_forward_device.5} parent=5 // pred_check_branch
      %3475 = sbr.rel (%p3473) target = $region44
    $region43: #{_forward_device.5} parent=5 // pred_region
      %s3476 = ssub.s32 %s10, 2
      // Predicated region
      $region45: #{_forward_device.5} parent=43 // pred_check
        %p3477 = pneg %p133
      $region46: #{_forward_device.5} parent=43 // pred_check_branch
        %3479 = sbr.rel (%p3477) target = $region48
      $region47: #{_forward_device.5} parent=43 // pred_region
        %s3480 = smul.u32 32, %s16
        %p3481 = scmp.lt.s32.totalorder %s3480, 63
        %s3482 = scalar_select %p3481, %s3480, 63
        %s3483 = smul.addr %s3482, 4
        %s3484 = scalar_lea.vmem %s4, %s3483
      $region48: #{_forward_device.5} parent=43 // pred_fallthru
        _
    $region44: #{_forward_device.5} parent=5 // pred_fallthru
      _
  $region6: #{_forward_device.5} parent=0 // loop_footer
    %s14 = sadd.s32 1, %s10
  $region7: #{_forward_device.5} parent=0 // loop_footer_branch
    %9 = sbr.rel target = $region3
  $region8: #{_forward_device.5} parent=0 // loop_exit
    _

// kernel: _forward_device.7
$region0: #{_forward_device.7}
  #allocation0 [shape = 'u32[]', space=smem, size = 0x4, offset = 0x4, fixed_abs, tag = 'smem constant byte address 0x4 - core index']
  #allocation1 [shape = 'u32[72,128]{1,0:T(1,128)}', space=vmem, size = 0x9000, scoped, tag = 'internal scratch']
  %s0 = inlined_call_operand.vmem [shape: f32[2,8,128], index: 0, kind: input, shape index: {}]
  %s1 = inlined_call_operand.vmem [shape: bf16[2,2,128,128], index: 1, kind: input, shape index: {}]
  %s2 = inlined_call_operand.vmem [shape: f32[2,2,1,128], index: 2, kind: input, shape index: {}]
  %s3 = inlined_call_operand.vmem [shape: bf16[2,128,128], index: 3, kind: input, shape index: {}]
  %s4 = inlined_call_operand.vmem [shape: f32[8,128], index: 4, kind: output, shape index: {}]
  %s5 = sld [smem:[#allocation0]]
  $region26: #{_forward_device.7} parent=0
    _
  %s7 = ssub.s32 1, %s5
  %s8 = scalar_select 0, %s7, %s5
  // Predicated region
  $region2: #{_forward_device.7} parent=0 // pred_check
    _
  $region3: #{_forward_device.7} parent=0 // pred_check_branch
    %10 = sbr.rel (0) target = $region5
  $region4: #{_forward_device.7} parent=0 // pred_region
    _
  $region5: #{_forward_device.7} parent=0 // pred_fallthru
    _
  // Predicated region
  $region6: #{_forward_device.7} parent=0 // pred_check
    _
  $region7: #{_forward_device.7} parent=0 // pred_check_branch
    %12 = sbr.rel (0) target = $region9
  $region8: #{_forward_device.7} parent=0 // pred_region
    _
  $region9: #{_forward_device.7} parent=0 // pred_fallthru
    _
  // Predicated region
  $region10: #{_forward_device.7} parent=0 // pred_check
    _
  $region11: #{_forward_device.7} parent=0 // pred_check_branch
    %14 = sbr.rel (0) target = $region13
  $region12: #{_forward_device.7} parent=0 // pred_region
    _
  $region13: #{_forward_device.7} parent=0 // pred_fallthru
    _
  // Predicated region
  $region14: #{_forward_device.7} parent=0 // pred_check
    _
  $region15: #{_forward_device.7} parent=0 // pred_check_branch
    %16 = sbr.rel (0) target = $region17
  $region16: #{_forward_device.7} parent=0 // pred_region
    _
  $region17: #{_forward_device.7} parent=0 // pred_fallthru
    _
  %v17 = vld [vmem:[%s0] sm:$0xff]
  %v18 = vpack.c.bf16 %v17, %v17
  %v19 = vld [vmem:[%s1] sm:$0xf]
  %v20 = vld [vmem:[%s1 + $0x4] sm:$0xf]
  %v21 = vld [vmem:[%s1 + $0x8] sm:$0xf]
  %v22 = vld [vmem:[%s1 + $0xc] sm:$0xf]
  %v23 = vld [vmem:[%s1 + $0x10] sm:$0xf]
  %v24 = vld [vmem:[%s1 + $0x14] sm:$0xf]
  %v25 = vld [vmem:[%s1 + $0x18] sm:$0xf]
  %v26 = vld [vmem:[%s1 + $0x1c] sm:$0xf]
  %v27 = vld [vmem:[%s1 + $0x20] sm:$0xf]
  %v28 = vld [vmem:[%s1 + $0x24] sm:$0xf]
  %v29 = vld [vmem:[%s1 + $0x28] sm:$0xf]
  %v30 = vld [vmem:[%s1 + $0x2c] sm:$0xf]
  %v31 = vld [vmem:[%s1 + $0x30] sm:$0xf]
  %v32 = vld [vmem:[%s1 + $0x34] sm:$0xf]
  %v33 = vld [vmem:[%s1 + $0x38] sm:$0xf]
  %v34 = vld [vmem:[%s1 + $0x3c] sm:$0xf]
  %v35 = vld [vmem:[%s2] sm:$0x1]
  %v37 = vperm.slane %v35, 0
  %v55 = vunpack.c.l.b16 %v19
  %v56 = vunpack.c.l.b16 %v20
  %v57 = vunpack.c.l.b16 %v21
  %v58 = vunpack.c.l.b16 %v22
  %v59 = vunpack.c.l.b16 %v23
  %v60 = vunpack.c.l.b16 %v24
  %v61 = vunpack.c.l.b16 %v25
  %v62 = vunpack.c.l.b16 %v26
  %v63 = vunpack.c.l.b16 %v27
  %v64 = vunpack.c.l.b16 %v28
  %v65 = vunpack.c.l.b16 %v29
  %v66 = vunpack.c.l.b16 %v30
  %v67 = vunpack.c.l.b16 %v31
  %v68 = vunpack.c.l.b16 %v32
  %v69 = vunpack.c.l.b16 %v33
  %v70 = vunpack.c.l.b16 %v34
  %v71 = vpack.c.b16 %v56, %v55
  %v72 = vpack.c.b16 %v58, %v57
  %v73 = vpack.c.b16 %v60, %v59
  %v74 = vpack.c.b16 %v62, %v61
  %v75 = vpack.c.b16 %v64, %v63
  %v76 = vpack.c.b16 %v66, %v65
  %v77 = vpack.c.b16 %v68, %v67
  %v78 = vpack.c.b16 %v70, %v69
  %87 = vmatpush.bf16.msra.mxu0 %v78
  %88 = vmatpush.bf16.msra.mxu0 %v77
  %89 = vmatpush.bf16.msra.mxu0 %v76
  %90 = vmatpush.bf16.msra.mxu0 %v75
  %91 = vmatpush.bf16.msra.mxu0 %v74
  %92 = vmatpush.bf16.msra.mxu0 %v73
  %93 = vmatpush.bf16.msra.mxu0 %v72
  %94 = vmatpush.bf16.msra.mxu0 %v71
  %95 = vmatmul.bf16.gmra.mxu0 %v18
  %v96 = vpop.f32.mrf.mxu0
  %v97 = vadd.f32 %v37, %v96
  %v98 = vpop.f32.mrf.mxu0
  %99 = vdwg.mxu0
  %v100 = vsub.f32 0.0, %v97
  %v101 = vmul.f32 %v100, 1.442695
  %v102 = vpow.pop %v101
  %v103 = vadd.f32 %v102, 1.0
  %v104 = vrcp.pop %v103
  %v105 = vmul.f32 %v103, %v104
  %v106 = vsub.f32 1.0, %v105
  %v107 = vmul.f32 %v104, %v106
  %v108 = vadd.f32 %v104, %v107
  %vm109 = vweird.f32 %v103
  %vm110 = vweird.f32 %v104
  %vm111 = vmor %vm109, %vm110
  %v112 = vsel %vm111, %v104, %v108
  %v113 = vand.u32 2147483647, %v103
  %vm114 = vcmp.eq.f32.partialorder %v113, 8.507059e+37
  %v115 = vand.u32 %v103, 2147483648
  %v116 = vor.u32 1.1754944e-38, %v115
  %v117 = vsel %vm114, %v116, %v112
  %v118 = vmul.f32 1.0, %v117
  %v119 = vmul.f32 %v97, %v118
  %v120 = vpack.c.bf16 %v119, %v119
  %s121 = scalar_lea.vmem %s1, 64
  %v122 = vld [vmem:[%s121] sm:$0xf]
  %v123 = vld [vmem:[%s121 + $0x4] sm:$0xf]
  %v124 = vld [vmem:[%s121 + $0x8] sm:$0xf]
  %v125 = vld [vmem:[%s121 + $0xc] sm:$0xf]
  %v126 = vld [vmem:[%s121 + $0x10] sm:$0xf]
  %v127 = vld [vmem:[%s121 + $0x14] sm:$0xf]
  %v128 = vld [vmem:[%s121 + $0x18] sm:$0xf]
  %v129 = vld [vmem:[%s121 + $0x1c] sm:$0xf]
  %v130 = vld [vmem:[%s121 + $0x20] sm:$0xf]
  %v131 = vld [vmem:[%s121 + $0x24] sm:$0xf]
  %v132 = vld [vmem:[%s121 + $0x28] sm:$0xf]
  %v133 = vld [vmem:[%s121 + $0x2c] sm:$0xf]
  %v134 = vld [vmem:[%s121 + $0x30] sm:$0xf]
  %v135 = vld [vmem:[%s121 + $0x34] sm:$0xf]
  %v136 = vld [vmem:[%s121 + $0x38] sm:$0xf]
  %v137 = vld [vmem:[%s121 + $0x3c] sm:$0xf]
  %s138 = scalar_lea.vmem %s2, 1
  %v139 = vld [vmem:[%s138] sm:$0x1]
  %v141 = vperm.slane %v139, 0
  %v159 = vunpack.c.l.b16 %v122
  %v160 = vunpack.c.l.b16 %v123
  %v161 = vunpack.c.l.b16 %v124
  %v162 = vunpack.c.l.b16 %v125
  %v163 = vunpack.c.l.b16 %v126
  %v164 = vunpack.c.l.b16 %v127
  %v165 = vunpack.c.l.b16 %v128
  %v166 = vunpack.c.l.b16 %v129
  %v167 = vunpack.c.l.b16 %v130
  %v168 = vunpack.c.l.b16 %v131
  %v169 = vunpack.c.l.b16 %v132
  %v170 = vunpack.c.l.b16 %v133
  %v171 = vunpack.c.l.b16 %v134
  %v172 = vunpack.c.l.b16 %v135
  %v173 = vunpack.c.l.b16 %v136
  %v174 = vunpack.c.l.b16 %v137
  %v175 = vpack.c.b16 %v160, %v159
  %v176 = vpack.c.b16 %v162, %v161
  %v177 = vpack.c.b16 %v164, %v163
  %v178 = vpack.c.b16 %v166, %v165
  %v179 = vpack.c.b16 %v168, %v167
  %v180 = vpack.c.b16 %v170, %v169
  %v181 = vpack.c.b16 %v172, %v171
  %v182 = vpack.c.b16 %v174, %v173
  %191 = vmatpush.bf16.msra.mxu0 %v182
  %192 = vmatpush.bf16.msra.mxu0 %v181
  %193 = vmatpush.bf16.msra.mxu0 %v180
  %194 = vmatpush.bf16.msra.mxu0 %v179
  %195 = vmatpush.bf16.msra.mxu0 %v178
  %196 = vmatpush.bf16.msra.mxu0 %v177
  %197 = vmatpush.bf16.msra.mxu0 %v176
  %198 = vmatpush.bf16.msra.mxu0 %v175
  %199 = vmatmul.bf16.gmra.mxu0 %v120
  %v200 = vpop.f32.mrf.mxu0
  %v201 = vadd.f32 %v141, %v200
  %v202 = vpop.f32.mrf.mxu0
  %203 = vdwg.mxu0
  %v204 = vsub.f32 0.0, %v201
  %v205 = vmul.f32 %v204, 1.442695
  %v206 = vpow.pop %v205
  %v207 = vadd.f32 %v206, 1.0
  %v208 = vrcp.pop %v207
  %v209 = vmul.f32 %v207, %v208
  %v210 = vsub.f32 1.0, %v209
  %v211 = vmul.f32 %v208, %v210
  %v212 = vadd.f32 %v208, %v211
  %vm213 = vweird.f32 %v207
  %vm214 = vweird.f32 %v208
  %vm215 = vmor %vm213, %vm214
  %v216 = vsel %vm215, %v208, %v212
  %v217 = vand.u32 2147483647, %v207
  %vm218 = vcmp.eq.f32.partialorder %v217, 8.507059e+37
  %v219 = vand.u32 %v207, 2147483648
  %v220 = vor.u32 1.1754944e-38, %v219
  %v221 = vsel %vm218, %v220, %v216
  %v222 = vmul.f32 1.0, %v221
  %v223 = vmul.f32 %v201, %v222
  %v224 = vpack.c.bf16 %v223, %v223
  %v225 = vld [vmem:[%s3] sm:$0xf]
  %v226 = vld [vmem:[%s3 + $0x4] sm:$0xf]
  %v227 = vld [vmem:[%s3 + $0x8] sm:$0xf]
  %v228 = vld [vmem:[%s3 + $0xc] sm:$0xf]
  %v229 = vld [vmem:[%s3 + $0x10] sm:$0xf]
  %v230 = vld [vmem:[%s3 + $0x14] sm:$0xf]
  %v231 = vld [vmem:[%s3 + $0x18] sm:$0xf]
  %v232 = vld [vmem:[%s3 + $0x1c] sm:$0xf]
  %v233 = vld [vmem:[%s3 + $0x20] sm:$0xf]
  %v234 = vld [vmem:[%s3 + $0x24] sm:$0xf]
  %v235 = vld [vmem:[%s3 + $0x28] sm:$0xf]
  %v236 = vld [vmem:[%s3 + $0x2c] sm:$0xf]
  %v237 = vld [vmem:[%s3 + $0x30] sm:$0xf]
  %v238 = vld [vmem:[%s3 + $0x34] sm:$0xf]
  %v239 = vld [vmem:[%s3 + $0x38] sm:$0xf]
  %v240 = vld [vmem:[%s3 + $0x3c] sm:$0xf]
  %s241 = scalar_lea.vmem %s0, 8
  %v242 = vld [vmem:[%s241] sm:$0xff]
  %v243 = vpack.c.bf16 %v242, %v242
  %s244 = scalar_lea.vmem %s1, 128
  %v245 = vld [vmem:[%s244] sm:$0xf]
  %v246 = vld [vmem:[%s244 + $0x4] sm:$0xf]
  %v247 = vld [vmem:[%s244 + $0x8] sm:$0xf]
  %v248 = vld [vmem:[%s244 + $0xc] sm:$0xf]
  %v249 = vld [vmem:[%s244 + $0x10] sm:$0xf]
  %v250 = vld [vmem:[%s244 + $0x14] sm:$0xf]
  %v251 = vld [vmem:[%s244 + $0x18] sm:$0xf]
  %v252 = vld [vmem:[%s244 + $0x1c] sm:$0xf]
  %v253 = vld [vmem:[%s244 + $0x20] sm:$0xf]
  %v254 = vld [vmem:[%s244 + $0x24] sm:$0xf]
  %v255 = vld [vmem:[%s244 + $0x28] sm:$0xf]
  %v256 = vld [vmem:[%s244 + $0x2c] sm:$0xf]
  %v257 = vld [vmem:[%s244 + $0x30] sm:$0xf]
  %v258 = vld [vmem:[%s244 + $0x34] sm:$0xf]
  %v259 = vld [vmem:[%s244 + $0x38] sm:$0xf]
  %v260 = vld [vmem:[%s244 + $0x3c] sm:$0xf]
  %s261 = scalar_lea.vmem %s2, 2
  %v262 = vld [vmem:[%s261] sm:$0x1]
  %v264 = vperm.slane %v262, 0
  %v282 = vunpack.c.l.b16 %v245
  %v283 = vunpack.c.l.b16 %v246
  %v284 = vunpack.c.l.b16 %v247
  %v285 = vunpack.c.l.b16 %v248
  %v286 = vunpack.c.l.b16 %v249
  %v287 = vunpack.c.l.b16 %v250
  %v288 = vunpack.c.l.b16 %v251
  %v289 = vunpack.c.l.b16 %v252
  %v290 = vunpack.c.l.b16 %v253
  %v291 = vunpack.c.l.b16 %v254
  %v292 = vunpack.c.l.b16 %v255
  %v293 = vunpack.c.l.b16 %v256
  %v294 = vunpack.c.l.b16 %v257
  %v295 = vunpack.c.l.b16 %v258
  %v296 = vunpack.c.l.b16 %v259
  %v297 = vunpack.c.l.b16 %v260
  %v298 = vpack.c.b16 %v283, %v282
  %v299 = vpack.c.b16 %v285, %v284
  %v300 = vpack.c.b16 %v287, %v286
  %v301 = vpack.c.b16 %v289, %v288
  %v302 = vpack.c.b16 %v291, %v290
  %v303 = vpack.c.b16 %v293, %v292
  %v304 = vpack.c.b16 %v295, %v294
  %v305 = vpack.c.b16 %v297, %v296
  %314 = vmatpush.bf16.msra.mxu0 %v305
  %315 = vmatpush.bf16.msra.mxu0 %v304
  %316 = vmatpush.bf16.msra.mxu0 %v303
  %317 = vmatpush.bf16.msra.mxu0 %v302
  %318 = vmatpush.bf16.msra.mxu0 %v301
  %319 = vmatpush.bf16.msra.mxu0 %v300
  %320 = vmatpush.bf16.msra.mxu0 %v299
  %321 = vmatpush.bf16.msra.mxu0 %v298
  %322 = vmatmul.bf16.gmra.mxu0 %v243
  %v323 = vpop.f32.mrf.mxu0
  %v324 = vadd.f32 %v264, %v323
  %v325 = vpop.f32.mrf.mxu0
  %326 = vdwg.mxu0
  %v327 = vsub.f32 0.0, %v324
  %v328 = vmul.f32 %v327, 1.442695
  %v329 = vpow.pop %v328
  %v330 = vadd.f32 %v329, 1.0
  %v331 = vrcp.pop %v330
  %v332 = vmul.f32 %v330, %v331
  %v333 = vsub.f32 1.0, %v332
  %v334 = vmul.f32 %v331, %v333
  %v335 = vadd.f32 %v331, %v334
  %vm336 = vweird.f32 %v330
  %vm337 = vweird.f32 %v331
  %vm338 = vmor %vm336, %vm337
  %v339 = vsel %vm338, %v331, %v335
  %v340 = vand.u32 2147483647, %v330
  %vm341 = vcmp.eq.f32.partialorder %v340, 8.507059e+37
  %v342 = vand.u32 %v330, 2147483648
  %v343 = vor.u32 1.1754944e-38, %v342
  %v344 = vsel %vm341, %v343, %v339
  %v345 = vmul.f32 1.0, %v344
  %v346 = vmul.f32 %v324, %v345
  %v347 = vpack.c.bf16 %v346, %v346
  %s348 = scalar_lea.vmem %s1, 192
  %v349 = vld [vmem:[%s348] sm:$0xf]
  %v350 = vld [vmem:[%s348 + $0x4] sm:$0xf]
  %v351 = vld [vmem:[%s348 + $0x8] sm:$0xf]
  %v352 = vld [vmem:[%s348 + $0xc] sm:$0xf]
  %v353 = vld [vmem:[%s348 + $0x10] sm:$0xf]
  %v354 = vld [vmem:[%s348 + $0x14] sm:$0xf]
  %v355 = vld [vmem:[%s348 + $0x18] sm:$0xf]
  %v356 = vld [vmem:[%s348 + $0x1c] sm:$0xf]
  %v357 = vld [vmem:[%s348 + $0x20] sm:$0xf]
  %v358 = vld [vmem:[%s348 + $0x24] sm:$0xf]
  %v359 = vld [vmem:[%s348 + $0x28] sm:$0xf]
  %v360 = vld [vmem:[%s348 + $0x2c] sm:$0xf]
  %v361 = vld [vmem:[%s348 + $0x30] sm:$0xf]
  %v362 = vld [vmem:[%s348 + $0x34] sm:$0xf]
  %v363 = vld [vmem:[%s348 + $0x38] sm:$0xf]
  %v364 = vld [vmem:[%s348 + $0x3c] sm:$0xf]
  %s365 = scalar_lea.vmem %s2, 3
  %v366 = vld [vmem:[%s365] sm:$0x1]
  %v368 = vperm.slane %v366, 0
  %v386 = vunpack.c.l.b16 %v349
  %v387 = vunpack.c.l.b16 %v350
  %v388 = vunpack.c.l.b16 %v351
  %v389 = vunpack.c.l.b16 %v352
  %v390 = vunpack.c.l.b16 %v353
  %v391 = vunpack.c.l.b16 %v354
  %v392 = vunpack.c.l.b16 %v355
  %v393 = vunpack.c.l.b16 %v356
  %v394 = vunpack.c.l.b16 %v357
  %v395 = vunpack.c.l.b16 %v358
  %v396 = vunpack.c.l.b16 %v359
  %v397 = vunpack.c.l.b16 %v360
  %v398 = vunpack.c.l.b16 %v361
  %v399 = vunpack.c.l.b16 %v362
  %v400 = vunpack.c.l.b16 %v363
  %v401 = vunpack.c.l.b16 %v364
  %v402 = vpack.c.b16 %v387, %v386
  %v403 = vpack.c.b16 %v389, %v388
  %v404 = vpack.c.b16 %v391, %v390
  %v405 = vpack.c.b16 %v393, %v392
  %v406 = vpack.c.b16 %v395, %v394
  %v407 = vpack.c.b16 %v397, %v396
  %v408 = vpack.c.b16 %v399, %v398
  %v409 = vpack.c.b16 %v401, %v400
  %418 = vmatpush.bf16.msra.mxu0 %v409
  %419 = vmatpush.bf16.msra.mxu0 %v408
  %420 = vmatpush.bf16.msra.mxu0 %v407
  %421 = vmatpush.bf16.msra.mxu0 %v406
  %422 = vmatpush.bf16.msra.mxu0 %v405
  %423 = vmatpush.bf16.msra.mxu0 %v404
  %424 = vmatpush.bf16.msra.mxu0 %v403
  %425 = vmatpush.bf16.msra.mxu0 %v402
  %426 = vmatmul.bf16.gmra.mxu0 %v347
  %v427 = vpop.f32.mrf.mxu0
  %v428 = vadd.f32 %v368, %v427
  %v429 = vpop.f32.mrf.mxu0
  %430 = vdwg.mxu0
  %v431 = vsub.f32 0.0, %v428
  %v432 = vmul.f32 %v431, 1.442695
  %v433 = vpow.pop %v432
  %v434 = vadd.f32 %v433, 1.0
  %v435 = vrcp.pop %v434
  %v436 = vmul.f32 %v434, %v435
  %v437 = vsub.f32 1.0, %v436
  %v438 = vmul.f32 %v435, %v437
  %v439 = vadd.f32 %v435, %v438
  %vm440 = vweird.f32 %v434
  %vm441 = vweird.f32 %v435
  %vm442 = vmor %vm440, %vm441
  %v443 = vsel %vm442, %v435, %v439
  %v444 = vand.u32 2147483647, %v434
  %vm445 = vcmp.eq.f32.partialorder %v444, 8.507059e+37
  %v446 = vand.u32 %v434, 2147483648
  %v447 = vor.u32 1.1754944e-38, %v446
  %v448 = vsel %vm445, %v447, %v443
  %v449 = vmul.f32 1.0, %v448
  %v450 = vmul.f32 %v428, %v449
  %v451 = vpack.c.bf16 %v450, %v450
  %s452 = scalar_lea.vmem %s3, 64
  %v453 = vld [vmem:[%s452] sm:$0xf]
  %v454 = vld [vmem:[%s452 + $0x4] sm:$0xf]
  %v455 = vld [vmem:[%s452 + $0x8] sm:$0xf]
  %v456 = vld [vmem:[%s452 + $0xc] sm:$0xf]
  %v457 = vld [vmem:[%s452 + $0x10] sm:$0xf]
  %v458 = vld [vmem:[%s452 + $0x14] sm:$0xf]
  %v459 = vld [vmem:[%s452 + $0x18] sm:$0xf]
  %v460 = vld [vmem:[%s452 + $0x1c] sm:$0xf]
  %v461 = vld [vmem:[%s452 + $0x20] sm:$0xf]
  %v462 = vld [vmem:[%s452 + $0x24] sm:$0xf]
  %v463 = vld [vmem:[%s452 + $0x28] sm:$0xf]
  %v464 = vld [vmem:[%s452 + $0x2c] sm:$0xf]
  %v465 = vld [vmem:[%s452 + $0x30] sm:$0xf]
  %v466 = vld [vmem:[%s452 + $0x34] sm:$0xf]
  %v467 = vld [vmem:[%s452 + $0x38] sm:$0xf]
  %v468 = vld [vmem:[%s452 + $0x3c] sm:$0xf]
  %v485 = vunpack.c.l.b16 %v453
  %v486 = vunpack.c.l.b16 %v454
  %v487 = vunpack.c.l.b16 %v455
  %v488 = vunpack.c.l.b16 %v456
  %v489 = vunpack.c.l.b16 %v457
  %v490 = vunpack.c.l.b16 %v458
  %v491 = vunpack.c.l.b16 %v459
  %v492 = vunpack.c.l.b16 %v460
  %v493 = vunpack.c.l.b16 %v461
  %v494 = vunpack.c.l.b16 %v462
  %v495 = vunpack.c.l.b16 %v463
  %v496 = vunpack.c.l.b16 %v464
  %v497 = vunpack.c.l.b16 %v465
  %v498 = vunpack.c.l.b16 %v466
  %v499 = vunpack.c.l.b16 %v467
  %v500 = vunpack.c.l.b16 %v468
  %v501 = vpack.c.b16 %v486, %v485
  %v502 = vpack.c.b16 %v488, %v487
  %v503 = vpack.c.b16 %v490, %v489
  %v504 = vpack.c.b16 %v492, %v491
  %v505 = vpack.c.b16 %v494, %v493
  %v506 = vpack.c.b16 %v496, %v495
  %v507 = vpack.c.b16 %v498, %v497
  %v508 = vpack.c.b16 %v500, %v499
  %517 = vmatpush.bf16.msra.mxu0 %v508
  %518 = vmatpush.bf16.msra.mxu0 %v507
  %519 = vmatpush.bf16.msra.mxu0 %v506
  %520 = vmatpush.bf16.msra.mxu0 %v505
  %521 = vmatpush.bf16.msra.mxu0 %v504
  %522 = vmatpush.bf16.msra.mxu0 %v503
  %523 = vmatpush.bf16.msra.mxu0 %v502
  %524 = vmatpush.bf16.msra.mxu0 %v501
  %525 = vmatmul.bf16.gmra.mxu0 %v451
  %v526 = vpop.f32.mrf.mxu0
  %v527 = vadd.f32 0.0, %v526
  %v528 = vpop.f32.mrf.mxu0
  %529 = vdwg.mxu0
  %v546 = vunpack.c.l.b16 %v225
  %v547 = vunpack.c.l.b16 %v226
  %v548 = vunpack.c.l.b16 %v227
  %v549 = vunpack.c.l.b16 %v228
  %v550 = vunpack.c.l.b16 %v229
  %v551 = vunpack.c.l.b16 %v230
  %v552 = vunpack.c.l.b16 %v231
  %v553 = vunpack.c.l.b16 %v232
  %v554 = vunpack.c.l.b16 %v233
  %v555 = vunpack.c.l.b16 %v234
  %v556 = vunpack.c.l.b16 %v235
  %v557 = vunpack.c.l.b16 %v236
  %v558 = vunpack.c.l.b16 %v237
  %v559 = vunpack.c.l.b16 %v238
  %v560 = vunpack.c.l.b16 %v239
  %v561 = vunpack.c.l.b16 %v240
  %v562 = vpack.c.b16 %v547, %v546
  %v563 = vpack.c.b16 %v549, %v548
  %v564 = vpack.c.b16 %v551, %v550
  %v565 = vpack.c.b16 %v553, %v552
  %v566 = vpack.c.b16 %v555, %v554
  %v567 = vpack.c.b16 %v557, %v556
  %v568 = vpack.c.b16 %v559, %v558
  %v569 = vpack.c.b16 %v561, %v560
  %578 = vmatpush.bf16.msra.mxu0 %v569
  %579 = vmatpush.bf16.msra.mxu0 %v568
  %580 = vmatpush.bf16.msra.mxu0 %v567
  %581 = vmatpush.bf16.msra.mxu0 %v566
  %582 = vmatpush.bf16.msra.mxu0 %v565
  %583 = vmatpush.bf16.msra.mxu0 %v564
  %584 = vmatpush.bf16.msra.mxu0 %v563
  %585 = vmatpush.bf16.msra.mxu0 %v562
  %586 = vmatmul.bf16.gmra.mxu0 %v224
  %v587 = vpop.f32.mrf.mxu0
  %v588 = vadd.f32 %v527, %v587
  %v589 = vpop.f32.mrf.mxu0
  %590 = vdwg.mxu0
  %591 = vst [vmem:[%s4] sm:$0xff] %v588
  // Predicated region
  $region18: #{_forward_device.7} parent=0 // pred_check
    _
  $region19: #{_forward_device.7} parent=0 // pred_check_branch
    %593 = sbr.rel (0) target = $region21
  $region20: #{_forward_device.7} parent=0 // pred_region
    _
  $region21: #{_forward_device.7} parent=0 // pred_fallthru
    _
  // Predicated region
  $region22: #{_forward_device.7} parent=0 // pred_check
    _
  $region23: #{_forward_device.7} parent=0 // pred_check_branch
    %595 = sbr.rel (0) target = $region25
  $region24: #{_forward_device.7} parent=0 // pred_region
    _
  $region25: #{_forward_device.7} parent=0 // pred_fallthru
    _

</llo_original>
